<compile_context>
chip_gen: v6e
topology: v6e:2x2x1
jax: 0.10.0
libtpu: 0.0.40
codegen_flags: <defaults>
</compile_context>

<pallas_src>
import numpy as np
import jax
import jax.numpy as jnp
from jax import lax
from jax.experimental import pallas as pl
from jax.experimental.pallas import tpu as pltpu

# --- small config, structurally faithful to the Qwen2.5-VL text decoder layer ---
T = 16                         # total_tokens
NUM_HEADS = 4                  # num_attention_heads
NUM_KV_HEADS = 2               # num_key_value_heads
HEAD_DIM = 128                 # real Qwen2.5-VL head_dim -> 128-lane-aligned heads
HIDDEN = NUM_HEADS * HEAD_DIM  # 512 (lane-dense output, multiple of 128)
INTERMEDIATE = 1024            # intermediate_size (toy)
MROPE_SECTION = (16, 24, 24)   # real Qwen2.5-VL values; sums to HEAD_DIM // 2
RMS_EPS = 1e-6
SCALE = HEAD_DIM ** -0.5
KV_GROUPS = NUM_HEADS // NUM_KV_HEADS
DQ = NUM_HEADS * HEAD_DIM      # 512
DK = NUM_KV_HEADS * HEAD_DIM   # 256
DV = NUM_KV_HEADS * HEAD_DIM   # 256
HALF = HEAD_DIM // 2           # 64
TQ = 8                         # query-token tile -> "parallel" grid axis
assert T % TQ == 0 and (TQ & (TQ - 1)) == 0 and TQ % 8 == 0


# ----------------------------- one-time preprocessing (plain-JAX glue) -----------------------------
def build_mrope_tables(cos, sin, mrope_section):
    """cos/sin: [3, T, head_dim]; emulates torch split + interleaved concat."""
    sec = [s * 2 for s in mrope_section]
    offs = np.concatenate([[0], np.cumsum(sec)])
    cparts, sparts = [], []
    for i in range(len(sec)):
        sl = slice(int(offs[i]), int(offs[i + 1]))
        cparts.append(cos[i % 3, :, sl])
        sparts.append(sin[i % 3, :, sl])
    return jnp.concatenate(cparts, axis=-1), jnp.concatenate(sparts, axis=-1)


def prepare_rope(cos, sin):
    """Combine M-RoPE sections and fold the rotate-half sign into sin (tiny, per-sequence)."""
    cos_c, sin_c = build_mrope_tables(cos, sin, MROPE_SECTION)
    sign = jnp.concatenate([-jnp.ones((HALF,), jnp.float32),
                            jnp.ones((HALF,), jnp.float32)])
    return cos_c.astype(jnp.float32), (sin_c * sign[None, :]).astype(jnp.float32)


def prepare_params(p):
    """One-time per-model-load: fuse k|v and gate|up, cast weights to bf16.
    (Hoisted out of the forward call per the perf review.)"""
    return {
        "ln1": p["ln1_w"].reshape(1, HIDDEN).astype(jnp.float32),
        "ln2": p["ln2_w"].reshape(1, HIDDEN).astype(jnp.float32),
        "wq": p["wq"].astype(jnp.bfloat16),
        "bq": p["bq"].reshape(1, DQ).astype(jnp.float32),
        "wkv": jnp.concatenate([p["wk"], p["wv"]], axis=1).astype(jnp.bfloat16),
        "bkv": jnp.concatenate([p["bk"], p["bv"]]).reshape(1, DK + DV).astype(jnp.float32),
        "wo": p["wo"].astype(jnp.bfloat16),
        "wgu": jnp.concatenate([p["wg"], p["wu"]], axis=1).astype(jnp.bfloat16),
        "wd": p["wd"].astype(jnp.bfloat16),
    }


# ----------------------------- fused decoder-layer kernel -----------------------------
def _decoder_layer_kernel(x_ref, cos_ref, sins_ref, ln1_ref, ln2_ref,
                          wq_ref, bq_ref, wkv_ref, bkv_ref,
                          wo_ref, wgu_ref, wd_ref, o_ref):
    qi = pl.program_id(0)
    q_start = pl.multiple_of(qi * TQ, TQ)

    # Loads: full sequence for the K/V path, this query tile for the Q/residual path.
    x_full = x_ref[...].astype(jnp.float32)                       # (T, H)
    x_t = x_ref[pl.ds(q_start, TQ), :].astype(jnp.float32)        # (TQ, H)
    cos_f = cos_ref[...]                                          # (T, D) f32
    sins_f = sins_ref[...]                                        # sign-folded sin
    cos_t = cos_ref[pl.ds(q_start, TQ), :]
    sins_t = sins_ref[pl.ds(q_start, TQ), :]
    ln1 = ln1_ref[...]
    ln2 = ln2_ref[...]

    def rms_norm(y, w):                                           # f32 elementwise (v5e-safe)
        return y * lax.rsqrt(jnp.mean(y * y, axis=-1, keepdims=True) + RMS_EPS) * w

    def rope(xh, c, ss):
        # rotate_half(x) * sin == roll(x, D/2) * (sign-folded sin); roll rides the XLU slot.
        return xh * c + pltpu.roll(xh, HALF, 1) * ss

    # --- input RMSNorm; bf16 matmul operands, f32 accumulation ---
    h_t = rms_norm(x_t, ln1).astype(jnp.bfloat16)
    h_f = rms_norm(x_full, ln1).astype(jnp.bfloat16)

    # q for this query tile; fused k|v for the whole sequence (prefill).
    q_t = jnp.dot(h_t, wq_ref[...], preferred_element_type=jnp.float32) + bq_ref[...]
    kv_f = jnp.dot(h_f, wkv_ref[...], preferred_element_type=jnp.float32) + bkv_ref[...]

    # Causal mask for the group-stacked scores (rows = KV_GROUPS copies of the q tile).
    rows = lax.broadcasted_iota(jnp.int32, (KV_GROUPS * TQ, T), 0)
    cols = lax.broadcasted_iota(jnp.int32, (KV_GROUPS * TQ, T), 1)
    q_tok = q_start + jnp.bitwise_and(rows, TQ - 1)               # global query token index
    causal = cols <= q_tok

    # --- grouped causal GQA attention + per-head o_proj accumulation ---
    x1 = x_t                                                      # f32 residual accumulator
    for n in range(NUM_KV_HEADS):
        k_n = rope(kv_f[:, n * HEAD_DIM:(n + 1) * HEAD_DIM], cos_f, sins_f)       # (T, D)
        v_n = kv_f[:, DK + n * HEAD_DIM: DK + (n + 1) * HEAD_DIM]                 # (T, D)
        # Stack this kv head's KV_GROUPS query heads along rows -> one fat matmul.
        q_grp = jnp.concatenate(
            [rope(q_t[:, hd * HEAD_DIM:(hd + 1) * HEAD_DIM], cos_t, sins_t)
             for hd in range(n * KV_GROUPS, (n + 1) * KV_GROUPS)], axis=0)        # (G*TQ, D)
        s = lax.dot_general(q_grp.astype(jnp.bfloat16), k_n.astype(jnp.bfloat16),
                            (((1,), (1,)), ((), ())),
                            preferred_element_type=jnp.float32) * SCALE           # (G*TQ, T)
        s = jnp.where(causal, s, -1e30)
        m = jnp.max(s, axis=-1, keepdims=True)
        p = jnp.exp(s - m)
        p = p / jnp.sum(p, axis=-1, keepdims=True)                # exact divide (parity)
        o_grp = jnp.dot(p.astype(jnp.bfloat16), v_n.astype(jnp.bfloat16),
                        preferred_element_type=jnp.float32)       # (G*TQ, D)
        for g in range(KV_GROUPS):                                # o_proj, no lane concat
            hd = n * KV_GROUPS + g
            attn_h = o_grp[g * TQ:(g + 1) * TQ, :]                # sublane slice
            x1 = x1 + jnp.dot(attn_h.astype(jnp.bfloat16),
                              wo_ref[hd * HEAD_DIM:(hd + 1) * HEAD_DIM, :],
                              preferred_element_type=jnp.float32)

    # --- post-attention RMSNorm -> fused gate|up SwiGLU -> down_proj + residual ---
    h2 = rms_norm(x1, ln2).astype(jnp.bfloat16)
    gu = jnp.dot(h2, wgu_ref[...], preferred_element_type=jnp.float32)            # (TQ, 2I)
    g = gu[:, :INTERMEDIATE]
    u = gu[:, INTERMEDIATE:]
    act = (g / (1.0 + jnp.exp(-g))) * u                           # silu(gate) * up, f32
    out = x1 + jnp.dot(act.astype(jnp.bfloat16), wd_ref[...],
                       preferred_element_type=jnp.float32)
    o_ref[...] = out.astype(o_ref.dtype)
    # TODO(synk): the torch forward's logging / NaN-debug / DEBUG_SHAPES branch has no
    # kernel equivalent; cu_seqlens / max_seqlen / position_ids are not consumed by
    # SDPA(is_causal=True) and therefore not consumed here either.


# ----------------------------- wrapper -----------------------------
def decoder_layer(x, cos_c, sins_c, fp):
    t, h = x.shape
    n_q_tiles = t // TQ

    def full(shape):
        return pl.BlockSpec(shape, lambda i, _s=shape: (0,) * len(_s))

    return pl.pallas_call(
        _decoder_layer_kernel,
        out_shape=jax.ShapeDtypeStruct((t, h), x.dtype),
        grid=(n_q_tiles,),
        in_specs=[
            full((t, h)),                     # x (full; query-tile rows sliced in-kernel)
            full((t, HEAD_DIM)),              # combined M-RoPE cos
            full((t, HEAD_DIM)),              # sign-folded M-RoPE sin
            full((1, h)),                     # ln1 weight
            full((1, h)),                     # ln2 weight
            full((h, DQ)),                    # wq (bf16)
            full((1, DQ)),                    # bq (f32)
            full((h, DK + DV)),               # fused k|v weight (bf16)
            full((1, DK + DV)),               # fused k|v bias (f32)
            full((DQ, h)),                    # o_proj weight (bf16)
            full((h, 2 * INTERMEDIATE)),      # fused gate|up weight (bf16)
            full((INTERMEDIATE, h)),          # down_proj weight (bf16)
        ],
        out_specs=pl.BlockSpec((TQ, h), lambda i: (i, 0)),        # lane-dense (h = 4*128)
        compiler_params=pltpu.CompilerParams(
            dimension_semantics=("parallel",),                    # both v7x TCs get q tiles
            vmem_limit_bytes=48 * 1024 * 1024),                   # <= v7x 64 MiB physical
    )(x, cos_c, sins_c, fp["ln1"], fp["ln2"], fp["wq"], fp["bq"],
      fp["wkv"], fp["bkv"], fp["wo"], fp["wgu"], fp["wd"])


# ----------------------------- pure-JAX reference (mirrors kernel's bf16 cast points) -----------------------------
def reference(x, cos, sin, p):
    f32 = jnp.float32
    bf = lambda w: w.astype(jnp.bfloat16).astype(f32)
    rbf = lambda y: y.astype(jnp.bfloat16).astype(f32)

    def rms(y, w):
        return y * lax.rsqrt(jnp.mean(y * y, -1, keepdims=True) + RMS_EPS) * w

    xf = x.astype(f32)
    h = rbf(rms(xf, p["ln1_w"]))
    q = (h @ bf(p["wq"]) + p["bq"]).reshape(T, NUM_HEADS, HEAD_DIM)
    k = (h @ bf(p["wk"]) + p["bk"]).reshape(T, NUM_KV_HEADS, HEAD_DIM)
    v = (h @ bf(p["wv"]) + p["bv"]).reshape(T, NUM_KV_HEADS, HEAD_DIM)
    cos_c, sin_c = build_mrope_tables(cos, sin, MROPE_SECTION)

    def rope(t_):
        rot = jnp.concatenate([-t_[..., HALF:], t_[..., :HALF]], -1)
        return t_ * cos_c[:, None, :] + rot * sin_c[:, None, :]

    q, k = rope(q), rope(k)
    qh = jnp.transpose(q, (1, 0, 2))
    kh = jnp.repeat(jnp.transpose(k, (1, 0, 2)), KV_GROUPS, axis=0)
    vh = jnp.repeat(jnp.transpose(v, (1, 0, 2)), KV_GROUPS, axis=0)
    s = jnp.einsum("htd,hsd->hts", rbf(qh), rbf(kh)) * SCALE
    mask = jnp.tril(jnp.ones((T, T), bool))
    s = jnp.where(mask, s, -1e30)
    pw = jax.nn.softmax(s, -1)
    attn = jnp.einsum("hts,hsd->htd", rbf(pw), rbf(vh))
    attn = jnp.transpose(attn, (1, 0, 2)).reshape(T, NUM_HEADS * HEAD_DIM)
    x1 = xf + rbf(attn) @ bf(p["wo"])
    h2 = rbf(rms(x1, p["ln2_w"]))
    g = h2 @ bf(p["wg"])
    u = h2 @ bf(p["wu"])
    out = x1 + rbf(jax.nn.silu(g) * u) @ bf(p["wd"])
    return out.astype(jnp.bfloat16)


if __name__ == "__main__":
    key = jax.random.PRNGKey(0)
    ks = jax.random.split(key, 16)

    def init(k, shape, scale=0.05):
        return jax.random.normal(k, shape, jnp.float32) * scale

    params = {
        "ln1_w": jnp.ones((HIDDEN,), jnp.float32) + init(ks[0], (HIDDEN,), 0.01),
        "ln2_w": jnp.ones((HIDDEN,), jnp.float32) + init(ks[1], (HIDDEN,), 0.01),
        # weights stored as [in, out] (transposed nn.Linear layout)
        "wq": init(ks[2], (HIDDEN, DQ)),
        "bq": init(ks[3], (DQ,)),
        "wk": init(ks[4], (HIDDEN, DK)),
        "bk": init(ks[5], (DK,)),
        "wv": init(ks[6], (HIDDEN, DV)),
        "bv": init(ks[7], (DV,)),
        "wo": init(ks[8], (DQ, HIDDEN)),
        "wg": init(ks[9], (HIDDEN, INTERMEDIATE)),
        "wu": init(ks[10], (HIDDEN, INTERMEDIATE)),
        "wd": init(ks[11], (INTERMEDIATE, HIDDEN)),
    }

    x = jax.random.normal(ks[12], (T, HIDDEN), jnp.float32).astype(jnp.bfloat16)

    # M-RoPE cos/sin tables: [3, T, head_dim] (temporal / height / width phases)
    pos = jnp.arange(T, dtype=jnp.float32)
    pos3 = jnp.stack([pos, pos + 1.0, pos + 2.0], axis=0)                 # [3, T]
    inv_freq = 1.0 / (10000.0 ** (jnp.arange(0, HEAD_DIM, 2, dtype=jnp.float32) / HEAD_DIM))
    freqs = pos3[:, :, None] * inv_freq[None, None, :]                    # [3, T, D/2]
    emb = jnp.concatenate([freqs, freqs], axis=-1)                        # [3, T, D]
    cos, sin = jnp.cos(emb), jnp.sin(emb)

    # One-time parameter / rope-table preprocessing (hoisted out of the forward).
    fused = prepare_params(params)
    cos_c, sins_c = prepare_rope(cos, sin)

    out = decoder_layer(x, cos_c, sins_c, fused)
    out = jax.block_until_ready(out)

    ref = reference(x, cos, sin, params)
    np.testing.assert_allclose(np.asarray(out.astype(jnp.float32)),
                               np.asarray(ref.astype(jnp.float32)),
                               rtol=2e-2, atol=2e-2)
    print("KERNEL_OK")
</pallas_src>

<mosaic_0001>
module attributes {stable_mosaic.version = 11 : i64} {
  func.func @_decoder_layer_kernel(%arg0: i32, %arg1: memref<16x512xbf16, #tpu.memory_space<vmem>>, %arg2: memref<16x128xf32, #tpu.memory_space<vmem>>, %arg3: memref<16x128xf32, #tpu.memory_space<vmem>>, %arg4: memref<1x512xf32, #tpu.memory_space<vmem>>, %arg5: memref<1x512xf32, #tpu.memory_space<vmem>>, %arg6: memref<512x512xbf16, #tpu.memory_space<vmem>>, %arg7: memref<1x512xf32, #tpu.memory_space<vmem>>, %arg8: memref<512x512xbf16, #tpu.memory_space<vmem>>, %arg9: memref<1x512xf32, #tpu.memory_space<vmem>>, %arg10: memref<512x512xbf16, #tpu.memory_space<vmem>>, %arg11: memref<512x2048xbf16, #tpu.memory_space<vmem>>, %arg12: memref<1024x512xbf16, #tpu.memory_space<vmem>>, %arg13: memref<8x512xbf16, #tpu.memory_space<vmem>>) attributes {dimension_semantics = [#tpu.dimension_semantics<parallel>], iteration_bounds = array<i64: 2>, scalar_prefetch = 0 : i64, scratch_operands = 0 : i64, tpu.core_type = #tpu.core_type<tc>, window_params = [{pipeline_mode = #tpu.pipeline_mode<synchronous>, transform_indices = @transform_0, window_bounds = array<i64: 16, 512>}, {pipeline_mode = #tpu.pipeline_mode<synchronous>, transform_indices = @transform_1, window_bounds = array<i64: 16, 128>}, {pipeline_mode = #tpu.pipeline_mode<synchronous>, transform_indices = @transform_2, window_bounds = array<i64: 16, 128>}, {pipeline_mode = #tpu.pipeline_mode<synchronous>, transform_indices = @transform_3, window_bounds = array<i64: 1, 512>}, {pipeline_mode = #tpu.pipeline_mode<synchronous>, transform_indices = @transform_4, window_bounds = array<i64: 1, 512>}, {pipeline_mode = #tpu.pipeline_mode<synchronous>, transform_indices = @transform_5, window_bounds = array<i64: 512, 512>}, {pipeline_mode = #tpu.pipeline_mode<synchronous>, transform_indices = @transform_6, window_bounds = array<i64: 1, 512>}, {pipeline_mode = #tpu.pipeline_mode<synchronous>, transform_indices = @transform_7, window_bounds = array<i64: 512, 512>}, {pipeline_mode = #tpu.pipeline_mode<synchronous>, transform_indices = @transform_8, window_bounds = array<i64: 1, 512>}, {pipeline_mode = #tpu.pipeline_mode<synchronous>, transform_indices = @transform_9, window_bounds = array<i64: 512, 512>}, {pipeline_mode = #tpu.pipeline_mode<synchronous>, transform_indices = @transform_10, window_bounds = array<i64: 512, 2048>}, {pipeline_mode = #tpu.pipeline_mode<synchronous>, transform_indices = @transform_11, window_bounds = array<i64: 1024, 512>}, {transform_indices = @transform_12, window_bounds = array<i64: 8, 512>}]} {
    %c8_i32 = arith.constant 8 : i32
    %0 = arith.muli %arg0, %c8_i32 : i32
    %1 = tpu.assume_multiple %0, 8 : i32
    %c0 = arith.constant 0 : index
    %c0_0 = arith.constant 0 : index
    %2 = vector.load %arg1[%c0, %c0_0] : memref<16x512xbf16, #tpu.memory_space<vmem>>, vector<16x512xbf16>
    %3 = arith.extf %2 : vector<16x512xbf16> to vector<16x512xf32>
    %4 = arith.index_cast %1 : i32 to index
    %c0_1 = arith.constant 0 : index
    %5 = vector.load %arg1[%4, %c0_1] : memref<16x512xbf16, #tpu.memory_space<vmem>>, vector<8x512xbf16>
    %6 = arith.extf %5 : vector<8x512xbf16> to vector<8x512xf32>
    %c0_2 = arith.constant 0 : index
    %c0_3 = arith.constant 0 : index
    %7 = vector.load %arg2[%c0_2, %c0_3] : memref<16x128xf32, #tpu.memory_space<vmem>>, vector<16x128xf32>
    %c0_4 = arith.constant 0 : index
    %c0_5 = arith.constant 0 : index
    %8 = vector.load %arg3[%c0_4, %c0_5] : memref<16x128xf32, #tpu.memory_space<vmem>>, vector<16x128xf32>
    %9 = arith.index_cast %1 : i32 to index
    %c0_6 = arith.constant 0 : index
    %10 = vector.load %arg2[%9, %c0_6] : memref<16x128xf32, #tpu.memory_space<vmem>>, vector<8x128xf32>
    %11 = arith.index_cast %1 : i32 to index
    %c0_7 = arith.constant 0 : index
    %12 = vector.load %arg3[%11, %c0_7] : memref<16x128xf32, #tpu.memory_space<vmem>>, vector<8x128xf32>
    %c0_8 = arith.constant 0 : index
    %c0_9 = arith.constant 0 : index
    %13 = vector.load %arg4[%c0_8, %c0_9] : memref<1x512xf32, #tpu.memory_space<vmem>>, vector<1x512xf32>
    %c0_10 = arith.constant 0 : index
    %c0_11 = arith.constant 0 : index
    %14 = vector.load %arg5[%c0_10, %c0_11] : memref<1x512xf32, #tpu.memory_space<vmem>>, vector<1x512xf32>
    %15 = arith.mulf %6, %6 : vector<8x512xf32>
    %cst = arith.constant dense<0.000000e+00> : vector<8xf32>
    %16 = vector.multi_reduction <add>, %15, %cst [1] : vector<8x512xf32> to vector<8xf32>
    %17 = vector.shape_cast %16 : vector<8xf32> to vector<8x1xf32>
    %cst_12 = arith.constant 5.120000e+02 : f32
    %18 = vector.broadcast %cst_12 : f32 to vector<8x1xf32>
    %19 = arith.divf %17, %18 : vector<8x1xf32>
    %cst_13 = arith.constant 9.99999997E-7 : f32
    %20 = vector.broadcast %cst_13 : f32 to vector<8x1xf32>
    %21 = arith.addf %19, %20 : vector<8x1xf32>
    %22 = math.rsqrt %21 : vector<8x1xf32>
    %23 = vector.broadcast %22 : vector<8x1xf32> to vector<8x512xf32>
    %24 = arith.mulf %6, %23 : vector<8x512xf32>
    %25 = vector.broadcast %13 : vector<1x512xf32> to vector<8x512xf32>
    %26 = arith.mulf %24, %25 : vector<8x512xf32>
    %27 = arith.truncf %26 : vector<8x512xf32> to vector<8x512xbf16>
    %28 = arith.mulf %3, %3 : vector<16x512xf32>
    %cst_14 = arith.constant dense<0.000000e+00> : vector<16xf32>
    %29 = vector.multi_reduction <add>, %28, %cst_14 [1] : vector<16x512xf32> to vector<16xf32>
    %30 = vector.shape_cast %29 : vector<16xf32> to vector<16x1xf32>
    %cst_15 = arith.constant 5.120000e+02 : f32
    %31 = vector.broadcast %cst_15 : f32 to vector<16x1xf32>
    %32 = arith.divf %30, %31 : vector<16x1xf32>
    %cst_16 = arith.constant 9.99999997E-7 : f32
    %33 = vector.broadcast %cst_16 : f32 to vector<16x1xf32>
    %34 = arith.addf %32, %33 : vector<16x1xf32>
    %35 = math.rsqrt %34 : vector<16x1xf32>
    %36 = vector.broadcast %35 : vector<16x1xf32> to vector<16x512xf32>
    %37 = arith.mulf %3, %36 : vector<16x512xf32>
    %38 = vector.broadcast %13 : vector<1x512xf32> to vector<16x512xf32>
    %39 = arith.mulf %37, %38 : vector<16x512xf32>
    %40 = arith.truncf %39 : vector<16x512xf32> to vector<16x512xbf16>
    %c0_17 = arith.constant 0 : index
    %c0_18 = arith.constant 0 : index
    %41 = vector.load %arg6[%c0_17, %c0_18] : memref<512x512xbf16, #tpu.memory_space<vmem>>, vector<512x512xbf16>
    %cst_19 = arith.constant dense<0.000000e+00> : vector<8x512xf32>
    %42 = tpu.matmul %27, %41, %cst_19 {dimension_numbers = #tpu.dot_dimension_numbers<[1], [0], [0], [1], [0, 0, 1, 1], [], []>} : vector<8x512xbf16>, vector<512x512xbf16>, vector<8x512xf32> -> vector<8x512xf32>
    %c0_20 = arith.constant 0 : index
    %c0_21 = arith.constant 0 : index
    %43 = vector.load %arg7[%c0_20, %c0_21] : memref<1x512xf32, #tpu.memory_space<vmem>>, vector<1x512xf32>
    %44 = vector.broadcast %43 : vector<1x512xf32> to vector<8x512xf32>
    %45 = arith.addf %42, %44 : vector<8x512xf32>
    %c0_22 = arith.constant 0 : index
    %c0_23 = arith.constant 0 : index
    %46 = vector.load %arg8[%c0_22, %c0_23] : memref<512x512xbf16, #tpu.memory_space<vmem>>, vector<512x512xbf16>
    %cst_24 = arith.constant dense<0.000000e+00> : vector<16x512xf32>
    %47 = tpu.matmul %40, %46, %cst_24 {dimension_numbers = #tpu.dot_dimension_numbers<[1], [0], [0], [1], [0, 0, 1, 1], [], []>} : vector<16x512xbf16>, vector<512x512xbf16>, vector<16x512xf32> -> vector<16x512xf32>
    %c0_25 = arith.constant 0 : index
    %c0_26 = arith.constant 0 : index
    %48 = vector.load %arg9[%c0_25, %c0_26] : memref<1x512xf32, #tpu.memory_space<vmem>>, vector<1x512xf32>
    %49 = vector.broadcast %48 : vector<1x512xf32> to vector<16x512xf32>
    %50 = arith.addf %47, %49 : vector<16x512xf32>
    %51 = tpu.iota {dimensions = array<i32: 0>} : vector<16x16xi32>
    %52 = tpu.iota {dimensions = array<i32: 1>} : vector<16x16xi32>
    %c7_i32 = arith.constant 7 : i32
    %53 = vector.broadcast %c7_i32 : i32 to vector<16x16xi32>
    %54 = arith.andi %51, %53 : vector<16x16xi32>
    %55 = vector.broadcast %1 : i32 to vector<16x16xi32>
    %56 = arith.addi %55, %54 : vector<16x16xi32>
    %57 = arith.cmpi sle, %52, %56 : vector<16x16xi32>
    %58 = vector.extract_strided_slice %50 {offsets = [0, 0], sizes = [16, 128], strides = [1, 1]} : vector<16x512xf32> to vector<16x128xf32>
    %59 = arith.mulf %58, %7 : vector<16x128xf32>
    %c64_i32 = arith.constant 64 : i32
    %60 = tpu.dynamic_rotate %58 by %c64_i32 dim 1 : vector<16x128xf32>, i32 -> vector<16x128xf32>
    %61 = arith.mulf %60, %8 : vector<16x128xf32>
    %62 = arith.addf %59, %61 : vector<16x128xf32>
    %63 = vector.extract_strided_slice %50 {offsets = [0, 256], sizes = [16, 128], strides = [1, 1]} : vector<16x512xf32> to vector<16x128xf32>
    %64 = vector.extract_strided_slice %45 {offsets = [0, 0], sizes = [8, 128], strides = [1, 1]} : vector<8x512xf32> to vector<8x128xf32>
    %65 = arith.mulf %64, %10 : vector<8x128xf32>
    %c64_i32_27 = arith.constant 64 : i32
    %66 = tpu.dynamic_rotate %64 by %c64_i32_27 dim 1 : vector<8x128xf32>, i32 -> vector<8x128xf32>
    %67 = arith.mulf %66, %12 : vector<8x128xf32>
    %68 = arith.addf %65, %67 : vector<8x128xf32>
    %69 = vector.extract_strided_slice %45 {offsets = [0, 128], sizes = [8, 128], strides = [1, 1]} : vector<8x512xf32> to vector<8x128xf32>
    %70 = arith.mulf %69, %10 : vector<8x128xf32>
    %c64_i32_28 = arith.constant 64 : i32
    %71 = tpu.dynamic_rotate %69 by %c64_i32_28 dim 1 : vector<8x128xf32>, i32 -> vector<8x128xf32>
    %72 = arith.mulf %71, %12 : vector<8x128xf32>
    %73 = arith.addf %70, %72 : vector<8x128xf32>
    %74 = tpu.concatenate %68, %73 in 0 : vector<8x128xf32>, vector<8x128xf32> -> vector<16x128xf32>
    %75 = arith.truncf %74 : vector<16x128xf32> to vector<16x128xbf16>
    %76 = arith.truncf %62 : vector<16x128xf32> to vector<16x128xbf16>
    %cst_29 = arith.constant dense<0.000000e+00> : vector<16x16xf32>
    %77 = tpu.matmul %75, %76, %cst_29 {dimension_numbers = #tpu.dot_dimension_numbers<[1], [1], [0], [0], [0, 0, 1, 0], [], []>} : vector<16x128xbf16>, vector<16x128xbf16>, vector<16x16xf32> -> vector<16x16xf32>
    %cst_30 = arith.constant 0.0883883461 : f32
    %78 = vector.broadcast %cst_30 : f32 to vector<16x16xf32>
    %79 = arith.mulf %77, %78 : vector<16x16xf32>
    %cst_31 = arith.constant -1.000000e+30 : f32
    %80 = vector.broadcast %cst_31 : f32 to vector<16x16xf32>
    %81 = arith.select %57, %79, %80 : vector<16x16xi1>, vector<16x16xf32>
    %cst_32 = arith.constant dense<0xFF800000> : vector<16xf32>
    %82 = vector.multi_reduction <maximumf>, %81, %cst_32 [1] : vector<16x16xf32> to vector<16xf32>
    %83 = vector.shape_cast %82 : vector<16xf32> to vector<16x1xf32>
    %84 = vector.broadcast %83 : vector<16x1xf32> to vector<16x16xf32>
    %85 = arith.subf %81, %84 : vector<16x16xf32>
    %86 = math.exp %85 : vector<16x16xf32>
    %cst_33 = arith.constant dense<0.000000e+00> : vector<16xf32>
    %87 = vector.multi_reduction <add>, %86, %cst_33 [1] : vector<16x16xf32> to vector<16xf32>
    %88 = vector.shape_cast %87 : vector<16xf32> to vector<16x1xf32>
    %89 = vector.broadcast %88 : vector<16x1xf32> to vector<16x16xf32>
    %90 = arith.divf %86, %89 : vector<16x16xf32>
    %91 = arith.truncf %90 : vector<16x16xf32> to vector<16x16xbf16>
    %92 = arith.truncf %63 : vector<16x128xf32> to vector<16x128xbf16>
    %cst_34 = arith.constant dense<0.000000e+00> : vector<16x128xf32>
    %93 = tpu.matmul %91, %92, %cst_34 {dimension_numbers = #tpu.dot_dimension_numbers<[1], [0], [0], [1], [0, 0, 1, 1], [], []>} : vector<16x16xbf16>, vector<16x128xbf16>, vector<16x128xf32> -> vector<16x128xf32>
    %94 = vector.extract_strided_slice %93 {offsets = [0, 0], sizes = [8, 128], strides = [1, 1]} : vector<16x128xf32> to vector<8x128xf32>
    %95 = arith.truncf %94 : vector<8x128xf32> to vector<8x128xbf16>
    %c0_35 = arith.constant 0 : index
    %c0_36 = arith.constant 0 : index
    %96 = vector.load %arg10[%c0_35, %c0_36] : memref<512x512xbf16, #tpu.memory_space<vmem>>, vector<128x512xbf16>
    %cst_37 = arith.constant dense<0.000000e+00> : vector<8x512xf32>
    %97 = tpu.matmul %95, %96, %cst_37 {dimension_numbers = #tpu.dot_dimension_numbers<[1], [0], [0], [1], [0, 0, 1, 1], [], []>} : vector<8x128xbf16>, vector<128x512xbf16>, vector<8x512xf32> -> vector<8x512xf32>
    %98 = arith.addf %6, %97 : vector<8x512xf32>
    %99 = vector.extract_strided_slice %93 {offsets = [8, 0], sizes = [8, 128], strides = [1, 1]} : vector<16x128xf32> to vector<8x128xf32>
    %100 = arith.truncf %99 : vector<8x128xf32> to vector<8x128xbf16>
    %c128 = arith.constant 128 : index
    %c0_38 = arith.constant 0 : index
    %101 = vector.load %arg10[%c128, %c0_38] : memref<512x512xbf16, #tpu.memory_space<vmem>>, vector<128x512xbf16>
    %cst_39 = arith.constant dense<0.000000e+00> : vector<8x512xf32>
    %102 = tpu.matmul %100, %101, %cst_39 {dimension_numbers = #tpu.dot_dimension_numbers<[1], [0], [0], [1], [0, 0, 1, 1], [], []>} : vector<8x128xbf16>, vector<128x512xbf16>, vector<8x512xf32> -> vector<8x512xf32>
    %103 = arith.addf %98, %102 : vector<8x512xf32>
    %104 = vector.extract_strided_slice %50 {offsets = [0, 128], sizes = [16, 128], strides = [1, 1]} : vector<16x512xf32> to vector<16x128xf32>
    %105 = arith.mulf %104, %7 : vector<16x128xf32>
    %c64_i32_40 = arith.constant 64 : i32
    %106 = tpu.dynamic_rotate %104 by %c64_i32_40 dim 1 : vector<16x128xf32>, i32 -> vector<16x128xf32>
    %107 = arith.mulf %106, %8 : vector<16x128xf32>
    %108 = arith.addf %105, %107 : vector<16x128xf32>
    %109 = vector.extract_strided_slice %50 {offsets = [0, 384], sizes = [16, 128], strides = [1, 1]} : vector<16x512xf32> to vector<16x128xf32>
    %110 = vector.extract_strided_slice %45 {offsets = [0, 256], sizes = [8, 128], strides = [1, 1]} : vector<8x512xf32> to vector<8x128xf32>
    %111 = arith.mulf %110, %10 : vector<8x128xf32>
    %c64_i32_41 = arith.constant 64 : i32
    %112 = tpu.dynamic_rotate %110 by %c64_i32_41 dim 1 : vector<8x128xf32>, i32 -> vector<8x128xf32>
    %113 = arith.mulf %112, %12 : vector<8x128xf32>
    %114 = arith.addf %111, %113 : vector<8x128xf32>
    %115 = vector.extract_strided_slice %45 {offsets = [0, 384], sizes = [8, 128], strides = [1, 1]} : vector<8x512xf32> to vector<8x128xf32>
    %116 = arith.mulf %115, %10 : vector<8x128xf32>
    %c64_i32_42 = arith.constant 64 : i32
    %117 = tpu.dynamic_rotate %115 by %c64_i32_42 dim 1 : vector<8x128xf32>, i32 -> vector<8x128xf32>
    %118 = arith.mulf %117, %12 : vector<8x128xf32>
    %119 = arith.addf %116, %118 : vector<8x128xf32>
    %120 = tpu.concatenate %114, %119 in 0 : vector<8x128xf32>, vector<8x128xf32> -> vector<16x128xf32>
    %121 = arith.truncf %120 : vector<16x128xf32> to vector<16x128xbf16>
    %122 = arith.truncf %108 : vector<16x128xf32> to vector<16x128xbf16>
    %cst_43 = arith.constant dense<0.000000e+00> : vector<16x16xf32>
    %123 = tpu.matmul %121, %122, %cst_43 {dimension_numbers = #tpu.dot_dimension_numbers<[1], [1], [0], [0], [0, 0, 1, 0], [], []>} : vector<16x128xbf16>, vector<16x128xbf16>, vector<16x16xf32> -> vector<16x16xf32>
    %cst_44 = arith.constant 0.0883883461 : f32
    %124 = vector.broadcast %cst_44 : f32 to vector<16x16xf32>
    %125 = arith.mulf %123, %124 : vector<16x16xf32>
    %cst_45 = arith.constant -1.000000e+30 : f32
    %126 = vector.broadcast %cst_45 : f32 to vector<16x16xf32>
    %127 = arith.select %57, %125, %126 : vector<16x16xi1>, vector<16x16xf32>
    %cst_46 = arith.constant dense<0xFF800000> : vector<16xf32>
    %128 = vector.multi_reduction <maximumf>, %127, %cst_46 [1] : vector<16x16xf32> to vector<16xf32>
    %129 = vector.shape_cast %128 : vector<16xf32> to vector<16x1xf32>
    %130 = vector.broadcast %129 : vector<16x1xf32> to vector<16x16xf32>
    %131 = arith.subf %127, %130 : vector<16x16xf32>
    %132 = math.exp %131 : vector<16x16xf32>
    %cst_47 = arith.constant dense<0.000000e+00> : vector<16xf32>
    %133 = vector.multi_reduction <add>, %132, %cst_47 [1] : vector<16x16xf32> to vector<16xf32>
    %134 = vector.shape_cast %133 : vector<16xf32> to vector<16x1xf32>
    %135 = vector.broadcast %134 : vector<16x1xf32> to vector<16x16xf32>
    %136 = arith.divf %132, %135 : vector<16x16xf32>
    %137 = arith.truncf %136 : vector<16x16xf32> to vector<16x16xbf16>
    %138 = arith.truncf %109 : vector<16x128xf32> to vector<16x128xbf16>
    %cst_48 = arith.constant dense<0.000000e+00> : vector<16x128xf32>
    %139 = tpu.matmul %137, %138, %cst_48 {dimension_numbers = #tpu.dot_dimension_numbers<[1], [0], [0], [1], [0, 0, 1, 1], [], []>} : vector<16x16xbf16>, vector<16x128xbf16>, vector<16x128xf32> -> vector<16x128xf32>
    %140 = vector.extract_strided_slice %139 {offsets = [0, 0], sizes = [8, 128], strides = [1, 1]} : vector<16x128xf32> to vector<8x128xf32>
    %141 = arith.truncf %140 : vector<8x128xf32> to vector<8x128xbf16>
    %c256 = arith.constant 256 : index
    %c0_49 = arith.constant 0 : index
    %142 = vector.load %arg10[%c256, %c0_49] : memref<512x512xbf16, #tpu.memory_space<vmem>>, vector<128x512xbf16>
    %cst_50 = arith.constant dense<0.000000e+00> : vector<8x512xf32>
    %143 = tpu.matmul %141, %142, %cst_50 {dimension_numbers = #tpu.dot_dimension_numbers<[1], [0], [0], [1], [0, 0, 1, 1], [], []>} : vector<8x128xbf16>, vector<128x512xbf16>, vector<8x512xf32> -> vector<8x512xf32>
    %144 = arith.addf %103, %143 : vector<8x512xf32>
    %145 = vector.extract_strided_slice %139 {offsets = [8, 0], sizes = [8, 128], strides = [1, 1]} : vector<16x128xf32> to vector<8x128xf32>
    %146 = arith.truncf %145 : vector<8x128xf32> to vector<8x128xbf16>
    %c384 = arith.constant 384 : index
    %c0_51 = arith.constant 0 : index
    %147 = vector.load %arg10[%c384, %c0_51] : memref<512x512xbf16, #tpu.memory_space<vmem>>, vector<128x512xbf16>
    %cst_52 = arith.constant dense<0.000000e+00> : vector<8x512xf32>
    %148 = tpu.matmul %146, %147, %cst_52 {dimension_numbers = #tpu.dot_dimension_numbers<[1], [0], [0], [1], [0, 0, 1, 1], [], []>} : vector<8x128xbf16>, vector<128x512xbf16>, vector<8x512xf32> -> vector<8x512xf32>
    %149 = arith.addf %144, %148 : vector<8x512xf32>
    %150 = arith.mulf %149, %149 : vector<8x512xf32>
    %cst_53 = arith.constant dense<0.000000e+00> : vector<8xf32>
    %151 = vector.multi_reduction <add>, %150, %cst_53 [1] : vector<8x512xf32> to vector<8xf32>
    %152 = vector.shape_cast %151 : vector<8xf32> to vector<8x1xf32>
    %cst_54 = arith.constant 5.120000e+02 : f32
    %153 = vector.broadcast %cst_54 : f32 to vector<8x1xf32>
    %154 = arith.divf %152, %153 : vector<8x1xf32>
    %cst_55 = arith.constant 9.99999997E-7 : f32
    %155 = vector.broadcast %cst_55 : f32 to vector<8x1xf32>
    %156 = arith.addf %154, %155 : vector<8x1xf32>
    %157 = math.rsqrt %156 : vector<8x1xf32>
    %158 = vector.broadcast %157 : vector<8x1xf32> to vector<8x512xf32>
    %159 = arith.mulf %149, %158 : vector<8x512xf32>
    %160 = vector.broadcast %14 : vector<1x512xf32> to vector<8x512xf32>
    %161 = arith.mulf %159, %160 : vector<8x512xf32>
    %162 = arith.truncf %161 : vector<8x512xf32> to vector<8x512xbf16>
    %c0_56 = arith.constant 0 : index
    %c0_57 = arith.constant 0 : index
    %163 = vector.load %arg11[%c0_56, %c0_57] : memref<512x2048xbf16, #tpu.memory_space<vmem>>, vector<512x2048xbf16>
    %cst_58 = arith.constant dense<0.000000e+00> : vector<8x2048xf32>
    %164 = tpu.matmul %162, %163, %cst_58 {dimension_numbers = #tpu.dot_dimension_numbers<[1], [0], [0], [1], [0, 0, 1, 1], [], []>} : vector<8x512xbf16>, vector<512x2048xbf16>, vector<8x2048xf32> -> vector<8x2048xf32>
    %165 = vector.extract_strided_slice %164 {offsets = [0, 0], sizes = [8, 1024], strides = [1, 1]} : vector<8x2048xf32> to vector<8x1024xf32>
    %166 = vector.extract_strided_slice %164 {offsets = [0, 1024], sizes = [8, 1024], strides = [1, 1]} : vector<8x2048xf32> to vector<8x1024xf32>
    %cst_59 = arith.constant 0.000000e+00 : f32
    %167 = vector.broadcast %cst_59 : f32 to vector<8x1024xf32>
    %168 = arith.subf %167, %165 : vector<8x1024xf32>
    %169 = math.exp %168 : vector<8x1024xf32>
    %cst_60 = arith.constant 1.000000e+00 : f32
    %170 = vector.broadcast %cst_60 : f32 to vector<8x1024xf32>
    %171 = arith.addf %170, %169 : vector<8x1024xf32>
    %172 = arith.divf %165, %171 : vector<8x1024xf32>
    %173 = arith.mulf %172, %166 : vector<8x1024xf32>
    %174 = arith.truncf %173 : vector<8x1024xf32> to vector<8x1024xbf16>
    %c0_61 = arith.constant 0 : index
    %c0_62 = arith.constant 0 : index
    %175 = vector.load %arg12[%c0_61, %c0_62] : memref<1024x512xbf16, #tpu.memory_space<vmem>>, vector<1024x512xbf16>
    %cst_63 = arith.constant dense<0.000000e+00> : vector<8x512xf32>
    %176 = tpu.matmul %174, %175, %cst_63 {dimension_numbers = #tpu.dot_dimension_numbers<[1], [0], [0], [1], [0, 0, 1, 1], [], []>} : vector<8x1024xbf16>, vector<1024x512xbf16>, vector<8x512xf32> -> vector<8x512xf32>
    %177 = arith.addf %149, %176 : vector<8x512xf32>
    %178 = arith.truncf %177 : vector<8x512xf32> to vector<8x512xbf16>
    %c0_64 = arith.constant 0 : index
    %c0_65 = arith.constant 0 : index
    %179 = vector.load %arg13[%c0_64, %c0_65] : memref<8x512xbf16, #tpu.memory_space<vmem>>, vector<8x512xbf16>
    tpu.vector_store %arg13[%c0_64, %c0_65], %178 {strides = array<i32>} : memref<8x512xbf16, #tpu.memory_space<vmem>>, vector<8x512xbf16>,
    return
  }
  func.func @transform_0(%arg0: i32) -> (i32, i32) {
    %c0_i32 = arith.constant 0 : i32
    %c0_i32_0 = arith.constant 0 : i32
    %c0_i32_1 = arith.constant 0 : i32
    return %c0_i32, %c0_i32_0 : i32, i32
  }
  func.func @transform_1(%arg0: i32) -> (i32, i32) {
    %c0_i32 = arith.constant 0 : i32
    %c0_i32_0 = arith.constant 0 : i32
    %c0_i32_1 = arith.constant 0 : i32
    return %c0_i32, %c0_i32_0 : i32, i32
  }
  func.func @transform_2(%arg0: i32) -> (i32, i32) {
    %c0_i32 = arith.constant 0 : i32
    %c0_i32_0 = arith.constant 0 : i32
    %c0_i32_1 = arith.constant 0 : i32
    return %c0_i32, %c0_i32_0 : i32, i32
  }
  func.func @transform_3(%arg0: i32) -> (i32, i32) {
    %c0_i32 = arith.constant 0 : i32
    %c0_i32_0 = arith.constant 0 : i32
    %c0_i32_1 = arith.constant 0 : i32
    return %c0_i32, %c0_i32_0 : i32, i32
  }
  func.func @transform_4(%arg0: i32) -> (i32, i32) {
    %c0_i32 = arith.constant 0 : i32
    %c0_i32_0 = arith.constant 0 : i32
    %c0_i32_1 = arith.constant 0 : i32
    return %c0_i32, %c0_i32_0 : i32, i32
  }
  func.func @transform_5(%arg0: i32) -> (i32, i32) {
    %c0_i32 = arith.constant 0 : i32
    %c0_i32_0 = arith.constant 0 : i32
    %c0_i32_1 = arith.constant 0 : i32
    return %c0_i32, %c0_i32_0 : i32, i32
  }
  func.func @transform_6(%arg0: i32) -> (i32, i32) {
    %c0_i32 = arith.constant 0 : i32
    %c0_i32_0 = arith.constant 0 : i32
    %c0_i32_1 = arith.constant 0 : i32
    return %c0_i32, %c0_i32_0 : i32, i32
  }
  func.func @transform_7(%arg0: i32) -> (i32, i32) {
    %c0_i32 = arith.constant 0 : i32
    %c0_i32_0 = arith.constant 0 : i32
    %c0_i32_1 = arith.constant 0 : i32
    return %c0_i32, %c0_i32_0 : i32, i32
  }
  func.func @transform_8(%arg0: i32) -> (i32, i32) {
    %c0_i32 = arith.constant 0 : i32
    %c0_i32_0 = arith.constant 0 : i32
    %c0_i32_1 = arith.constant 0 : i32
    return %c0_i32, %c0_i32_0 : i32, i32
  }
  func.func @transform_9(%arg0: i32) -> (i32, i32) {
    %c0_i32 = arith.constant 0 : i32
    %c0_i32_0 = arith.constant 0 : i32
    %c0_i32_1 = arith.constant 0 : i32
    return %c0_i32, %c0_i32_0 : i32, i32
  }
  func.func @transform_10(%arg0: i32) -> (i32, i32) {
    %c0_i32 = arith.constant 0 : i32
    %c0_i32_0 = arith.constant 0 : i32
    %c0_i32_1 = arith.constant 0 : i32
    return %c0_i32, %c0_i32_0 : i32, i32
  }
  func.func @transform_11(%arg0: i32) -> (i32, i32) {
    %c0_i32 = arith.constant 0 : i32
    %c0_i32_0 = arith.constant 0 : i32
    %c0_i32_1 = arith.constant 0 : i32
    return %c0_i32, %c0_i32_0 : i32, i32
  }
  func.func @transform_12(%arg0: i32) -> (i32, i32) {
    %c0_i32 = arith.constant 0 : i32
    %c0_i32_0 = arith.constant 0 : i32
    return %arg0, %c0_i32 : i32, i32
  }
}

</mosaic_0001>

<llo_original>
// kernel: tpu_custom_call.1
$region0: #{tpu_custom_call.1}
  #allocation0 [shape = 'u32[]', space=smem, size = 0x4, offset = 0x4, fixed_abs, tag = 'smem constant byte address 0x4 - core index']
  #allocation1 [shape = 'u32[144,128]{1,0:T(1,128)}', space=vmem, size = 0x12000, scoped, tag = 'internal scratch']
  %s0 = inlined_call_operand.hbm [shape: bf16[16,512], index: 0, kind: input, shape index: {}]
  %s1 = inlined_call_operand.hbm [shape: f32[16,128], index: 1, kind: input, shape index: {}]
  %s2 = inlined_call_operand.hbm [shape: f32[16,128], index: 2, kind: input, shape index: {}]
  %s3 = inlined_call_operand.hbm [shape: f32[1,512], index: 3, kind: input, shape index: {}]
  %s4 = inlined_call_operand.hbm [shape: f32[1,512], index: 4, kind: input, shape index: {}]
  %s5 = inlined_call_operand.hbm [shape: bf16[512,512], index: 5, kind: input, shape index: {}]
  %s6 = inlined_call_operand.hbm [shape: f32[1,512], index: 6, kind: input, shape index: {}]
  %s7 = inlined_call_operand.hbm [shape: bf16[512,512], index: 7, kind: input, shape index: {}]
  %s8 = inlined_call_operand.hbm [shape: f32[1,512], index: 8, kind: input, shape index: {}]
  %s9 = inlined_call_operand.hbm [shape: bf16[512,512], index: 9, kind: input, shape index: {}]
  %s10 = inlined_call_operand.hbm [shape: bf16[512,2048], index: 10, kind: input, shape index: {}]
  %s11 = inlined_call_operand.hbm [shape: bf16[1024,512], index: 11, kind: input, shape index: {}]
  %s12 = inlined_call_operand.hbm [shape: bf16[16,512], index: 12, kind: output, shape index: {}]
  %s13 = sld [smem:[#allocation0]]
  $region129: #{tpu_custom_call.1} parent=0
    _
  %s15 = ssub.s32 1, %s13
  %s16 = scalar_select 0, %s15, %s13
  $region1: #{tpu_custom_call.1} parent=0
    #allocation2 [shape = 'u8[16384]{0}', space=vmem, size = 0x4000, scoped, tag = 'input window, operand 0, single buffered']
    #allocation3 [shape = 's32[2]{0}', space=sflag, size = 0x8, scoped, tag = 'scoped memory for tpu_custom_call.1']
    #allocation4 [shape = 's32[2]{0}', space=sflag, size = 0x8, scoped, tag = 'scoped memory for tpu_custom_call.1']
    #allocation5 [shape = 'u8[8192]{0}', space=vmem, size = 0x2000, scoped, tag = 'input window, operand 1, single buffered']
    #allocation6 [shape = 's32[1]{0}', space=sflag, size = 0x4, scoped, tag = 'scoped memory for tpu_custom_call.1']
    #allocation7 [shape = 'u8[8192]{0}', space=vmem, size = 0x2000, scoped, tag = 'input window, operand 2, single buffered']
    #allocation8 [shape = 'u8[2048]{0}', space=vmem, size = 0x800, scoped, tag = 'input window, operand 3, single buffered']
    #allocation9 [shape = 's32[1]{0}', space=sflag, size = 0x4, scoped, tag = 'scoped memory for tpu_custom_call.1']
    #allocation10 [shape = 'u8[2048]{0}', space=vmem, size = 0x800, scoped, tag = 'input window, operand 4, single buffered']
    #allocation11 [shape = 'u8[524288]{0}', space=vmem, size = 0x80000, scoped, tag = 'input window, operand 5, single buffered']
    #allocation12 [shape = 's32[1]{0}', space=sflag, size = 0x4, scoped, tag = 'scoped memory for tpu_custom_call.1']
    #allocation13 [shape = 'u8[2048]{0}', space=vmem, size = 0x800, scoped, tag = 'input window, operand 6, single buffered']
    #allocation14 [shape = 'u8[524288]{0}', space=vmem, size = 0x80000, scoped, tag = 'input window, operand 7, single buffered']
    #allocation15 [shape = 's32[1]{0}', space=sflag, size = 0x4, scoped, tag = 'scoped memory for tpu_custom_call.1']
    #allocation16 [shape = 'u8[2048]{0}', space=vmem, size = 0x800, scoped, tag = 'input window, operand 8, single buffered']
    #allocation17 [shape = 'u8[524288]{0}', space=vmem, size = 0x80000, scoped, tag = 'input window, operand 9, single buffered']
    #allocation18 [shape = 's32[1]{0}', space=sflag, size = 0x4, scoped, tag = 'scoped memory for tpu_custom_call.1']
    #allocation19 [shape = 'u8[2097152]{0}', space=vmem, size = 0x200000, scoped, tag = 'input window, operand 10, single buffered']
    #allocation20 [shape = 'u8[1048576]{0}', space=vmem, size = 0x100000, scoped, tag = 'input window, operand 11, single buffered']
    #allocation21 [shape = 's32[1]{0}', space=sflag, size = 0x4, scoped, tag = 'scoped memory for tpu_custom_call.1']
    #allocation22 [shape = 'u8[16384]{0}', space=vmem, size = 0x4000, scoped, tag = 'output window, operand 0']
    %17 = vsyncpa [#allocation3], 0
    %18 = vsyncpa [#allocation6], 0
    %19 = vsyncpa [#allocation9], 0
    %20 = vsyncpa [#allocation12], 0
    %21 = vsyncpa [#allocation15], 0
    %22 = vsyncpa [#allocation18], 0
    %23 = vsyncpa [#allocation21], 0
    %24 = vsyncpa [#allocation4], 0
    %s25 = scalar_lea.sflag [#allocation4], 1
    %26 = vsyncpa %s25, 0
    loop: start=0, step=1, limit=4
    $region2: #{tpu_custom_call.1} parent=1 // loop_pre_header
      _
    $region3: #{tpu_custom_call.1} parent=1 // loop_header
      %s28 = sphi 0, %s32
      %p29 = scmp.ge.s32.totalorder %s28, 4
      %s36 = sphi 0, %s36
      %s38 = sphi 0, %s36
      %s39 = sphi 0, %s38
      %s53 = sphi 0, %s39
      %s57 = sphi 0, %s57
      %s59 = sphi 0, %s57
      %s60 = sphi 0, %s59
      %s74 = sphi 0, %s60
      %s78 = sphi 0, %s78
      %s80 = sphi 0, %s78
      %s81 = sphi 0, %s80
      %s95 = sphi 0, %s81
      %s99 = sphi 0, %s99
      %s101 = sphi 0, %s99
      %s102 = sphi 0, %s101
      %s116 = sphi 0, %s102
      %s120 = sphi 0, %s120
      %s122 = sphi 0, %s120
      %s123 = sphi 0, %s122
      %s137 = sphi 0, %s123
      %s141 = sphi 0, %s141
      %s143 = sphi 0, %s141
      %s144 = sphi 0, %s143
      %s158 = sphi 0, %s144
      %s162 = sphi 0, %s162
      %s164 = sphi 0, %s162
      %s165 = sphi 0, %s164
      %s179 = sphi 0, %s165
      %s183 = sphi 0, %s183
      %s185 = sphi 0, %s183
      %s186 = sphi 0, %s185
      %s200 = sphi 0, %s186
      %s204 = sphi 0, %s204
      %s206 = sphi 0, %s204
      %s207 = sphi 0, %s206
      %s221 = sphi 0, %s207
      %s225 = sphi 0, %s225
      %s227 = sphi 0, %s225
      %s228 = sphi 0, %s227
      %s242 = sphi 0, %s228
      %s246 = sphi 0, %s246
      %s248 = sphi 0, %s246
      %s249 = sphi 0, %s248
      %s263 = sphi 0, %s249
      %s267 = sphi 0, %s267
      %s269 = sphi 0, %s267
      %s270 = sphi 0, %s269
      %s284 = sphi 0, %s270
      %s290 = sphi 0, %s292
      %s293 = sphi 0, %s290
      %s294 = sphi 0, %s293
      %s310 = sphi 0, %s294
    $region4: #{tpu_custom_call.1} parent=1 // loop_header_branch
      %31 = sbr.rel (%p29) target = $region8
    $region5: #{tpu_custom_call.1} parent=1 // loop_body
      %s33 = ssub.s32 %s28, 1
      %s34 = ssub.s32 %s28, 2
      %s35 = sadd.s32 %s28, 1
      %s37 = sadd.s32 %s36, 1
      %p40 = scmp.eq.s32.totalorder %s28, 1
      %p41 = scmp.ne.s32.totalorder %s36, %s38
      %p42 = scmp.eq.s32.totalorder %s28, 0
      %p43 = por %p41, %p42
      %p44 = scmp.ne.s32.totalorder %s36, %s38
      %p45 = scmp.eq.s32.totalorder %s33, 1
      %p46 = por %p44, %p45
      %p47 = scmp.ne.s32.totalorder %s38, %s39
      %p48 = scmp.eq.s32.totalorder %s33, 0
      %p49 = por %p47, %p48
      %p50 = scmp.ne.s32.totalorder %s38, %s39
      %p51 = scmp.eq.s32.totalorder %s34, 1
      %p52 = por %p50, %p51
      %p54 = scmp.ne.s32.totalorder %s39, %s53
      %p55 = scmp.eq.s32.totalorder %s34, 0
      %p56 = por %p54, %p55
      %s58 = sadd.s32 %s57, 1
      %p61 = scmp.eq.s32.totalorder %s28, 1
      %p62 = scmp.ne.s32.totalorder %s57, %s59
      %p63 = scmp.eq.s32.totalorder %s28, 0
      %p64 = por %p62, %p63
      %p65 = scmp.ne.s32.totalorder %s57, %s59
      %p66 = scmp.eq.s32.totalorder %s33, 1
      %p67 = por %p65, %p66
      %p68 = scmp.ne.s32.totalorder %s59, %s60
      %p69 = scmp.eq.s32.totalorder %s33, 0
      %p70 = por %p68, %p69
      %p71 = scmp.ne.s32.totalorder %s59, %s60
      %p72 = scmp.eq.s32.totalorder %s34, 1
      %p73 = por %p71, %p72
      %p75 = scmp.ne.s32.totalorder %s60, %s74
      %p76 = scmp.eq.s32.totalorder %s34, 0
      %p77 = por %p75, %p76
      %s79 = sadd.s32 %s78, 1
      %p82 = scmp.eq.s32.totalorder %s28, 1
      %p83 = scmp.ne.s32.totalorder %s78, %s80
      %p84 = scmp.eq.s32.totalorder %s28, 0
      %p85 = por %p83, %p84
      %p86 = scmp.ne.s32.totalorder %s78, %s80
      %p87 = scmp.eq.s32.totalorder %s33, 1
      %p88 = por %p86, %p87
      %p89 = scmp.ne.s32.totalorder %s80, %s81
      %p90 = scmp.eq.s32.totalorder %s33, 0
      %p91 = por %p89, %p90
      %p92 = scmp.ne.s32.totalorder %s80, %s81
      %p93 = scmp.eq.s32.totalorder %s34, 1
      %p94 = por %p92, %p93
      %p96 = scmp.ne.s32.totalorder %s81, %s95
      %p97 = scmp.eq.s32.totalorder %s34, 0
      %p98 = por %p96, %p97
      %s100 = sadd.s32 %s99, 1
      %p103 = scmp.eq.s32.totalorder %s28, 1
      %p104 = scmp.ne.s32.totalorder %s99, %s101
      %p105 = scmp.eq.s32.totalorder %s28, 0
      %p106 = por %p104, %p105
      %p107 = scmp.ne.s32.totalorder %s99, %s101
      %p108 = scmp.eq.s32.totalorder %s33, 1
      %p109 = por %p107, %p108
      %p110 = scmp.ne.s32.totalorder %s101, %s102
      %p111 = scmp.eq.s32.totalorder %s33, 0
      %p112 = por %p110, %p111
      %p113 = scmp.ne.s32.totalorder %s101, %s102
      %p114 = scmp.eq.s32.totalorder %s34, 1
      %p115 = por %p113, %p114
      %p117 = scmp.ne.s32.totalorder %s102, %s116
      %p118 = scmp.eq.s32.totalorder %s34, 0
      %p119 = por %p117, %p118
      %s121 = sadd.s32 %s120, 1
      %p124 = scmp.eq.s32.totalorder %s28, 1
      %p125 = scmp.ne.s32.totalorder %s120, %s122
      %p126 = scmp.eq.s32.totalorder %s28, 0
      %p127 = por %p125, %p126
      %p128 = scmp.ne.s32.totalorder %s120, %s122
      %p129 = scmp.eq.s32.totalorder %s33, 1
      %p130 = por %p128, %p129
      %p131 = scmp.ne.s32.totalorder %s122, %s123
      %p132 = scmp.eq.s32.totalorder %s33, 0
      %p133 = por %p131, %p132
      %p134 = scmp.ne.s32.totalorder %s122, %s123
      %p135 = scmp.eq.s32.totalorder %s34, 1
      %p136 = por %p134, %p135
      %p138 = scmp.ne.s32.totalorder %s123, %s137
      %p139 = scmp.eq.s32.totalorder %s34, 0
      %p140 = por %p138, %p139
      %s142 = sadd.s32 %s141, 1
      %p145 = scmp.eq.s32.totalorder %s28, 1
      %p146 = scmp.ne.s32.totalorder %s141, %s143
      %p147 = scmp.eq.s32.totalorder %s28, 0
      %p148 = por %p146, %p147
      %p149 = scmp.ne.s32.totalorder %s141, %s143
      %p150 = scmp.eq.s32.totalorder %s33, 1
      %p151 = por %p149, %p150
      %p152 = scmp.ne.s32.totalorder %s143, %s144
      %p153 = scmp.eq.s32.totalorder %s33, 0
      %p154 = por %p152, %p153
      %p155 = scmp.ne.s32.totalorder %s143, %s144
      %p156 = scmp.eq.s32.totalorder %s34, 1
      %p157 = por %p155, %p156
      %p159 = scmp.ne.s32.totalorder %s144, %s158
      %p160 = scmp.eq.s32.totalorder %s34, 0
      %p161 = por %p159, %p160
      %s163 = sadd.s32 %s162, 1
      %p166 = scmp.eq.s32.totalorder %s28, 1
      %p167 = scmp.ne.s32.totalorder %s162, %s164
      %p168 = scmp.eq.s32.totalorder %s28, 0
      %p169 = por %p167, %p168
      %p170 = scmp.ne.s32.totalorder %s162, %s164
      %p171 = scmp.eq.s32.totalorder %s33, 1
      %p172 = por %p170, %p171
      %p173 = scmp.ne.s32.totalorder %s164, %s165
      %p174 = scmp.eq.s32.totalorder %s33, 0
      %p175 = por %p173, %p174
      %p176 = scmp.ne.s32.totalorder %s164, %s165
      %p177 = scmp.eq.s32.totalorder %s34, 1
      %p178 = por %p176, %p177
      %p180 = scmp.ne.s32.totalorder %s165, %s179
      %p181 = scmp.eq.s32.totalorder %s34, 0
      %p182 = por %p180, %p181
      %s184 = sadd.s32 %s183, 1
      %p187 = scmp.eq.s32.totalorder %s28, 1
      %p188 = scmp.ne.s32.totalorder %s183, %s185
      %p189 = scmp.eq.s32.totalorder %s28, 0
      %p190 = por %p188, %p189
      %p191 = scmp.ne.s32.totalorder %s183, %s185
      %p192 = scmp.eq.s32.totalorder %s33, 1
      %p193 = por %p191, %p192
      %p194 = scmp.ne.s32.totalorder %s185, %s186
      %p195 = scmp.eq.s32.totalorder %s33, 0
      %p196 = por %p194, %p195
      %p197 = scmp.ne.s32.totalorder %s185, %s186
      %p198 = scmp.eq.s32.totalorder %s34, 1
      %p199 = por %p197, %p198
      %p201 = scmp.ne.s32.totalorder %s186, %s200
      %p202 = scmp.eq.s32.totalorder %s34, 0
      %p203 = por %p201, %p202
      %s205 = sadd.s32 %s204, 1
      %p208 = scmp.eq.s32.totalorder %s28, 1
      %p209 = scmp.ne.s32.totalorder %s204, %s206
      %p210 = scmp.eq.s32.totalorder %s28, 0
      %p211 = por %p209, %p210
      %p212 = scmp.ne.s32.totalorder %s204, %s206
      %p213 = scmp.eq.s32.totalorder %s33, 1
      %p214 = por %p212, %p213
      %p215 = scmp.ne.s32.totalorder %s206, %s207
      %p216 = scmp.eq.s32.totalorder %s33, 0
      %p217 = por %p215, %p216
      %p218 = scmp.ne.s32.totalorder %s206, %s207
      %p219 = scmp.eq.s32.totalorder %s34, 1
      %p220 = por %p218, %p219
      %p222 = scmp.ne.s32.totalorder %s207, %s221
      %p223 = scmp.eq.s32.totalorder %s34, 0
      %p224 = por %p222, %p223
      %s226 = sadd.s32 %s225, 1
      %p229 = scmp.eq.s32.totalorder %s28, 1
      %p230 = scmp.ne.s32.totalorder %s225, %s227
      %p231 = scmp.eq.s32.totalorder %s28, 0
      %p232 = por %p230, %p231
      %p233 = scmp.ne.s32.totalorder %s225, %s227
      %p234 = scmp.eq.s32.totalorder %s33, 1
      %p235 = por %p233, %p234
      %p236 = scmp.ne.s32.totalorder %s227, %s228
      %p237 = scmp.eq.s32.totalorder %s33, 0
      %p238 = por %p236, %p237
      %p239 = scmp.ne.s32.totalorder %s227, %s228
      %p240 = scmp.eq.s32.totalorder %s34, 1
      %p241 = por %p239, %p240
      %p243 = scmp.ne.s32.totalorder %s228, %s242
      %p244 = scmp.eq.s32.totalorder %s34, 0
      %p245 = por %p243, %p244
      %s247 = sadd.s32 %s246, 1
      %p250 = scmp.eq.s32.totalorder %s28, 1
      %p251 = scmp.ne.s32.totalorder %s246, %s248
      %p252 = scmp.eq.s32.totalorder %s28, 0
      %p253 = por %p251, %p252
      %p254 = scmp.ne.s32.totalorder %s246, %s248
      %p255 = scmp.eq.s32.totalorder %s33, 1
      %p256 = por %p254, %p255
      %p257 = scmp.ne.s32.totalorder %s248, %s249
      %p258 = scmp.eq.s32.totalorder %s33, 0
      %p259 = por %p257, %p258
      %p260 = scmp.ne.s32.totalorder %s248, %s249
      %p261 = scmp.eq.s32.totalorder %s34, 1
      %p262 = por %p260, %p261
      %p264 = scmp.ne.s32.totalorder %s249, %s263
      %p265 = scmp.eq.s32.totalorder %s34, 0
      %p266 = por %p264, %p265
      %s268 = sadd.s32 %s267, 1
      %p271 = scmp.eq.s32.totalorder %s28, 1
      %p272 = scmp.ne.s32.totalorder %s267, %s269
      %p273 = scmp.eq.s32.totalorder %s28, 0
      %p274 = por %p272, %p273
      %p275 = scmp.ne.s32.totalorder %s267, %s269
      %p276 = scmp.eq.s32.totalorder %s33, 1
      %p277 = por %p275, %p276
      %p278 = scmp.ne.s32.totalorder %s269, %s270
      %p279 = scmp.eq.s32.totalorder %s33, 0
      %p280 = por %p278, %p279
      %p281 = scmp.ne.s32.totalorder %s269, %s270
      %p282 = scmp.eq.s32.totalorder %s34, 1
      %p283 = por %p281, %p282
      %p285 = scmp.ne.s32.totalorder %s270, %s284
      %p286 = scmp.eq.s32.totalorder %s34, 0
      %p287 = por %p285, %p286
      %s288 = ssub.s32 %s28, %s35
      %p289 = scmp.eq.s32.totalorder %s288, 0
      %s291 = sadd.s32 %s290, 1
      %s292 = scalar_select %p289, %s290, %s291
      %p295 = pneg %p289
      %p296 = scmp.eq.s32.totalorder %s28, 1
      %p297 = por %p295, %p296
      %p298 = scmp.ne.s32.totalorder %s290, %s293
      %p299 = scmp.eq.s32.totalorder %s28, 0
      %p300 = por %p298, %p299
      %p301 = scmp.ne.s32.totalorder %s290, %s293
      %p302 = scmp.eq.s32.totalorder %s33, 1
      %p303 = por %p301, %p302
      %p304 = scmp.ne.s32.totalorder %s293, %s294
      %p305 = scmp.eq.s32.totalorder %s33, 0
      %p306 = por %p304, %p305
      %p307 = scmp.ne.s32.totalorder %s293, %s294
      %p308 = scmp.eq.s32.totalorder %s34, 1
      %p309 = por %p307, %p308
      %p311 = scmp.ne.s32.totalorder %s294, %s310
      %p312 = scmp.eq.s32.totalorder %s34, 0
      %p313 = por %p311, %p312
      %p314 = scmp.le.s32.totalorder 1, %s28
      %p315 = scmp.lt.s32.totalorder %s28, 3
      %p316 = pnand %p314, %p315
      %p317 = pneg %p316
      // Predicated region
      $region9: #{tpu_custom_call.1} parent=5 // pred_check
        _
      $region10: #{tpu_custom_call.1} parent=5 // pred_check_branch
        %319 = sbr.rel (%p316) target = $region12
      $region11: #{tpu_custom_call.1} parent=5 // pred_region
        %s320 = ssub.s32 %s28, 1
        // Predicated region
        $region13: #{tpu_custom_call.1} parent=11 // pred_check
          %p321 = pneg %p49
        $region14: #{tpu_custom_call.1} parent=11 // pred_check_branch
          %323 = sbr.rel (%p321) target = $region16
        $region15: #{tpu_custom_call.1} parent=11 // pred_region
          %s325 = ssub.s32 512, 512
          %326 = vsyncadd [#allocation3], %s325
          %s327 = sshll.u32 [#allocation2], 4
          %s328 = int_to_ptr.vmem [resolvable:$true] %s327
          %333 = dma.hbm_to_vmem [thread:$0]  %s0, 512, %s328, [#allocation3], 256, 256, 16
        $region16: #{tpu_custom_call.1} parent=11 // pred_fallthru
          _
        // Predicated region
        $region17: #{tpu_custom_call.1} parent=11 // pred_check
          %p334 = pneg %p70
        $region18: #{tpu_custom_call.1} parent=11 // pred_check_branch
          %336 = sbr.rel (%p334) target = $region20
        $region19: #{tpu_custom_call.1} parent=11 // pred_region
          %s338 = ssub.s32 256, 256
          %339 = vsyncadd [#allocation6], %s338
          %s340 = sshll.u32 [#allocation5], 4
          %s341 = int_to_ptr.vmem [resolvable:$true] %s340
          %346 = dma.hbm_to_vmem [thread:$0]  %s1, 256, %s341, [#allocation6], 128, 128, 8
        $region20: #{tpu_custom_call.1} parent=11 // pred_fallthru
          _
        // Predicated region
        $region21: #{tpu_custom_call.1} parent=11 // pred_check
          %p347 = pneg %p91
        $region22: #{tpu_custom_call.1} parent=11 // pred_check_branch
          %349 = sbr.rel (%p347) target = $region24
        $region23: #{tpu_custom_call.1} parent=11 // pred_region
          %s351 = ssub.s32 256, 256
          %352 = vsyncadd [#allocation6], %s351
          %s353 = sshll.u32 [#allocation7], 4
          %s354 = int_to_ptr.vmem [resolvable:$true] %s353
          %359 = dma.hbm_to_vmem [thread:$0]  %s2, 256, %s354, [#allocation6], 128, 128, 8
        $region24: #{tpu_custom_call.1} parent=11 // pred_fallthru
          _
        // Predicated region
        $region25: #{tpu_custom_call.1} parent=11 // pred_check
          %p360 = pneg %p112
        $region26: #{tpu_custom_call.1} parent=11 // pred_check_branch
          %362 = sbr.rel (%p360) target = $region28
        $region27: #{tpu_custom_call.1} parent=11 // pred_region
          %s364 = ssub.s32 64, 64
          %365 = vsyncadd [#allocation9], %s364
          %s367 = sshll.u32 [#allocation8], 4
          %s368 = int_to_ptr.vmem [resolvable:$true] %s367
          %370 = dma.hbm_to_vmem [thread:$0]  %s3, 64, %s368, [#allocation9]
        $region28: #{tpu_custom_call.1} parent=11 // pred_fallthru
          _
        // Predicated region
        $region29: #{tpu_custom_call.1} parent=11 // pred_check
          %p371 = pneg %p133
        $region30: #{tpu_custom_call.1} parent=11 // pred_check_branch
          %373 = sbr.rel (%p371) target = $region32
        $region31: #{tpu_custom_call.1} parent=11 // pred_region
          %s375 = ssub.s32 64, 64
          %376 = vsyncadd [#allocation9], %s375
          %s378 = sshll.u32 [#allocation10], 4
          %s379 = int_to_ptr.vmem [resolvable:$true] %s378
          %381 = dma.hbm_to_vmem [thread:$0]  %s4, 64, %s379, [#allocation9]
        $region32: #{tpu_custom_call.1} parent=11 // pred_fallthru
          _
        // Predicated region
        $region33: #{tpu_custom_call.1} parent=11 // pred_check
          %p382 = pneg %p154
        $region34: #{tpu_custom_call.1} parent=11 // pred_check_branch
          %384 = sbr.rel (%p382) target = $region36
        $region35: #{tpu_custom_call.1} parent=11 // pred_region
          %s386 = ssub.s32 16384, 16384
          %387 = vsyncadd [#allocation12], %s386
          %s388 = sshll.u32 [#allocation11], 4
          %s389 = int_to_ptr.vmem [resolvable:$true] %s388
          %394 = dma.hbm_to_vmem [thread:$0]  %s5, 16384, %s389, [#allocation12], 256, 256, 16
        $region36: #{tpu_custom_call.1} parent=11 // pred_fallthru
          _
        // Predicated region
        $region37: #{tpu_custom_call.1} parent=11 // pred_check
          %p395 = pneg %p175
        $region38: #{tpu_custom_call.1} parent=11 // pred_check_branch
          %397 = sbr.rel (%p395) target = $region40
        $region39: #{tpu_custom_call.1} parent=11 // pred_region
          %s399 = ssub.s32 64, 64
          %400 = vsyncadd [#allocation12], %s399
          %s402 = sshll.u32 [#allocation13], 4
          %s403 = int_to_ptr.vmem [resolvable:$true] %s402
          %405 = dma.hbm_to_vmem [thread:$0]  %s6, 64, %s403, [#allocation12]
        $region40: #{tpu_custom_call.1} parent=11 // pred_fallthru
          _
        // Predicated region
        $region41: #{tpu_custom_call.1} parent=11 // pred_check
          %p406 = pneg %p196
        $region42: #{tpu_custom_call.1} parent=11 // pred_check_branch
          %408 = sbr.rel (%p406) target = $region44
        $region43: #{tpu_custom_call.1} parent=11 // pred_region
          %s410 = ssub.s32 16384, 16384
          %411 = vsyncadd [#allocation15], %s410
          %s412 = sshll.u32 [#allocation14], 4
          %s413 = int_to_ptr.vmem [resolvable:$true] %s412
          %418 = dma.hbm_to_vmem [thread:$0]  %s7, 16384, %s413, [#allocation15], 256, 256, 16
        $region44: #{tpu_custom_call.1} parent=11 // pred_fallthru
          _
        // Predicated region
        $region45: #{tpu_custom_call.1} parent=11 // pred_check
          %p419 = pneg %p217
        $region46: #{tpu_custom_call.1} parent=11 // pred_check_branch
          %421 = sbr.rel (%p419) target = $region48
        $region47: #{tpu_custom_call.1} parent=11 // pred_region
          %s423 = ssub.s32 64, 64
          %424 = vsyncadd [#allocation15], %s423
          %s426 = sshll.u32 [#allocation16], 4
          %s427 = int_to_ptr.vmem [resolvable:$true] %s426
          %429 = dma.hbm_to_vmem [thread:$0]  %s8, 64, %s427, [#allocation15]
        $region48: #{tpu_custom_call.1} parent=11 // pred_fallthru
          _
        // Predicated region
        $region49: #{tpu_custom_call.1} parent=11 // pred_check
          %p430 = pneg %p238
        $region50: #{tpu_custom_call.1} parent=11 // pred_check_branch
          %432 = sbr.rel (%p430) target = $region52
        $region51: #{tpu_custom_call.1} parent=11 // pred_region
          %s434 = ssub.s32 16384, 16384
          %435 = vsyncadd [#allocation18], %s434
          %s436 = sshll.u32 [#allocation17], 4
          %s437 = int_to_ptr.vmem [resolvable:$true] %s436
          %442 = dma.hbm_to_vmem [thread:$0]  %s9, 16384, %s437, [#allocation18], 256, 256, 16
        $region52: #{tpu_custom_call.1} parent=11 // pred_fallthru
          _
        // Predicated region
        $region53: #{tpu_custom_call.1} parent=11 // pred_check
          %p443 = pneg %p259
        $region54: #{tpu_custom_call.1} parent=11 // pred_check_branch
          %445 = sbr.rel (%p443) target = $region56
        $region55: #{tpu_custom_call.1} parent=11 // pred_region
          %s447 = ssub.s32 65536, 65536
          %448 = vsyncadd [#allocation18], %s447
          %s449 = sshll.u32 [#allocation19], 4
          %s450 = int_to_ptr.vmem [resolvable:$true] %s449
          %455 = dma.hbm_to_vmem [thread:$0]  %s10, 65536, %s450, [#allocation18], 1024, 1024, 64
        $region56: #{tpu_custom_call.1} parent=11 // pred_fallthru
          _
        // Predicated region
        $region57: #{tpu_custom_call.1} parent=11 // pred_check
          %p456 = pneg %p280
        $region58: #{tpu_custom_call.1} parent=11 // pred_check_branch
          %458 = sbr.rel (%p456) target = $region60
        $region59: #{tpu_custom_call.1} parent=11 // pred_region
          %s460 = ssub.s32 32768, 32768
          %461 = vsyncadd [#allocation21], %s460
          %s462 = sshll.u32 [#allocation20], 4
          %s463 = int_to_ptr.vmem [resolvable:$true] %s462
          %468 = dma.hbm_to_vmem [thread:$0]  %s11, 32768, %s463, [#allocation21], 256, 256, 16
        $region60: #{tpu_custom_call.1} parent=11 // pred_fallthru
          _
      $region12: #{tpu_custom_call.1} parent=5 // pred_fallthru
        _
      %p469 = scmp.lt.s32.totalorder %s28, 2
      // Predicated region
      $region61: #{tpu_custom_call.1} parent=5 // pred_check
        %p470 = pneg %p469
      $region62: #{tpu_custom_call.1} parent=5 // pred_check_branch
        %472 = sbr.rel (%p470) target = $region64
      $region63: #{tpu_custom_call.1} parent=5 // pred_region
        _
      $region64: #{tpu_custom_call.1} parent=5 // pred_fallthru
        _
      %p473 = scmp.le.s32.totalorder 1, %s28
      %p474 = scmp.lt.s32.totalorder %s28, 3
      %p475 = pnand %p473, %p474
      %p476 = pneg %p475
      // Predicated region
      $region65: #{tpu_custom_call.1} parent=5 // pred_check
        _
      $region66: #{tpu_custom_call.1} parent=5 // pred_check_branch
        %478 = sbr.rel (%p475) target = $region68
      $region67: #{tpu_custom_call.1} parent=5 // pred_region
        %s479 = ssub.s32 %s28, 1
        // Predicated region
        $region69: #{tpu_custom_call.1} parent=67 // pred_check
          %p480 = pneg %p49
        $region70: #{tpu_custom_call.1} parent=67 // pred_check_branch
          %482 = sbr.rel (%p480) target = $region72
        $region71: #{tpu_custom_call.1} parent=67 // pred_region
          %483 = dma.done [#allocation3], 512
        $region72: #{tpu_custom_call.1} parent=67 // pred_fallthru
          _
        // Predicated region
        $region73: #{tpu_custom_call.1} parent=67 // pred_check
          %p484 = pneg %p70
        $region74: #{tpu_custom_call.1} parent=67 // pred_check_branch
          %486 = sbr.rel (%p484) target = $region76
        $region75: #{tpu_custom_call.1} parent=67 // pred_region
          %487 = dma.done [#allocation6], 256
        $region76: #{tpu_custom_call.1} parent=67 // pred_fallthru
          _
        // Predicated region
        $region77: #{tpu_custom_call.1} parent=67 // pred_check
          %p488 = pneg %p91
        $region78: #{tpu_custom_call.1} parent=67 // pred_check_branch
          %490 = sbr.rel (%p488) target = $region80
        $region79: #{tpu_custom_call.1} parent=67 // pred_region
          %491 = dma.done [#allocation6], 256
        $region80: #{tpu_custom_call.1} parent=67 // pred_fallthru
          _
        // Predicated region
        $region81: #{tpu_custom_call.1} parent=67 // pred_check
          %p492 = pneg %p112
        $region82: #{tpu_custom_call.1} parent=67 // pred_check_branch
          %494 = sbr.rel (%p492) target = $region84
        $region83: #{tpu_custom_call.1} parent=67 // pred_region
          %495 = dma.done [#allocation9], 64
        $region84: #{tpu_custom_call.1} parent=67 // pred_fallthru
          _
        // Predicated region
        $region85: #{tpu_custom_call.1} parent=67 // pred_check
          %p496 = pneg %p133
        $region86: #{tpu_custom_call.1} parent=67 // pred_check_branch
          %498 = sbr.rel (%p496) target = $region88
        $region87: #{tpu_custom_call.1} parent=67 // pred_region
          %499 = dma.done [#allocation9], 64
        $region88: #{tpu_custom_call.1} parent=67 // pred_fallthru
          _
        // Predicated region
        $region89: #{tpu_custom_call.1} parent=67 // pred_check
          %p500 = pneg %p154
        $region90: #{tpu_custom_call.1} parent=67 // pred_check_branch
          %502 = sbr.rel (%p500) target = $region92
        $region91: #{tpu_custom_call.1} parent=67 // pred_region
          %503 = dma.done [#allocation12], 16384
        $region92: #{tpu_custom_call.1} parent=67 // pred_fallthru
          _
        // Predicated region
        $region93: #{tpu_custom_call.1} parent=67 // pred_check
          %p504 = pneg %p175
        $region94: #{tpu_custom_call.1} parent=67 // pred_check_branch
          %506 = sbr.rel (%p504) target = $region96
        $region95: #{tpu_custom_call.1} parent=67 // pred_region
          %507 = dma.done [#allocation12], 64
        $region96: #{tpu_custom_call.1} parent=67 // pred_fallthru
          _
        // Predicated region
        $region97: #{tpu_custom_call.1} parent=67 // pred_check
          %p508 = pneg %p196
        $region98: #{tpu_custom_call.1} parent=67 // pred_check_branch
          %510 = sbr.rel (%p508) target = $region100
        $region99: #{tpu_custom_call.1} parent=67 // pred_region
          %511 = dma.done [#allocation15], 16384
        $region100: #{tpu_custom_call.1} parent=67 // pred_fallthru
          _
        // Predicated region
        $region101: #{tpu_custom_call.1} parent=67 // pred_check
          %p512 = pneg %p217
        $region102: #{tpu_custom_call.1} parent=67 // pred_check_branch
          %514 = sbr.rel (%p512) target = $region104
        $region103: #{tpu_custom_call.1} parent=67 // pred_region
          %515 = dma.done [#allocation15], 64
        $region104: #{tpu_custom_call.1} parent=67 // pred_fallthru
          _
        // Predicated region
        $region105: #{tpu_custom_call.1} parent=67 // pred_check
          %p516 = pneg %p238
        $region106: #{tpu_custom_call.1} parent=67 // pred_check_branch
          %518 = sbr.rel (%p516) target = $region108
        $region107: #{tpu_custom_call.1} parent=67 // pred_region
          %519 = dma.done [#allocation18], 16384
        $region108: #{tpu_custom_call.1} parent=67 // pred_fallthru
          _
        // Predicated region
        $region109: #{tpu_custom_call.1} parent=67 // pred_check
          %p520 = pneg %p259
        $region110: #{tpu_custom_call.1} parent=67 // pred_check_branch
          %522 = sbr.rel (%p520) target = $region112
        $region111: #{tpu_custom_call.1} parent=67 // pred_region
          %523 = dma.done [#allocation18], 65536
        $region112: #{tpu_custom_call.1} parent=67 // pred_fallthru
          _
        // Predicated region
        $region113: #{tpu_custom_call.1} parent=67 // pred_check
          %p524 = pneg %p280
        $region114: #{tpu_custom_call.1} parent=67 // pred_check_branch
          %526 = sbr.rel (%p524) target = $region116
        $region115: #{tpu_custom_call.1} parent=67 // pred_region
          %527 = dma.done [#allocation21], 32768
        $region116: #{tpu_custom_call.1} parent=67 // pred_fallthru
          _
        %p528 = pneg %p49
        %p529 = pneg %p46
        %p530 = pneg %p70
        %p531 = pneg %p67
        %p532 = pneg %p91
        %p533 = pneg %p88
        %p534 = pneg %p112
        %p535 = pneg %p109
        %p536 = pneg %p133
        %p537 = pneg %p130
        %p538 = pneg %p154
        %p539 = pneg %p151
        %p540 = pneg %p175
        %p541 = pneg %p172
        %p542 = pneg %p196
        %p543 = pneg %p193
        %p544 = pneg %p217
        %p545 = pneg %p214
        %p546 = pneg %p238
        %p547 = pneg %p235
        %p548 = pneg %p259
        %p549 = pneg %p256
        %p550 = pneg %p280
        %p551 = pneg %p277
        %p552 = pneg %p306
        %p553 = pneg %p303
        %s554 = sand.u32 %s293, 1
        %s555 = scalar_lea.sflag [#allocation4], %s554
        %s556 = sand.u32 %s293, 1
        %s557 = smul.addr %s556, 16
        %s558 = scalar_lea.vmem [#allocation22], %s557
        %s560 = smul.u32 %s33, 8
        %v561 = vld [vmem:[#allocation2] sm:$0xff]
        %v562 = vld [vmem:[#allocation2 + $0x8] sm:$0xff]
        %v563 = vld [vmem:[#allocation2 + $0x10] sm:$0xff]
        %v564 = vld [vmem:[#allocation2 + $0x18] sm:$0xff]
        %v565 = vunpack.c.l.bf16 %v561
        %v566 = vunpack.c.h.bf16 %v561
        %v567 = vunpack.c.l.bf16 %v562
        %v568 = vunpack.c.h.bf16 %v562
        %v569 = vunpack.c.l.bf16 %v563
        %v570 = vunpack.c.h.bf16 %v563
        %v571 = vunpack.c.l.bf16 %v564
        %v572 = vunpack.c.h.bf16 %v564
        %s573 = sshra.s32 %s560, 3
        %s574 = sand.u32 %s560, 7
        %s575 = smul.u32 %s573, 4
        %s576 = smul.addr %s575, 4
        %s577 = scalar_lea.vmem [#allocation2], %s576
        %v578 = vld [vmem:[%s577] sm:$0xff]
        %v579 = vld [vmem:[%s577 + $0x8] sm:$0xff]
        %v580 = vunpack.c.l.bf16 %v578
        %v581 = vunpack.c.h.bf16 %v578
        %v582 = vunpack.c.l.bf16 %v579
        %v583 = vunpack.c.h.bf16 %v579
        %v584 = vld [vmem:[#allocation5] sm:$0xff]
        %v585 = vld [vmem:[#allocation5 + $0x8] sm:$0xff]
        %v586 = vld [vmem:[#allocation7] sm:$0xff]
        %v587 = vld [vmem:[#allocation7 + $0x8] sm:$0xff]
        %s588 = scalar_lea.vmem [#allocation5], %s560
        %v589 = vld [vmem:[%s588] sm:$0xff]
        %s590 = scalar_lea.vmem [#allocation7], %s560
        %v591 = vld [vmem:[%s590] sm:$0xff]
        %v592 = vld [vmem:[#allocation8] sm:$0xf]
        %v593 = vld [vmem:[#allocation10] sm:$0xf]
        %v594 = vmul.f32 %v580, %v580
        %v595 = vmul.f32 %v581, %v581
        %v596 = vmul.f32 %v582, %v582
        %v597 = vmul.f32 %v583, %v583
        %v598 = vadd.f32 %v594, %v595
        %v599 = vadd.f32 %v598, %v596
        %v600 = vadd.f32 %v599, %v597
        %601 = vadd.xlane.f32.xlu0 %v600
        %v602 = vpop.xlane.xlu0 %601
        %v603 = vrcp.pop 512.0
        %v604 = vmul.f32 %v602, %v603
        %v605 = vadd.f32 %v604, 1e-06
        %v606 = vrsqrt.pop %v605
        %v607 = vmul.f32 %v580, %v606
        %v608 = vmul.f32 %v581, %v606
        %v609 = vmul.f32 %v582, %v606
        %v610 = vmul.f32 %v583, %v606
        %v612 = vlaneseq
        %v613 = vshrl.u32 %v612, 7
        %v614 = vsub.s32 0, %v613
        %v615 = vrot.slane %v592, %v614
        %v616 = vlaneseq
        %v617 = vshrl.u32 %v616, 7
        %v618 = vsub.s32 1, %v617
        %v619 = vrot.slane %v592, %v618
        %v620 = vlaneseq
        %v621 = vshrl.u32 %v620, 7
        %v622 = vsub.s32 2, %v621
        %v623 = vrot.slane %v592, %v622
        %v624 = vlaneseq
        %v625 = vshrl.u32 %v624, 7
        %v626 = vsub.s32 3, %v625
        %v627 = vrot.slane %v592, %v626
        %v632 = vmul.f32 %v607, %v615
        %v633 = vmul.f32 %v608, %v619
        %v634 = vmul.f32 %v609, %v623
        %v635 = vmul.f32 %v610, %v627
        %v636 = vpack.c.bf16 %v632, %v632
        %v637 = vpack.c.bf16 %v633, %v633
        %v638 = vpack.c.bf16 %v634, %v634
        %v639 = vpack.c.bf16 %v635, %v635
        %v640 = vmul.f32 %v565, %v565
        %v641 = vmul.f32 %v566, %v566
        %v642 = vmul.f32 %v567, %v567
        %v643 = vmul.f32 %v568, %v568
        %v644 = vmul.f32 %v569, %v569
        %v645 = vmul.f32 %v570, %v570
        %v646 = vmul.f32 %v571, %v571
        %v647 = vmul.f32 %v572, %v572
        %v648 = vadd.f32 %v640, %v641
        %v649 = vadd.f32 %v648, %v642
        %v650 = vadd.f32 %v649, %v643
        %651 = vadd.xlane.f32.xlu0 %v650
        %v652 = vpop.xlane.xlu0 %651
        %v653 = vadd.f32 %v644, %v645
        %v654 = vadd.f32 %v653, %v646
        %v655 = vadd.f32 %v654, %v647
        %656 = vadd.xlane.f32.xlu0 %v655
        %v657 = vpop.xlane.xlu0 %656
        %v658 = vmul.f32 %v652, %v603
        %v659 = vmul.f32 %v657, %v603
        %v660 = vadd.f32 %v658, 1e-06
        %v661 = vadd.f32 %v659, 1e-06
        %v662 = vrsqrt.pop %v660
        %v663 = vrsqrt.pop %v661
        %v664 = vmul.f32 %v565, %v662
        %v665 = vmul.f32 %v566, %v662
        %v666 = vmul.f32 %v567, %v662
        %v667 = vmul.f32 %v568, %v662
        %v668 = vmul.f32 %v569, %v663
        %v669 = vmul.f32 %v570, %v663
        %v670 = vmul.f32 %v571, %v663
        %v671 = vmul.f32 %v572, %v663
        %v672 = vmul.f32 %v664, %v615
        %v673 = vmul.f32 %v665, %v619
        %v674 = vmul.f32 %v666, %v623
        %v675 = vmul.f32 %v667, %v627
        %v676 = vmul.f32 %v668, %v615
        %v677 = vmul.f32 %v669, %v619
        %v678 = vmul.f32 %v670, %v623
        %v679 = vmul.f32 %v671, %v627
        %v680 = vpack.c.bf16 %v676, %v672
        %v681 = vpack.c.bf16 %v677, %v673
        %v682 = vpack.c.bf16 %v678, %v674
        %v683 = vpack.c.bf16 %v679, %v675
        %v684 = vld [vmem:[#allocation11] sm:$0xff]
        %v685 = vld [vmem:[#allocation11 + $0x8] sm:$0xff]
        %v686 = vld [vmem:[#allocation11 + $0x10] sm:$0xff]
        %v687 = vld [vmem:[#allocation11 + $0x18] sm:$0xff]
        %v688 = vld [vmem:[#allocation11 + $0x20] sm:$0xff]
        %v689 = vld [vmem:[#allocation11 + $0x28] sm:$0xff]
        %v690 = vld [vmem:[#allocation11 + $0x30] sm:$0xff]
        %v691 = vld [vmem:[#allocation11 + $0x38] sm:$0xff]
        %v692 = vld [vmem:[#allocation11 + $0x40] sm:$0xff]
        %v693 = vld [vmem:[#allocation11 + $0x48] sm:$0xff]
        %v694 = vld [vmem:[#allocation11 + $0x50] sm:$0xff]
        %v695 = vld [vmem:[#allocation11 + $0x58] sm:$0xff]
        %v696 = vld [vmem:[#allocation11 + $0x60] sm:$0xff]
        %v697 = vld [vmem:[#allocation11 + $0x68] sm:$0xff]
        %v698 = vld [vmem:[#allocation11 + $0x70] sm:$0xff]
        %v699 = vld [vmem:[#allocation11 + $0x78] sm:$0xff]
        %v700 = vld [vmem:[#allocation11 + $0x80] sm:$0xff]
        %v701 = vld [vmem:[#allocation11 + $0x88] sm:$0xff]
        %v702 = vld [vmem:[#allocation11 + $0x90] sm:$0xff]
        %v703 = vld [vmem:[#allocation11 + $0x98] sm:$0xff]
        %v704 = vld [vmem:[#allocation11 + $0xa0] sm:$0xff]
        %v705 = vld [vmem:[#allocation11 + $0xa8] sm:$0xff]
        %v706 = vld [vmem:[#allocation11 + $0xb0] sm:$0xff]
        %v707 = vld [vmem:[#allocation11 + $0xb8] sm:$0xff]
        %v708 = vld [vmem:[#allocation11 + $0xc0] sm:$0xff]
        %v709 = vld [vmem:[#allocation11 + $0xc8] sm:$0xff]
        %v710 = vld [vmem:[#allocation11 + $0xd0] sm:$0xff]
        %v711 = vld [vmem:[#allocation11 + $0xd8] sm:$0xff]
        %v712 = vld [vmem:[#allocation11 + $0xe0] sm:$0xff]
        %v713 = vld [vmem:[#allocation11 + $0xe8] sm:$0xff]
        %v714 = vld [vmem:[#allocation11 + $0xf0] sm:$0xff]
        %v715 = vld [vmem:[#allocation11 + $0xf8] sm:$0xff]
        %v716 = vld [vmem:[#allocation11 + $0x100] sm:$0xff]
        %v717 = vld [vmem:[#allocation11 + $0x108] sm:$0xff]
        %v718 = vld [vmem:[#allocation11 + $0x110] sm:$0xff]
        %v719 = vld [vmem:[#allocation11 + $0x118] sm:$0xff]
        %v720 = vld [vmem:[#allocation11 + $0x120] sm:$0xff]
        %v721 = vld [vmem:[#allocation11 + $0x128] sm:$0xff]
        %v722 = vld [vmem:[#allocation11 + $0x130] sm:$0xff]
        %v723 = vld [vmem:[#allocation11 + $0x138] sm:$0xff]
        %v724 = vld [vmem:[#allocation11 + $0x140] sm:$0xff]
        %v725 = vld [vmem:[#allocation11 + $0x148] sm:$0xff]
        %v726 = vld [vmem:[#allocation11 + $0x150] sm:$0xff]
        %v727 = vld [vmem:[#allocation11 + $0x158] sm:$0xff]
        %v728 = vld [vmem:[#allocation11 + $0x160] sm:$0xff]
        %v729 = vld [vmem:[#allocation11 + $0x168] sm:$0xff]
        %v730 = vld [vmem:[#allocation11 + $0x170] sm:$0xff]
        %v731 = vld [vmem:[#allocation11 + $0x178] sm:$0xff]
        %v732 = vld [vmem:[#allocation11 + $0x180] sm:$0xff]
        %v733 = vld [vmem:[#allocation11 + $0x188] sm:$0xff]
        %v734 = vld [vmem:[#allocation11 + $0x190] sm:$0xff]
        %v735 = vld [vmem:[#allocation11 + $0x198] sm:$0xff]
        %v736 = vld [vmem:[#allocation11 + $0x1a0] sm:$0xff]
        %v737 = vld [vmem:[#allocation11 + $0x1a8] sm:$0xff]
        %v738 = vld [vmem:[#allocation11 + $0x1b0] sm:$0xff]
        %v739 = vld [vmem:[#allocation11 + $0x1b8] sm:$0xff]
        %v740 = vld [vmem:[#allocation11 + $0x1c0] sm:$0xff]
        %v741 = vld [vmem:[#allocation11 + $0x1c8] sm:$0xff]
        %v742 = vld [vmem:[#allocation11 + $0x1d0] sm:$0xff]
        %v743 = vld [vmem:[#allocation11 + $0x1d8] sm:$0xff]
        %v744 = vld [vmem:[#allocation11 + $0x1e0] sm:$0xff]
        %v745 = vld [vmem:[#allocation11 + $0x1e8] sm:$0xff]
        %v746 = vld [vmem:[#allocation11 + $0x1f0] sm:$0xff]
        %v747 = vld [vmem:[#allocation11 + $0x1f8] sm:$0xff]
        %v748 = vld [vmem:[#allocation11 + $0x200] sm:$0xff]
        %v749 = vld [vmem:[#allocation11 + $0x208] sm:$0xff]
        %v750 = vld [vmem:[#allocation11 + $0x210] sm:$0xff]
        %v751 = vld [vmem:[#allocation11 + $0x218] sm:$0xff]
        %v752 = vld [vmem:[#allocation11 + $0x220] sm:$0xff]
        %v753 = vld [vmem:[#allocation11 + $0x228] sm:$0xff]
        %v754 = vld [vmem:[#allocation11 + $0x230] sm:$0xff]
        %v755 = vld [vmem:[#allocation11 + $0x238] sm:$0xff]
        %v756 = vld [vmem:[#allocation11 + $0x240] sm:$0xff]
        %v757 = vld [vmem:[#allocation11 + $0x248] sm:$0xff]
        %v758 = vld [vmem:[#allocation11 + $0x250] sm:$0xff]
        %v759 = vld [vmem:[#allocation11 + $0x258] sm:$0xff]
        %v760 = vld [vmem:[#allocation11 + $0x260] sm:$0xff]
        %v761 = vld [vmem:[#allocation11 + $0x268] sm:$0xff]
        %v762 = vld [vmem:[#allocation11 + $0x270] sm:$0xff]
        %v763 = vld [vmem:[#allocation11 + $0x278] sm:$0xff]
        %v764 = vld [vmem:[#allocation11 + $0x280] sm:$0xff]
        %v765 = vld [vmem:[#allocation11 + $0x288] sm:$0xff]
        %v766 = vld [vmem:[#allocation11 + $0x290] sm:$0xff]
        %v767 = vld [vmem:[#allocation11 + $0x298] sm:$0xff]
        %v768 = vld [vmem:[#allocation11 + $0x2a0] sm:$0xff]
        %v769 = vld [vmem:[#allocation11 + $0x2a8] sm:$0xff]
        %v770 = vld [vmem:[#allocation11 + $0x2b0] sm:$0xff]
        %v771 = vld [vmem:[#allocation11 + $0x2b8] sm:$0xff]
        %v772 = vld [vmem:[#allocation11 + $0x2c0] sm:$0xff]
        %v773 = vld [vmem:[#allocation11 + $0x2c8] sm:$0xff]
        %v774 = vld [vmem:[#allocation11 + $0x2d0] sm:$0xff]
        %v775 = vld [vmem:[#allocation11 + $0x2d8] sm:$0xff]
        %v776 = vld [vmem:[#allocation11 + $0x2e0] sm:$0xff]
        %v777 = vld [vmem:[#allocation11 + $0x2e8] sm:$0xff]
        %v778 = vld [vmem:[#allocation11 + $0x2f0] sm:$0xff]
        %v779 = vld [vmem:[#allocation11 + $0x2f8] sm:$0xff]
        %v780 = vld [vmem:[#allocation11 + $0x300] sm:$0xff]
        %v781 = vld [vmem:[#allocation11 + $0x308] sm:$0xff]
        %v782 = vld [vmem:[#allocation11 + $0x310] sm:$0xff]
        %v783 = vld [vmem:[#allocation11 + $0x318] sm:$0xff]
        %v784 = vld [vmem:[#allocation11 + $0x320] sm:$0xff]
        %v785 = vld [vmem:[#allocation11 + $0x328] sm:$0xff]
        %v786 = vld [vmem:[#allocation11 + $0x330] sm:$0xff]
        %v787 = vld [vmem:[#allocation11 + $0x338] sm:$0xff]
        %v788 = vld [vmem:[#allocation11 + $0x340] sm:$0xff]
        %v789 = vld [vmem:[#allocation11 + $0x348] sm:$0xff]
        %v790 = vld [vmem:[#allocation11 + $0x350] sm:$0xff]
        %v791 = vld [vmem:[#allocation11 + $0x358] sm:$0xff]
        %v792 = vld [vmem:[#allocation11 + $0x360] sm:$0xff]
        %v793 = vld [vmem:[#allocation11 + $0x368] sm:$0xff]
        %v794 = vld [vmem:[#allocation11 + $0x370] sm:$0xff]
        %v795 = vld [vmem:[#allocation11 + $0x378] sm:$0xff]
        %v796 = vld [vmem:[#allocation11 + $0x380] sm:$0xff]
        %v797 = vld [vmem:[#allocation11 + $0x388] sm:$0xff]
        %v798 = vld [vmem:[#allocation11 + $0x390] sm:$0xff]
        %v799 = vld [vmem:[#allocation11 + $0x398] sm:$0xff]
        %v800 = vld [vmem:[#allocation11 + $0x3a0] sm:$0xff]
        %v801 = vld [vmem:[#allocation11 + $0x3a8] sm:$0xff]
        %v802 = vld [vmem:[#allocation11 + $0x3b0] sm:$0xff]
        %v803 = vld [vmem:[#allocation11 + $0x3b8] sm:$0xff]
        %v804 = vld [vmem:[#allocation11 + $0x3c0] sm:$0xff]
        %v805 = vld [vmem:[#allocation11 + $0x3c8] sm:$0xff]
        %v806 = vld [vmem:[#allocation11 + $0x3d0] sm:$0xff]
        %v807 = vld [vmem:[#allocation11 + $0x3d8] sm:$0xff]
        %v808 = vld [vmem:[#allocation11 + $0x3e0] sm:$0xff]
        %v809 = vld [vmem:[#allocation11 + $0x3e8] sm:$0xff]
        %v810 = vld [vmem:[#allocation11 + $0x3f0] sm:$0xff]
        %v811 = vld [vmem:[#allocation11 + $0x3f8] sm:$0xff]
        %v812 = vld [vmem:[#allocation13] sm:$0xf]
        %v814 = vlaneseq
        %v815 = vshrl.u32 %v814, 7
        %v816 = vsub.s32 0, %v815
        %v817 = vrot.slane %v812, %v816
        %v818 = vlaneseq
        %v819 = vshrl.u32 %v818, 7
        %v820 = vsub.s32 1, %v819
        %v821 = vrot.slane %v812, %v820
        %v822 = vlaneseq
        %v823 = vshrl.u32 %v822, 7
        %v824 = vsub.s32 2, %v823
        %v825 = vrot.slane %v812, %v824
        %v826 = vlaneseq
        %v827 = vshrl.u32 %v826, 7
        %v828 = vsub.s32 3, %v827
        %v829 = vrot.slane %v812, %v828
        %v962 = vunpack.c.l.b16 %v684
        %v963 = vunpack.c.h.b16 %v684
        %v964 = vunpack.c.l.b16 %v685
        %v965 = vunpack.c.h.b16 %v685
        %v966 = vunpack.c.l.b16 %v686
        %v967 = vunpack.c.h.b16 %v686
        %v968 = vunpack.c.l.b16 %v687
        %v969 = vunpack.c.h.b16 %v687
        %v970 = vunpack.c.l.b16 %v688
        %v971 = vunpack.c.h.b16 %v688
        %v972 = vunpack.c.l.b16 %v689
        %v973 = vunpack.c.h.b16 %v689
        %v974 = vunpack.c.l.b16 %v690
        %v975 = vunpack.c.h.b16 %v690
        %v976 = vunpack.c.l.b16 %v691
        %v977 = vunpack.c.h.b16 %v691
        %v978 = vunpack.c.l.b16 %v692
        %v979 = vunpack.c.h.b16 %v692
        %v980 = vunpack.c.l.b16 %v693
        %v981 = vunpack.c.h.b16 %v693
        %v982 = vunpack.c.l.b16 %v694
        %v983 = vunpack.c.h.b16 %v694
        %v984 = vunpack.c.l.b16 %v695
        %v985 = vunpack.c.h.b16 %v695
        %v986 = vunpack.c.l.b16 %v696
        %v987 = vunpack.c.h.b16 %v696
        %v988 = vunpack.c.l.b16 %v697
        %v989 = vunpack.c.h.b16 %v697
        %v990 = vunpack.c.l.b16 %v698
        %v991 = vunpack.c.h.b16 %v698
        %v992 = vunpack.c.l.b16 %v699
        %v993 = vunpack.c.h.b16 %v699
        %v994 = vunpack.c.l.b16 %v700
        %v995 = vunpack.c.h.b16 %v700
        %v996 = vunpack.c.l.b16 %v701
        %v997 = vunpack.c.h.b16 %v701
        %v998 = vunpack.c.l.b16 %v702
        %v999 = vunpack.c.h.b16 %v702
        %v1000 = vunpack.c.l.b16 %v703
        %v1001 = vunpack.c.h.b16 %v703
        %v1002 = vunpack.c.l.b16 %v704
        %v1003 = vunpack.c.h.b16 %v704
        %v1004 = vunpack.c.l.b16 %v705
        %v1005 = vunpack.c.h.b16 %v705
        %v1006 = vunpack.c.l.b16 %v706
        %v1007 = vunpack.c.h.b16 %v706
        %v1008 = vunpack.c.l.b16 %v707
        %v1009 = vunpack.c.h.b16 %v707
        %v1010 = vunpack.c.l.b16 %v708
        %v1011 = vunpack.c.h.b16 %v708
        %v1012 = vunpack.c.l.b16 %v709
        %v1013 = vunpack.c.h.b16 %v709
        %v1014 = vunpack.c.l.b16 %v710
        %v1015 = vunpack.c.h.b16 %v710
        %v1016 = vunpack.c.l.b16 %v711
        %v1017 = vunpack.c.h.b16 %v711
        %v1018 = vunpack.c.l.b16 %v712
        %v1019 = vunpack.c.h.b16 %v712
        %v1020 = vunpack.c.l.b16 %v713
        %v1021 = vunpack.c.h.b16 %v713
        %v1022 = vunpack.c.l.b16 %v714
        %v1023 = vunpack.c.h.b16 %v714
        %v1024 = vunpack.c.l.b16 %v715
        %v1025 = vunpack.c.h.b16 %v715
        %v1026 = vunpack.c.l.b16 %v716
        %v1027 = vunpack.c.h.b16 %v716
        %v1028 = vunpack.c.l.b16 %v717
        %v1029 = vunpack.c.h.b16 %v717
        %v1030 = vunpack.c.l.b16 %v718
        %v1031 = vunpack.c.h.b16 %v718
        %v1032 = vunpack.c.l.b16 %v719
        %v1033 = vunpack.c.h.b16 %v719
        %v1034 = vunpack.c.l.b16 %v720
        %v1035 = vunpack.c.h.b16 %v720
        %v1036 = vunpack.c.l.b16 %v721
        %v1037 = vunpack.c.h.b16 %v721
        %v1038 = vunpack.c.l.b16 %v722
        %v1039 = vunpack.c.h.b16 %v722
        %v1040 = vunpack.c.l.b16 %v723
        %v1041 = vunpack.c.h.b16 %v723
        %v1042 = vunpack.c.l.b16 %v724
        %v1043 = vunpack.c.h.b16 %v724
        %v1044 = vunpack.c.l.b16 %v725
        %v1045 = vunpack.c.h.b16 %v725
        %v1046 = vunpack.c.l.b16 %v726
        %v1047 = vunpack.c.h.b16 %v726
        %v1048 = vunpack.c.l.b16 %v727
        %v1049 = vunpack.c.h.b16 %v727
        %v1050 = vunpack.c.l.b16 %v728
        %v1051 = vunpack.c.h.b16 %v728
        %v1052 = vunpack.c.l.b16 %v729
        %v1053 = vunpack.c.h.b16 %v729
        %v1054 = vunpack.c.l.b16 %v730
        %v1055 = vunpack.c.h.b16 %v730
        %v1056 = vunpack.c.l.b16 %v731
        %v1057 = vunpack.c.h.b16 %v731
        %v1058 = vunpack.c.l.b16 %v732
        %v1059 = vunpack.c.h.b16 %v732
        %v1060 = vunpack.c.l.b16 %v733
        %v1061 = vunpack.c.h.b16 %v733
        %v1062 = vunpack.c.l.b16 %v734
        %v1063 = vunpack.c.h.b16 %v734
        %v1064 = vunpack.c.l.b16 %v735
        %v1065 = vunpack.c.h.b16 %v735
        %v1066 = vunpack.c.l.b16 %v736
        %v1067 = vunpack.c.h.b16 %v736
        %v1068 = vunpack.c.l.b16 %v737
        %v1069 = vunpack.c.h.b16 %v737
        %v1070 = vunpack.c.l.b16 %v738
        %v1071 = vunpack.c.h.b16 %v738
        %v1072 = vunpack.c.l.b16 %v739
        %v1073 = vunpack.c.h.b16 %v739
        %v1074 = vunpack.c.l.b16 %v740
        %v1075 = vunpack.c.h.b16 %v740
        %v1076 = vunpack.c.l.b16 %v741
        %v1077 = vunpack.c.h.b16 %v741
        %v1078 = vunpack.c.l.b16 %v742
        %v1079 = vunpack.c.h.b16 %v742
        %v1080 = vunpack.c.l.b16 %v743
        %v1081 = vunpack.c.h.b16 %v743
        %v1082 = vunpack.c.l.b16 %v744
        %v1083 = vunpack.c.h.b16 %v744
        %v1084 = vunpack.c.l.b16 %v745
        %v1085 = vunpack.c.h.b16 %v745
        %v1086 = vunpack.c.l.b16 %v746
        %v1087 = vunpack.c.h.b16 %v746
        %v1088 = vunpack.c.l.b16 %v747
        %v1089 = vunpack.c.h.b16 %v747
        %v1090 = vunpack.c.l.b16 %v748
        %v1091 = vunpack.c.h.b16 %v748
        %v1092 = vunpack.c.l.b16 %v749
        %v1093 = vunpack.c.h.b16 %v749
        %v1094 = vunpack.c.l.b16 %v750
        %v1095 = vunpack.c.h.b16 %v750
        %v1096 = vunpack.c.l.b16 %v751
        %v1097 = vunpack.c.h.b16 %v751
        %v1098 = vunpack.c.l.b16 %v752
        %v1099 = vunpack.c.h.b16 %v752
        %v1100 = vunpack.c.l.b16 %v753
        %v1101 = vunpack.c.h.b16 %v753
        %v1102 = vunpack.c.l.b16 %v754
        %v1103 = vunpack.c.h.b16 %v754
        %v1104 = vunpack.c.l.b16 %v755
        %v1105 = vunpack.c.h.b16 %v755
        %v1106 = vunpack.c.l.b16 %v756
        %v1107 = vunpack.c.h.b16 %v756
        %v1108 = vunpack.c.l.b16 %v757
        %v1109 = vunpack.c.h.b16 %v757
        %v1110 = vunpack.c.l.b16 %v758
        %v1111 = vunpack.c.h.b16 %v758
        %v1112 = vunpack.c.l.b16 %v759
        %v1113 = vunpack.c.h.b16 %v759
        %v1114 = vunpack.c.l.b16 %v760
        %v1115 = vunpack.c.h.b16 %v760
        %v1116 = vunpack.c.l.b16 %v761
        %v1117 = vunpack.c.h.b16 %v761
        %v1118 = vunpack.c.l.b16 %v762
        %v1119 = vunpack.c.h.b16 %v762
        %v1120 = vunpack.c.l.b16 %v763
        %v1121 = vunpack.c.h.b16 %v763
        %v1122 = vunpack.c.l.b16 %v764
        %v1123 = vunpack.c.h.b16 %v764
        %v1124 = vunpack.c.l.b16 %v765
        %v1125 = vunpack.c.h.b16 %v765
        %v1126 = vunpack.c.l.b16 %v766
        %v1127 = vunpack.c.h.b16 %v766
        %v1128 = vunpack.c.l.b16 %v767
        %v1129 = vunpack.c.h.b16 %v767
        %v1130 = vunpack.c.l.b16 %v768
        %v1131 = vunpack.c.h.b16 %v768
        %v1132 = vunpack.c.l.b16 %v769
        %v1133 = vunpack.c.h.b16 %v769
        %v1134 = vunpack.c.l.b16 %v770
        %v1135 = vunpack.c.h.b16 %v770
        %v1136 = vunpack.c.l.b16 %v771
        %v1137 = vunpack.c.h.b16 %v771
        %v1138 = vunpack.c.l.b16 %v772
        %v1139 = vunpack.c.h.b16 %v772
        %v1140 = vunpack.c.l.b16 %v773
        %v1141 = vunpack.c.h.b16 %v773
        %v1142 = vunpack.c.l.b16 %v774
        %v1143 = vunpack.c.h.b16 %v774
        %v1144 = vunpack.c.l.b16 %v775
        %v1145 = vunpack.c.h.b16 %v775
        %v1146 = vunpack.c.l.b16 %v776
        %v1147 = vunpack.c.h.b16 %v776
        %v1148 = vunpack.c.l.b16 %v777
        %v1149 = vunpack.c.h.b16 %v777
        %v1150 = vunpack.c.l.b16 %v778
        %v1151 = vunpack.c.h.b16 %v778
        %v1152 = vunpack.c.l.b16 %v779
        %v1153 = vunpack.c.h.b16 %v779
        %v1154 = vunpack.c.l.b16 %v780
        %v1155 = vunpack.c.h.b16 %v780
        %v1156 = vunpack.c.l.b16 %v781
        %v1157 = vunpack.c.h.b16 %v781
        %v1158 = vunpack.c.l.b16 %v782
        %v1159 = vunpack.c.h.b16 %v782
        %v1160 = vunpack.c.l.b16 %v783
        %v1161 = vunpack.c.h.b16 %v783
        %v1162 = vunpack.c.l.b16 %v784
        %v1163 = vunpack.c.h.b16 %v784
        %v1164 = vunpack.c.l.b16 %v785
        %v1165 = vunpack.c.h.b16 %v785
        %v1166 = vunpack.c.l.b16 %v786
        %v1167 = vunpack.c.h.b16 %v786
        %v1168 = vunpack.c.l.b16 %v787
        %v1169 = vunpack.c.h.b16 %v787
        %v1170 = vunpack.c.l.b16 %v788
        %v1171 = vunpack.c.h.b16 %v788
        %v1172 = vunpack.c.l.b16 %v789
        %v1173 = vunpack.c.h.b16 %v789
        %v1174 = vunpack.c.l.b16 %v790
        %v1175 = vunpack.c.h.b16 %v790
        %v1176 = vunpack.c.l.b16 %v791
        %v1177 = vunpack.c.h.b16 %v791
        %v1178 = vunpack.c.l.b16 %v792
        %v1179 = vunpack.c.h.b16 %v792
        %v1180 = vunpack.c.l.b16 %v793
        %v1181 = vunpack.c.h.b16 %v793
        %v1182 = vunpack.c.l.b16 %v794
        %v1183 = vunpack.c.h.b16 %v794
        %v1184 = vunpack.c.l.b16 %v795
        %v1185 = vunpack.c.h.b16 %v795
        %v1186 = vunpack.c.l.b16 %v796
        %v1187 = vunpack.c.h.b16 %v796
        %v1188 = vunpack.c.l.b16 %v797
        %v1189 = vunpack.c.h.b16 %v797
        %v1190 = vunpack.c.l.b16 %v798
        %v1191 = vunpack.c.h.b16 %v798
        %v1192 = vunpack.c.l.b16 %v799
        %v1193 = vunpack.c.h.b16 %v799
        %v1194 = vunpack.c.l.b16 %v800
        %v1195 = vunpack.c.h.b16 %v800
        %v1196 = vunpack.c.l.b16 %v801
        %v1197 = vunpack.c.h.b16 %v801
        %v1198 = vunpack.c.l.b16 %v802
        %v1199 = vunpack.c.h.b16 %v802
        %v1200 = vunpack.c.l.b16 %v803
        %v1201 = vunpack.c.h.b16 %v803
        %v1202 = vunpack.c.l.b16 %v804
        %v1203 = vunpack.c.h.b16 %v804
        %v1204 = vunpack.c.l.b16 %v805
        %v1205 = vunpack.c.h.b16 %v805
        %v1206 = vunpack.c.l.b16 %v806
        %v1207 = vunpack.c.h.b16 %v806
        %v1208 = vunpack.c.l.b16 %v807
        %v1209 = vunpack.c.h.b16 %v807
        %v1210 = vunpack.c.l.b16 %v808
        %v1211 = vunpack.c.h.b16 %v808
        %v1212 = vunpack.c.l.b16 %v809
        %v1213 = vunpack.c.h.b16 %v809
        %v1214 = vunpack.c.l.b16 %v810
        %v1215 = vunpack.c.h.b16 %v810
        %v1216 = vunpack.c.l.b16 %v811
        %v1217 = vunpack.c.h.b16 %v811
        %v1218 = vpack.c.b16 %v966, %v962
        %v1219 = vpack.c.b16 %v967, %v963
        %v1220 = vpack.c.b16 %v968, %v964
        %v1221 = vpack.c.b16 %v969, %v965
        %v1222 = vpack.c.b16 %v974, %v970
        %v1223 = vpack.c.b16 %v975, %v971
        %v1224 = vpack.c.b16 %v976, %v972
        %v1225 = vpack.c.b16 %v977, %v973
        %v1226 = vpack.c.b16 %v982, %v978
        %v1227 = vpack.c.b16 %v983, %v979
        %v1228 = vpack.c.b16 %v984, %v980
        %v1229 = vpack.c.b16 %v985, %v981
        %v1230 = vpack.c.b16 %v990, %v986
        %v1231 = vpack.c.b16 %v991, %v987
        %v1232 = vpack.c.b16 %v992, %v988
        %v1233 = vpack.c.b16 %v993, %v989
        %v1234 = vpack.c.b16 %v998, %v994
        %v1235 = vpack.c.b16 %v999, %v995
        %v1236 = vpack.c.b16 %v1000, %v996
        %v1237 = vpack.c.b16 %v1001, %v997
        %v1238 = vpack.c.b16 %v1006, %v1002
        %v1239 = vpack.c.b16 %v1007, %v1003
        %v1240 = vpack.c.b16 %v1008, %v1004
        %v1241 = vpack.c.b16 %v1009, %v1005
        %v1242 = vpack.c.b16 %v1014, %v1010
        %v1243 = vpack.c.b16 %v1015, %v1011
        %v1244 = vpack.c.b16 %v1016, %v1012
        %v1245 = vpack.c.b16 %v1017, %v1013
        %v1246 = vpack.c.b16 %v1022, %v1018
        %v1247 = vpack.c.b16 %v1023, %v1019
        %v1248 = vpack.c.b16 %v1024, %v1020
        %v1249 = vpack.c.b16 %v1025, %v1021
        %v1250 = vpack.c.b16 %v1030, %v1026
        %v1251 = vpack.c.b16 %v1031, %v1027
        %v1252 = vpack.c.b16 %v1032, %v1028
        %v1253 = vpack.c.b16 %v1033, %v1029
        %v1254 = vpack.c.b16 %v1038, %v1034
        %v1255 = vpack.c.b16 %v1039, %v1035
        %v1256 = vpack.c.b16 %v1040, %v1036
        %v1257 = vpack.c.b16 %v1041, %v1037
        %v1258 = vpack.c.b16 %v1046, %v1042
        %v1259 = vpack.c.b16 %v1047, %v1043
        %v1260 = vpack.c.b16 %v1048, %v1044
        %v1261 = vpack.c.b16 %v1049, %v1045
        %v1262 = vpack.c.b16 %v1054, %v1050
        %v1263 = vpack.c.b16 %v1055, %v1051
        %v1264 = vpack.c.b16 %v1056, %v1052
        %v1265 = vpack.c.b16 %v1057, %v1053
        %v1266 = vpack.c.b16 %v1062, %v1058
        %v1267 = vpack.c.b16 %v1063, %v1059
        %v1268 = vpack.c.b16 %v1064, %v1060
        %v1269 = vpack.c.b16 %v1065, %v1061
        %v1270 = vpack.c.b16 %v1070, %v1066
        %v1271 = vpack.c.b16 %v1071, %v1067
        %v1272 = vpack.c.b16 %v1072, %v1068
        %v1273 = vpack.c.b16 %v1073, %v1069
        %v1274 = vpack.c.b16 %v1078, %v1074
        %v1275 = vpack.c.b16 %v1079, %v1075
        %v1276 = vpack.c.b16 %v1080, %v1076
        %v1277 = vpack.c.b16 %v1081, %v1077
        %v1278 = vpack.c.b16 %v1086, %v1082
        %v1279 = vpack.c.b16 %v1087, %v1083
        %v1280 = vpack.c.b16 %v1088, %v1084
        %v1281 = vpack.c.b16 %v1089, %v1085
        %v1282 = vpack.c.b16 %v1094, %v1090
        %v1283 = vpack.c.b16 %v1095, %v1091
        %v1284 = vpack.c.b16 %v1096, %v1092
        %v1285 = vpack.c.b16 %v1097, %v1093
        %v1286 = vpack.c.b16 %v1102, %v1098
        %v1287 = vpack.c.b16 %v1103, %v1099
        %v1288 = vpack.c.b16 %v1104, %v1100
        %v1289 = vpack.c.b16 %v1105, %v1101
        %v1290 = vpack.c.b16 %v1110, %v1106
        %v1291 = vpack.c.b16 %v1111, %v1107
        %v1292 = vpack.c.b16 %v1112, %v1108
        %v1293 = vpack.c.b16 %v1113, %v1109
        %v1294 = vpack.c.b16 %v1118, %v1114
        %v1295 = vpack.c.b16 %v1119, %v1115
        %v1296 = vpack.c.b16 %v1120, %v1116
        %v1297 = vpack.c.b16 %v1121, %v1117
        %v1298 = vpack.c.b16 %v1126, %v1122
        %v1299 = vpack.c.b16 %v1127, %v1123
        %v1300 = vpack.c.b16 %v1128, %v1124
        %v1301 = vpack.c.b16 %v1129, %v1125
        %v1302 = vpack.c.b16 %v1134, %v1130
        %v1303 = vpack.c.b16 %v1135, %v1131
        %v1304 = vpack.c.b16 %v1136, %v1132
        %v1305 = vpack.c.b16 %v1137, %v1133
        %v1306 = vpack.c.b16 %v1142, %v1138
        %v1307 = vpack.c.b16 %v1143, %v1139
        %v1308 = vpack.c.b16 %v1144, %v1140
        %v1309 = vpack.c.b16 %v1145, %v1141
        %v1310 = vpack.c.b16 %v1150, %v1146
        %v1311 = vpack.c.b16 %v1151, %v1147
        %v1312 = vpack.c.b16 %v1152, %v1148
        %v1313 = vpack.c.b16 %v1153, %v1149
        %v1314 = vpack.c.b16 %v1158, %v1154
        %v1315 = vpack.c.b16 %v1159, %v1155
        %v1316 = vpack.c.b16 %v1160, %v1156
        %v1317 = vpack.c.b16 %v1161, %v1157
        %v1318 = vpack.c.b16 %v1166, %v1162
        %v1319 = vpack.c.b16 %v1167, %v1163
        %v1320 = vpack.c.b16 %v1168, %v1164
        %v1321 = vpack.c.b16 %v1169, %v1165
        %v1322 = vpack.c.b16 %v1174, %v1170
        %v1323 = vpack.c.b16 %v1175, %v1171
        %v1324 = vpack.c.b16 %v1176, %v1172
        %v1325 = vpack.c.b16 %v1177, %v1173
        %v1326 = vpack.c.b16 %v1182, %v1178
        %v1327 = vpack.c.b16 %v1183, %v1179
        %v1328 = vpack.c.b16 %v1184, %v1180
        %v1329 = vpack.c.b16 %v1185, %v1181
        %v1330 = vpack.c.b16 %v1190, %v1186
        %v1331 = vpack.c.b16 %v1191, %v1187
        %v1332 = vpack.c.b16 %v1192, %v1188
        %v1333 = vpack.c.b16 %v1193, %v1189
        %v1334 = vpack.c.b16 %v1198, %v1194
        %v1335 = vpack.c.b16 %v1199, %v1195
        %v1336 = vpack.c.b16 %v1200, %v1196
        %v1337 = vpack.c.b16 %v1201, %v1197
        %v1338 = vpack.c.b16 %v1206, %v1202
        %v1339 = vpack.c.b16 %v1207, %v1203
        %v1340 = vpack.c.b16 %v1208, %v1204
        %v1341 = vpack.c.b16 %v1209, %v1205
        %v1342 = vpack.c.b16 %v1214, %v1210
        %v1343 = vpack.c.b16 %v1215, %v1211
        %v1344 = vpack.c.b16 %v1216, %v1212
        %v1345 = vpack.c.b16 %v1217, %v1213
        %1474 = vmatprep.subr.bf16.mxu0 %v1247
        %1475 = vmatpush1.bf16.msra.mxu0 %v1246
        %1476 = vmatprep.subr.bf16.mxu0 %v1243
        %1477 = vmatpush1.bf16.msra.mxu0 %v1242
        %1478 = vmatprep.subr.bf16.mxu0 %v1239
        %1479 = vmatpush1.bf16.msra.mxu0 %v1238
        %1480 = vmatprep.subr.bf16.mxu0 %v1235
        %1481 = vmatpush1.bf16.msra.mxu0 %v1234
        %1482 = vmatprep.subr.bf16.mxu0 %v1231
        %1483 = vmatpush1.bf16.msra.mxu0 %v1230
        %1484 = vmatprep.subr.bf16.mxu0 %v1227
        %1485 = vmatpush1.bf16.msra.mxu0 %v1226
        %1486 = vmatprep.subr.bf16.mxu0 %v1223
        %1487 = vmatpush1.bf16.msra.mxu0 %v1222
        %1488 = vmatprep.subr.bf16.mxu0 %v1219
        %1489 = vmatpush1.bf16.msra.mxu0 %v1218
        %1490 = vmatprep.subr.bf16.mxu0 %v1279
        %1491 = vmatpush2.bf16.msra.mxu0 %v1278
        %1492 = vmatprep.subr.bf16.mxu0 %v1275
        %1493 = vmatpush2.bf16.msra.mxu0 %v1274
        %1494 = vmatprep.subr.bf16.mxu0 %v1271
        %1495 = vmatpush2.bf16.msra.mxu0 %v1270
        %1496 = vmatprep.subr.bf16.mxu0 %v1267
        %1497 = vmatpush2.bf16.msra.mxu0 %v1266
        %1498 = vmatprep.subr.bf16.mxu0 %v1263
        %1499 = vmatpush2.bf16.msra.mxu0 %v1262
        %1500 = vmatprep.subr.bf16.mxu0 %v1259
        %1501 = vmatpush2.bf16.msra.mxu0 %v1258
        %1502 = vmatprep.subr.bf16.mxu0 %v1255
        %1503 = vmatpush2.bf16.msra.mxu0 %v1254
        %1504 = vmatprep.subr.bf16.mxu0 %v1251
        %1505 = vmatpush2.bf16.msra.mxu0 %v1250
        %1506 = vmatprep.mubr.bf16.mxu0 %v637
        %1507 = vmatmul.mubr.bf16.gmra.mxu0 %v636
        %v1508 = vpop.f32.mrf.mxu0
        %v1509 = vadd.f32 %v817, %v1508
        %v1510 = vpop.f32.mrf.mxu0
        %v1511 = vadd.f32 %v821, %v1510
        %v1512 = vpop.f32.mrf.mxu0
        %v1513 = vpop.f32.mrf.mxu0
        %1514 = vdwg.mxu0
        %1515 = vmatprep.subr.bf16.mxu0 %v1311
        %1516 = vmatpush1.bf16.msra.mxu0 %v1310
        %1517 = vmatprep.subr.bf16.mxu0 %v1307
        %1518 = vmatpush1.bf16.msra.mxu0 %v1306
        %1519 = vmatprep.subr.bf16.mxu0 %v1303
        %1520 = vmatpush1.bf16.msra.mxu0 %v1302
        %1521 = vmatprep.subr.bf16.mxu0 %v1299
        %1522 = vmatpush1.bf16.msra.mxu0 %v1298
        %1523 = vmatprep.subr.bf16.mxu0 %v1295
        %1524 = vmatpush1.bf16.msra.mxu0 %v1294
        %1525 = vmatprep.subr.bf16.mxu0 %v1291
        %1526 = vmatpush1.bf16.msra.mxu0 %v1290
        %1527 = vmatprep.subr.bf16.mxu0 %v1287
        %1528 = vmatpush1.bf16.msra.mxu0 %v1286
        %1529 = vmatprep.subr.bf16.mxu0 %v1283
        %1530 = vmatpush1.bf16.msra.mxu0 %v1282
        %1531 = vmatprep.subr.bf16.mxu0 %v1343
        %1532 = vmatpush2.bf16.msra.mxu0 %v1342
        %1533 = vmatprep.subr.bf16.mxu0 %v1339
        %1534 = vmatpush2.bf16.msra.mxu0 %v1338
        %1535 = vmatprep.subr.bf16.mxu0 %v1335
        %1536 = vmatpush2.bf16.msra.mxu0 %v1334
        %1537 = vmatprep.subr.bf16.mxu0 %v1331
        %1538 = vmatpush2.bf16.msra.mxu0 %v1330
        %1539 = vmatprep.subr.bf16.mxu0 %v1327
        %1540 = vmatpush2.bf16.msra.mxu0 %v1326
        %1541 = vmatprep.subr.bf16.mxu0 %v1323
        %1542 = vmatpush2.bf16.msra.mxu0 %v1322
        %1543 = vmatprep.subr.bf16.mxu0 %v1319
        %1544 = vmatpush2.bf16.msra.mxu0 %v1318
        %1545 = vmatprep.subr.bf16.mxu0 %v1315
        %1546 = vmatpush2.bf16.msra.mxu0 %v1314
        %1547 = vmatprep.mubr.bf16.mxu0 %v639
        %1548 = vmatmul.mubr.bf16.gmra.mxu0 %v638
        %v1549 = vpop.f32.mrf.mxu0
        %v1550 = vadd.f32 %v1509, %v1549
        %v1551 = vpop.f32.mrf.mxu0
        %v1552 = vadd.f32 %v1511, %v1551
        %v1553 = vpop.f32.mrf.mxu0
        %v1554 = vpop.f32.mrf.mxu0
        %1555 = vdwg.mxu0
        %1556 = vmatprep.subr.bf16.mxu0 %v1249
        %1557 = vmatpush1.bf16.msra.mxu0 %v1248
        %1558 = vmatprep.subr.bf16.mxu0 %v1245
        %1559 = vmatpush1.bf16.msra.mxu0 %v1244
        %1560 = vmatprep.subr.bf16.mxu0 %v1241
        %1561 = vmatpush1.bf16.msra.mxu0 %v1240
        %1562 = vmatprep.subr.bf16.mxu0 %v1237
        %1563 = vmatpush1.bf16.msra.mxu0 %v1236
        %1564 = vmatprep.subr.bf16.mxu0 %v1233
        %1565 = vmatpush1.bf16.msra.mxu0 %v1232
        %1566 = vmatprep.subr.bf16.mxu0 %v1229
        %1567 = vmatpush1.bf16.msra.mxu0 %v1228
        %1568 = vmatprep.subr.bf16.mxu0 %v1225
        %1569 = vmatpush1.bf16.msra.mxu0 %v1224
        %1570 = vmatprep.subr.bf16.mxu0 %v1221
        %1571 = vmatpush1.bf16.msra.mxu0 %v1220
        %1572 = vmatprep.subr.bf16.mxu0 %v1281
        %1573 = vmatpush2.bf16.msra.mxu0 %v1280
        %1574 = vmatprep.subr.bf16.mxu0 %v1277
        %1575 = vmatpush2.bf16.msra.mxu0 %v1276
        %1576 = vmatprep.subr.bf16.mxu0 %v1273
        %1577 = vmatpush2.bf16.msra.mxu0 %v1272
        %1578 = vmatprep.subr.bf16.mxu0 %v1269
        %1579 = vmatpush2.bf16.msra.mxu0 %v1268
        %1580 = vmatprep.subr.bf16.mxu0 %v1265
        %1581 = vmatpush2.bf16.msra.mxu0 %v1264
        %1582 = vmatprep.subr.bf16.mxu0 %v1261
        %1583 = vmatpush2.bf16.msra.mxu0 %v1260
        %1584 = vmatprep.subr.bf16.mxu0 %v1257
        %1585 = vmatpush2.bf16.msra.mxu0 %v1256
        %1586 = vmatprep.subr.bf16.mxu0 %v1253
        %1587 = vmatpush2.bf16.msra.mxu0 %v1252
        %1588 = vmatprep.mubr.bf16.mxu0 %v637
        %1589 = vmatmul.mubr.bf16.gmra.mxu0 %v636
        %v1590 = vpop.f32.mrf.mxu0
        %v1591 = vadd.f32 %v825, %v1590
        %v1592 = vpop.f32.mrf.mxu0
        %v1593 = vadd.f32 %v829, %v1592
        %v1594 = vpop.f32.mrf.mxu0
        %v1595 = vpop.f32.mrf.mxu0
        %1596 = vdwg.mxu0
        %1597 = vmatprep.subr.bf16.mxu0 %v1313
        %1598 = vmatpush1.bf16.msra.mxu0 %v1312
        %1599 = vmatprep.subr.bf16.mxu0 %v1309
        %1600 = vmatpush1.bf16.msra.mxu0 %v1308
        %1601 = vmatprep.subr.bf16.mxu0 %v1305
        %1602 = vmatpush1.bf16.msra.mxu0 %v1304
        %1603 = vmatprep.subr.bf16.mxu0 %v1301
        %1604 = vmatpush1.bf16.msra.mxu0 %v1300
        %1605 = vmatprep.subr.bf16.mxu0 %v1297
        %1606 = vmatpush1.bf16.msra.mxu0 %v1296
        %1607 = vmatprep.subr.bf16.mxu0 %v1293
        %1608 = vmatpush1.bf16.msra.mxu0 %v1292
        %1609 = vmatprep.subr.bf16.mxu0 %v1289
        %1610 = vmatpush1.bf16.msra.mxu0 %v1288
        %1611 = vmatprep.subr.bf16.mxu0 %v1285
        %1612 = vmatpush1.bf16.msra.mxu0 %v1284
        %1613 = vmatprep.subr.bf16.mxu0 %v1345
        %1614 = vmatpush2.bf16.msra.mxu0 %v1344
        %1615 = vmatprep.subr.bf16.mxu0 %v1341
        %1616 = vmatpush2.bf16.msra.mxu0 %v1340
        %1617 = vmatprep.subr.bf16.mxu0 %v1337
        %1618 = vmatpush2.bf16.msra.mxu0 %v1336
        %1619 = vmatprep.subr.bf16.mxu0 %v1333
        %1620 = vmatpush2.bf16.msra.mxu0 %v1332
        %1621 = vmatprep.subr.bf16.mxu0 %v1329
        %1622 = vmatpush2.bf16.msra.mxu0 %v1328
        %1623 = vmatprep.subr.bf16.mxu0 %v1325
        %1624 = vmatpush2.bf16.msra.mxu0 %v1324
        %1625 = vmatprep.subr.bf16.mxu0 %v1321
        %1626 = vmatpush2.bf16.msra.mxu0 %v1320
        %1627 = vmatprep.subr.bf16.mxu0 %v1317
        %1628 = vmatpush2.bf16.msra.mxu0 %v1316
        %1629 = vmatprep.mubr.bf16.mxu0 %v639
        %1630 = vmatmul.mubr.bf16.gmra.mxu0 %v638
        %v1631 = vpop.f32.mrf.mxu0
        %v1632 = vadd.f32 %v1591, %v1631
        %v1633 = vpop.f32.mrf.mxu0
        %v1634 = vadd.f32 %v1593, %v1633
        %v1635 = vpop.f32.mrf.mxu0
        %v1636 = vpop.f32.mrf.mxu0
        %1637 = vdwg.mxu0
        %v1638 = vld [vmem:[#allocation14] sm:$0xff]
        %v1639 = vld [vmem:[#allocation14 + $0x8] sm:$0xff]
        %v1640 = vld [vmem:[#allocation14 + $0x10] sm:$0xff]
        %v1641 = vld [vmem:[#allocation14 + $0x18] sm:$0xff]
        %v1642 = vld [vmem:[#allocation14 + $0x20] sm:$0xff]
        %v1643 = vld [vmem:[#allocation14 + $0x28] sm:$0xff]
        %v1644 = vld [vmem:[#allocation14 + $0x30] sm:$0xff]
        %v1645 = vld [vmem:[#allocation14 + $0x38] sm:$0xff]
        %v1646 = vld [vmem:[#allocation14 + $0x40] sm:$0xff]
        %v1647 = vld [vmem:[#allocation14 + $0x48] sm:$0xff]
        %v1648 = vld [vmem:[#allocation14 + $0x50] sm:$0xff]
        %v1649 = vld [vmem:[#allocation14 + $0x58] sm:$0xff]
        %v1650 = vld [vmem:[#allocation14 + $0x60] sm:$0xff]
        %v1651 = vld [vmem:[#allocation14 + $0x68] sm:$0xff]
        %v1652 = vld [vmem:[#allocation14 + $0x70] sm:$0xff]
        %v1653 = vld [vmem:[#allocation14 + $0x78] sm:$0xff]
        %v1654 = vld [vmem:[#allocation14 + $0x80] sm:$0xff]
        %v1655 = vld [vmem:[#allocation14 + $0x88] sm:$0xff]
        %v1656 = vld [vmem:[#allocation14 + $0x90] sm:$0xff]
        %v1657 = vld [vmem:[#allocation14 + $0x98] sm:$0xff]
        %v1658 = vld [vmem:[#allocation14 + $0xa0] sm:$0xff]
        %v1659 = vld [vmem:[#allocation14 + $0xa8] sm:$0xff]
        %v1660 = vld [vmem:[#allocation14 + $0xb0] sm:$0xff]
        %v1661 = vld [vmem:[#allocation14 + $0xb8] sm:$0xff]
        %v1662 = vld [vmem:[#allocation14 + $0xc0] sm:$0xff]
        %v1663 = vld [vmem:[#allocation14 + $0xc8] sm:$0xff]
        %v1664 = vld [vmem:[#allocation14 + $0xd0] sm:$0xff]
        %v1665 = vld [vmem:[#allocation14 + $0xd8] sm:$0xff]
        %v1666 = vld [vmem:[#allocation14 + $0xe0] sm:$0xff]
        %v1667 = vld [vmem:[#allocation14 + $0xe8] sm:$0xff]
        %v1668 = vld [vmem:[#allocation14 + $0xf0] sm:$0xff]
        %v1669 = vld [vmem:[#allocation14 + $0xf8] sm:$0xff]
        %v1670 = vld [vmem:[#allocation14 + $0x100] sm:$0xff]
        %v1671 = vld [vmem:[#allocation14 + $0x108] sm:$0xff]
        %v1672 = vld [vmem:[#allocation14 + $0x110] sm:$0xff]
        %v1673 = vld [vmem:[#allocation14 + $0x118] sm:$0xff]
        %v1674 = vld [vmem:[#allocation14 + $0x120] sm:$0xff]
        %v1675 = vld [vmem:[#allocation14 + $0x128] sm:$0xff]
        %v1676 = vld [vmem:[#allocation14 + $0x130] sm:$0xff]
        %v1677 = vld [vmem:[#allocation14 + $0x138] sm:$0xff]
        %v1678 = vld [vmem:[#allocation14 + $0x140] sm:$0xff]
        %v1679 = vld [vmem:[#allocation14 + $0x148] sm:$0xff]
        %v1680 = vld [vmem:[#allocation14 + $0x150] sm:$0xff]
        %v1681 = vld [vmem:[#allocation14 + $0x158] sm:$0xff]
        %v1682 = vld [vmem:[#allocation14 + $0x160] sm:$0xff]
        %v1683 = vld [vmem:[#allocation14 + $0x168] sm:$0xff]
        %v1684 = vld [vmem:[#allocation14 + $0x170] sm:$0xff]
        %v1685 = vld [vmem:[#allocation14 + $0x178] sm:$0xff]
        %v1686 = vld [vmem:[#allocation14 + $0x180] sm:$0xff]
        %v1687 = vld [vmem:[#allocation14 + $0x188] sm:$0xff]
        %v1688 = vld [vmem:[#allocation14 + $0x190] sm:$0xff]
        %v1689 = vld [vmem:[#allocation14 + $0x198] sm:$0xff]
        %v1690 = vld [vmem:[#allocation14 + $0x1a0] sm:$0xff]
        %v1691 = vld [vmem:[#allocation14 + $0x1a8] sm:$0xff]
        %v1692 = vld [vmem:[#allocation14 + $0x1b0] sm:$0xff]
        %v1693 = vld [vmem:[#allocation14 + $0x1b8] sm:$0xff]
        %v1694 = vld [vmem:[#allocation14 + $0x1c0] sm:$0xff]
        %v1695 = vld [vmem:[#allocation14 + $0x1c8] sm:$0xff]
        %v1696 = vld [vmem:[#allocation14 + $0x1d0] sm:$0xff]
        %v1697 = vld [vmem:[#allocation14 + $0x1d8] sm:$0xff]
        %v1698 = vld [vmem:[#allocation14 + $0x1e0] sm:$0xff]
        %v1699 = vld [vmem:[#allocation14 + $0x1e8] sm:$0xff]
        %v1700 = vld [vmem:[#allocation14 + $0x1f0] sm:$0xff]
        %v1701 = vld [vmem:[#allocation14 + $0x1f8] sm:$0xff]
        %v1702 = vld [vmem:[#allocation14 + $0x200] sm:$0xff]
        %v1703 = vld [vmem:[#allocation14 + $0x208] sm:$0xff]
        %v1704 = vld [vmem:[#allocation14 + $0x210] sm:$0xff]
        %v1705 = vld [vmem:[#allocation14 + $0x218] sm:$0xff]
        %v1706 = vld [vmem:[#allocation14 + $0x220] sm:$0xff]
        %v1707 = vld [vmem:[#allocation14 + $0x228] sm:$0xff]
        %v1708 = vld [vmem:[#allocation14 + $0x230] sm:$0xff]
        %v1709 = vld [vmem:[#allocation14 + $0x238] sm:$0xff]
        %v1710 = vld [vmem:[#allocation14 + $0x240] sm:$0xff]
        %v1711 = vld [vmem:[#allocation14 + $0x248] sm:$0xff]
        %v1712 = vld [vmem:[#allocation14 + $0x250] sm:$0xff]
        %v1713 = vld [vmem:[#allocation14 + $0x258] sm:$0xff]
        %v1714 = vld [vmem:[#allocation14 + $0x260] sm:$0xff]
        %v1715 = vld [vmem:[#allocation14 + $0x268] sm:$0xff]
        %v1716 = vld [vmem:[#allocation14 + $0x270] sm:$0xff]
        %v1717 = vld [vmem:[#allocation14 + $0x278] sm:$0xff]
        %v1718 = vld [vmem:[#allocation14 + $0x280] sm:$0xff]
        %v1719 = vld [vmem:[#allocation14 + $0x288] sm:$0xff]
        %v1720 = vld [vmem:[#allocation14 + $0x290] sm:$0xff]
        %v1721 = vld [vmem:[#allocation14 + $0x298] sm:$0xff]
        %v1722 = vld [vmem:[#allocation14 + $0x2a0] sm:$0xff]
        %v1723 = vld [vmem:[#allocation14 + $0x2a8] sm:$0xff]
        %v1724 = vld [vmem:[#allocation14 + $0x2b0] sm:$0xff]
        %v1725 = vld [vmem:[#allocation14 + $0x2b8] sm:$0xff]
        %v1726 = vld [vmem:[#allocation14 + $0x2c0] sm:$0xff]
        %v1727 = vld [vmem:[#allocation14 + $0x2c8] sm:$0xff]
        %v1728 = vld [vmem:[#allocation14 + $0x2d0] sm:$0xff]
        %v1729 = vld [vmem:[#allocation14 + $0x2d8] sm:$0xff]
        %v1730 = vld [vmem:[#allocation14 + $0x2e0] sm:$0xff]
        %v1731 = vld [vmem:[#allocation14 + $0x2e8] sm:$0xff]
        %v1732 = vld [vmem:[#allocation14 + $0x2f0] sm:$0xff]
        %v1733 = vld [vmem:[#allocation14 + $0x2f8] sm:$0xff]
        %v1734 = vld [vmem:[#allocation14 + $0x300] sm:$0xff]
        %v1735 = vld [vmem:[#allocation14 + $0x308] sm:$0xff]
        %v1736 = vld [vmem:[#allocation14 + $0x310] sm:$0xff]
        %v1737 = vld [vmem:[#allocation14 + $0x318] sm:$0xff]
        %v1738 = vld [vmem:[#allocation14 + $0x320] sm:$0xff]
        %v1739 = vld [vmem:[#allocation14 + $0x328] sm:$0xff]
        %v1740 = vld [vmem:[#allocation14 + $0x330] sm:$0xff]
        %v1741 = vld [vmem:[#allocation14 + $0x338] sm:$0xff]
        %v1742 = vld [vmem:[#allocation14 + $0x340] sm:$0xff]
        %v1743 = vld [vmem:[#allocation14 + $0x348] sm:$0xff]
        %v1744 = vld [vmem:[#allocation14 + $0x350] sm:$0xff]
        %v1745 = vld [vmem:[#allocation14 + $0x358] sm:$0xff]
        %v1746 = vld [vmem:[#allocation14 + $0x360] sm:$0xff]
        %v1747 = vld [vmem:[#allocation14 + $0x368] sm:$0xff]
        %v1748 = vld [vmem:[#allocation14 + $0x370] sm:$0xff]
        %v1749 = vld [vmem:[#allocation14 + $0x378] sm:$0xff]
        %v1750 = vld [vmem:[#allocation14 + $0x380] sm:$0xff]
        %v1751 = vld [vmem:[#allocation14 + $0x388] sm:$0xff]
        %v1752 = vld [vmem:[#allocation14 + $0x390] sm:$0xff]
        %v1753 = vld [vmem:[#allocation14 + $0x398] sm:$0xff]
        %v1754 = vld [vmem:[#allocation14 + $0x3a0] sm:$0xff]
        %v1755 = vld [vmem:[#allocation14 + $0x3a8] sm:$0xff]
        %v1756 = vld [vmem:[#allocation14 + $0x3b0] sm:$0xff]
        %v1757 = vld [vmem:[#allocation14 + $0x3b8] sm:$0xff]
        %v1758 = vld [vmem:[#allocation14 + $0x3c0] sm:$0xff]
        %v1759 = vld [vmem:[#allocation14 + $0x3c8] sm:$0xff]
        %v1760 = vld [vmem:[#allocation14 + $0x3d0] sm:$0xff]
        %v1761 = vld [vmem:[#allocation14 + $0x3d8] sm:$0xff]
        %v1762 = vld [vmem:[#allocation14 + $0x3e0] sm:$0xff]
        %v1763 = vld [vmem:[#allocation14 + $0x3e8] sm:$0xff]
        %v1764 = vld [vmem:[#allocation14 + $0x3f0] sm:$0xff]
        %v1765 = vld [vmem:[#allocation14 + $0x3f8] sm:$0xff]
        %v1766 = vld [vmem:[#allocation16] sm:$0xf]
        %v1768 = vlaneseq
        %v1769 = vshrl.u32 %v1768, 7
        %v1770 = vsub.s32 0, %v1769
        %v1771 = vrot.slane %v1766, %v1770
        %v1772 = vlaneseq
        %v1773 = vshrl.u32 %v1772, 7
        %v1774 = vsub.s32 1, %v1773
        %v1775 = vrot.slane %v1766, %v1774
        %v1776 = vlaneseq
        %v1777 = vshrl.u32 %v1776, 7
        %v1778 = vsub.s32 2, %v1777
        %v1779 = vrot.slane %v1766, %v1778
        %v1780 = vlaneseq
        %v1781 = vshrl.u32 %v1780, 7
        %v1782 = vsub.s32 3, %v1781
        %v1783 = vrot.slane %v1766, %v1782
        %v1916 = vunpack.c.l.b16 %v1638
        %v1917 = vunpack.c.h.b16 %v1638
        %v1918 = vunpack.c.l.b16 %v1639
        %v1919 = vunpack.c.h.b16 %v1639
        %v1920 = vunpack.c.l.b16 %v1640
        %v1921 = vunpack.c.h.b16 %v1640
        %v1922 = vunpack.c.l.b16 %v1641
        %v1923 = vunpack.c.h.b16 %v1641
        %v1924 = vunpack.c.l.b16 %v1642
        %v1925 = vunpack.c.h.b16 %v1642
        %v1926 = vunpack.c.l.b16 %v1643
        %v1927 = vunpack.c.h.b16 %v1643
        %v1928 = vunpack.c.l.b16 %v1644
        %v1929 = vunpack.c.h.b16 %v1644
        %v1930 = vunpack.c.l.b16 %v1645
        %v1931 = vunpack.c.h.b16 %v1645
        %v1932 = vunpack.c.l.b16 %v1646
        %v1933 = vunpack.c.h.b16 %v1646
        %v1934 = vunpack.c.l.b16 %v1647
        %v1935 = vunpack.c.h.b16 %v1647
        %v1936 = vunpack.c.l.b16 %v1648
        %v1937 = vunpack.c.h.b16 %v1648
        %v1938 = vunpack.c.l.b16 %v1649
        %v1939 = vunpack.c.h.b16 %v1649
        %v1940 = vunpack.c.l.b16 %v1650
        %v1941 = vunpack.c.h.b16 %v1650
        %v1942 = vunpack.c.l.b16 %v1651
        %v1943 = vunpack.c.h.b16 %v1651
        %v1944 = vunpack.c.l.b16 %v1652
        %v1945 = vunpack.c.h.b16 %v1652
        %v1946 = vunpack.c.l.b16 %v1653
        %v1947 = vunpack.c.h.b16 %v1653
        %v1948 = vunpack.c.l.b16 %v1654
        %v1949 = vunpack.c.h.b16 %v1654
        %v1950 = vunpack.c.l.b16 %v1655
        %v1951 = vunpack.c.h.b16 %v1655
        %v1952 = vunpack.c.l.b16 %v1656
        %v1953 = vunpack.c.h.b16 %v1656
        %v1954 = vunpack.c.l.b16 %v1657
        %v1955 = vunpack.c.h.b16 %v1657
        %v1956 = vunpack.c.l.b16 %v1658
        %v1957 = vunpack.c.h.b16 %v1658
        %v1958 = vunpack.c.l.b16 %v1659
        %v1959 = vunpack.c.h.b16 %v1659
        %v1960 = vunpack.c.l.b16 %v1660
        %v1961 = vunpack.c.h.b16 %v1660
        %v1962 = vunpack.c.l.b16 %v1661
        %v1963 = vunpack.c.h.b16 %v1661
        %v1964 = vunpack.c.l.b16 %v1662
        %v1965 = vunpack.c.h.b16 %v1662
        %v1966 = vunpack.c.l.b16 %v1663
        %v1967 = vunpack.c.h.b16 %v1663
        %v1968 = vunpack.c.l.b16 %v1664
        %v1969 = vunpack.c.h.b16 %v1664
        %v1970 = vunpack.c.l.b16 %v1665
        %v1971 = vunpack.c.h.b16 %v1665
        %v1972 = vunpack.c.l.b16 %v1666
        %v1973 = vunpack.c.h.b16 %v1666
        %v1974 = vunpack.c.l.b16 %v1667
        %v1975 = vunpack.c.h.b16 %v1667
        %v1976 = vunpack.c.l.b16 %v1668
        %v1977 = vunpack.c.h.b16 %v1668
        %v1978 = vunpack.c.l.b16 %v1669
        %v1979 = vunpack.c.h.b16 %v1669
        %v1980 = vunpack.c.l.b16 %v1670
        %v1981 = vunpack.c.h.b16 %v1670
        %v1982 = vunpack.c.l.b16 %v1671
        %v1983 = vunpack.c.h.b16 %v1671
        %v1984 = vunpack.c.l.b16 %v1672
        %v1985 = vunpack.c.h.b16 %v1672
        %v1986 = vunpack.c.l.b16 %v1673
        %v1987 = vunpack.c.h.b16 %v1673
        %v1988 = vunpack.c.l.b16 %v1674
        %v1989 = vunpack.c.h.b16 %v1674
        %v1990 = vunpack.c.l.b16 %v1675
        %v1991 = vunpack.c.h.b16 %v1675
        %v1992 = vunpack.c.l.b16 %v1676
        %v1993 = vunpack.c.h.b16 %v1676
        %v1994 = vunpack.c.l.b16 %v1677
        %v1995 = vunpack.c.h.b16 %v1677
        %v1996 = vunpack.c.l.b16 %v1678
        %v1997 = vunpack.c.h.b16 %v1678
        %v1998 = vunpack.c.l.b16 %v1679
        %v1999 = vunpack.c.h.b16 %v1679
        %v2000 = vunpack.c.l.b16 %v1680
        %v2001 = vunpack.c.h.b16 %v1680
        %v2002 = vunpack.c.l.b16 %v1681
        %v2003 = vunpack.c.h.b16 %v1681
        %v2004 = vunpack.c.l.b16 %v1682
        %v2005 = vunpack.c.h.b16 %v1682
        %v2006 = vunpack.c.l.b16 %v1683
        %v2007 = vunpack.c.h.b16 %v1683
        %v2008 = vunpack.c.l.b16 %v1684
        %v2009 = vunpack.c.h.b16 %v1684
        %v2010 = vunpack.c.l.b16 %v1685
        %v2011 = vunpack.c.h.b16 %v1685
        %v2012 = vunpack.c.l.b16 %v1686
        %v2013 = vunpack.c.h.b16 %v1686
        %v2014 = vunpack.c.l.b16 %v1687
        %v2015 = vunpack.c.h.b16 %v1687
        %v2016 = vunpack.c.l.b16 %v1688
        %v2017 = vunpack.c.h.b16 %v1688
        %v2018 = vunpack.c.l.b16 %v1689
        %v2019 = vunpack.c.h.b16 %v1689
        %v2020 = vunpack.c.l.b16 %v1690
        %v2021 = vunpack.c.h.b16 %v1690
        %v2022 = vunpack.c.l.b16 %v1691
        %v2023 = vunpack.c.h.b16 %v1691
        %v2024 = vunpack.c.l.b16 %v1692
        %v2025 = vunpack.c.h.b16 %v1692
        %v2026 = vunpack.c.l.b16 %v1693
        %v2027 = vunpack.c.h.b16 %v1693
        %v2028 = vunpack.c.l.b16 %v1694
        %v2029 = vunpack.c.h.b16 %v1694
        %v2030 = vunpack.c.l.b16 %v1695
        %v2031 = vunpack.c.h.b16 %v1695
        %v2032 = vunpack.c.l.b16 %v1696
        %v2033 = vunpack.c.h.b16 %v1696
        %v2034 = vunpack.c.l.b16 %v1697
        %v2035 = vunpack.c.h.b16 %v1697
        %v2036 = vunpack.c.l.b16 %v1698
        %v2037 = vunpack.c.h.b16 %v1698
        %v2038 = vunpack.c.l.b16 %v1699
        %v2039 = vunpack.c.h.b16 %v1699
        %v2040 = vunpack.c.l.b16 %v1700
        %v2041 = vunpack.c.h.b16 %v1700
        %v2042 = vunpack.c.l.b16 %v1701
        %v2043 = vunpack.c.h.b16 %v1701
        %v2044 = vunpack.c.l.b16 %v1702
        %v2045 = vunpack.c.h.b16 %v1702
        %v2046 = vunpack.c.l.b16 %v1703
        %v2047 = vunpack.c.h.b16 %v1703
        %v2048 = vunpack.c.l.b16 %v1704
        %v2049 = vunpack.c.h.b16 %v1704
        %v2050 = vunpack.c.l.b16 %v1705
        %v2051 = vunpack.c.h.b16 %v1705
        %v2052 = vunpack.c.l.b16 %v1706
        %v2053 = vunpack.c.h.b16 %v1706
        %v2054 = vunpack.c.l.b16 %v1707
        %v2055 = vunpack.c.h.b16 %v1707
        %v2056 = vunpack.c.l.b16 %v1708
        %v2057 = vunpack.c.h.b16 %v1708
        %v2058 = vunpack.c.l.b16 %v1709
        %v2059 = vunpack.c.h.b16 %v1709
        %v2060 = vunpack.c.l.b16 %v1710
        %v2061 = vunpack.c.h.b16 %v1710
        %v2062 = vunpack.c.l.b16 %v1711
        %v2063 = vunpack.c.h.b16 %v1711
        %v2064 = vunpack.c.l.b16 %v1712
        %v2065 = vunpack.c.h.b16 %v1712
        %v2066 = vunpack.c.l.b16 %v1713
        %v2067 = vunpack.c.h.b16 %v1713
        %v2068 = vunpack.c.l.b16 %v1714
        %v2069 = vunpack.c.h.b16 %v1714
        %v2070 = vunpack.c.l.b16 %v1715
        %v2071 = vunpack.c.h.b16 %v1715
        %v2072 = vunpack.c.l.b16 %v1716
        %v2073 = vunpack.c.h.b16 %v1716
        %v2074 = vunpack.c.l.b16 %v1717
        %v2075 = vunpack.c.h.b16 %v1717
        %v2076 = vunpack.c.l.b16 %v1718
        %v2077 = vunpack.c.h.b16 %v1718
        %v2078 = vunpack.c.l.b16 %v1719
        %v2079 = vunpack.c.h.b16 %v1719
        %v2080 = vunpack.c.l.b16 %v1720
        %v2081 = vunpack.c.h.b16 %v1720
        %v2082 = vunpack.c.l.b16 %v1721
        %v2083 = vunpack.c.h.b16 %v1721
        %v2084 = vunpack.c.l.b16 %v1722
        %v2085 = vunpack.c.h.b16 %v1722
        %v2086 = vunpack.c.l.b16 %v1723
        %v2087 = vunpack.c.h.b16 %v1723
        %v2088 = vunpack.c.l.b16 %v1724
        %v2089 = vunpack.c.h.b16 %v1724
        %v2090 = vunpack.c.l.b16 %v1725
        %v2091 = vunpack.c.h.b16 %v1725
        %v2092 = vunpack.c.l.b16 %v1726
        %v2093 = vunpack.c.h.b16 %v1726
        %v2094 = vunpack.c.l.b16 %v1727
        %v2095 = vunpack.c.h.b16 %v1727
        %v2096 = vunpack.c.l.b16 %v1728
        %v2097 = vunpack.c.h.b16 %v1728
        %v2098 = vunpack.c.l.b16 %v1729
        %v2099 = vunpack.c.h.b16 %v1729
        %v2100 = vunpack.c.l.b16 %v1730
        %v2101 = vunpack.c.h.b16 %v1730
        %v2102 = vunpack.c.l.b16 %v1731
        %v2103 = vunpack.c.h.b16 %v1731
        %v2104 = vunpack.c.l.b16 %v1732
        %v2105 = vunpack.c.h.b16 %v1732
        %v2106 = vunpack.c.l.b16 %v1733
        %v2107 = vunpack.c.h.b16 %v1733
        %v2108 = vunpack.c.l.b16 %v1734
        %v2109 = vunpack.c.h.b16 %v1734
        %v2110 = vunpack.c.l.b16 %v1735
        %v2111 = vunpack.c.h.b16 %v1735
        %v2112 = vunpack.c.l.b16 %v1736
        %v2113 = vunpack.c.h.b16 %v1736
        %v2114 = vunpack.c.l.b16 %v1737
        %v2115 = vunpack.c.h.b16 %v1737
        %v2116 = vunpack.c.l.b16 %v1738
        %v2117 = vunpack.c.h.b16 %v1738
        %v2118 = vunpack.c.l.b16 %v1739
        %v2119 = vunpack.c.h.b16 %v1739
        %v2120 = vunpack.c.l.b16 %v1740
        %v2121 = vunpack.c.h.b16 %v1740
        %v2122 = vunpack.c.l.b16 %v1741
        %v2123 = vunpack.c.h.b16 %v1741
        %v2124 = vunpack.c.l.b16 %v1742
        %v2125 = vunpack.c.h.b16 %v1742
        %v2126 = vunpack.c.l.b16 %v1743
        %v2127 = vunpack.c.h.b16 %v1743
        %v2128 = vunpack.c.l.b16 %v1744
        %v2129 = vunpack.c.h.b16 %v1744
        %v2130 = vunpack.c.l.b16 %v1745
        %v2131 = vunpack.c.h.b16 %v1745
        %v2132 = vunpack.c.l.b16 %v1746
        %v2133 = vunpack.c.h.b16 %v1746
        %v2134 = vunpack.c.l.b16 %v1747
        %v2135 = vunpack.c.h.b16 %v1747
        %v2136 = vunpack.c.l.b16 %v1748
        %v2137 = vunpack.c.h.b16 %v1748
        %v2138 = vunpack.c.l.b16 %v1749
        %v2139 = vunpack.c.h.b16 %v1749
        %v2140 = vunpack.c.l.b16 %v1750
        %v2141 = vunpack.c.h.b16 %v1750
        %v2142 = vunpack.c.l.b16 %v1751
        %v2143 = vunpack.c.h.b16 %v1751
        %v2144 = vunpack.c.l.b16 %v1752
        %v2145 = vunpack.c.h.b16 %v1752
        %v2146 = vunpack.c.l.b16 %v1753
        %v2147 = vunpack.c.h.b16 %v1753
        %v2148 = vunpack.c.l.b16 %v1754
        %v2149 = vunpack.c.h.b16 %v1754
        %v2150 = vunpack.c.l.b16 %v1755
        %v2151 = vunpack.c.h.b16 %v1755
        %v2152 = vunpack.c.l.b16 %v1756
        %v2153 = vunpack.c.h.b16 %v1756
        %v2154 = vunpack.c.l.b16 %v1757
        %v2155 = vunpack.c.h.b16 %v1757
        %v2156 = vunpack.c.l.b16 %v1758
        %v2157 = vunpack.c.h.b16 %v1758
        %v2158 = vunpack.c.l.b16 %v1759
        %v2159 = vunpack.c.h.b16 %v1759
        %v2160 = vunpack.c.l.b16 %v1760
        %v2161 = vunpack.c.h.b16 %v1760
        %v2162 = vunpack.c.l.b16 %v1761
        %v2163 = vunpack.c.h.b16 %v1761
        %v2164 = vunpack.c.l.b16 %v1762
        %v2165 = vunpack.c.h.b16 %v1762
        %v2166 = vunpack.c.l.b16 %v1763
        %v2167 = vunpack.c.h.b16 %v1763
        %v2168 = vunpack.c.l.b16 %v1764
        %v2169 = vunpack.c.h.b16 %v1764
        %v2170 = vunpack.c.l.b16 %v1765
        %v2171 = vunpack.c.h.b16 %v1765
        %v2172 = vpack.c.b16 %v1920, %v1916
        %v2173 = vpack.c.b16 %v1921, %v1917
        %v2174 = vpack.c.b16 %v1922, %v1918
        %v2175 = vpack.c.b16 %v1923, %v1919
        %v2176 = vpack.c.b16 %v1928, %v1924
        %v2177 = vpack.c.b16 %v1929, %v1925
        %v2178 = vpack.c.b16 %v1930, %v1926
        %v2179 = vpack.c.b16 %v1931, %v1927
        %v2180 = vpack.c.b16 %v1936, %v1932
        %v2181 = vpack.c.b16 %v1937, %v1933
        %v2182 = vpack.c.b16 %v1938, %v1934
        %v2183 = vpack.c.b16 %v1939, %v1935
        %v2184 = vpack.c.b16 %v1944, %v1940
        %v2185 = vpack.c.b16 %v1945, %v1941
        %v2186 = vpack.c.b16 %v1946, %v1942
        %v2187 = vpack.c.b16 %v1947, %v1943
        %v2188 = vpack.c.b16 %v1952, %v1948
        %v2189 = vpack.c.b16 %v1953, %v1949
        %v2190 = vpack.c.b16 %v1954, %v1950
        %v2191 = vpack.c.b16 %v1955, %v1951
        %v2192 = vpack.c.b16 %v1960, %v1956
        %v2193 = vpack.c.b16 %v1961, %v1957
        %v2194 = vpack.c.b16 %v1962, %v1958
        %v2195 = vpack.c.b16 %v1963, %v1959
        %v2196 = vpack.c.b16 %v1968, %v1964
        %v2197 = vpack.c.b16 %v1969, %v1965
        %v2198 = vpack.c.b16 %v1970, %v1966
        %v2199 = vpack.c.b16 %v1971, %v1967
        %v2200 = vpack.c.b16 %v1976, %v1972
        %v2201 = vpack.c.b16 %v1977, %v1973
        %v2202 = vpack.c.b16 %v1978, %v1974
        %v2203 = vpack.c.b16 %v1979, %v1975
        %v2204 = vpack.c.b16 %v1984, %v1980
        %v2205 = vpack.c.b16 %v1985, %v1981
        %v2206 = vpack.c.b16 %v1986, %v1982
        %v2207 = vpack.c.b16 %v1987, %v1983
        %v2208 = vpack.c.b16 %v1992, %v1988
        %v2209 = vpack.c.b16 %v1993, %v1989
        %v2210 = vpack.c.b16 %v1994, %v1990
        %v2211 = vpack.c.b16 %v1995, %v1991
        %v2212 = vpack.c.b16 %v2000, %v1996
        %v2213 = vpack.c.b16 %v2001, %v1997
        %v2214 = vpack.c.b16 %v2002, %v1998
        %v2215 = vpack.c.b16 %v2003, %v1999
        %v2216 = vpack.c.b16 %v2008, %v2004
        %v2217 = vpack.c.b16 %v2009, %v2005
        %v2218 = vpack.c.b16 %v2010, %v2006
        %v2219 = vpack.c.b16 %v2011, %v2007
        %v2220 = vpack.c.b16 %v2016, %v2012
        %v2221 = vpack.c.b16 %v2017, %v2013
        %v2222 = vpack.c.b16 %v2018, %v2014
        %v2223 = vpack.c.b16 %v2019, %v2015
        %v2224 = vpack.c.b16 %v2024, %v2020
        %v2225 = vpack.c.b16 %v2025, %v2021
        %v2226 = vpack.c.b16 %v2026, %v2022
        %v2227 = vpack.c.b16 %v2027, %v2023
        %v2228 = vpack.c.b16 %v2032, %v2028
        %v2229 = vpack.c.b16 %v2033, %v2029
        %v2230 = vpack.c.b16 %v2034, %v2030
        %v2231 = vpack.c.b16 %v2035, %v2031
        %v2232 = vpack.c.b16 %v2040, %v2036
        %v2233 = vpack.c.b16 %v2041, %v2037
        %v2234 = vpack.c.b16 %v2042, %v2038
        %v2235 = vpack.c.b16 %v2043, %v2039
        %v2236 = vpack.c.b16 %v2048, %v2044
        %v2237 = vpack.c.b16 %v2049, %v2045
        %v2238 = vpack.c.b16 %v2050, %v2046
        %v2239 = vpack.c.b16 %v2051, %v2047
        %v2240 = vpack.c.b16 %v2056, %v2052
        %v2241 = vpack.c.b16 %v2057, %v2053
        %v2242 = vpack.c.b16 %v2058, %v2054
        %v2243 = vpack.c.b16 %v2059, %v2055
        %v2244 = vpack.c.b16 %v2064, %v2060
        %v2245 = vpack.c.b16 %v2065, %v2061
        %v2246 = vpack.c.b16 %v2066, %v2062
        %v2247 = vpack.c.b16 %v2067, %v2063
        %v2248 = vpack.c.b16 %v2072, %v2068
        %v2249 = vpack.c.b16 %v2073, %v2069
        %v2250 = vpack.c.b16 %v2074, %v2070
        %v2251 = vpack.c.b16 %v2075, %v2071
        %v2252 = vpack.c.b16 %v2080, %v2076
        %v2253 = vpack.c.b16 %v2081, %v2077
        %v2254 = vpack.c.b16 %v2082, %v2078
        %v2255 = vpack.c.b16 %v2083, %v2079
        %v2256 = vpack.c.b16 %v2088, %v2084
        %v2257 = vpack.c.b16 %v2089, %v2085
        %v2258 = vpack.c.b16 %v2090, %v2086
        %v2259 = vpack.c.b16 %v2091, %v2087
        %v2260 = vpack.c.b16 %v2096, %v2092
        %v2261 = vpack.c.b16 %v2097, %v2093
        %v2262 = vpack.c.b16 %v2098, %v2094
        %v2263 = vpack.c.b16 %v2099, %v2095
        %v2264 = vpack.c.b16 %v2104, %v2100
        %v2265 = vpack.c.b16 %v2105, %v2101
        %v2266 = vpack.c.b16 %v2106, %v2102
        %v2267 = vpack.c.b16 %v2107, %v2103
        %v2268 = vpack.c.b16 %v2112, %v2108
        %v2269 = vpack.c.b16 %v2113, %v2109
        %v2270 = vpack.c.b16 %v2114, %v2110
        %v2271 = vpack.c.b16 %v2115, %v2111
        %v2272 = vpack.c.b16 %v2120, %v2116
        %v2273 = vpack.c.b16 %v2121, %v2117
        %v2274 = vpack.c.b16 %v2122, %v2118
        %v2275 = vpack.c.b16 %v2123, %v2119
        %v2276 = vpack.c.b16 %v2128, %v2124
        %v2277 = vpack.c.b16 %v2129, %v2125
        %v2278 = vpack.c.b16 %v2130, %v2126
        %v2279 = vpack.c.b16 %v2131, %v2127
        %v2280 = vpack.c.b16 %v2136, %v2132
        %v2281 = vpack.c.b16 %v2137, %v2133
        %v2282 = vpack.c.b16 %v2138, %v2134
        %v2283 = vpack.c.b16 %v2139, %v2135
        %v2284 = vpack.c.b16 %v2144, %v2140
        %v2285 = vpack.c.b16 %v2145, %v2141
        %v2286 = vpack.c.b16 %v2146, %v2142
        %v2287 = vpack.c.b16 %v2147, %v2143
        %v2288 = vpack.c.b16 %v2152, %v2148
        %v2289 = vpack.c.b16 %v2153, %v2149
        %v2290 = vpack.c.b16 %v2154, %v2150
        %v2291 = vpack.c.b16 %v2155, %v2151
        %v2292 = vpack.c.b16 %v2160, %v2156
        %v2293 = vpack.c.b16 %v2161, %v2157
        %v2294 = vpack.c.b16 %v2162, %v2158
        %v2295 = vpack.c.b16 %v2163, %v2159
        %v2296 = vpack.c.b16 %v2168, %v2164
        %v2297 = vpack.c.b16 %v2169, %v2165
        %v2298 = vpack.c.b16 %v2170, %v2166
        %v2299 = vpack.c.b16 %v2171, %v2167
        %2428 = vmatprep.subr.bf16.mxu0 %v2201
        %2429 = vmatpush1.bf16.msra.mxu0 %v2200
        %2430 = vmatprep.subr.bf16.mxu0 %v2197
        %2431 = vmatpush1.bf16.msra.mxu0 %v2196
        %2432 = vmatprep.subr.bf16.mxu0 %v2193
        %2433 = vmatpush1.bf16.msra.mxu0 %v2192
        %2434 = vmatprep.subr.bf16.mxu0 %v2189
        %2435 = vmatpush1.bf16.msra.mxu0 %v2188
        %2436 = vmatprep.subr.bf16.mxu0 %v2185
        %2437 = vmatpush1.bf16.msra.mxu0 %v2184
        %2438 = vmatprep.subr.bf16.mxu0 %v2181
        %2439 = vmatpush1.bf16.msra.mxu0 %v2180
        %2440 = vmatprep.subr.bf16.mxu0 %v2177
        %2441 = vmatpush1.bf16.msra.mxu0 %v2176
        %2442 = vmatprep.subr.bf16.mxu0 %v2173
        %2443 = vmatpush1.bf16.msra.mxu0 %v2172
        %2444 = vmatprep.subr.bf16.mxu0 %v2233
        %2445 = vmatpush2.bf16.msra.mxu0 %v2232
        %2446 = vmatprep.subr.bf16.mxu0 %v2229
        %2447 = vmatpush2.bf16.msra.mxu0 %v2228
        %2448 = vmatprep.subr.bf16.mxu0 %v2225
        %2449 = vmatpush2.bf16.msra.mxu0 %v2224
        %2450 = vmatprep.subr.bf16.mxu0 %v2221
        %2451 = vmatpush2.bf16.msra.mxu0 %v2220
        %2452 = vmatprep.subr.bf16.mxu0 %v2217
        %2453 = vmatpush2.bf16.msra.mxu0 %v2216
        %2454 = vmatprep.subr.bf16.mxu0 %v2213
        %2455 = vmatpush2.bf16.msra.mxu0 %v2212
        %2456 = vmatprep.subr.bf16.mxu0 %v2209
        %2457 = vmatpush2.bf16.msra.mxu0 %v2208
        %2458 = vmatprep.subr.bf16.mxu0 %v2205
        %2459 = vmatpush2.bf16.msra.mxu0 %v2204
        %2460 = vmatprep.mubr.bf16.mxu0 %v681
        %2461 = vmatmul.mubr.bf16.gmra.mxu0 %v680
        %v2462 = vpop.f32.mrf.mxu0
        %v2463 = vadd.f32 %v1771, %v2462
        %v2464 = vpop.f32.mrf.mxu0
        %v2465 = vadd.f32 %v1775, %v2464
        %v2466 = vpop.f32.mrf.mxu0
        %v2467 = vadd.f32 %v1771, %v2466
        %v2468 = vpop.f32.mrf.mxu0
        %v2469 = vadd.f32 %v1775, %v2468
        %2470 = vdwg.mxu0
        %2471 = vmatprep.subr.bf16.mxu0 %v2265
        %2472 = vmatpush1.bf16.msra.mxu0 %v2264
        %2473 = vmatprep.subr.bf16.mxu0 %v2261
        %2474 = vmatpush1.bf16.msra.mxu0 %v2260
        %2475 = vmatprep.subr.bf16.mxu0 %v2257
        %2476 = vmatpush1.bf16.msra.mxu0 %v2256
        %2477 = vmatprep.subr.bf16.mxu0 %v2253
        %2478 = vmatpush1.bf16.msra.mxu0 %v2252
        %2479 = vmatprep.subr.bf16.mxu0 %v2249
        %2480 = vmatpush1.bf16.msra.mxu0 %v2248
        %2481 = vmatprep.subr.bf16.mxu0 %v2245
        %2482 = vmatpush1.bf16.msra.mxu0 %v2244
        %2483 = vmatprep.subr.bf16.mxu0 %v2241
        %2484 = vmatpush1.bf16.msra.mxu0 %v2240
        %2485 = vmatprep.subr.bf16.mxu0 %v2237
        %2486 = vmatpush1.bf16.msra.mxu0 %v2236
        %2487 = vmatprep.subr.bf16.mxu0 %v2297
        %2488 = vmatpush2.bf16.msra.mxu0 %v2296
        %2489 = vmatprep.subr.bf16.mxu0 %v2293
        %2490 = vmatpush2.bf16.msra.mxu0 %v2292
        %2491 = vmatprep.subr.bf16.mxu0 %v2289
        %2492 = vmatpush2.bf16.msra.mxu0 %v2288
        %2493 = vmatprep.subr.bf16.mxu0 %v2285
        %2494 = vmatpush2.bf16.msra.mxu0 %v2284
        %2495 = vmatprep.subr.bf16.mxu0 %v2281
        %2496 = vmatpush2.bf16.msra.mxu0 %v2280
        %2497 = vmatprep.subr.bf16.mxu0 %v2277
        %2498 = vmatpush2.bf16.msra.mxu0 %v2276
        %2499 = vmatprep.subr.bf16.mxu0 %v2273
        %2500 = vmatpush2.bf16.msra.mxu0 %v2272
        %2501 = vmatprep.subr.bf16.mxu0 %v2269
        %2502 = vmatpush2.bf16.msra.mxu0 %v2268
        %2503 = vmatprep.mubr.bf16.mxu0 %v683
        %2504 = vmatmul.mubr.bf16.gmra.mxu0 %v682
        %v2505 = vpop.f32.mrf.mxu0
        %v2506 = vadd.f32 %v2463, %v2505
        %v2507 = vpop.f32.mrf.mxu0
        %v2508 = vadd.f32 %v2465, %v2507
        %v2509 = vpop.f32.mrf.mxu0
        %v2510 = vadd.f32 %v2467, %v2509
        %v2511 = vpop.f32.mrf.mxu0
        %v2512 = vadd.f32 %v2469, %v2511
        %2513 = vdwg.mxu0
        %2514 = vmatprep.subr.bf16.mxu0 %v2203
        %2515 = vmatpush1.bf16.msra.mxu0 %v2202
        %2516 = vmatprep.subr.bf16.mxu0 %v2199
        %2517 = vmatpush1.bf16.msra.mxu0 %v2198
        %2518 = vmatprep.subr.bf16.mxu0 %v2195
        %2519 = vmatpush1.bf16.msra.mxu0 %v2194
        %2520 = vmatprep.subr.bf16.mxu0 %v2191
        %2521 = vmatpush1.bf16.msra.mxu0 %v2190
        %2522 = vmatprep.subr.bf16.mxu0 %v2187
        %2523 = vmatpush1.bf16.msra.mxu0 %v2186
        %2524 = vmatprep.subr.bf16.mxu0 %v2183
        %2525 = vmatpush1.bf16.msra.mxu0 %v2182
        %2526 = vmatprep.subr.bf16.mxu0 %v2179
        %2527 = vmatpush1.bf16.msra.mxu0 %v2178
        %2528 = vmatprep.subr.bf16.mxu0 %v2175
        %2529 = vmatpush1.bf16.msra.mxu0 %v2174
        %2530 = vmatprep.subr.bf16.mxu0 %v2235
        %2531 = vmatpush2.bf16.msra.mxu0 %v2234
        %2532 = vmatprep.subr.bf16.mxu0 %v2231
        %2533 = vmatpush2.bf16.msra.mxu0 %v2230
        %2534 = vmatprep.subr.bf16.mxu0 %v2227
        %2535 = vmatpush2.bf16.msra.mxu0 %v2226
        %2536 = vmatprep.subr.bf16.mxu0 %v2223
        %2537 = vmatpush2.bf16.msra.mxu0 %v2222
        %2538 = vmatprep.subr.bf16.mxu0 %v2219
        %2539 = vmatpush2.bf16.msra.mxu0 %v2218
        %2540 = vmatprep.subr.bf16.mxu0 %v2215
        %2541 = vmatpush2.bf16.msra.mxu0 %v2214
        %2542 = vmatprep.subr.bf16.mxu0 %v2211
        %2543 = vmatpush2.bf16.msra.mxu0 %v2210
        %2544 = vmatprep.subr.bf16.mxu0 %v2207
        %2545 = vmatpush2.bf16.msra.mxu0 %v2206
        %2546 = vmatprep.mubr.bf16.mxu0 %v681
        %2547 = vmatmul.mubr.bf16.gmra.mxu0 %v680
        %v2548 = vpop.f32.mrf.mxu0
        %v2549 = vadd.f32 %v1779, %v2548
        %v2550 = vpop.f32.mrf.mxu0
        %v2551 = vadd.f32 %v1783, %v2550
        %v2552 = vpop.f32.mrf.mxu0
        %v2553 = vadd.f32 %v1779, %v2552
        %v2554 = vpop.f32.mrf.mxu0
        %v2555 = vadd.f32 %v1783, %v2554
        %2556 = vdwg.mxu0
        %2557 = vmatprep.subr.bf16.mxu0 %v2267
        %2558 = vmatpush1.bf16.msra.mxu0 %v2266
        %2559 = vmatprep.subr.bf16.mxu0 %v2263
        %2560 = vmatpush1.bf16.msra.mxu0 %v2262
        %2561 = vmatprep.subr.bf16.mxu0 %v2259
        %2562 = vmatpush1.bf16.msra.mxu0 %v2258
        %2563 = vmatprep.subr.bf16.mxu0 %v2255
        %2564 = vmatpush1.bf16.msra.mxu0 %v2254
        %2565 = vmatprep.subr.bf16.mxu0 %v2251
        %2566 = vmatpush1.bf16.msra.mxu0 %v2250
        %2567 = vmatprep.subr.bf16.mxu0 %v2247
        %2568 = vmatpush1.bf16.msra.mxu0 %v2246
        %2569 = vmatprep.subr.bf16.mxu0 %v2243
        %2570 = vmatpush1.bf16.msra.mxu0 %v2242
        %2571 = vmatprep.subr.bf16.mxu0 %v2239
        %2572 = vmatpush1.bf16.msra.mxu0 %v2238
        %2573 = vmatprep.subr.bf16.mxu0 %v2299
        %2574 = vmatpush2.bf16.msra.mxu0 %v2298
        %2575 = vmatprep.subr.bf16.mxu0 %v2295
        %2576 = vmatpush2.bf16.msra.mxu0 %v2294
        %2577 = vmatprep.subr.bf16.mxu0 %v2291
        %2578 = vmatpush2.bf16.msra.mxu0 %v2290
        %2579 = vmatprep.subr.bf16.mxu0 %v2287
        %2580 = vmatpush2.bf16.msra.mxu0 %v2286
        %2581 = vmatprep.subr.bf16.mxu0 %v2283
        %2582 = vmatpush2.bf16.msra.mxu0 %v2282
        %2583 = vmatprep.subr.bf16.mxu0 %v2279
        %2584 = vmatpush2.bf16.msra.mxu0 %v2278
        %2585 = vmatprep.subr.bf16.mxu0 %v2275
        %2586 = vmatpush2.bf16.msra.mxu0 %v2274
        %2587 = vmatprep.subr.bf16.mxu0 %v2271
        %2588 = vmatpush2.bf16.msra.mxu0 %v2270
        %2589 = vmatprep.mubr.bf16.mxu0 %v683
        %2590 = vmatmul.mubr.bf16.gmra.mxu0 %v682
        %v2591 = vpop.f32.mrf.mxu0
        %v2592 = vadd.f32 %v2549, %v2591
        %v2593 = vpop.f32.mrf.mxu0
        %v2594 = vadd.f32 %v2551, %v2593
        %v2595 = vpop.f32.mrf.mxu0
        %v2596 = vadd.f32 %v2553, %v2595
        %v2597 = vpop.f32.mrf.mxu0
        %v2598 = vadd.f32 %v2555, %v2597
        %2599 = vdwg.mxu0
        %v2600 = vlaneseq
        %v2601 = vshrl.u32 %v2600, 7
        %v2602 = vadd.s32 %v2601, 8
        %v2603 = vlaneseq
        %v2604 = vand.u32 %v2603, 127
        %v2605 = vand.u32 %v2601, 7
        %v2606 = vand.u32 %v2602, 7
        %v2607 = vstv %s560
        %v2608 = vadd.s32 %v2607, %v2605
        %v2609 = vadd.s32 %v2607, %v2606
        %vm2610 = vcmp.le.s32.totalorder %v2604, %v2608
        %vm2611 = vcmp.le.s32.totalorder %v2604, %v2609
        %v2612 = vmul.f32 %v2506, %v584
        %v2613 = vmul.f32 %v2510, %v585
        %2614 = vrot.lane.b32.xlu0 %v2506, 64
        %v2615 = vpop.permute.xlu0 %2614
        %2616 = vrot.lane.b32.xlu0 %v2510, 64
        %v2617 = vpop.permute.xlu0 %2616
        %v2618 = vmul.f32 %v2615, %v586
        %v2619 = vmul.f32 %v2617, %v587
        %v2620 = vadd.f32 %v2612, %v2618
        %v2621 = vadd.f32 %v2613, %v2619
        %v2622 = vmul.f32 %v1550, %v589
        %2623 = vrot.lane.b32.xlu0 %v1550, 64
        %v2624 = vpop.permute.xlu0 %2623
        %v2625 = vmul.f32 %v2624, %v591
        %v2626 = vadd.f32 %v2622, %v2625
        %v2627 = vmul.f32 %v1552, %v589
        %2628 = vrot.lane.b32.xlu0 %v1552, 64
        %v2629 = vpop.permute.xlu0 %2628
        %v2630 = vmul.f32 %v2629, %v591
        %v2631 = vadd.f32 %v2627, %v2630
        %v2632 = vpack.c.bf16 %v2631, %v2626
        %v2633 = vpack.c.bf16 %v2621, %v2620
        %2634 = vmatprep.subr.bf16.mxu0 0
        %2635 = vmatpush1.bf16.xpose.msra.mxu0 0
        %2636 = vmatprep.subr.bf16.mxu0 0
        %2637 = vmatpush1.bf16.xpose.msra.mxu0 0
        %2638 = vmatprep.subr.bf16.mxu0 0
        %2639 = vmatpush1.bf16.xpose.msra.mxu0 0
        %2640 = vmatprep.subr.bf16.mxu0 0
        %2641 = vmatpush1.bf16.xpose.msra.mxu0 0
        %2642 = vmatprep.subr.bf16.mxu0 0
        %2643 = vmatpush1.bf16.xpose.msra.mxu0 0
        %2644 = vmatprep.subr.bf16.mxu0 0
        %2645 = vmatpush1.bf16.xpose.msra.mxu0 0
        %2646 = vmatprep.subr.bf16.mxu0 0
        %2647 = vmatpush1.bf16.xpose.msra.mxu0 0
        %2648 = vmatprep.subr.bf16.mxu0 0
        %2649 = vmatpush1.bf16.xpose.msra.mxu0 %v2633
        %2650 = vmatprep.subr.bf16.mxu0 0
        %2651 = vmatpush2.bf16.xpose.msra.mxu0 0
        %2652 = vmatprep.subr.bf16.mxu0 0
        %2653 = vmatpush2.bf16.xpose.msra.mxu0 0
        %2654 = vmatprep.subr.bf16.mxu0 0
        %2655 = vmatpush2.bf16.xpose.msra.mxu0 0
        %2656 = vmatprep.subr.bf16.mxu0 0
        %2657 = vmatpush2.bf16.xpose.msra.mxu0 0
        %2658 = vmatprep.subr.bf16.mxu0 0
        %2659 = vmatpush2.bf16.xpose.msra.mxu0 0
        %2660 = vmatprep.subr.bf16.mxu0 0
        %2661 = vmatpush2.bf16.xpose.msra.mxu0 0
        %2662 = vmatprep.subr.bf16.mxu0 0
        %2663 = vmatpush2.bf16.xpose.msra.mxu0 0
        %2664 = vmatprep.subr.bf16.mxu0 0
        %2665 = vmatpush2.bf16.xpose.msra.mxu0 0
        %2666 = vmatprep.mubr.bf16.mxu0 0
        %2667 = vmatmul.mubr.bf16.gmra.mxu0 %v2632
        %v2668 = vpop.f32.mrf.mxu0
        %v2669 = vadd.f32 0.0, %v2668
        %v2670 = vpop.f32.mrf.mxu0
        %v2671 = vpop.f32.mrf.mxu0
        %v2672 = vadd.f32 0.0, %v2671
        %v2673 = vpop.f32.mrf.mxu0
        %2674 = vdwg.mxu0
        %v2675 = vmul.f32 %v2669, 0.088388346
        %v2676 = vmul.f32 %v2672, 0.088388346
        %v2677 = vsel %vm2610, %v2675, -1e+30
        %v2678 = vsel %vm2611, %v2676, -1e+30
        %vm2679 = vcmask 130048
        %v2680 = vsel %vm2679, %v2677, -inf
        %2681 = vmax.xlane.f32.xlu0 %v2680
        %v2682 = vpop.xlane.xlu0 %2681
        %v2683 = vsel %vm2679, %v2678, -inf
        %2684 = vmax.xlane.f32.xlu0 %v2683
        %v2685 = vpop.xlane.xlu0 %2684
        %v2686 = vsub.f32 %v2677, %v2682
        %v2687 = vsub.f32 %v2678, %v2685
        %v2688 = vmul.f32 %v2686, 1.442695
        %v2689 = vpow.pop %v2688
        %v2690 = vmul.f32 %v2687, 1.442695
        %v2691 = vpow.pop %v2690
        %v2692 = vsel %vm2679, %v2689, 0.0
        %2693 = vadd.xlane.f32.xlu0 %v2692
        %v2694 = vpop.xlane.xlu0 %2693
        %v2695 = vsel %vm2679, %v2691, 0.0
        %2696 = vadd.xlane.f32.xlu0 %v2695
        %v2697 = vpop.xlane.xlu0 %2696
        %v2698 = vrcp.pop %v2694
        %v2699 = vmul.f32 %v2689, %v2698
        %v2700 = vrcp.pop %v2697
        %v2701 = vmul.f32 %v2691, %v2700
        %v2702 = vpack.c.bf16 %v2701, %v2699
        %v2703 = vpack.c.bf16 %v2596, %v2592
        %v2705 = vsel %vm2679, %v2702, 0
        %2707 = vmatprep.subr.bf16.mxu0 0
        %2708 = vmatpush1.bf16.msra.mxu0 0
        %2709 = vmatprep.subr.bf16.mxu0 0
        %2710 = vmatpush1.bf16.msra.mxu0 0
        %2711 = vmatprep.subr.bf16.mxu0 0
        %2712 = vmatpush1.bf16.msra.mxu0 0
        %2713 = vmatprep.subr.bf16.mxu0 0
        %2714 = vmatpush1.bf16.msra.mxu0 0
        %2715 = vmatprep.subr.bf16.mxu0 0
        %2716 = vmatpush1.bf16.msra.mxu0 0
        %2717 = vmatprep.subr.bf16.mxu0 0
        %2718 = vmatpush1.bf16.msra.mxu0 0
        %2719 = vmatprep.subr.bf16.mxu0 0
        %2720 = vmatpush1.bf16.msra.mxu0 0
        %2721 = vmatprep.subr.bf16.mxu0 0
        %2722 = vmatpush1.bf16.msra.mxu0 %v2703
        %2723 = vmatprep.subr.bf16.mxu0 0
        %2724 = vmatpush2.bf16.msra.mxu0 0
        %2725 = vmatprep.subr.bf16.mxu0 0
        %2726 = vmatpush2.bf16.msra.mxu0 0
        %2727 = vmatprep.subr.bf16.mxu0 0
        %2728 = vmatpush2.bf16.msra.mxu0 0
        %2729 = vmatprep.subr.bf16.mxu0 0
        %2730 = vmatpush2.bf16.msra.mxu0 0
        %2731 = vmatprep.subr.bf16.mxu0 0
        %2732 = vmatpush2.bf16.msra.mxu0 0
        %2733 = vmatprep.subr.bf16.mxu0 0
        %2734 = vmatpush2.bf16.msra.mxu0 0
        %2735 = vmatprep.subr.bf16.mxu0 0
        %2736 = vmatpush2.bf16.msra.mxu0 0
        %2737 = vmatprep.subr.bf16.mxu0 0
        %2738 = vmatpush2.bf16.msra.mxu0 0
        %2739 = vmatprep.mubr.bf16.mxu0 0
        %2740 = vmatmul.mubr.bf16.gmra.mxu0 %v2705
        %v2741 = vpop.f32.mrf.mxu0
        %v2742 = vadd.f32 0.0, %v2741
        %v2743 = vpop.f32.mrf.mxu0
        %v2744 = vpop.f32.mrf.mxu0
        %v2745 = vadd.f32 0.0, %v2744
        %v2746 = vpop.f32.mrf.mxu0
        %2747 = vdwg.mxu0
        %v2748 = vpack.c.bf16 %v2742, %v2742
        %v2749 = vld [vmem:[#allocation17] sm:$0xff]
        %v2750 = vld [vmem:[#allocation17 + $0x8] sm:$0xff]
        %v2751 = vld [vmem:[#allocation17 + $0x10] sm:$0xff]
        %v2752 = vld [vmem:[#allocation17 + $0x18] sm:$0xff]
        %v2753 = vld [vmem:[#allocation17 + $0x20] sm:$0xff]
        %v2754 = vld [vmem:[#allocation17 + $0x28] sm:$0xff]
        %v2755 = vld [vmem:[#allocation17 + $0x30] sm:$0xff]
        %v2756 = vld [vmem:[#allocation17 + $0x38] sm:$0xff]
        %v2757 = vld [vmem:[#allocation17 + $0x40] sm:$0xff]
        %v2758 = vld [vmem:[#allocation17 + $0x48] sm:$0xff]
        %v2759 = vld [vmem:[#allocation17 + $0x50] sm:$0xff]
        %v2760 = vld [vmem:[#allocation17 + $0x58] sm:$0xff]
        %v2761 = vld [vmem:[#allocation17 + $0x60] sm:$0xff]
        %v2762 = vld [vmem:[#allocation17 + $0x68] sm:$0xff]
        %v2763 = vld [vmem:[#allocation17 + $0x70] sm:$0xff]
        %v2764 = vld [vmem:[#allocation17 + $0x78] sm:$0xff]
        %v2765 = vld [vmem:[#allocation17 + $0x80] sm:$0xff]
        %v2766 = vld [vmem:[#allocation17 + $0x88] sm:$0xff]
        %v2767 = vld [vmem:[#allocation17 + $0x90] sm:$0xff]
        %v2768 = vld [vmem:[#allocation17 + $0x98] sm:$0xff]
        %v2769 = vld [vmem:[#allocation17 + $0xa0] sm:$0xff]
        %v2770 = vld [vmem:[#allocation17 + $0xa8] sm:$0xff]
        %v2771 = vld [vmem:[#allocation17 + $0xb0] sm:$0xff]
        %v2772 = vld [vmem:[#allocation17 + $0xb8] sm:$0xff]
        %v2773 = vld [vmem:[#allocation17 + $0xc0] sm:$0xff]
        %v2774 = vld [vmem:[#allocation17 + $0xc8] sm:$0xff]
        %v2775 = vld [vmem:[#allocation17 + $0xd0] sm:$0xff]
        %v2776 = vld [vmem:[#allocation17 + $0xd8] sm:$0xff]
        %v2777 = vld [vmem:[#allocation17 + $0xe0] sm:$0xff]
        %v2778 = vld [vmem:[#allocation17 + $0xe8] sm:$0xff]
        %v2779 = vld [vmem:[#allocation17 + $0xf0] sm:$0xff]
        %v2780 = vld [vmem:[#allocation17 + $0xf8] sm:$0xff]
        %v2813 = vunpack.c.l.b16 %v2749
        %v2814 = vunpack.c.h.b16 %v2749
        %v2815 = vunpack.c.l.b16 %v2750
        %v2816 = vunpack.c.h.b16 %v2750
        %v2817 = vunpack.c.l.b16 %v2751
        %v2818 = vunpack.c.h.b16 %v2751
        %v2819 = vunpack.c.l.b16 %v2752
        %v2820 = vunpack.c.h.b16 %v2752
        %v2821 = vunpack.c.l.b16 %v2753
        %v2822 = vunpack.c.h.b16 %v2753
        %v2823 = vunpack.c.l.b16 %v2754
        %v2824 = vunpack.c.h.b16 %v2754
        %v2825 = vunpack.c.l.b16 %v2755
        %v2826 = vunpack.c.h.b16 %v2755
        %v2827 = vunpack.c.l.b16 %v2756
        %v2828 = vunpack.c.h.b16 %v2756
        %v2829 = vunpack.c.l.b16 %v2757
        %v2830 = vunpack.c.h.b16 %v2757
        %v2831 = vunpack.c.l.b16 %v2758
        %v2832 = vunpack.c.h.b16 %v2758
        %v2833 = vunpack.c.l.b16 %v2759
        %v2834 = vunpack.c.h.b16 %v2759
        %v2835 = vunpack.c.l.b16 %v2760
        %v2836 = vunpack.c.h.b16 %v2760
        %v2837 = vunpack.c.l.b16 %v2761
        %v2838 = vunpack.c.h.b16 %v2761
        %v2839 = vunpack.c.l.b16 %v2762
        %v2840 = vunpack.c.h.b16 %v2762
        %v2841 = vunpack.c.l.b16 %v2763
        %v2842 = vunpack.c.h.b16 %v2763
        %v2843 = vunpack.c.l.b16 %v2764
        %v2844 = vunpack.c.h.b16 %v2764
        %v2845 = vunpack.c.l.b16 %v2765
        %v2846 = vunpack.c.h.b16 %v2765
        %v2847 = vunpack.c.l.b16 %v2766
        %v2848 = vunpack.c.h.b16 %v2766
        %v2849 = vunpack.c.l.b16 %v2767
        %v2850 = vunpack.c.h.b16 %v2767
        %v2851 = vunpack.c.l.b16 %v2768
        %v2852 = vunpack.c.h.b16 %v2768
        %v2853 = vunpack.c.l.b16 %v2769
        %v2854 = vunpack.c.h.b16 %v2769
        %v2855 = vunpack.c.l.b16 %v2770
        %v2856 = vunpack.c.h.b16 %v2770
        %v2857 = vunpack.c.l.b16 %v2771
        %v2858 = vunpack.c.h.b16 %v2771
        %v2859 = vunpack.c.l.b16 %v2772
        %v2860 = vunpack.c.h.b16 %v2772
        %v2861 = vunpack.c.l.b16 %v2773
        %v2862 = vunpack.c.h.b16 %v2773
        %v2863 = vunpack.c.l.b16 %v2774
        %v2864 = vunpack.c.h.b16 %v2774
        %v2865 = vunpack.c.l.b16 %v2775
        %v2866 = vunpack.c.h.b16 %v2775
        %v2867 = vunpack.c.l.b16 %v2776
        %v2868 = vunpack.c.h.b16 %v2776
        %v2869 = vunpack.c.l.b16 %v2777
        %v2870 = vunpack.c.h.b16 %v2777
        %v2871 = vunpack.c.l.b16 %v2778
        %v2872 = vunpack.c.h.b16 %v2778
        %v2873 = vunpack.c.l.b16 %v2779
        %v2874 = vunpack.c.h.b16 %v2779
        %v2875 = vunpack.c.l.b16 %v2780
        %v2876 = vunpack.c.h.b16 %v2780
        %v2877 = vpack.c.b16 %v2817, %v2813
        %v2878 = vpack.c.b16 %v2818, %v2814
        %v2879 = vpack.c.b16 %v2819, %v2815
        %v2880 = vpack.c.b16 %v2820, %v2816
        %v2881 = vpack.c.b16 %v2825, %v2821
        %v2882 = vpack.c.b16 %v2826, %v2822
        %v2883 = vpack.c.b16 %v2827, %v2823
        %v2884 = vpack.c.b16 %v2828, %v2824
        %v2885 = vpack.c.b16 %v2833, %v2829
        %v2886 = vpack.c.b16 %v2834, %v2830
        %v2887 = vpack.c.b16 %v2835, %v2831
        %v2888 = vpack.c.b16 %v2836, %v2832
        %v2889 = vpack.c.b16 %v2841, %v2837
        %v2890 = vpack.c.b16 %v2842, %v2838
        %v2891 = vpack.c.b16 %v2843, %v2839
        %v2892 = vpack.c.b16 %v2844, %v2840
        %v2893 = vpack.c.b16 %v2849, %v2845
        %v2894 = vpack.c.b16 %v2850, %v2846
        %v2895 = vpack.c.b16 %v2851, %v2847
        %v2896 = vpack.c.b16 %v2852, %v2848
        %v2897 = vpack.c.b16 %v2857, %v2853
        %v2898 = vpack.c.b16 %v2858, %v2854
        %v2899 = vpack.c.b16 %v2859, %v2855
        %v2900 = vpack.c.b16 %v2860, %v2856
        %v2901 = vpack.c.b16 %v2865, %v2861
        %v2902 = vpack.c.b16 %v2866, %v2862
        %v2903 = vpack.c.b16 %v2867, %v2863
        %v2904 = vpack.c.b16 %v2868, %v2864
        %v2905 = vpack.c.b16 %v2873, %v2869
        %v2906 = vpack.c.b16 %v2874, %v2870
        %v2907 = vpack.c.b16 %v2875, %v2871
        %v2908 = vpack.c.b16 %v2876, %v2872
        %2941 = vmatprep.subr.bf16.mxu0 %v2906
        %2942 = vmatpush1.bf16.msra.mxu0 %v2905
        %2943 = vmatprep.subr.bf16.mxu0 %v2902
        %2944 = vmatpush1.bf16.msra.mxu0 %v2901
        %2945 = vmatprep.subr.bf16.mxu0 %v2898
        %2946 = vmatpush1.bf16.msra.mxu0 %v2897
        %2947 = vmatprep.subr.bf16.mxu0 %v2894
        %2948 = vmatpush1.bf16.msra.mxu0 %v2893
        %2949 = vmatprep.subr.bf16.mxu0 %v2890
        %2950 = vmatpush1.bf16.msra.mxu0 %v2889
        %2951 = vmatprep.subr.bf16.mxu0 %v2886
        %2952 = vmatpush1.bf16.msra.mxu0 %v2885
        %2953 = vmatprep.subr.bf16.mxu0 %v2882
        %2954 = vmatpush1.bf16.msra.mxu0 %v2881
        %2955 = vmatprep.subr.bf16.mxu0 %v2878
        %2956 = vmatpush1.bf16.msra.mxu0 %v2877
        %2957 = vmatprep.subr.bf16.mxu0 0
        %2958 = vmatpush2.bf16.msra.mxu0 0
        %2959 = vmatprep.subr.bf16.mxu0 0
        %2960 = vmatpush2.bf16.msra.mxu0 0
        %2961 = vmatprep.subr.bf16.mxu0 0
        %2962 = vmatpush2.bf16.msra.mxu0 0
        %2963 = vmatprep.subr.bf16.mxu0 0
        %2964 = vmatpush2.bf16.msra.mxu0 0
        %2965 = vmatprep.subr.bf16.mxu0 0
        %2966 = vmatpush2.bf16.msra.mxu0 0
        %2967 = vmatprep.subr.bf16.mxu0 0
        %2968 = vmatpush2.bf16.msra.mxu0 0
        %2969 = vmatprep.subr.bf16.mxu0 0
        %2970 = vmatpush2.bf16.msra.mxu0 0
        %2971 = vmatprep.subr.bf16.mxu0 0
        %2972 = vmatpush2.bf16.msra.mxu0 0
        %2973 = vmatprep.mubr.bf16.mxu0 0
        %2974 = vmatmul.mubr.bf16.gmra.mxu0 %v2748
        %v2975 = vpop.f32.mrf.mxu0
        %v2976 = vadd.f32 0.0, %v2975
        %v2977 = vpop.f32.mrf.mxu0
        %v2978 = vadd.f32 0.0, %v2977
        %v2979 = vpop.f32.mrf.mxu0
        %v2980 = vpop.f32.mrf.mxu0
        %2981 = vdwg.mxu0
        %2982 = vmatprep.subr.bf16.mxu0 %v2908
        %2983 = vmatpush1.bf16.msra.mxu0 %v2907
        %2984 = vmatprep.subr.bf16.mxu0 %v2904
        %2985 = vmatpush1.bf16.msra.mxu0 %v2903
        %2986 = vmatprep.subr.bf16.mxu0 %v2900
        %2987 = vmatpush1.bf16.msra.mxu0 %v2899
        %2988 = vmatprep.subr.bf16.mxu0 %v2896
        %2989 = vmatpush1.bf16.msra.mxu0 %v2895
        %2990 = vmatprep.subr.bf16.mxu0 %v2892
        %2991 = vmatpush1.bf16.msra.mxu0 %v2891
        %2992 = vmatprep.subr.bf16.mxu0 %v2888
        %2993 = vmatpush1.bf16.msra.mxu0 %v2887
        %2994 = vmatprep.subr.bf16.mxu0 %v2884
        %2995 = vmatpush1.bf16.msra.mxu0 %v2883
        %2996 = vmatprep.subr.bf16.mxu0 %v2880
        %2997 = vmatpush1.bf16.msra.mxu0 %v2879
        %2998 = vmatprep.subr.bf16.mxu0 0
        %2999 = vmatpush2.bf16.msra.mxu0 0
        %3000 = vmatprep.subr.bf16.mxu0 0
        %3001 = vmatpush2.bf16.msra.mxu0 0
        %3002 = vmatprep.subr.bf16.mxu0 0
        %3003 = vmatpush2.bf16.msra.mxu0 0
        %3004 = vmatprep.subr.bf16.mxu0 0
        %3005 = vmatpush2.bf16.msra.mxu0 0
        %3006 = vmatprep.subr.bf16.mxu0 0
        %3007 = vmatpush2.bf16.msra.mxu0 0
        %3008 = vmatprep.subr.bf16.mxu0 0
        %3009 = vmatpush2.bf16.msra.mxu0 0
        %3010 = vmatprep.subr.bf16.mxu0 0
        %3011 = vmatpush2.bf16.msra.mxu0 0
        %3012 = vmatprep.subr.bf16.mxu0 0
        %3013 = vmatpush2.bf16.msra.mxu0 0
        %3014 = vmatprep.mubr.bf16.mxu0 0
        %3015 = vmatmul.mubr.bf16.gmra.mxu0 %v2748
        %v3016 = vpop.f32.mrf.mxu0
        %v3017 = vadd.f32 0.0, %v3016
        %v3018 = vpop.f32.mrf.mxu0
        %v3019 = vadd.f32 0.0, %v3018
        %v3020 = vpop.f32.mrf.mxu0
        %v3021 = vpop.f32.mrf.mxu0
        %3022 = vdwg.mxu0
        %v3023 = vadd.f32 %v580, %v2976
        %v3024 = vadd.f32 %v581, %v2978
        %v3025 = vadd.f32 %v582, %v3017
        %v3026 = vadd.f32 %v583, %v3019
        %v3027 = vpack.c.bf16 %v2745, %v2745
        %v3028 = vld [vmem:[#allocation17 + $0x100] sm:$0xff]
        %v3029 = vld [vmem:[#allocation17 + $0x108] sm:$0xff]
        %v3030 = vld [vmem:[#allocation17 + $0x110] sm:$0xff]
        %v3031 = vld [vmem:[#allocation17 + $0x118] sm:$0xff]
        %v3032 = vld [vmem:[#allocation17 + $0x120] sm:$0xff]
        %v3033 = vld [vmem:[#allocation17 + $0x128] sm:$0xff]
        %v3034 = vld [vmem:[#allocation17 + $0x130] sm:$0xff]
        %v3035 = vld [vmem:[#allocation17 + $0x138] sm:$0xff]
        %v3036 = vld [vmem:[#allocation17 + $0x140] sm:$0xff]
        %v3037 = vld [vmem:[#allocation17 + $0x148] sm:$0xff]
        %v3038 = vld [vmem:[#allocation17 + $0x150] sm:$0xff]
        %v3039 = vld [vmem:[#allocation17 + $0x158] sm:$0xff]
        %v3040 = vld [vmem:[#allocation17 + $0x160] sm:$0xff]
        %v3041 = vld [vmem:[#allocation17 + $0x168] sm:$0xff]
        %v3042 = vld [vmem:[#allocation17 + $0x170] sm:$0xff]
        %v3043 = vld [vmem:[#allocation17 + $0x178] sm:$0xff]
        %v3044 = vld [vmem:[#allocation17 + $0x180] sm:$0xff]
        %v3045 = vld [vmem:[#allocation17 + $0x188] sm:$0xff]
        %v3046 = vld [vmem:[#allocation17 + $0x190] sm:$0xff]
        %v3047 = vld [vmem:[#allocation17 + $0x198] sm:$0xff]
        %v3048 = vld [vmem:[#allocation17 + $0x1a0] sm:$0xff]
        %v3049 = vld [vmem:[#allocation17 + $0x1a8] sm:$0xff]
        %v3050 = vld [vmem:[#allocation17 + $0x1b0] sm:$0xff]
        %v3051 = vld [vmem:[#allocation17 + $0x1b8] sm:$0xff]
        %v3052 = vld [vmem:[#allocation17 + $0x1c0] sm:$0xff]
        %v3053 = vld [vmem:[#allocation17 + $0x1c8] sm:$0xff]
        %v3054 = vld [vmem:[#allocation17 + $0x1d0] sm:$0xff]
        %v3055 = vld [vmem:[#allocation17 + $0x1d8] sm:$0xff]
        %v3056 = vld [vmem:[#allocation17 + $0x1e0] sm:$0xff]
        %v3057 = vld [vmem:[#allocation17 + $0x1e8] sm:$0xff]
        %v3058 = vld [vmem:[#allocation17 + $0x1f0] sm:$0xff]
        %v3059 = vld [vmem:[#allocation17 + $0x1f8] sm:$0xff]
        %v3092 = vunpack.c.l.b16 %v3028
        %v3093 = vunpack.c.h.b16 %v3028
        %v3094 = vunpack.c.l.b16 %v3029
        %v3095 = vunpack.c.h.b16 %v3029
        %v3096 = vunpack.c.l.b16 %v3030
        %v3097 = vunpack.c.h.b16 %v3030
        %v3098 = vunpack.c.l.b16 %v3031
        %v3099 = vunpack.c.h.b16 %v3031
        %v3100 = vunpack.c.l.b16 %v3032
        %v3101 = vunpack.c.h.b16 %v3032
        %v3102 = vunpack.c.l.b16 %v3033
        %v3103 = vunpack.c.h.b16 %v3033
        %v3104 = vunpack.c.l.b16 %v3034
        %v3105 = vunpack.c.h.b16 %v3034
        %v3106 = vunpack.c.l.b16 %v3035
        %v3107 = vunpack.c.h.b16 %v3035
        %v3108 = vunpack.c.l.b16 %v3036
        %v3109 = vunpack.c.h.b16 %v3036
        %v3110 = vunpack.c.l.b16 %v3037
        %v3111 = vunpack.c.h.b16 %v3037
        %v3112 = vunpack.c.l.b16 %v3038
        %v3113 = vunpack.c.h.b16 %v3038
        %v3114 = vunpack.c.l.b16 %v3039
        %v3115 = vunpack.c.h.b16 %v3039
        %v3116 = vunpack.c.l.b16 %v3040
        %v3117 = vunpack.c.h.b16 %v3040
        %v3118 = vunpack.c.l.b16 %v3041
        %v3119 = vunpack.c.h.b16 %v3041
        %v3120 = vunpack.c.l.b16 %v3042
        %v3121 = vunpack.c.h.b16 %v3042
        %v3122 = vunpack.c.l.b16 %v3043
        %v3123 = vunpack.c.h.b16 %v3043
        %v3124 = vunpack.c.l.b16 %v3044
        %v3125 = vunpack.c.h.b16 %v3044
        %v3126 = vunpack.c.l.b16 %v3045
        %v3127 = vunpack.c.h.b16 %v3045
        %v3128 = vunpack.c.l.b16 %v3046
        %v3129 = vunpack.c.h.b16 %v3046
        %v3130 = vunpack.c.l.b16 %v3047
        %v3131 = vunpack.c.h.b16 %v3047
        %v3132 = vunpack.c.l.b16 %v3048
        %v3133 = vunpack.c.h.b16 %v3048
        %v3134 = vunpack.c.l.b16 %v3049
        %v3135 = vunpack.c.h.b16 %v3049
        %v3136 = vunpack.c.l.b16 %v3050
        %v3137 = vunpack.c.h.b16 %v3050
        %v3138 = vunpack.c.l.b16 %v3051
        %v3139 = vunpack.c.h.b16 %v3051
        %v3140 = vunpack.c.l.b16 %v3052
        %v3141 = vunpack.c.h.b16 %v3052
        %v3142 = vunpack.c.l.b16 %v3053
        %v3143 = vunpack.c.h.b16 %v3053
        %v3144 = vunpack.c.l.b16 %v3054
        %v3145 = vunpack.c.h.b16 %v3054
        %v3146 = vunpack.c.l.b16 %v3055
        %v3147 = vunpack.c.h.b16 %v3055
        %v3148 = vunpack.c.l.b16 %v3056
        %v3149 = vunpack.c.h.b16 %v3056
        %v3150 = vunpack.c.l.b16 %v3057
        %v3151 = vunpack.c.h.b16 %v3057
        %v3152 = vunpack.c.l.b16 %v3058
        %v3153 = vunpack.c.h.b16 %v3058
        %v3154 = vunpack.c.l.b16 %v3059
        %v3155 = vunpack.c.h.b16 %v3059
        %v3156 = vpack.c.b16 %v3096, %v3092
        %v3157 = vpack.c.b16 %v3097, %v3093
        %v3158 = vpack.c.b16 %v3098, %v3094
        %v3159 = vpack.c.b16 %v3099, %v3095
        %v3160 = vpack.c.b16 %v3104, %v3100
        %v3161 = vpack.c.b16 %v3105, %v3101
        %v3162 = vpack.c.b16 %v3106, %v3102
        %v3163 = vpack.c.b16 %v3107, %v3103
        %v3164 = vpack.c.b16 %v3112, %v3108
        %v3165 = vpack.c.b16 %v3113, %v3109
        %v3166 = vpack.c.b16 %v3114, %v3110
        %v3167 = vpack.c.b16 %v3115, %v3111
        %v3168 = vpack.c.b16 %v3120, %v3116
        %v3169 = vpack.c.b16 %v3121, %v3117
        %v3170 = vpack.c.b16 %v3122, %v3118
        %v3171 = vpack.c.b16 %v3123, %v3119
        %v3172 = vpack.c.b16 %v3128, %v3124
        %v3173 = vpack.c.b16 %v3129, %v3125
        %v3174 = vpack.c.b16 %v3130, %v3126
        %v3175 = vpack.c.b16 %v3131, %v3127
        %v3176 = vpack.c.b16 %v3136, %v3132
        %v3177 = vpack.c.b16 %v3137, %v3133
        %v3178 = vpack.c.b16 %v3138, %v3134
        %v3179 = vpack.c.b16 %v3139, %v3135
        %v3180 = vpack.c.b16 %v3144, %v3140
        %v3181 = vpack.c.b16 %v3145, %v3141
        %v3182 = vpack.c.b16 %v3146, %v3142
        %v3183 = vpack.c.b16 %v3147, %v3143
        %v3184 = vpack.c.b16 %v3152, %v3148
        %v3185 = vpack.c.b16 %v3153, %v3149
        %v3186 = vpack.c.b16 %v3154, %v3150
        %v3187 = vpack.c.b16 %v3155, %v3151
        %3220 = vmatprep.subr.bf16.mxu0 %v3185
        %3221 = vmatpush1.bf16.msra.mxu0 %v3184
        %3222 = vmatprep.subr.bf16.mxu0 %v3181
        %3223 = vmatpush1.bf16.msra.mxu0 %v3180
        %3224 = vmatprep.subr.bf16.mxu0 %v3177
        %3225 = vmatpush1.bf16.msra.mxu0 %v3176
        %3226 = vmatprep.subr.bf16.mxu0 %v3173
        %3227 = vmatpush1.bf16.msra.mxu0 %v3172
        %3228 = vmatprep.subr.bf16.mxu0 %v3169
        %3229 = vmatpush1.bf16.msra.mxu0 %v3168
        %3230 = vmatprep.subr.bf16.mxu0 %v3165
        %3231 = vmatpush1.bf16.msra.mxu0 %v3164
        %3232 = vmatprep.subr.bf16.mxu0 %v3161
        %3233 = vmatpush1.bf16.msra.mxu0 %v3160
        %3234 = vmatprep.subr.bf16.mxu0 %v3157
        %3235 = vmatpush1.bf16.msra.mxu0 %v3156
        %3236 = vmatprep.subr.bf16.mxu0 0
        %3237 = vmatpush2.bf16.msra.mxu0 0
        %3238 = vmatprep.subr.bf16.mxu0 0
        %3239 = vmatpush2.bf16.msra.mxu0 0
        %3240 = vmatprep.subr.bf16.mxu0 0
        %3241 = vmatpush2.bf16.msra.mxu0 0
        %3242 = vmatprep.subr.bf16.mxu0 0
        %3243 = vmatpush2.bf16.msra.mxu0 0
        %3244 = vmatprep.subr.bf16.mxu0 0
        %3245 = vmatpush2.bf16.msra.mxu0 0
        %3246 = vmatprep.subr.bf16.mxu0 0
        %3247 = vmatpush2.bf16.msra.mxu0 0
        %3248 = vmatprep.subr.bf16.mxu0 0
        %3249 = vmatpush2.bf16.msra.mxu0 0
        %3250 = vmatprep.subr.bf16.mxu0 0
        %3251 = vmatpush2.bf16.msra.mxu0 0
        %3252 = vmatprep.mubr.bf16.mxu0 0
        %3253 = vmatmul.mubr.bf16.gmra.mxu0 %v3027
        %v3254 = vpop.f32.mrf.mxu0
        %v3255 = vadd.f32 0.0, %v3254
        %v3256 = vpop.f32.mrf.mxu0
        %v3257 = vadd.f32 0.0, %v3256
        %v3258 = vpop.f32.mrf.mxu0
        %v3259 = vpop.f32.mrf.mxu0
        %3260 = vdwg.mxu0
        %3261 = vmatprep.subr.bf16.mxu0 %v3187
        %3262 = vmatpush1.bf16.msra.mxu0 %v3186
        %3263 = vmatprep.subr.bf16.mxu0 %v3183
        %3264 = vmatpush1.bf16.msra.mxu0 %v3182
        %3265 = vmatprep.subr.bf16.mxu0 %v3179
        %3266 = vmatpush1.bf16.msra.mxu0 %v3178
        %3267 = vmatprep.subr.bf16.mxu0 %v3175
        %3268 = vmatpush1.bf16.msra.mxu0 %v3174
        %3269 = vmatprep.subr.bf16.mxu0 %v3171
        %3270 = vmatpush1.bf16.msra.mxu0 %v3170
        %3271 = vmatprep.subr.bf16.mxu0 %v3167
        %3272 = vmatpush1.bf16.msra.mxu0 %v3166
        %3273 = vmatprep.subr.bf16.mxu0 %v3163
        %3274 = vmatpush1.bf16.msra.mxu0 %v3162
        %3275 = vmatprep.subr.bf16.mxu0 %v3159
        %3276 = vmatpush1.bf16.msra.mxu0 %v3158
        %3277 = vmatprep.subr.bf16.mxu0 0
        %3278 = vmatpush2.bf16.msra.mxu0 0
        %3279 = vmatprep.subr.bf16.mxu0 0
        %3280 = vmatpush2.bf16.msra.mxu0 0
        %3281 = vmatprep.subr.bf16.mxu0 0
        %3282 = vmatpush2.bf16.msra.mxu0 0
        %3283 = vmatprep.subr.bf16.mxu0 0
        %3284 = vmatpush2.bf16.msra.mxu0 0
        %3285 = vmatprep.subr.bf16.mxu0 0
        %3286 = vmatpush2.bf16.msra.mxu0 0
        %3287 = vmatprep.subr.bf16.mxu0 0
        %3288 = vmatpush2.bf16.msra.mxu0 0
        %3289 = vmatprep.subr.bf16.mxu0 0
        %3290 = vmatpush2.bf16.msra.mxu0 0
        %3291 = vmatprep.subr.bf16.mxu0 0
        %3292 = vmatpush2.bf16.msra.mxu0 0
        %3293 = vmatprep.mubr.bf16.mxu0 0
        %3294 = vmatmul.mubr.bf16.gmra.mxu0 %v3027
        %v3295 = vpop.f32.mrf.mxu0
        %v3296 = vadd.f32 0.0, %v3295
        %v3297 = vpop.f32.mrf.mxu0
        %v3298 = vadd.f32 0.0, %v3297
        %v3299 = vpop.f32.mrf.mxu0
        %v3300 = vpop.f32.mrf.mxu0
        %3301 = vdwg.mxu0
        %v3302 = vadd.f32 %v3023, %v3255
        %v3303 = vadd.f32 %v3024, %v3257
        %v3304 = vadd.f32 %v3025, %v3296
        %v3305 = vadd.f32 %v3026, %v3298
        %v3306 = vmul.f32 %v2508, %v584
        %v3307 = vmul.f32 %v2512, %v585
        %3308 = vrot.lane.b32.xlu0 %v2508, 64
        %v3309 = vpop.permute.xlu0 %3308
        %3310 = vrot.lane.b32.xlu0 %v2512, 64
        %v3311 = vpop.permute.xlu0 %3310
        %v3312 = vmul.f32 %v3309, %v586
        %v3313 = vmul.f32 %v3311, %v587
        %v3314 = vadd.f32 %v3306, %v3312
        %v3315 = vadd.f32 %v3307, %v3313
        %v3316 = vmul.f32 %v1632, %v589
        %3317 = vrot.lane.b32.xlu0 %v1632, 64
        %v3318 = vpop.permute.xlu0 %3317
        %v3319 = vmul.f32 %v3318, %v591
        %v3320 = vadd.f32 %v3316, %v3319
        %v3321 = vmul.f32 %v1634, %v589
        %3322 = vrot.lane.b32.xlu0 %v1634, 64
        %v3323 = vpop.permute.xlu0 %3322
        %v3324 = vmul.f32 %v3323, %v591
        %v3325 = vadd.f32 %v3321, %v3324
        %v3326 = vpack.c.bf16 %v3325, %v3320
        %v3327 = vpack.c.bf16 %v3315, %v3314
        %3328 = vmatprep.subr.bf16.mxu0 0
        %3329 = vmatpush1.bf16.xpose.msra.mxu0 0
        %3330 = vmatprep.subr.bf16.mxu0 0
        %3331 = vmatpush1.bf16.xpose.msra.mxu0 0
        %3332 = vmatprep.subr.bf16.mxu0 0
        %3333 = vmatpush1.bf16.xpose.msra.mxu0 0
        %3334 = vmatprep.subr.bf16.mxu0 0
        %3335 = vmatpush1.bf16.xpose.msra.mxu0 0
        %3336 = vmatprep.subr.bf16.mxu0 0
        %3337 = vmatpush1.bf16.xpose.msra.mxu0 0
        %3338 = vmatprep.subr.bf16.mxu0 0
        %3339 = vmatpush1.bf16.xpose.msra.mxu0 0
        %3340 = vmatprep.subr.bf16.mxu0 0
        %3341 = vmatpush1.bf16.xpose.msra.mxu0 0
        %3342 = vmatprep.subr.bf16.mxu0 0
        %3343 = vmatpush1.bf16.xpose.msra.mxu0 %v3327
        %3344 = vmatprep.subr.bf16.mxu0 0
        %3345 = vmatpush2.bf16.xpose.msra.mxu0 0
        %3346 = vmatprep.subr.bf16.mxu0 0
        %3347 = vmatpush2.bf16.xpose.msra.mxu0 0
        %3348 = vmatprep.subr.bf16.mxu0 0
        %3349 = vmatpush2.bf16.xpose.msra.mxu0 0
        %3350 = vmatprep.subr.bf16.mxu0 0
        %3351 = vmatpush2.bf16.xpose.msra.mxu0 0
        %3352 = vmatprep.subr.bf16.mxu0 0
        %3353 = vmatpush2.bf16.xpose.msra.mxu0 0
        %3354 = vmatprep.subr.bf16.mxu0 0
        %3355 = vmatpush2.bf16.xpose.msra.mxu0 0
        %3356 = vmatprep.subr.bf16.mxu0 0
        %3357 = vmatpush2.bf16.xpose.msra.mxu0 0
        %3358 = vmatprep.subr.bf16.mxu0 0
        %3359 = vmatpush2.bf16.xpose.msra.mxu0 0
        %3360 = vmatprep.mubr.bf16.mxu0 0
        %3361 = vmatmul.mubr.bf16.gmra.mxu0 %v3326
        %v3362 = vpop.f32.mrf.mxu0
        %v3363 = vadd.f32 0.0, %v3362
        %v3364 = vpop.f32.mrf.mxu0
        %v3365 = vpop.f32.mrf.mxu0
        %v3366 = vadd.f32 0.0, %v3365
        %v3367 = vpop.f32.mrf.mxu0
        %3368 = vdwg.mxu0
        %v3369 = vmul.f32 %v3363, 0.088388346
        %v3370 = vmul.f32 %v3366, 0.088388346
        %v3371 = vsel %vm2610, %v3369, -1e+30
        %v3372 = vsel %vm2611, %v3370, -1e+30
        %v3373 = vsel %vm2679, %v3371, -inf
        %3374 = vmax.xlane.f32.xlu0 %v3373
        %v3375 = vpop.xlane.xlu0 %3374
        %v3376 = vsel %vm2679, %v3372, -inf
        %3377 = vmax.xlane.f32.xlu0 %v3376
        %v3378 = vpop.xlane.xlu0 %3377
        %v3379 = vsub.f32 %v3371, %v3375
        %v3380 = vsub.f32 %v3372, %v3378
        %v3381 = vmul.f32 %v3379, 1.442695
        %v3382 = vpow.pop %v3381
        %v3383 = vmul.f32 %v3380, 1.442695
        %v3384 = vpow.pop %v3383
        %v3385 = vsel %vm2679, %v3382, 0.0
        %3386 = vadd.xlane.f32.xlu0 %v3385
        %v3387 = vpop.xlane.xlu0 %3386
        %v3388 = vsel %vm2679, %v3384, 0.0
        %3389 = vadd.xlane.f32.xlu0 %v3388
        %v3390 = vpop.xlane.xlu0 %3389
        %v3391 = vrcp.pop %v3387
        %v3392 = vmul.f32 %v3382, %v3391
        %v3393 = vrcp.pop %v3390
        %v3394 = vmul.f32 %v3384, %v3393
        %v3395 = vpack.c.bf16 %v3394, %v3392
        %v3396 = vpack.c.bf16 %v2598, %v2594
        %v3398 = vsel %vm2679, %v3395, 0
        %3400 = vmatprep.subr.bf16.mxu0 0
        %3401 = vmatpush1.bf16.msra.mxu0 0
        %3402 = vmatprep.subr.bf16.mxu0 0
        %3403 = vmatpush1.bf16.msra.mxu0 0
        %3404 = vmatprep.subr.bf16.mxu0 0
        %3405 = vmatpush1.bf16.msra.mxu0 0
        %3406 = vmatprep.subr.bf16.mxu0 0
        %3407 = vmatpush1.bf16.msra.mxu0 0
        %3408 = vmatprep.subr.bf16.mxu0 0
        %3409 = vmatpush1.bf16.msra.mxu0 0
        %3410 = vmatprep.subr.bf16.mxu0 0
        %3411 = vmatpush1.bf16.msra.mxu0 0
        %3412 = vmatprep.subr.bf16.mxu0 0
        %3413 = vmatpush1.bf16.msra.mxu0 0
        %3414 = vmatprep.subr.bf16.mxu0 0
        %3415 = vmatpush1.bf16.msra.mxu0 %v3396
        %3416 = vmatprep.subr.bf16.mxu0 0
        %3417 = vmatpush2.bf16.msra.mxu0 0
        %3418 = vmatprep.subr.bf16.mxu0 0
        %3419 = vmatpush2.bf16.msra.mxu0 0
        %3420 = vmatprep.subr.bf16.mxu0 0
        %3421 = vmatpush2.bf16.msra.mxu0 0
        %3422 = vmatprep.subr.bf16.mxu0 0
        %3423 = vmatpush2.bf16.msra.mxu0 0
        %3424 = vmatprep.subr.bf16.mxu0 0
        %3425 = vmatpush2.bf16.msra.mxu0 0
        %3426 = vmatprep.subr.bf16.mxu0 0
        %3427 = vmatpush2.bf16.msra.mxu0 0
        %3428 = vmatprep.subr.bf16.mxu0 0
        %3429 = vmatpush2.bf16.msra.mxu0 0
        %3430 = vmatprep.subr.bf16.mxu0 0
        %3431 = vmatpush2.bf16.msra.mxu0 0
        %3432 = vmatprep.mubr.bf16.mxu0 0
        %3433 = vmatmul.mubr.bf16.gmra.mxu0 %v3398
        %v3434 = vpop.f32.mrf.mxu0
        %v3435 = vadd.f32 0.0, %v3434
        %v3436 = vpop.f32.mrf.mxu0
        %v3437 = vpop.f32.mrf.mxu0
        %v3438 = vadd.f32 0.0, %v3437
        %v3439 = vpop.f32.mrf.mxu0
        %3440 = vdwg.mxu0
        %v3441 = vpack.c.bf16 %v3435, %v3435
        %v3442 = vld [vmem:[#allocation17 + $0x200] sm:$0xff]
        %v3443 = vld [vmem:[#allocation17 + $0x208] sm:$0xff]
        %v3444 = vld [vmem:[#allocation17 + $0x210] sm:$0xff]
        %v3445 = vld [vmem:[#allocation17 + $0x218] sm:$0xff]
        %v3446 = vld [vmem:[#allocation17 + $0x220] sm:$0xff]
        %v3447 = vld [vmem:[#allocation17 + $0x228] sm:$0xff]
        %v3448 = vld [vmem:[#allocation17 + $0x230] sm:$0xff]
        %v3449 = vld [vmem:[#allocation17 + $0x238] sm:$0xff]
        %v3450 = vld [vmem:[#allocation17 + $0x240] sm:$0xff]
        %v3451 = vld [vmem:[#allocation17 + $0x248] sm:$0xff]
        %v3452 = vld [vmem:[#allocation17 + $0x250] sm:$0xff]
        %v3453 = vld [vmem:[#allocation17 + $0x258] sm:$0xff]
        %v3454 = vld [vmem:[#allocation17 + $0x260] sm:$0xff]
        %v3455 = vld [vmem:[#allocation17 + $0x268] sm:$0xff]
        %v3456 = vld [vmem:[#allocation17 + $0x270] sm:$0xff]
        %v3457 = vld [vmem:[#allocation17 + $0x278] sm:$0xff]
        %v3458 = vld [vmem:[#allocation17 + $0x280] sm:$0xff]
        %v3459 = vld [vmem:[#allocation17 + $0x288] sm:$0xff]
        %v3460 = vld [vmem:[#allocation17 + $0x290] sm:$0xff]
        %v3461 = vld [vmem:[#allocation17 + $0x298] sm:$0xff]
        %v3462 = vld [vmem:[#allocation17 + $0x2a0] sm:$0xff]
        %v3463 = vld [vmem:[#allocation17 + $0x2a8] sm:$0xff]
        %v3464 = vld [vmem:[#allocation17 + $0x2b0] sm:$0xff]
        %v3465 = vld [vmem:[#allocation17 + $0x2b8] sm:$0xff]
        %v3466 = vld [vmem:[#allocation17 + $0x2c0] sm:$0xff]
        %v3467 = vld [vmem:[#allocation17 + $0x2c8] sm:$0xff]
        %v3468 = vld [vmem:[#allocation17 + $0x2d0] sm:$0xff]
        %v3469 = vld [vmem:[#allocation17 + $0x2d8] sm:$0xff]
        %v3470 = vld [vmem:[#allocation17 + $0x2e0] sm:$0xff]
        %v3471 = vld [vmem:[#allocation17 + $0x2e8] sm:$0xff]
        %v3472 = vld [vmem:[#allocation17 + $0x2f0] sm:$0xff]
        %v3473 = vld [vmem:[#allocation17 + $0x2f8] sm:$0xff]
        %v3506 = vunpack.c.l.b16 %v3442
        %v3507 = vunpack.c.h.b16 %v3442
        %v3508 = vunpack.c.l.b16 %v3443
        %v3509 = vunpack.c.h.b16 %v3443
        %v3510 = vunpack.c.l.b16 %v3444
        %v3511 = vunpack.c.h.b16 %v3444
        %v3512 = vunpack.c.l.b16 %v3445
        %v3513 = vunpack.c.h.b16 %v3445
        %v3514 = vunpack.c.l.b16 %v3446
        %v3515 = vunpack.c.h.b16 %v3446
        %v3516 = vunpack.c.l.b16 %v3447
        %v3517 = vunpack.c.h.b16 %v3447
        %v3518 = vunpack.c.l.b16 %v3448
        %v3519 = vunpack.c.h.b16 %v3448
        %v3520 = vunpack.c.l.b16 %v3449
        %v3521 = vunpack.c.h.b16 %v3449
        %v3522 = vunpack.c.l.b16 %v3450
        %v3523 = vunpack.c.h.b16 %v3450
        %v3524 = vunpack.c.l.b16 %v3451
        %v3525 = vunpack.c.h.b16 %v3451
        %v3526 = vunpack.c.l.b16 %v3452
        %v3527 = vunpack.c.h.b16 %v3452
        %v3528 = vunpack.c.l.b16 %v3453
        %v3529 = vunpack.c.h.b16 %v3453
        %v3530 = vunpack.c.l.b16 %v3454
        %v3531 = vunpack.c.h.b16 %v3454
        %v3532 = vunpack.c.l.b16 %v3455
        %v3533 = vunpack.c.h.b16 %v3455
        %v3534 = vunpack.c.l.b16 %v3456
        %v3535 = vunpack.c.h.b16 %v3456
        %v3536 = vunpack.c.l.b16 %v3457
        %v3537 = vunpack.c.h.b16 %v3457
        %v3538 = vunpack.c.l.b16 %v3458
        %v3539 = vunpack.c.h.b16 %v3458
        %v3540 = vunpack.c.l.b16 %v3459
        %v3541 = vunpack.c.h.b16 %v3459
        %v3542 = vunpack.c.l.b16 %v3460
        %v3543 = vunpack.c.h.b16 %v3460
        %v3544 = vunpack.c.l.b16 %v3461
        %v3545 = vunpack.c.h.b16 %v3461
        %v3546 = vunpack.c.l.b16 %v3462
        %v3547 = vunpack.c.h.b16 %v3462
        %v3548 = vunpack.c.l.b16 %v3463
        %v3549 = vunpack.c.h.b16 %v3463
        %v3550 = vunpack.c.l.b16 %v3464
        %v3551 = vunpack.c.h.b16 %v3464
        %v3552 = vunpack.c.l.b16 %v3465
        %v3553 = vunpack.c.h.b16 %v3465
        %v3554 = vunpack.c.l.b16 %v3466
        %v3555 = vunpack.c.h.b16 %v3466
        %v3556 = vunpack.c.l.b16 %v3467
        %v3557 = vunpack.c.h.b16 %v3467
        %v3558 = vunpack.c.l.b16 %v3468
        %v3559 = vunpack.c.h.b16 %v3468
        %v3560 = vunpack.c.l.b16 %v3469
        %v3561 = vunpack.c.h.b16 %v3469
        %v3562 = vunpack.c.l.b16 %v3470
        %v3563 = vunpack.c.h.b16 %v3470
        %v3564 = vunpack.c.l.b16 %v3471
        %v3565 = vunpack.c.h.b16 %v3471
        %v3566 = vunpack.c.l.b16 %v3472
        %v3567 = vunpack.c.h.b16 %v3472
        %v3568 = vunpack.c.l.b16 %v3473
        %v3569 = vunpack.c.h.b16 %v3473
        %v3570 = vpack.c.b16 %v3510, %v3506
        %v3571 = vpack.c.b16 %v3511, %v3507
        %v3572 = vpack.c.b16 %v3512, %v3508
        %v3573 = vpack.c.b16 %v3513, %v3509
        %v3574 = vpack.c.b16 %v3518, %v3514
        %v3575 = vpack.c.b16 %v3519, %v3515
        %v3576 = vpack.c.b16 %v3520, %v3516
        %v3577 = vpack.c.b16 %v3521, %v3517
        %v3578 = vpack.c.b16 %v3526, %v3522
        %v3579 = vpack.c.b16 %v3527, %v3523
        %v3580 = vpack.c.b16 %v3528, %v3524
        %v3581 = vpack.c.b16 %v3529, %v3525
        %v3582 = vpack.c.b16 %v3534, %v3530
        %v3583 = vpack.c.b16 %v3535, %v3531
        %v3584 = vpack.c.b16 %v3536, %v3532
        %v3585 = vpack.c.b16 %v3537, %v3533
        %v3586 = vpack.c.b16 %v3542, %v3538
        %v3587 = vpack.c.b16 %v3543, %v3539
        %v3588 = vpack.c.b16 %v3544, %v3540
        %v3589 = vpack.c.b16 %v3545, %v3541
        %v3590 = vpack.c.b16 %v3550, %v3546
        %v3591 = vpack.c.b16 %v3551, %v3547
        %v3592 = vpack.c.b16 %v3552, %v3548
        %v3593 = vpack.c.b16 %v3553, %v3549
        %v3594 = vpack.c.b16 %v3558, %v3554
        %v3595 = vpack.c.b16 %v3559, %v3555
        %v3596 = vpack.c.b16 %v3560, %v3556
        %v3597 = vpack.c.b16 %v3561, %v3557
        %v3598 = vpack.c.b16 %v3566, %v3562
        %v3599 = vpack.c.b16 %v3567, %v3563
        %v3600 = vpack.c.b16 %v3568, %v3564
        %v3601 = vpack.c.b16 %v3569, %v3565
        %3634 = vmatprep.subr.bf16.mxu0 %v3599
        %3635 = vmatpush1.bf16.msra.mxu0 %v3598
        %3636 = vmatprep.subr.bf16.mxu0 %v3595
        %3637 = vmatpush1.bf16.msra.mxu0 %v3594
        %3638 = vmatprep.subr.bf16.mxu0 %v3591
        %3639 = vmatpush1.bf16.msra.mxu0 %v3590
        %3640 = vmatprep.subr.bf16.mxu0 %v3587
        %3641 = vmatpush1.bf16.msra.mxu0 %v3586
        %3642 = vmatprep.subr.bf16.mxu0 %v3583
        %3643 = vmatpush1.bf16.msra.mxu0 %v3582
        %3644 = vmatprep.subr.bf16.mxu0 %v3579
        %3645 = vmatpush1.bf16.msra.mxu0 %v3578
        %3646 = vmatprep.subr.bf16.mxu0 %v3575
        %3647 = vmatpush1.bf16.msra.mxu0 %v3574
        %3648 = vmatprep.subr.bf16.mxu0 %v3571
        %3649 = vmatpush1.bf16.msra.mxu0 %v3570
        %3650 = vmatprep.subr.bf16.mxu0 0
        %3651 = vmatpush2.bf16.msra.mxu0 0
        %3652 = vmatprep.subr.bf16.mxu0 0
        %3653 = vmatpush2.bf16.msra.mxu0 0
        %3654 = vmatprep.subr.bf16.mxu0 0
        %3655 = vmatpush2.bf16.msra.mxu0 0
        %3656 = vmatprep.subr.bf16.mxu0 0
        %3657 = vmatpush2.bf16.msra.mxu0 0
        %3658 = vmatprep.subr.bf16.mxu0 0
        %3659 = vmatpush2.bf16.msra.mxu0 0
        %3660 = vmatprep.subr.bf16.mxu0 0
        %3661 = vmatpush2.bf16.msra.mxu0 0
        %3662 = vmatprep.subr.bf16.mxu0 0
        %3663 = vmatpush2.bf16.msra.mxu0 0
        %3664 = vmatprep.subr.bf16.mxu0 0
        %3665 = vmatpush2.bf16.msra.mxu0 0
        %3666 = vmatprep.mubr.bf16.mxu0 0
        %3667 = vmatmul.mubr.bf16.gmra.mxu0 %v3441
        %v3668 = vpop.f32.mrf.mxu0
        %v3669 = vadd.f32 0.0, %v3668
        %v3670 = vpop.f32.mrf.mxu0
        %v3671 = vadd.f32 0.0, %v3670
        %v3672 = vpop.f32.mrf.mxu0
        %v3673 = vpop.f32.mrf.mxu0
        %3674 = vdwg.mxu0
        %3675 = vmatprep.subr.bf16.mxu0 %v3601
        %3676 = vmatpush1.bf16.msra.mxu0 %v3600
        %3677 = vmatprep.subr.bf16.mxu0 %v3597
        %3678 = vmatpush1.bf16.msra.mxu0 %v3596
        %3679 = vmatprep.subr.bf16.mxu0 %v3593
        %3680 = vmatpush1.bf16.msra.mxu0 %v3592
        %3681 = vmatprep.subr.bf16.mxu0 %v3589
        %3682 = vmatpush1.bf16.msra.mxu0 %v3588
        %3683 = vmatprep.subr.bf16.mxu0 %v3585
        %3684 = vmatpush1.bf16.msra.mxu0 %v3584
        %3685 = vmatprep.subr.bf16.mxu0 %v3581
        %3686 = vmatpush1.bf16.msra.mxu0 %v3580
        %3687 = vmatprep.subr.bf16.mxu0 %v3577
        %3688 = vmatpush1.bf16.msra.mxu0 %v3576
        %3689 = vmatprep.subr.bf16.mxu0 %v3573
        %3690 = vmatpush1.bf16.msra.mxu0 %v3572
        %3691 = vmatprep.subr.bf16.mxu0 0
        %3692 = vmatpush2.bf16.msra.mxu0 0
        %3693 = vmatprep.subr.bf16.mxu0 0
        %3694 = vmatpush2.bf16.msra.mxu0 0
        %3695 = vmatprep.subr.bf16.mxu0 0
        %3696 = vmatpush2.bf16.msra.mxu0 0
        %3697 = vmatprep.subr.bf16.mxu0 0
        %3698 = vmatpush2.bf16.msra.mxu0 0
        %3699 = vmatprep.subr.bf16.mxu0 0
        %3700 = vmatpush2.bf16.msra.mxu0 0
        %3701 = vmatprep.subr.bf16.mxu0 0
        %3702 = vmatpush2.bf16.msra.mxu0 0
        %3703 = vmatprep.subr.bf16.mxu0 0
        %3704 = vmatpush2.bf16.msra.mxu0 0
        %3705 = vmatprep.subr.bf16.mxu0 0
        %3706 = vmatpush2.bf16.msra.mxu0 0
        %3707 = vmatprep.mubr.bf16.mxu0 0
        %3708 = vmatmul.mubr.bf16.gmra.mxu0 %v3441
        %v3709 = vpop.f32.mrf.mxu0
        %v3710 = vadd.f32 0.0, %v3709
        %v3711 = vpop.f32.mrf.mxu0
        %v3712 = vadd.f32 0.0, %v3711
        %v3713 = vpop.f32.mrf.mxu0
        %v3714 = vpop.f32.mrf.mxu0
        %3715 = vdwg.mxu0
        %v3716 = vadd.f32 %v3302, %v3669
        %v3717 = vadd.f32 %v3303, %v3671
        %v3718 = vadd.f32 %v3304, %v3710
        %v3719 = vadd.f32 %v3305, %v3712
        %v3720 = vpack.c.bf16 %v3438, %v3438
        %v3721 = vld [vmem:[#allocation17 + $0x300] sm:$0xff]
        %v3722 = vld [vmem:[#allocation17 + $0x308] sm:$0xff]
        %v3723 = vld [vmem:[#allocation17 + $0x310] sm:$0xff]
        %v3724 = vld [vmem:[#allocation17 + $0x318] sm:$0xff]
        %v3725 = vld [vmem:[#allocation17 + $0x320] sm:$0xff]
        %v3726 = vld [vmem:[#allocation17 + $0x328] sm:$0xff]
        %v3727 = vld [vmem:[#allocation17 + $0x330] sm:$0xff]
        %v3728 = vld [vmem:[#allocation17 + $0x338] sm:$0xff]
        %v3729 = vld [vmem:[#allocation17 + $0x340] sm:$0xff]
        %v3730 = vld [vmem:[#allocation17 + $0x348] sm:$0xff]
        %v3731 = vld [vmem:[#allocation17 + $0x350] sm:$0xff]
        %v3732 = vld [vmem:[#allocation17 + $0x358] sm:$0xff]
        %v3733 = vld [vmem:[#allocation17 + $0x360] sm:$0xff]
        %v3734 = vld [vmem:[#allocation17 + $0x368] sm:$0xff]
        %v3735 = vld [vmem:[#allocation17 + $0x370] sm:$0xff]
        %v3736 = vld [vmem:[#allocation17 + $0x378] sm:$0xff]
        %v3737 = vld [vmem:[#allocation17 + $0x380] sm:$0xff]
        %v3738 = vld [vmem:[#allocation17 + $0x388] sm:$0xff]
        %v3739 = vld [vmem:[#allocation17 + $0x390] sm:$0xff]
        %v3740 = vld [vmem:[#allocation17 + $0x398] sm:$0xff]
        %v3741 = vld [vmem:[#allocation17 + $0x3a0] sm:$0xff]
        %v3742 = vld [vmem:[#allocation17 + $0x3a8] sm:$0xff]
        %v3743 = vld [vmem:[#allocation17 + $0x3b0] sm:$0xff]
        %v3744 = vld [vmem:[#allocation17 + $0x3b8] sm:$0xff]
        %v3745 = vld [vmem:[#allocation17 + $0x3c0] sm:$0xff]
        %v3746 = vld [vmem:[#allocation17 + $0x3c8] sm:$0xff]
        %v3747 = vld [vmem:[#allocation17 + $0x3d0] sm:$0xff]
        %v3748 = vld [vmem:[#allocation17 + $0x3d8] sm:$0xff]
        %v3749 = vld [vmem:[#allocation17 + $0x3e0] sm:$0xff]
        %v3750 = vld [vmem:[#allocation17 + $0x3e8] sm:$0xff]
        %v3751 = vld [vmem:[#allocation17 + $0x3f0] sm:$0xff]
        %v3752 = vld [vmem:[#allocation17 + $0x3f8] sm:$0xff]
        %v3785 = vunpack.c.l.b16 %v3721
        %v3786 = vunpack.c.h.b16 %v3721
        %v3787 = vunpack.c.l.b16 %v3722
        %v3788 = vunpack.c.h.b16 %v3722
        %v3789 = vunpack.c.l.b16 %v3723
        %v3790 = vunpack.c.h.b16 %v3723
        %v3791 = vunpack.c.l.b16 %v3724
        %v3792 = vunpack.c.h.b16 %v3724
        %v3793 = vunpack.c.l.b16 %v3725
        %v3794 = vunpack.c.h.b16 %v3725
        %v3795 = vunpack.c.l.b16 %v3726
        %v3796 = vunpack.c.h.b16 %v3726
        %v3797 = vunpack.c.l.b16 %v3727
        %v3798 = vunpack.c.h.b16 %v3727
        %v3799 = vunpack.c.l.b16 %v3728
        %v3800 = vunpack.c.h.b16 %v3728
        %v3801 = vunpack.c.l.b16 %v3729
        %v3802 = vunpack.c.h.b16 %v3729
        %v3803 = vunpack.c.l.b16 %v3730
        %v3804 = vunpack.c.h.b16 %v3730
        %v3805 = vunpack.c.l.b16 %v3731
        %v3806 = vunpack.c.h.b16 %v3731
        %v3807 = vunpack.c.l.b16 %v3732
        %v3808 = vunpack.c.h.b16 %v3732
        %v3809 = vunpack.c.l.b16 %v3733
        %v3810 = vunpack.c.h.b16 %v3733
        %v3811 = vunpack.c.l.b16 %v3734
        %v3812 = vunpack.c.h.b16 %v3734
        %v3813 = vunpack.c.l.b16 %v3735
        %v3814 = vunpack.c.h.b16 %v3735
        %v3815 = vunpack.c.l.b16 %v3736
        %v3816 = vunpack.c.h.b16 %v3736
        %v3817 = vunpack.c.l.b16 %v3737
        %v3818 = vunpack.c.h.b16 %v3737
        %v3819 = vunpack.c.l.b16 %v3738
        %v3820 = vunpack.c.h.b16 %v3738
        %v3821 = vunpack.c.l.b16 %v3739
        %v3822 = vunpack.c.h.b16 %v3739
        %v3823 = vunpack.c.l.b16 %v3740
        %v3824 = vunpack.c.h.b16 %v3740
        %v3825 = vunpack.c.l.b16 %v3741
        %v3826 = vunpack.c.h.b16 %v3741
        %v3827 = vunpack.c.l.b16 %v3742
        %v3828 = vunpack.c.h.b16 %v3742
        %v3829 = vunpack.c.l.b16 %v3743
        %v3830 = vunpack.c.h.b16 %v3743
        %v3831 = vunpack.c.l.b16 %v3744
        %v3832 = vunpack.c.h.b16 %v3744
        %v3833 = vunpack.c.l.b16 %v3745
        %v3834 = vunpack.c.h.b16 %v3745
        %v3835 = vunpack.c.l.b16 %v3746
        %v3836 = vunpack.c.h.b16 %v3746
        %v3837 = vunpack.c.l.b16 %v3747
        %v3838 = vunpack.c.h.b16 %v3747
        %v3839 = vunpack.c.l.b16 %v3748
        %v3840 = vunpack.c.h.b16 %v3748
        %v3841 = vunpack.c.l.b16 %v3749
        %v3842 = vunpack.c.h.b16 %v3749
        %v3843 = vunpack.c.l.b16 %v3750
        %v3844 = vunpack.c.h.b16 %v3750
        %v3845 = vunpack.c.l.b16 %v3751
        %v3846 = vunpack.c.h.b16 %v3751
        %v3847 = vunpack.c.l.b16 %v3752
        %v3848 = vunpack.c.h.b16 %v3752
        %v3849 = vpack.c.b16 %v3789, %v3785
        %v3850 = vpack.c.b16 %v3790, %v3786
        %v3851 = vpack.c.b16 %v3791, %v3787
        %v3852 = vpack.c.b16 %v3792, %v3788
        %v3853 = vpack.c.b16 %v3797, %v3793
        %v3854 = vpack.c.b16 %v3798, %v3794
        %v3855 = vpack.c.b16 %v3799, %v3795
        %v3856 = vpack.c.b16 %v3800, %v3796
        %v3857 = vpack.c.b16 %v3805, %v3801
        %v3858 = vpack.c.b16 %v3806, %v3802
        %v3859 = vpack.c.b16 %v3807, %v3803
        %v3860 = vpack.c.b16 %v3808, %v3804
        %v3861 = vpack.c.b16 %v3813, %v3809
        %v3862 = vpack.c.b16 %v3814, %v3810
        %v3863 = vpack.c.b16 %v3815, %v3811
        %v3864 = vpack.c.b16 %v3816, %v3812
        %v3865 = vpack.c.b16 %v3821, %v3817
        %v3866 = vpack.c.b16 %v3822, %v3818
        %v3867 = vpack.c.b16 %v3823, %v3819
        %v3868 = vpack.c.b16 %v3824, %v3820
        %v3869 = vpack.c.b16 %v3829, %v3825
        %v3870 = vpack.c.b16 %v3830, %v3826
        %v3871 = vpack.c.b16 %v3831, %v3827
        %v3872 = vpack.c.b16 %v3832, %v3828
        %v3873 = vpack.c.b16 %v3837, %v3833
        %v3874 = vpack.c.b16 %v3838, %v3834
        %v3875 = vpack.c.b16 %v3839, %v3835
        %v3876 = vpack.c.b16 %v3840, %v3836
        %v3877 = vpack.c.b16 %v3845, %v3841
        %v3878 = vpack.c.b16 %v3846, %v3842
        %v3879 = vpack.c.b16 %v3847, %v3843
        %v3880 = vpack.c.b16 %v3848, %v3844
        %3913 = vmatprep.subr.bf16.mxu0 %v3878
        %3914 = vmatpush1.bf16.msra.mxu0 %v3877
        %3915 = vmatprep.subr.bf16.mxu0 %v3874
        %3916 = vmatpush1.bf16.msra.mxu0 %v3873
        %3917 = vmatprep.subr.bf16.mxu0 %v3870
        %3918 = vmatpush1.bf16.msra.mxu0 %v3869
        %3919 = vmatprep.subr.bf16.mxu0 %v3866
        %3920 = vmatpush1.bf16.msra.mxu0 %v3865
        %3921 = vmatprep.subr.bf16.mxu0 %v3862
        %3922 = vmatpush1.bf16.msra.mxu0 %v3861
        %3923 = vmatprep.subr.bf16.mxu0 %v3858
        %3924 = vmatpush1.bf16.msra.mxu0 %v3857
        %3925 = vmatprep.subr.bf16.mxu0 %v3854
        %3926 = vmatpush1.bf16.msra.mxu0 %v3853
        %3927 = vmatprep.subr.bf16.mxu0 %v3850
        %3928 = vmatpush1.bf16.msra.mxu0 %v3849
        %3929 = vmatprep.subr.bf16.mxu0 0
        %3930 = vmatpush2.bf16.msra.mxu0 0
        %3931 = vmatprep.subr.bf16.mxu0 0
        %3932 = vmatpush2.bf16.msra.mxu0 0
        %3933 = vmatprep.subr.bf16.mxu0 0
        %3934 = vmatpush2.bf16.msra.mxu0 0
        %3935 = vmatprep.subr.bf16.mxu0 0
        %3936 = vmatpush2.bf16.msra.mxu0 0
        %3937 = vmatprep.subr.bf16.mxu0 0
        %3938 = vmatpush2.bf16.msra.mxu0 0
        %3939 = vmatprep.subr.bf16.mxu0 0
        %3940 = vmatpush2.bf16.msra.mxu0 0
        %3941 = vmatprep.subr.bf16.mxu0 0
        %3942 = vmatpush2.bf16.msra.mxu0 0
        %3943 = vmatprep.subr.bf16.mxu0 0
        %3944 = vmatpush2.bf16.msra.mxu0 0
        %3945 = vmatprep.mubr.bf16.mxu0 0
        %3946 = vmatmul.mubr.bf16.gmra.mxu0 %v3720
        %v3947 = vpop.f32.mrf.mxu0
        %v3948 = vadd.f32 0.0, %v3947
        %v3949 = vpop.f32.mrf.mxu0
        %v3950 = vadd.f32 0.0, %v3949
        %v3951 = vpop.f32.mrf.mxu0
        %v3952 = vpop.f32.mrf.mxu0
        %3953 = vdwg.mxu0
        %3954 = vmatprep.subr.bf16.mxu0 %v3880
        %3955 = vmatpush1.bf16.msra.mxu0 %v3879
        %3956 = vmatprep.subr.bf16.mxu0 %v3876
        %3957 = vmatpush1.bf16.msra.mxu0 %v3875
        %3958 = vmatprep.subr.bf16.mxu0 %v3872
        %3959 = vmatpush1.bf16.msra.mxu0 %v3871
        %3960 = vmatprep.subr.bf16.mxu0 %v3868
        %3961 = vmatpush1.bf16.msra.mxu0 %v3867
        %3962 = vmatprep.subr.bf16.mxu0 %v3864
        %3963 = vmatpush1.bf16.msra.mxu0 %v3863
        %3964 = vmatprep.subr.bf16.mxu0 %v3860
        %3965 = vmatpush1.bf16.msra.mxu0 %v3859
        %3966 = vmatprep.subr.bf16.mxu0 %v3856
        %3967 = vmatpush1.bf16.msra.mxu0 %v3855
        %3968 = vmatprep.subr.bf16.mxu0 %v3852
        %3969 = vmatpush1.bf16.msra.mxu0 %v3851
        %3970 = vmatprep.subr.bf16.mxu0 0
        %3971 = vmatpush2.bf16.msra.mxu0 0
        %3972 = vmatprep.subr.bf16.mxu0 0
        %3973 = vmatpush2.bf16.msra.mxu0 0
        %3974 = vmatprep.subr.bf16.mxu0 0
        %3975 = vmatpush2.bf16.msra.mxu0 0
        %3976 = vmatprep.subr.bf16.mxu0 0
        %3977 = vmatpush2.bf16.msra.mxu0 0
        %3978 = vmatprep.subr.bf16.mxu0 0
        %3979 = vmatpush2.bf16.msra.mxu0 0
        %3980 = vmatprep.subr.bf16.mxu0 0
        %3981 = vmatpush2.bf16.msra.mxu0 0
        %3982 = vmatprep.subr.bf16.mxu0 0
        %3983 = vmatpush2.bf16.msra.mxu0 0
        %3984 = vmatprep.subr.bf16.mxu0 0
        %3985 = vmatpush2.bf16.msra.mxu0 0
        %3986 = vmatprep.mubr.bf16.mxu0 0
        %3987 = vmatmul.mubr.bf16.gmra.mxu0 %v3720
        %v3988 = vpop.f32.mrf.mxu0
        %v3989 = vadd.f32 0.0, %v3988
        %v3990 = vpop.f32.mrf.mxu0
        %v3991 = vadd.f32 0.0, %v3990
        %v3992 = vpop.f32.mrf.mxu0
        %v3993 = vpop.f32.mrf.mxu0
        %3994 = vdwg.mxu0
        %v3995 = vadd.f32 %v3716, %v3948
        %v3996 = vadd.f32 %v3717, %v3950
        %v3997 = vadd.f32 %v3718, %v3989
        %v3998 = vadd.f32 %v3719, %v3991
        %v3999 = vmul.f32 %v3995, %v3995
        %v4000 = vmul.f32 %v3996, %v3996
        %v4001 = vmul.f32 %v3997, %v3997
        %v4002 = vmul.f32 %v3998, %v3998
        %v4003 = vadd.f32 %v3999, %v4000
        %v4004 = vadd.f32 %v4003, %v4001
        %v4005 = vadd.f32 %v4004, %v4002
        %4006 = vadd.xlane.f32.xlu0 %v4005
        %v4007 = vpop.xlane.xlu0 %4006
        %v4008 = vmul.f32 %v4007, %v603
        %v4009 = vadd.f32 %v4008, 1e-06
        %v4010 = vrsqrt.pop %v4009
        %v4011 = vmul.f32 %v3995, %v4010
        %v4012 = vmul.f32 %v3996, %v4010
        %v4013 = vmul.f32 %v3997, %v4010
        %v4014 = vmul.f32 %v3998, %v4010
        %v4016 = vlaneseq
        %v4017 = vshrl.u32 %v4016, 7
        %v4018 = vsub.s32 0, %v4017
        %v4019 = vrot.slane %v593, %v4018
        %v4020 = vlaneseq
        %v4021 = vshrl.u32 %v4020, 7
        %v4022 = vsub.s32 1, %v4021
        %v4023 = vrot.slane %v593, %v4022
        %v4024 = vlaneseq
        %v4025 = vshrl.u32 %v4024, 7
        %v4026 = vsub.s32 2, %v4025
        %v4027 = vrot.slane %v593, %v4026
        %v4028 = vlaneseq
        %v4029 = vshrl.u32 %v4028, 7
        %v4030 = vsub.s32 3, %v4029
        %v4031 = vrot.slane %v593, %v4030
        %v4036 = vmul.f32 %v4011, %v4019
        %v4037 = vmul.f32 %v4012, %v4023
        %v4038 = vmul.f32 %v4013, %v4027
        %v4039 = vmul.f32 %v4014, %v4031
        %v4040 = vpack.c.bf16 %v4036, %v4036
        %v4041 = vpack.c.bf16 %v4037, %v4037
        %v4042 = vpack.c.bf16 %v4038, %v4038
        %v4043 = vpack.c.bf16 %v4039, %v4039
        %v4044 = vld [vmem:[#allocation19] sm:$0xff]
        %v4045 = vld [vmem:[#allocation19 + $0x8] sm:$0xff]
        %v4046 = vld [vmem:[#allocation19 + $0x10] sm:$0xff]
        %v4047 = vld [vmem:[#allocation19 + $0x18] sm:$0xff]
        %v4048 = vld [vmem:[#allocation19 + $0x20] sm:$0xff]
        %v4049 = vld [vmem:[#allocation19 + $0x28] sm:$0xff]
        %v4050 = vld [vmem:[#allocation19 + $0x30] sm:$0xff]
        %v4051 = vld [vmem:[#allocation19 + $0x38] sm:$0xff]
        %v4052 = vld [vmem:[#allocation19 + $0x40] sm:$0xff]
        %v4053 = vld [vmem:[#allocation19 + $0x48] sm:$0xff]
        %v4054 = vld [vmem:[#allocation19 + $0x50] sm:$0xff]
        %v4055 = vld [vmem:[#allocation19 + $0x58] sm:$0xff]
        %v4056 = vld [vmem:[#allocation19 + $0x60] sm:$0xff]
        %v4057 = vld [vmem:[#allocation19 + $0x68] sm:$0xff]
        %v4058 = vld [vmem:[#allocation19 + $0x70] sm:$0xff]
        %v4059 = vld [vmem:[#allocation19 + $0x78] sm:$0xff]
        %v4060 = vld [vmem:[#allocation19 + $0x80] sm:$0xff]
        %v4061 = vld [vmem:[#allocation19 + $0x88] sm:$0xff]
        %v4062 = vld [vmem:[#allocation19 + $0x90] sm:$0xff]
        %v4063 = vld [vmem:[#allocation19 + $0x98] sm:$0xff]
        %v4064 = vld [vmem:[#allocation19 + $0xa0] sm:$0xff]
        %v4065 = vld [vmem:[#allocation19 + $0xa8] sm:$0xff]
        %v4066 = vld [vmem:[#allocation19 + $0xb0] sm:$0xff]
        %v4067 = vld [vmem:[#allocation19 + $0xb8] sm:$0xff]
        %v4068 = vld [vmem:[#allocation19 + $0xc0] sm:$0xff]
        %v4069 = vld [vmem:[#allocation19 + $0xc8] sm:$0xff]
        %v4070 = vld [vmem:[#allocation19 + $0xd0] sm:$0xff]
        %v4071 = vld [vmem:[#allocation19 + $0xd8] sm:$0xff]
        %v4072 = vld [vmem:[#allocation19 + $0xe0] sm:$0xff]
        %v4073 = vld [vmem:[#allocation19 + $0xe8] sm:$0xff]
        %v4074 = vld [vmem:[#allocation19 + $0xf0] sm:$0xff]
        %v4075 = vld [vmem:[#allocation19 + $0xf8] sm:$0xff]
        %v4076 = vld [vmem:[#allocation19 + $0x100] sm:$0xff]
        %v4077 = vld [vmem:[#allocation19 + $0x108] sm:$0xff]
        %v4078 = vld [vmem:[#allocation19 + $0x110] sm:$0xff]
        %v4079 = vld [vmem:[#allocation19 + $0x118] sm:$0xff]
        %v4080 = vld [vmem:[#allocation19 + $0x120] sm:$0xff]
        %v4081 = vld [vmem:[#allocation19 + $0x128] sm:$0xff]
        %v4082 = vld [vmem:[#allocation19 + $0x130] sm:$0xff]
        %v4083 = vld [vmem:[#allocation19 + $0x138] sm:$0xff]
        %v4084 = vld [vmem:[#allocation19 + $0x140] sm:$0xff]
        %v4085 = vld [vmem:[#allocation19 + $0x148] sm:$0xff]
        %v4086 = vld [vmem:[#allocation19 + $0x150] sm:$0xff]
        %v4087 = vld [vmem:[#allocation19 + $0x158] sm:$0xff]
        %v4088 = vld [vmem:[#allocation19 + $0x160] sm:$0xff]
        %v4089 = vld [vmem:[#allocation19 + $0x168] sm:$0xff]
        %v4090 = vld [vmem:[#allocation19 + $0x170] sm:$0xff]
        %v4091 = vld [vmem:[#allocation19 + $0x178] sm:$0xff]
        %v4092 = vld [vmem:[#allocation19 + $0x180] sm:$0xff]
        %v4093 = vld [vmem:[#allocation19 + $0x188] sm:$0xff]
        %v4094 = vld [vmem:[#allocation19 + $0x190] sm:$0xff]
        %v4095 = vld [vmem:[#allocation19 + $0x198] sm:$0xff]
        %v4096 = vld [vmem:[#allocation19 + $0x1a0] sm:$0xff]
        %v4097 = vld [vmem:[#allocation19 + $0x1a8] sm:$0xff]
        %v4098 = vld [vmem:[#allocation19 + $0x1b0] sm:$0xff]
        %v4099 = vld [vmem:[#allocation19 + $0x1b8] sm:$0xff]
        %v4100 = vld [vmem:[#allocation19 + $0x1c0] sm:$0xff]
        %v4101 = vld [vmem:[#allocation19 + $0x1c8] sm:$0xff]
        %v4102 = vld [vmem:[#allocation19 + $0x1d0] sm:$0xff]
        %v4103 = vld [vmem:[#allocation19 + $0x1d8] sm:$0xff]
        %v4104 = vld [vmem:[#allocation19 + $0x1e0] sm:$0xff]
        %v4105 = vld [vmem:[#allocation19 + $0x1e8] sm:$0xff]
        %v4106 = vld [vmem:[#allocation19 + $0x1f0] sm:$0xff]
        %v4107 = vld [vmem:[#allocation19 + $0x1f8] sm:$0xff]
        %v4108 = vld [vmem:[#allocation19 + $0x200] sm:$0xff]
        %v4109 = vld [vmem:[#allocation19 + $0x208] sm:$0xff]
        %v4110 = vld [vmem:[#allocation19 + $0x210] sm:$0xff]
        %v4111 = vld [vmem:[#allocation19 + $0x218] sm:$0xff]
        %v4112 = vld [vmem:[#allocation19 + $0x220] sm:$0xff]
        %v4113 = vld [vmem:[#allocation19 + $0x228] sm:$0xff]
        %v4114 = vld [vmem:[#allocation19 + $0x230] sm:$0xff]
        %v4115 = vld [vmem:[#allocation19 + $0x238] sm:$0xff]
        %v4116 = vld [vmem:[#allocation19 + $0x240] sm:$0xff]
        %v4117 = vld [vmem:[#allocation19 + $0x248] sm:$0xff]
        %v4118 = vld [vmem:[#allocation19 + $0x250] sm:$0xff]
        %v4119 = vld [vmem:[#allocation19 + $0x258] sm:$0xff]
        %v4120 = vld [vmem:[#allocation19 + $0x260] sm:$0xff]
        %v4121 = vld [vmem:[#allocation19 + $0x268] sm:$0xff]
        %v4122 = vld [vmem:[#allocation19 + $0x270] sm:$0xff]
        %v4123 = vld [vmem:[#allocation19 + $0x278] sm:$0xff]
        %v4124 = vld [vmem:[#allocation19 + $0x280] sm:$0xff]
        %v4125 = vld [vmem:[#allocation19 + $0x288] sm:$0xff]
        %v4126 = vld [vmem:[#allocation19 + $0x290] sm:$0xff]
        %v4127 = vld [vmem:[#allocation19 + $0x298] sm:$0xff]
        %v4128 = vld [vmem:[#allocation19 + $0x2a0] sm:$0xff]
        %v4129 = vld [vmem:[#allocation19 + $0x2a8] sm:$0xff]
        %v4130 = vld [vmem:[#allocation19 + $0x2b0] sm:$0xff]
        %v4131 = vld [vmem:[#allocation19 + $0x2b8] sm:$0xff]
        %v4132 = vld [vmem:[#allocation19 + $0x2c0] sm:$0xff]
        %v4133 = vld [vmem:[#allocation19 + $0x2c8] sm:$0xff]
        %v4134 = vld [vmem:[#allocation19 + $0x2d0] sm:$0xff]
        %v4135 = vld [vmem:[#allocation19 + $0x2d8] sm:$0xff]
        %v4136 = vld [vmem:[#allocation19 + $0x2e0] sm:$0xff]
        %v4137 = vld [vmem:[#allocation19 + $0x2e8] sm:$0xff]
        %v4138 = vld [vmem:[#allocation19 + $0x2f0] sm:$0xff]
        %v4139 = vld [vmem:[#allocation19 + $0x2f8] sm:$0xff]
        %v4140 = vld [vmem:[#allocation19 + $0x300] sm:$0xff]
        %v4141 = vld [vmem:[#allocation19 + $0x308] sm:$0xff]
        %v4142 = vld [vmem:[#allocation19 + $0x310] sm:$0xff]
        %v4143 = vld [vmem:[#allocation19 + $0x318] sm:$0xff]
        %v4144 = vld [vmem:[#allocation19 + $0x320] sm:$0xff]
        %v4145 = vld [vmem:[#allocation19 + $0x328] sm:$0xff]
        %v4146 = vld [vmem:[#allocation19 + $0x330] sm:$0xff]
        %v4147 = vld [vmem:[#allocation19 + $0x338] sm:$0xff]
        %v4148 = vld [vmem:[#allocation19 + $0x340] sm:$0xff]
        %v4149 = vld [vmem:[#allocation19 + $0x348] sm:$0xff]
        %v4150 = vld [vmem:[#allocation19 + $0x350] sm:$0xff]
        %v4151 = vld [vmem:[#allocation19 + $0x358] sm:$0xff]
        %v4152 = vld [vmem:[#allocation19 + $0x360] sm:$0xff]
        %v4153 = vld [vmem:[#allocation19 + $0x368] sm:$0xff]
        %v4154 = vld [vmem:[#allocation19 + $0x370] sm:$0xff]
        %v4155 = vld [vmem:[#allocation19 + $0x378] sm:$0xff]
        %v4156 = vld [vmem:[#allocation19 + $0x380] sm:$0xff]
        %v4157 = vld [vmem:[#allocation19 + $0x388] sm:$0xff]
        %v4158 = vld [vmem:[#allocation19 + $0x390] sm:$0xff]
        %v4159 = vld [vmem:[#allocation19 + $0x398] sm:$0xff]
        %v4160 = vld [vmem:[#allocation19 + $0x3a0] sm:$0xff]
        %v4161 = vld [vmem:[#allocation19 + $0x3a8] sm:$0xff]
        %v4162 = vld [vmem:[#allocation19 + $0x3b0] sm:$0xff]
        %v4163 = vld [vmem:[#allocation19 + $0x3b8] sm:$0xff]
        %v4164 = vld [vmem:[#allocation19 + $0x3c0] sm:$0xff]
        %v4165 = vld [vmem:[#allocation19 + $0x3c8] sm:$0xff]
        %v4166 = vld [vmem:[#allocation19 + $0x3d0] sm:$0xff]
        %v4167 = vld [vmem:[#allocation19 + $0x3d8] sm:$0xff]
        %v4168 = vld [vmem:[#allocation19 + $0x3e0] sm:$0xff]
        %v4169 = vld [vmem:[#allocation19 + $0x3e8] sm:$0xff]
        %v4170 = vld [vmem:[#allocation19 + $0x3f0] sm:$0xff]
        %v4171 = vld [vmem:[#allocation19 + $0x3f8] sm:$0xff]
        %v4172 = vld [vmem:[#allocation19 + $0x400] sm:$0xff]
        %v4173 = vld [vmem:[#allocation19 + $0x408] sm:$0xff]
        %v4174 = vld [vmem:[#allocation19 + $0x410] sm:$0xff]
        %v4175 = vld [vmem:[#allocation19 + $0x418] sm:$0xff]
        %v4176 = vld [vmem:[#allocation19 + $0x420] sm:$0xff]
        %v4177 = vld [vmem:[#allocation19 + $0x428] sm:$0xff]
        %v4178 = vld [vmem:[#allocation19 + $0x430] sm:$0xff]
        %v4179 = vld [vmem:[#allocation19 + $0x438] sm:$0xff]
        %v4180 = vld [vmem:[#allocation19 + $0x440] sm:$0xff]
        %v4181 = vld [vmem:[#allocation19 + $0x448] sm:$0xff]
        %v4182 = vld [vmem:[#allocation19 + $0x450] sm:$0xff]
        %v4183 = vld [vmem:[#allocation19 + $0x458] sm:$0xff]
        %v4184 = vld [vmem:[#allocation19 + $0x460] sm:$0xff]
        %v4185 = vld [vmem:[#allocation19 + $0x468] sm:$0xff]
        %v4186 = vld [vmem:[#allocation19 + $0x470] sm:$0xff]
        %v4187 = vld [vmem:[#allocation19 + $0x478] sm:$0xff]
        %v4188 = vld [vmem:[#allocation19 + $0x480] sm:$0xff]
        %v4189 = vld [vmem:[#allocation19 + $0x488] sm:$0xff]
        %v4190 = vld [vmem:[#allocation19 + $0x490] sm:$0xff]
        %v4191 = vld [vmem:[#allocation19 + $0x498] sm:$0xff]
        %v4192 = vld [vmem:[#allocation19 + $0x4a0] sm:$0xff]
        %v4193 = vld [vmem:[#allocation19 + $0x4a8] sm:$0xff]
        %v4194 = vld [vmem:[#allocation19 + $0x4b0] sm:$0xff]
        %v4195 = vld [vmem:[#allocation19 + $0x4b8] sm:$0xff]
        %v4196 = vld [vmem:[#allocation19 + $0x4c0] sm:$0xff]
        %v4197 = vld [vmem:[#allocation19 + $0x4c8] sm:$0xff]
        %v4198 = vld [vmem:[#allocation19 + $0x4d0] sm:$0xff]
        %v4199 = vld [vmem:[#allocation19 + $0x4d8] sm:$0xff]
        %v4200 = vld [vmem:[#allocation19 + $0x4e0] sm:$0xff]
        %v4201 = vld [vmem:[#allocation19 + $0x4e8] sm:$0xff]
        %v4202 = vld [vmem:[#allocation19 + $0x4f0] sm:$0xff]
        %v4203 = vld [vmem:[#allocation19 + $0x4f8] sm:$0xff]
        %v4204 = vld [vmem:[#allocation19 + $0x500] sm:$0xff]
        %v4205 = vld [vmem:[#allocation19 + $0x508] sm:$0xff]
        %v4206 = vld [vmem:[#allocation19 + $0x510] sm:$0xff]
        %v4207 = vld [vmem:[#allocation19 + $0x518] sm:$0xff]
        %v4208 = vld [vmem:[#allocation19 + $0x520] sm:$0xff]
        %v4209 = vld [vmem:[#allocation19 + $0x528] sm:$0xff]
        %v4210 = vld [vmem:[#allocation19 + $0x530] sm:$0xff]
        %v4211 = vld [vmem:[#allocation19 + $0x538] sm:$0xff]
        %v4212 = vld [vmem:[#allocation19 + $0x540] sm:$0xff]
        %v4213 = vld [vmem:[#allocation19 + $0x548] sm:$0xff]
        %v4214 = vld [vmem:[#allocation19 + $0x550] sm:$0xff]
        %v4215 = vld [vmem:[#allocation19 + $0x558] sm:$0xff]
        %v4216 = vld [vmem:[#allocation19 + $0x560] sm:$0xff]
        %v4217 = vld [vmem:[#allocation19 + $0x568] sm:$0xff]
        %v4218 = vld [vmem:[#allocation19 + $0x570] sm:$0xff]
        %v4219 = vld [vmem:[#allocation19 + $0x578] sm:$0xff]
        %v4220 = vld [vmem:[#allocation19 + $0x580] sm:$0xff]
        %v4221 = vld [vmem:[#allocation19 + $0x588] sm:$0xff]
        %v4222 = vld [vmem:[#allocation19 + $0x590] sm:$0xff]
        %v4223 = vld [vmem:[#allocation19 + $0x598] sm:$0xff]
        %v4224 = vld [vmem:[#allocation19 + $0x5a0] sm:$0xff]
        %v4225 = vld [vmem:[#allocation19 + $0x5a8] sm:$0xff]
        %v4226 = vld [vmem:[#allocation19 + $0x5b0] sm:$0xff]
        %v4227 = vld [vmem:[#allocation19 + $0x5b8] sm:$0xff]
        %v4228 = vld [vmem:[#allocation19 + $0x5c0] sm:$0xff]
        %v4229 = vld [vmem:[#allocation19 + $0x5c8] sm:$0xff]
        %v4230 = vld [vmem:[#allocation19 + $0x5d0] sm:$0xff]
        %v4231 = vld [vmem:[#allocation19 + $0x5d8] sm:$0xff]
        %v4232 = vld [vmem:[#allocation19 + $0x5e0] sm:$0xff]
        %v4233 = vld [vmem:[#allocation19 + $0x5e8] sm:$0xff]
        %v4234 = vld [vmem:[#allocation19 + $0x5f0] sm:$0xff]
        %v4235 = vld [vmem:[#allocation19 + $0x5f8] sm:$0xff]
        %v4236 = vld [vmem:[#allocation19 + $0x600] sm:$0xff]
        %v4237 = vld [vmem:[#allocation19 + $0x608] sm:$0xff]
        %v4238 = vld [vmem:[#allocation19 + $0x610] sm:$0xff]
        %v4239 = vld [vmem:[#allocation19 + $0x618] sm:$0xff]
        %v4240 = vld [vmem:[#allocation19 + $0x620] sm:$0xff]
        %v4241 = vld [vmem:[#allocation19 + $0x628] sm:$0xff]
        %v4242 = vld [vmem:[#allocation19 + $0x630] sm:$0xff]
        %v4243 = vld [vmem:[#allocation19 + $0x638] sm:$0xff]
        %v4244 = vld [vmem:[#allocation19 + $0x640] sm:$0xff]
        %v4245 = vld [vmem:[#allocation19 + $0x648] sm:$0xff]
        %v4246 = vld [vmem:[#allocation19 + $0x650] sm:$0xff]
        %v4247 = vld [vmem:[#allocation19 + $0x658] sm:$0xff]
        %v4248 = vld [vmem:[#allocation19 + $0x660] sm:$0xff]
        %v4249 = vld [vmem:[#allocation19 + $0x668] sm:$0xff]
        %v4250 = vld [vmem:[#allocation19 + $0x670] sm:$0xff]
        %v4251 = vld [vmem:[#allocation19 + $0x678] sm:$0xff]
        %v4252 = vld [vmem:[#allocation19 + $0x680] sm:$0xff]
        %v4253 = vld [vmem:[#allocation19 + $0x688] sm:$0xff]
        %v4254 = vld [vmem:[#allocation19 + $0x690] sm:$0xff]
        %v4255 = vld [vmem:[#allocation19 + $0x698] sm:$0xff]
        %v4256 = vld [vmem:[#allocation19 + $0x6a0] sm:$0xff]
        %v4257 = vld [vmem:[#allocation19 + $0x6a8] sm:$0xff]
        %v4258 = vld [vmem:[#allocation19 + $0x6b0] sm:$0xff]
        %v4259 = vld [vmem:[#allocation19 + $0x6b8] sm:$0xff]
        %v4260 = vld [vmem:[#allocation19 + $0x6c0] sm:$0xff]
        %v4261 = vld [vmem:[#allocation19 + $0x6c8] sm:$0xff]
        %v4262 = vld [vmem:[#allocation19 + $0x6d0] sm:$0xff]
        %v4263 = vld [vmem:[#allocation19 + $0x6d8] sm:$0xff]
        %v4264 = vld [vmem:[#allocation19 + $0x6e0] sm:$0xff]
        %v4265 = vld [vmem:[#allocation19 + $0x6e8] sm:$0xff]
        %v4266 = vld [vmem:[#allocation19 + $0x6f0] sm:$0xff]
        %v4267 = vld [vmem:[#allocation19 + $0x6f8] sm:$0xff]
        %v4268 = vld [vmem:[#allocation19 + $0x700] sm:$0xff]
        %v4269 = vld [vmem:[#allocation19 + $0x708] sm:$0xff]
        %v4270 = vld [vmem:[#allocation19 + $0x710] sm:$0xff]
        %v4271 = vld [vmem:[#allocation19 + $0x718] sm:$0xff]
        %v4272 = vld [vmem:[#allocation19 + $0x720] sm:$0xff]
        %v4273 = vld [vmem:[#allocation19 + $0x728] sm:$0xff]
        %v4274 = vld [vmem:[#allocation19 + $0x730] sm:$0xff]
        %v4275 = vld [vmem:[#allocation19 + $0x738] sm:$0xff]
        %v4276 = vld [vmem:[#allocation19 + $0x740] sm:$0xff]
        %v4277 = vld [vmem:[#allocation19 + $0x748] sm:$0xff]
        %v4278 = vld [vmem:[#allocation19 + $0x750] sm:$0xff]
        %v4279 = vld [vmem:[#allocation19 + $0x758] sm:$0xff]
        %v4280 = vld [vmem:[#allocation19 + $0x760] sm:$0xff]
        %v4281 = vld [vmem:[#allocation19 + $0x768] sm:$0xff]
        %v4282 = vld [vmem:[#allocation19 + $0x770] sm:$0xff]
        %v4283 = vld [vmem:[#allocation19 + $0x778] sm:$0xff]
        %v4284 = vld [vmem:[#allocation19 + $0x780] sm:$0xff]
        %v4285 = vld [vmem:[#allocation19 + $0x788] sm:$0xff]
        %v4286 = vld [vmem:[#allocation19 + $0x790] sm:$0xff]
        %v4287 = vld [vmem:[#allocation19 + $0x798] sm:$0xff]
        %v4288 = vld [vmem:[#allocation19 + $0x7a0] sm:$0xff]
        %v4289 = vld [vmem:[#allocation19 + $0x7a8] sm:$0xff]
        %v4290 = vld [vmem:[#allocation19 + $0x7b0] sm:$0xff]
        %v4291 = vld [vmem:[#allocation19 + $0x7b8] sm:$0xff]
        %v4292 = vld [vmem:[#allocation19 + $0x7c0] sm:$0xff]
        %v4293 = vld [vmem:[#allocation19 + $0x7c8] sm:$0xff]
        %v4294 = vld [vmem:[#allocation19 + $0x7d0] sm:$0xff]
        %v4295 = vld [vmem:[#allocation19 + $0x7d8] sm:$0xff]
        %v4296 = vld [vmem:[#allocation19 + $0x7e0] sm:$0xff]
        %v4297 = vld [vmem:[#allocation19 + $0x7e8] sm:$0xff]
        %v4298 = vld [vmem:[#allocation19 + $0x7f0] sm:$0xff]
        %v4299 = vld [vmem:[#allocation19 + $0x7f8] sm:$0xff]
        %v4300 = vld [vmem:[#allocation19 + $0x800] sm:$0xff]
        %v4301 = vld [vmem:[#allocation19 + $0x808] sm:$0xff]
        %v4302 = vld [vmem:[#allocation19 + $0x810] sm:$0xff]
        %v4303 = vld [vmem:[#allocation19 + $0x818] sm:$0xff]
        %v4304 = vld [vmem:[#allocation19 + $0x820] sm:$0xff]
        %v4305 = vld [vmem:[#allocation19 + $0x828] sm:$0xff]
        %v4306 = vld [vmem:[#allocation19 + $0x830] sm:$0xff]
        %v4307 = vld [vmem:[#allocation19 + $0x838] sm:$0xff]
        %v4308 = vld [vmem:[#allocation19 + $0x840] sm:$0xff]
        %v4309 = vld [vmem:[#allocation19 + $0x848] sm:$0xff]
        %v4310 = vld [vmem:[#allocation19 + $0x850] sm:$0xff]
        %v4311 = vld [vmem:[#allocation19 + $0x858] sm:$0xff]
        %v4312 = vld [vmem:[#allocation19 + $0x860] sm:$0xff]
        %v4313 = vld [vmem:[#allocation19 + $0x868] sm:$0xff]
        %v4314 = vld [vmem:[#allocation19 + $0x870] sm:$0xff]
        %v4315 = vld [vmem:[#allocation19 + $0x878] sm:$0xff]
        %v4316 = vld [vmem:[#allocation19 + $0x880] sm:$0xff]
        %v4317 = vld [vmem:[#allocation19 + $0x888] sm:$0xff]
        %v4318 = vld [vmem:[#allocation19 + $0x890] sm:$0xff]
        %v4319 = vld [vmem:[#allocation19 + $0x898] sm:$0xff]
        %v4320 = vld [vmem:[#allocation19 + $0x8a0] sm:$0xff]
        %v4321 = vld [vmem:[#allocation19 + $0x8a8] sm:$0xff]
        %v4322 = vld [vmem:[#allocation19 + $0x8b0] sm:$0xff]
        %v4323 = vld [vmem:[#allocation19 + $0x8b8] sm:$0xff]
        %v4324 = vld [vmem:[#allocation19 + $0x8c0] sm:$0xff]
        %v4325 = vld [vmem:[#allocation19 + $0x8c8] sm:$0xff]
        %v4326 = vld [vmem:[#allocation19 + $0x8d0] sm:$0xff]
        %v4327 = vld [vmem:[#allocation19 + $0x8d8] sm:$0xff]
        %v4328 = vld [vmem:[#allocation19 + $0x8e0] sm:$0xff]
        %v4329 = vld [vmem:[#allocation19 + $0x8e8] sm:$0xff]
        %v4330 = vld [vmem:[#allocation19 + $0x8f0] sm:$0xff]
        %v4331 = vld [vmem:[#allocation19 + $0x8f8] sm:$0xff]
        %v4332 = vld [vmem:[#allocation19 + $0x900] sm:$0xff]
        %v4333 = vld [vmem:[#allocation19 + $0x908] sm:$0xff]
        %v4334 = vld [vmem:[#allocation19 + $0x910] sm:$0xff]
        %v4335 = vld [vmem:[#allocation19 + $0x918] sm:$0xff]
        %v4336 = vld [vmem:[#allocation19 + $0x920] sm:$0xff]
        %v4337 = vld [vmem:[#allocation19 + $0x928] sm:$0xff]
        %v4338 = vld [vmem:[#allocation19 + $0x930] sm:$0xff]
        %v4339 = vld [vmem:[#allocation19 + $0x938] sm:$0xff]
        %v4340 = vld [vmem:[#allocation19 + $0x940] sm:$0xff]
        %v4341 = vld [vmem:[#allocation19 + $0x948] sm:$0xff]
        %v4342 = vld [vmem:[#allocation19 + $0x950] sm:$0xff]
        %v4343 = vld [vmem:[#allocation19 + $0x958] sm:$0xff]
        %v4344 = vld [vmem:[#allocation19 + $0x960] sm:$0xff]
        %v4345 = vld [vmem:[#allocation19 + $0x968] sm:$0xff]
        %v4346 = vld [vmem:[#allocation19 + $0x970] sm:$0xff]
        %v4347 = vld [vmem:[#allocation19 + $0x978] sm:$0xff]
        %v4348 = vld [vmem:[#allocation19 + $0x980] sm:$0xff]
        %v4349 = vld [vmem:[#allocation19 + $0x988] sm:$0xff]
        %v4350 = vld [vmem:[#allocation19 + $0x990] sm:$0xff]
        %v4351 = vld [vmem:[#allocation19 + $0x998] sm:$0xff]
        %v4352 = vld [vmem:[#allocation19 + $0x9a0] sm:$0xff]
        %v4353 = vld [vmem:[#allocation19 + $0x9a8] sm:$0xff]
        %v4354 = vld [vmem:[#allocation19 + $0x9b0] sm:$0xff]
        %v4355 = vld [vmem:[#allocation19 + $0x9b8] sm:$0xff]
        %v4356 = vld [vmem:[#allocation19 + $0x9c0] sm:$0xff]
        %v4357 = vld [vmem:[#allocation19 + $0x9c8] sm:$0xff]
        %v4358 = vld [vmem:[#allocation19 + $0x9d0] sm:$0xff]
        %v4359 = vld [vmem:[#allocation19 + $0x9d8] sm:$0xff]
        %v4360 = vld [vmem:[#allocation19 + $0x9e0] sm:$0xff]
        %v4361 = vld [vmem:[#allocation19 + $0x9e8] sm:$0xff]
        %v4362 = vld [vmem:[#allocation19 + $0x9f0] sm:$0xff]
        %v4363 = vld [vmem:[#allocation19 + $0x9f8] sm:$0xff]
        %v4364 = vld [vmem:[#allocation19 + $0xa00] sm:$0xff]
        %v4365 = vld [vmem:[#allocation19 + $0xa08] sm:$0xff]
        %v4366 = vld [vmem:[#allocation19 + $0xa10] sm:$0xff]
        %v4367 = vld [vmem:[#allocation19 + $0xa18] sm:$0xff]
        %v4368 = vld [vmem:[#allocation19 + $0xa20] sm:$0xff]
        %v4369 = vld [vmem:[#allocation19 + $0xa28] sm:$0xff]
        %v4370 = vld [vmem:[#allocation19 + $0xa30] sm:$0xff]
        %v4371 = vld [vmem:[#allocation19 + $0xa38] sm:$0xff]
        %v4372 = vld [vmem:[#allocation19 + $0xa40] sm:$0xff]
        %v4373 = vld [vmem:[#allocation19 + $0xa48] sm:$0xff]
        %v4374 = vld [vmem:[#allocation19 + $0xa50] sm:$0xff]
        %v4375 = vld [vmem:[#allocation19 + $0xa58] sm:$0xff]
        %v4376 = vld [vmem:[#allocation19 + $0xa60] sm:$0xff]
        %v4377 = vld [vmem:[#allocation19 + $0xa68] sm:$0xff]
        %v4378 = vld [vmem:[#allocation19 + $0xa70] sm:$0xff]
        %v4379 = vld [vmem:[#allocation19 + $0xa78] sm:$0xff]
        %v4380 = vld [vmem:[#allocation19 + $0xa80] sm:$0xff]
        %v4381 = vld [vmem:[#allocation19 + $0xa88] sm:$0xff]
        %v4382 = vld [vmem:[#allocation19 + $0xa90] sm:$0xff]
        %v4383 = vld [vmem:[#allocation19 + $0xa98] sm:$0xff]
        %v4384 = vld [vmem:[#allocation19 + $0xaa0] sm:$0xff]
        %v4385 = vld [vmem:[#allocation19 + $0xaa8] sm:$0xff]
        %v4386 = vld [vmem:[#allocation19 + $0xab0] sm:$0xff]
        %v4387 = vld [vmem:[#allocation19 + $0xab8] sm:$0xff]
        %v4388 = vld [vmem:[#allocation19 + $0xac0] sm:$0xff]
        %v4389 = vld [vmem:[#allocation19 + $0xac8] sm:$0xff]
        %v4390 = vld [vmem:[#allocation19 + $0xad0] sm:$0xff]
        %v4391 = vld [vmem:[#allocation19 + $0xad8] sm:$0xff]
        %v4392 = vld [vmem:[#allocation19 + $0xae0] sm:$0xff]
        %v4393 = vld [vmem:[#allocation19 + $0xae8] sm:$0xff]
        %v4394 = vld [vmem:[#allocation19 + $0xaf0] sm:$0xff]
        %v4395 = vld [vmem:[#allocation19 + $0xaf8] sm:$0xff]
        %v4396 = vld [vmem:[#allocation19 + $0xb00] sm:$0xff]
        %v4397 = vld [vmem:[#allocation19 + $0xb08] sm:$0xff]
        %v4398 = vld [vmem:[#allocation19 + $0xb10] sm:$0xff]
        %v4399 = vld [vmem:[#allocation19 + $0xb18] sm:$0xff]
        %v4400 = vld [vmem:[#allocation19 + $0xb20] sm:$0xff]
        %v4401 = vld [vmem:[#allocation19 + $0xb28] sm:$0xff]
        %v4402 = vld [vmem:[#allocation19 + $0xb30] sm:$0xff]
        %v4403 = vld [vmem:[#allocation19 + $0xb38] sm:$0xff]
        %v4404 = vld [vmem:[#allocation19 + $0xb40] sm:$0xff]
        %v4405 = vld [vmem:[#allocation19 + $0xb48] sm:$0xff]
        %v4406 = vld [vmem:[#allocation19 + $0xb50] sm:$0xff]
        %v4407 = vld [vmem:[#allocation19 + $0xb58] sm:$0xff]
        %v4408 = vld [vmem:[#allocation19 + $0xb60] sm:$0xff]
        %v4409 = vld [vmem:[#allocation19 + $0xb68] sm:$0xff]
        %v4410 = vld [vmem:[#allocation19 + $0xb70] sm:$0xff]
        %v4411 = vld [vmem:[#allocation19 + $0xb78] sm:$0xff]
        %v4412 = vld [vmem:[#allocation19 + $0xb80] sm:$0xff]
        %v4413 = vld [vmem:[#allocation19 + $0xb88] sm:$0xff]
        %v4414 = vld [vmem:[#allocation19 + $0xb90] sm:$0xff]
        %v4415 = vld [vmem:[#allocation19 + $0xb98] sm:$0xff]
        %v4416 = vld [vmem:[#allocation19 + $0xba0] sm:$0xff]
        %v4417 = vld [vmem:[#allocation19 + $0xba8] sm:$0xff]
        %v4418 = vld [vmem:[#allocation19 + $0xbb0] sm:$0xff]
        %v4419 = vld [vmem:[#allocation19 + $0xbb8] sm:$0xff]
        %v4420 = vld [vmem:[#allocation19 + $0xbc0] sm:$0xff]
        %v4421 = vld [vmem:[#allocation19 + $0xbc8] sm:$0xff]
        %v4422 = vld [vmem:[#allocation19 + $0xbd0] sm:$0xff]
        %v4423 = vld [vmem:[#allocation19 + $0xbd8] sm:$0xff]
        %v4424 = vld [vmem:[#allocation19 + $0xbe0] sm:$0xff]
        %v4425 = vld [vmem:[#allocation19 + $0xbe8] sm:$0xff]
        %v4426 = vld [vmem:[#allocation19 + $0xbf0] sm:$0xff]
        %v4427 = vld [vmem:[#allocation19 + $0xbf8] sm:$0xff]
        %v4428 = vld [vmem:[#allocation19 + $0xc00] sm:$0xff]
        %v4429 = vld [vmem:[#allocation19 + $0xc08] sm:$0xff]
        %v4430 = vld [vmem:[#allocation19 + $0xc10] sm:$0xff]
        %v4431 = vld [vmem:[#allocation19 + $0xc18] sm:$0xff]
        %v4432 = vld [vmem:[#allocation19 + $0xc20] sm:$0xff]
        %v4433 = vld [vmem:[#allocation19 + $0xc28] sm:$0xff]
        %v4434 = vld [vmem:[#allocation19 + $0xc30] sm:$0xff]
        %v4435 = vld [vmem:[#allocation19 + $0xc38] sm:$0xff]
        %v4436 = vld [vmem:[#allocation19 + $0xc40] sm:$0xff]
        %v4437 = vld [vmem:[#allocation19 + $0xc48] sm:$0xff]
        %v4438 = vld [vmem:[#allocation19 + $0xc50] sm:$0xff]
        %v4439 = vld [vmem:[#allocation19 + $0xc58] sm:$0xff]
        %v4440 = vld [vmem:[#allocation19 + $0xc60] sm:$0xff]
        %v4441 = vld [vmem:[#allocation19 + $0xc68] sm:$0xff]
        %v4442 = vld [vmem:[#allocation19 + $0xc70] sm:$0xff]
        %v4443 = vld [vmem:[#allocation19 + $0xc78] sm:$0xff]
        %v4444 = vld [vmem:[#allocation19 + $0xc80] sm:$0xff]
        %v4445 = vld [vmem:[#allocation19 + $0xc88] sm:$0xff]
        %v4446 = vld [vmem:[#allocation19 + $0xc90] sm:$0xff]
        %v4447 = vld [vmem:[#allocation19 + $0xc98] sm:$0xff]
        %v4448 = vld [vmem:[#allocation19 + $0xca0] sm:$0xff]
        %v4449 = vld [vmem:[#allocation19 + $0xca8] sm:$0xff]
        %v4450 = vld [vmem:[#allocation19 + $0xcb0] sm:$0xff]
        %v4451 = vld [vmem:[#allocation19 + $0xcb8] sm:$0xff]
        %v4452 = vld [vmem:[#allocation19 + $0xcc0] sm:$0xff]
        %v4453 = vld [vmem:[#allocation19 + $0xcc8] sm:$0xff]
        %v4454 = vld [vmem:[#allocation19 + $0xcd0] sm:$0xff]
        %v4455 = vld [vmem:[#allocation19 + $0xcd8] sm:$0xff]
        %v4456 = vld [vmem:[#allocation19 + $0xce0] sm:$0xff]
        %v4457 = vld [vmem:[#allocation19 + $0xce8] sm:$0xff]
        %v4458 = vld [vmem:[#allocation19 + $0xcf0] sm:$0xff]
        %v4459 = vld [vmem:[#allocation19 + $0xcf8] sm:$0xff]
        %v4460 = vld [vmem:[#allocation19 + $0xd00] sm:$0xff]
        %v4461 = vld [vmem:[#allocation19 + $0xd08] sm:$0xff]
        %v4462 = vld [vmem:[#allocation19 + $0xd10] sm:$0xff]
        %v4463 = vld [vmem:[#allocation19 + $0xd18] sm:$0xff]
        %v4464 = vld [vmem:[#allocation19 + $0xd20] sm:$0xff]
        %v4465 = vld [vmem:[#allocation19 + $0xd28] sm:$0xff]
        %v4466 = vld [vmem:[#allocation19 + $0xd30] sm:$0xff]
        %v4467 = vld [vmem:[#allocation19 + $0xd38] sm:$0xff]
        %v4468 = vld [vmem:[#allocation19 + $0xd40] sm:$0xff]
        %v4469 = vld [vmem:[#allocation19 + $0xd48] sm:$0xff]
        %v4470 = vld [vmem:[#allocation19 + $0xd50] sm:$0xff]
        %v4471 = vld [vmem:[#allocation19 + $0xd58] sm:$0xff]
        %v4472 = vld [vmem:[#allocation19 + $0xd60] sm:$0xff]
        %v4473 = vld [vmem:[#allocation19 + $0xd68] sm:$0xff]
        %v4474 = vld [vmem:[#allocation19 + $0xd70] sm:$0xff]
        %v4475 = vld [vmem:[#allocation19 + $0xd78] sm:$0xff]
        %v4476 = vld [vmem:[#allocation19 + $0xd80] sm:$0xff]
        %v4477 = vld [vmem:[#allocation19 + $0xd88] sm:$0xff]
        %v4478 = vld [vmem:[#allocation19 + $0xd90] sm:$0xff]
        %v4479 = vld [vmem:[#allocation19 + $0xd98] sm:$0xff]
        %v4480 = vld [vmem:[#allocation19 + $0xda0] sm:$0xff]
        %v4481 = vld [vmem:[#allocation19 + $0xda8] sm:$0xff]
        %v4482 = vld [vmem:[#allocation19 + $0xdb0] sm:$0xff]
        %v4483 = vld [vmem:[#allocation19 + $0xdb8] sm:$0xff]
        %v4484 = vld [vmem:[#allocation19 + $0xdc0] sm:$0xff]
        %v4485 = vld [vmem:[#allocation19 + $0xdc8] sm:$0xff]
        %v4486 = vld [vmem:[#allocation19 + $0xdd0] sm:$0xff]
        %v4487 = vld [vmem:[#allocation19 + $0xdd8] sm:$0xff]
        %v4488 = vld [vmem:[#allocation19 + $0xde0] sm:$0xff]
        %v4489 = vld [vmem:[#allocation19 + $0xde8] sm:$0xff]
        %v4490 = vld [vmem:[#allocation19 + $0xdf0] sm:$0xff]
        %v4491 = vld [vmem:[#allocation19 + $0xdf8] sm:$0xff]
        %v4492 = vld [vmem:[#allocation19 + $0xe00] sm:$0xff]
        %v4493 = vld [vmem:[#allocation19 + $0xe08] sm:$0xff]
        %v4494 = vld [vmem:[#allocation19 + $0xe10] sm:$0xff]
        %v4495 = vld [vmem:[#allocation19 + $0xe18] sm:$0xff]
        %v4496 = vld [vmem:[#allocation19 + $0xe20] sm:$0xff]
        %v4497 = vld [vmem:[#allocation19 + $0xe28] sm:$0xff]
        %v4498 = vld [vmem:[#allocation19 + $0xe30] sm:$0xff]
        %v4499 = vld [vmem:[#allocation19 + $0xe38] sm:$0xff]
        %v4500 = vld [vmem:[#allocation19 + $0xe40] sm:$0xff]
        %v4501 = vld [vmem:[#allocation19 + $0xe48] sm:$0xff]
        %v4502 = vld [vmem:[#allocation19 + $0xe50] sm:$0xff]
        %v4503 = vld [vmem:[#allocation19 + $0xe58] sm:$0xff]
        %v4504 = vld [vmem:[#allocation19 + $0xe60] sm:$0xff]
        %v4505 = vld [vmem:[#allocation19 + $0xe68] sm:$0xff]
        %v4506 = vld [vmem:[#allocation19 + $0xe70] sm:$0xff]
        %v4507 = vld [vmem:[#allocation19 + $0xe78] sm:$0xff]
        %v4508 = vld [vmem:[#allocation19 + $0xe80] sm:$0xff]
        %v4509 = vld [vmem:[#allocation19 + $0xe88] sm:$0xff]
        %v4510 = vld [vmem:[#allocation19 + $0xe90] sm:$0xff]
        %v4511 = vld [vmem:[#allocation19 + $0xe98] sm:$0xff]
        %v4512 = vld [vmem:[#allocation19 + $0xea0] sm:$0xff]
        %v4513 = vld [vmem:[#allocation19 + $0xea8] sm:$0xff]
        %v4514 = vld [vmem:[#allocation19 + $0xeb0] sm:$0xff]
        %v4515 = vld [vmem:[#allocation19 + $0xeb8] sm:$0xff]
        %v4516 = vld [vmem:[#allocation19 + $0xec0] sm:$0xff]
        %v4517 = vld [vmem:[#allocation19 + $0xec8] sm:$0xff]
        %v4518 = vld [vmem:[#allocation19 + $0xed0] sm:$0xff]
        %v4519 = vld [vmem:[#allocation19 + $0xed8] sm:$0xff]
        %v4520 = vld [vmem:[#allocation19 + $0xee0] sm:$0xff]
        %v4521 = vld [vmem:[#allocation19 + $0xee8] sm:$0xff]
        %v4522 = vld [vmem:[#allocation19 + $0xef0] sm:$0xff]
        %v4523 = vld [vmem:[#allocation19 + $0xef8] sm:$0xff]
        %v4524 = vld [vmem:[#allocation19 + $0xf00] sm:$0xff]
        %v4525 = vld [vmem:[#allocation19 + $0xf08] sm:$0xff]
        %v4526 = vld [vmem:[#allocation19 + $0xf10] sm:$0xff]
        %v4527 = vld [vmem:[#allocation19 + $0xf18] sm:$0xff]
        %v4528 = vld [vmem:[#allocation19 + $0xf20] sm:$0xff]
        %v4529 = vld [vmem:[#allocation19 + $0xf28] sm:$0xff]
        %v4530 = vld [vmem:[#allocation19 + $0xf30] sm:$0xff]
        %v4531 = vld [vmem:[#allocation19 + $0xf38] sm:$0xff]
        %v4532 = vld [vmem:[#allocation19 + $0xf40] sm:$0xff]
        %v4533 = vld [vmem:[#allocation19 + $0xf48] sm:$0xff]
        %v4534 = vld [vmem:[#allocation19 + $0xf50] sm:$0xff]
        %v4535 = vld [vmem:[#allocation19 + $0xf58] sm:$0xff]
        %v4536 = vld [vmem:[#allocation19 + $0xf60] sm:$0xff]
        %v4537 = vld [vmem:[#allocation19 + $0xf68] sm:$0xff]
        %v4538 = vld [vmem:[#allocation19 + $0xf70] sm:$0xff]
        %v4539 = vld [vmem:[#allocation19 + $0xf78] sm:$0xff]
        %v4540 = vld [vmem:[#allocation19 + $0xf80] sm:$0xff]
        %v4541 = vld [vmem:[#allocation19 + $0xf88] sm:$0xff]
        %v4542 = vld [vmem:[#allocation19 + $0xf90] sm:$0xff]
        %v4543 = vld [vmem:[#allocation19 + $0xf98] sm:$0xff]
        %v4544 = vld [vmem:[#allocation19 + $0xfa0] sm:$0xff]
        %v4545 = vld [vmem:[#allocation19 + $0xfa8] sm:$0xff]
        %v4546 = vld [vmem:[#allocation19 + $0xfb0] sm:$0xff]
        %v4547 = vld [vmem:[#allocation19 + $0xfb8] sm:$0xff]
        %v4548 = vld [vmem:[#allocation19 + $0xfc0] sm:$0xff]
        %v4549 = vld [vmem:[#allocation19 + $0xfc8] sm:$0xff]
        %v4550 = vld [vmem:[#allocation19 + $0xfd0] sm:$0xff]
        %v4551 = vld [vmem:[#allocation19 + $0xfd8] sm:$0xff]
        %v4552 = vld [vmem:[#allocation19 + $0xfe0] sm:$0xff]
        %v4553 = vld [vmem:[#allocation19 + $0xfe8] sm:$0xff]
        %v4554 = vld [vmem:[#allocation19 + $0xff0] sm:$0xff]
        %v4555 = vld [vmem:[#allocation19 + $0xff8] sm:$0xff]
        %v5068 = vunpack.c.l.b16 %v4044
        %v5069 = vunpack.c.h.b16 %v4044
        %v5070 = vunpack.c.l.b16 %v4045
        %v5071 = vunpack.c.h.b16 %v4045
        %v5072 = vunpack.c.l.b16 %v4046
        %v5073 = vunpack.c.h.b16 %v4046
        %v5074 = vunpack.c.l.b16 %v4047
        %v5075 = vunpack.c.h.b16 %v4047
        %v5076 = vunpack.c.l.b16 %v4048
        %v5077 = vunpack.c.h.b16 %v4048
        %v5078 = vunpack.c.l.b16 %v4049
        %v5079 = vunpack.c.h.b16 %v4049
        %v5080 = vunpack.c.l.b16 %v4050
        %v5081 = vunpack.c.h.b16 %v4050
        %v5082 = vunpack.c.l.b16 %v4051
        %v5083 = vunpack.c.h.b16 %v4051
        %v5084 = vunpack.c.l.b16 %v4052
        %v5085 = vunpack.c.h.b16 %v4052
        %v5086 = vunpack.c.l.b16 %v4053
        %v5087 = vunpack.c.h.b16 %v4053
        %v5088 = vunpack.c.l.b16 %v4054
        %v5089 = vunpack.c.h.b16 %v4054
        %v5090 = vunpack.c.l.b16 %v4055
        %v5091 = vunpack.c.h.b16 %v4055
        %v5092 = vunpack.c.l.b16 %v4056
        %v5093 = vunpack.c.h.b16 %v4056
        %v5094 = vunpack.c.l.b16 %v4057
        %v5095 = vunpack.c.h.b16 %v4057
        %v5096 = vunpack.c.l.b16 %v4058
        %v5097 = vunpack.c.h.b16 %v4058
        %v5098 = vunpack.c.l.b16 %v4059
        %v5099 = vunpack.c.h.b16 %v4059
        %v5100 = vunpack.c.l.b16 %v4060
        %v5101 = vunpack.c.h.b16 %v4060
        %v5102 = vunpack.c.l.b16 %v4061
        %v5103 = vunpack.c.h.b16 %v4061
        %v5104 = vunpack.c.l.b16 %v4062
        %v5105 = vunpack.c.h.b16 %v4062
        %v5106 = vunpack.c.l.b16 %v4063
        %v5107 = vunpack.c.h.b16 %v4063
        %v5108 = vunpack.c.l.b16 %v4064
        %v5109 = vunpack.c.h.b16 %v4064
        %v5110 = vunpack.c.l.b16 %v4065
        %v5111 = vunpack.c.h.b16 %v4065
        %v5112 = vunpack.c.l.b16 %v4066
        %v5113 = vunpack.c.h.b16 %v4066
        %v5114 = vunpack.c.l.b16 %v4067
        %v5115 = vunpack.c.h.b16 %v4067
        %v5116 = vunpack.c.l.b16 %v4068
        %v5117 = vunpack.c.h.b16 %v4068
        %v5118 = vunpack.c.l.b16 %v4069
        %v5119 = vunpack.c.h.b16 %v4069
        %v5120 = vunpack.c.l.b16 %v4070
        %v5121 = vunpack.c.h.b16 %v4070
        %v5122 = vunpack.c.l.b16 %v4071
        %v5123 = vunpack.c.h.b16 %v4071
        %v5124 = vunpack.c.l.b16 %v4072
        %v5125 = vunpack.c.h.b16 %v4072
        %v5126 = vunpack.c.l.b16 %v4073
        %v5127 = vunpack.c.h.b16 %v4073
        %v5128 = vunpack.c.l.b16 %v4074
        %v5129 = vunpack.c.h.b16 %v4074
        %v5130 = vunpack.c.l.b16 %v4075
        %v5131 = vunpack.c.h.b16 %v4075
        %v5132 = vunpack.c.l.b16 %v4076
        %v5133 = vunpack.c.h.b16 %v4076
        %v5134 = vunpack.c.l.b16 %v4077
        %v5135 = vunpack.c.h.b16 %v4077
        %v5136 = vunpack.c.l.b16 %v4078
        %v5137 = vunpack.c.h.b16 %v4078
        %v5138 = vunpack.c.l.b16 %v4079
        %v5139 = vunpack.c.h.b16 %v4079
        %v5140 = vunpack.c.l.b16 %v4080
        %v5141 = vunpack.c.h.b16 %v4080
        %v5142 = vunpack.c.l.b16 %v4081
        %v5143 = vunpack.c.h.b16 %v4081
        %v5144 = vunpack.c.l.b16 %v4082
        %v5145 = vunpack.c.h.b16 %v4082
        %v5146 = vunpack.c.l.b16 %v4083
        %v5147 = vunpack.c.h.b16 %v4083
        %v5148 = vunpack.c.l.b16 %v4084
        %v5149 = vunpack.c.h.b16 %v4084
        %v5150 = vunpack.c.l.b16 %v4085
        %v5151 = vunpack.c.h.b16 %v4085
        %v5152 = vunpack.c.l.b16 %v4086
        %v5153 = vunpack.c.h.b16 %v4086
        %v5154 = vunpack.c.l.b16 %v4087
        %v5155 = vunpack.c.h.b16 %v4087
        %v5156 = vunpack.c.l.b16 %v4088
        %v5157 = vunpack.c.h.b16 %v4088
        %v5158 = vunpack.c.l.b16 %v4089
        %v5159 = vunpack.c.h.b16 %v4089
        %v5160 = vunpack.c.l.b16 %v4090
        %v5161 = vunpack.c.h.b16 %v4090
        %v5162 = vunpack.c.l.b16 %v4091
        %v5163 = vunpack.c.h.b16 %v4091
        %v5164 = vunpack.c.l.b16 %v4092
        %v5165 = vunpack.c.h.b16 %v4092
        %v5166 = vunpack.c.l.b16 %v4093
        %v5167 = vunpack.c.h.b16 %v4093
        %v5168 = vunpack.c.l.b16 %v4094
        %v5169 = vunpack.c.h.b16 %v4094
        %v5170 = vunpack.c.l.b16 %v4095
        %v5171 = vunpack.c.h.b16 %v4095
        %v5172 = vunpack.c.l.b16 %v4096
        %v5173 = vunpack.c.h.b16 %v4096
        %v5174 = vunpack.c.l.b16 %v4097
        %v5175 = vunpack.c.h.b16 %v4097
        %v5176 = vunpack.c.l.b16 %v4098
        %v5177 = vunpack.c.h.b16 %v4098
        %v5178 = vunpack.c.l.b16 %v4099
        %v5179 = vunpack.c.h.b16 %v4099
        %v5180 = vunpack.c.l.b16 %v4100
        %v5181 = vunpack.c.h.b16 %v4100
        %v5182 = vunpack.c.l.b16 %v4101
        %v5183 = vunpack.c.h.b16 %v4101
        %v5184 = vunpack.c.l.b16 %v4102
        %v5185 = vunpack.c.h.b16 %v4102
        %v5186 = vunpack.c.l.b16 %v4103
        %v5187 = vunpack.c.h.b16 %v4103
        %v5188 = vunpack.c.l.b16 %v4104
        %v5189 = vunpack.c.h.b16 %v4104
        %v5190 = vunpack.c.l.b16 %v4105
        %v5191 = vunpack.c.h.b16 %v4105
        %v5192 = vunpack.c.l.b16 %v4106
        %v5193 = vunpack.c.h.b16 %v4106
        %v5194 = vunpack.c.l.b16 %v4107
        %v5195 = vunpack.c.h.b16 %v4107
        %v5196 = vunpack.c.l.b16 %v4108
        %v5197 = vunpack.c.h.b16 %v4108
        %v5198 = vunpack.c.l.b16 %v4109
        %v5199 = vunpack.c.h.b16 %v4109
        %v5200 = vunpack.c.l.b16 %v4110
        %v5201 = vunpack.c.h.b16 %v4110
        %v5202 = vunpack.c.l.b16 %v4111
        %v5203 = vunpack.c.h.b16 %v4111
        %v5204 = vunpack.c.l.b16 %v4112
        %v5205 = vunpack.c.h.b16 %v4112
        %v5206 = vunpack.c.l.b16 %v4113
        %v5207 = vunpack.c.h.b16 %v4113
        %v5208 = vunpack.c.l.b16 %v4114
        %v5209 = vunpack.c.h.b16 %v4114
        %v5210 = vunpack.c.l.b16 %v4115
        %v5211 = vunpack.c.h.b16 %v4115
        %v5212 = vunpack.c.l.b16 %v4116
        %v5213 = vunpack.c.h.b16 %v4116
        %v5214 = vunpack.c.l.b16 %v4117
        %v5215 = vunpack.c.h.b16 %v4117
        %v5216 = vunpack.c.l.b16 %v4118
        %v5217 = vunpack.c.h.b16 %v4118
        %v5218 = vunpack.c.l.b16 %v4119
        %v5219 = vunpack.c.h.b16 %v4119
        %v5220 = vunpack.c.l.b16 %v4120
        %v5221 = vunpack.c.h.b16 %v4120
        %v5222 = vunpack.c.l.b16 %v4121
        %v5223 = vunpack.c.h.b16 %v4121
        %v5224 = vunpack.c.l.b16 %v4122
        %v5225 = vunpack.c.h.b16 %v4122
        %v5226 = vunpack.c.l.b16 %v4123
        %v5227 = vunpack.c.h.b16 %v4123
        %v5228 = vunpack.c.l.b16 %v4124
        %v5229 = vunpack.c.h.b16 %v4124
        %v5230 = vunpack.c.l.b16 %v4125
        %v5231 = vunpack.c.h.b16 %v4125
        %v5232 = vunpack.c.l.b16 %v4126
        %v5233 = vunpack.c.h.b16 %v4126
        %v5234 = vunpack.c.l.b16 %v4127
        %v5235 = vunpack.c.h.b16 %v4127
        %v5236 = vunpack.c.l.b16 %v4128
        %v5237 = vunpack.c.h.b16 %v4128
        %v5238 = vunpack.c.l.b16 %v4129
        %v5239 = vunpack.c.h.b16 %v4129
        %v5240 = vunpack.c.l.b16 %v4130
        %v5241 = vunpack.c.h.b16 %v4130
        %v5242 = vunpack.c.l.b16 %v4131
        %v5243 = vunpack.c.h.b16 %v4131
        %v5244 = vunpack.c.l.b16 %v4132
        %v5245 = vunpack.c.h.b16 %v4132
        %v5246 = vunpack.c.l.b16 %v4133
        %v5247 = vunpack.c.h.b16 %v4133
        %v5248 = vunpack.c.l.b16 %v4134
        %v5249 = vunpack.c.h.b16 %v4134
        %v5250 = vunpack.c.l.b16 %v4135
        %v5251 = vunpack.c.h.b16 %v4135
        %v5252 = vunpack.c.l.b16 %v4136
        %v5253 = vunpack.c.h.b16 %v4136
        %v5254 = vunpack.c.l.b16 %v4137
        %v5255 = vunpack.c.h.b16 %v4137
        %v5256 = vunpack.c.l.b16 %v4138
        %v5257 = vunpack.c.h.b16 %v4138
        %v5258 = vunpack.c.l.b16 %v4139
        %v5259 = vunpack.c.h.b16 %v4139
        %v5260 = vunpack.c.l.b16 %v4140
        %v5261 = vunpack.c.h.b16 %v4140
        %v5262 = vunpack.c.l.b16 %v4141
        %v5263 = vunpack.c.h.b16 %v4141
        %v5264 = vunpack.c.l.b16 %v4142
        %v5265 = vunpack.c.h.b16 %v4142
        %v5266 = vunpack.c.l.b16 %v4143
        %v5267 = vunpack.c.h.b16 %v4143
        %v5268 = vunpack.c.l.b16 %v4144
        %v5269 = vunpack.c.h.b16 %v4144
        %v5270 = vunpack.c.l.b16 %v4145
        %v5271 = vunpack.c.h.b16 %v4145
        %v5272 = vunpack.c.l.b16 %v4146
        %v5273 = vunpack.c.h.b16 %v4146
        %v5274 = vunpack.c.l.b16 %v4147
        %v5275 = vunpack.c.h.b16 %v4147
        %v5276 = vunpack.c.l.b16 %v4148
        %v5277 = vunpack.c.h.b16 %v4148
        %v5278 = vunpack.c.l.b16 %v4149
        %v5279 = vunpack.c.h.b16 %v4149
        %v5280 = vunpack.c.l.b16 %v4150
        %v5281 = vunpack.c.h.b16 %v4150
        %v5282 = vunpack.c.l.b16 %v4151
        %v5283 = vunpack.c.h.b16 %v4151
        %v5284 = vunpack.c.l.b16 %v4152
        %v5285 = vunpack.c.h.b16 %v4152
        %v5286 = vunpack.c.l.b16 %v4153
        %v5287 = vunpack.c.h.b16 %v4153
        %v5288 = vunpack.c.l.b16 %v4154
        %v5289 = vunpack.c.h.b16 %v4154
        %v5290 = vunpack.c.l.b16 %v4155
        %v5291 = vunpack.c.h.b16 %v4155
        %v5292 = vunpack.c.l.b16 %v4156
        %v5293 = vunpack.c.h.b16 %v4156
        %v5294 = vunpack.c.l.b16 %v4157
        %v5295 = vunpack.c.h.b16 %v4157
        %v5296 = vunpack.c.l.b16 %v4158
        %v5297 = vunpack.c.h.b16 %v4158
        %v5298 = vunpack.c.l.b16 %v4159
        %v5299 = vunpack.c.h.b16 %v4159
        %v5300 = vunpack.c.l.b16 %v4160
        %v5301 = vunpack.c.h.b16 %v4160
        %v5302 = vunpack.c.l.b16 %v4161
        %v5303 = vunpack.c.h.b16 %v4161
        %v5304 = vunpack.c.l.b16 %v4162
        %v5305 = vunpack.c.h.b16 %v4162
        %v5306 = vunpack.c.l.b16 %v4163
        %v5307 = vunpack.c.h.b16 %v4163
        %v5308 = vunpack.c.l.b16 %v4164
        %v5309 = vunpack.c.h.b16 %v4164
        %v5310 = vunpack.c.l.b16 %v4165
        %v5311 = vunpack.c.h.b16 %v4165
        %v5312 = vunpack.c.l.b16 %v4166
        %v5313 = vunpack.c.h.b16 %v4166
        %v5314 = vunpack.c.l.b16 %v4167
        %v5315 = vunpack.c.h.b16 %v4167
        %v5316 = vunpack.c.l.b16 %v4168
        %v5317 = vunpack.c.h.b16 %v4168
        %v5318 = vunpack.c.l.b16 %v4169
        %v5319 = vunpack.c.h.b16 %v4169
        %v5320 = vunpack.c.l.b16 %v4170
        %v5321 = vunpack.c.h.b16 %v4170
        %v5322 = vunpack.c.l.b16 %v4171
        %v5323 = vunpack.c.h.b16 %v4171
        %v5324 = vunpack.c.l.b16 %v4172
        %v5325 = vunpack.c.h.b16 %v4172
        %v5326 = vunpack.c.l.b16 %v4173
        %v5327 = vunpack.c.h.b16 %v4173
        %v5328 = vunpack.c.l.b16 %v4174
        %v5329 = vunpack.c.h.b16 %v4174
        %v5330 = vunpack.c.l.b16 %v4175
        %v5331 = vunpack.c.h.b16 %v4175
        %v5332 = vunpack.c.l.b16 %v4176
        %v5333 = vunpack.c.h.b16 %v4176
        %v5334 = vunpack.c.l.b16 %v4177
        %v5335 = vunpack.c.h.b16 %v4177
        %v5336 = vunpack.c.l.b16 %v4178
        %v5337 = vunpack.c.h.b16 %v4178
        %v5338 = vunpack.c.l.b16 %v4179
        %v5339 = vunpack.c.h.b16 %v4179
        %v5340 = vunpack.c.l.b16 %v4180
        %v5341 = vunpack.c.h.b16 %v4180
        %v5342 = vunpack.c.l.b16 %v4181
        %v5343 = vunpack.c.h.b16 %v4181
        %v5344 = vunpack.c.l.b16 %v4182
        %v5345 = vunpack.c.h.b16 %v4182
        %v5346 = vunpack.c.l.b16 %v4183
        %v5347 = vunpack.c.h.b16 %v4183
        %v5348 = vunpack.c.l.b16 %v4184
        %v5349 = vunpack.c.h.b16 %v4184
        %v5350 = vunpack.c.l.b16 %v4185
        %v5351 = vunpack.c.h.b16 %v4185
        %v5352 = vunpack.c.l.b16 %v4186
        %v5353 = vunpack.c.h.b16 %v4186
        %v5354 = vunpack.c.l.b16 %v4187
        %v5355 = vunpack.c.h.b16 %v4187
        %v5356 = vunpack.c.l.b16 %v4188
        %v5357 = vunpack.c.h.b16 %v4188
        %v5358 = vunpack.c.l.b16 %v4189
        %v5359 = vunpack.c.h.b16 %v4189
        %v5360 = vunpack.c.l.b16 %v4190
        %v5361 = vunpack.c.h.b16 %v4190
        %v5362 = vunpack.c.l.b16 %v4191
        %v5363 = vunpack.c.h.b16 %v4191
        %v5364 = vunpack.c.l.b16 %v4192
        %v5365 = vunpack.c.h.b16 %v4192
        %v5366 = vunpack.c.l.b16 %v4193
        %v5367 = vunpack.c.h.b16 %v4193
        %v5368 = vunpack.c.l.b16 %v4194
        %v5369 = vunpack.c.h.b16 %v4194
        %v5370 = vunpack.c.l.b16 %v4195
        %v5371 = vunpack.c.h.b16 %v4195
        %v5372 = vunpack.c.l.b16 %v4196
        %v5373 = vunpack.c.h.b16 %v4196
        %v5374 = vunpack.c.l.b16 %v4197
        %v5375 = vunpack.c.h.b16 %v4197
        %v5376 = vunpack.c.l.b16 %v4198
        %v5377 = vunpack.c.h.b16 %v4198
        %v5378 = vunpack.c.l.b16 %v4199
        %v5379 = vunpack.c.h.b16 %v4199
        %v5380 = vunpack.c.l.b16 %v4200
        %v5381 = vunpack.c.h.b16 %v4200
        %v5382 = vunpack.c.l.b16 %v4201
        %v5383 = vunpack.c.h.b16 %v4201
        %v5384 = vunpack.c.l.b16 %v4202
        %v5385 = vunpack.c.h.b16 %v4202
        %v5386 = vunpack.c.l.b16 %v4203
        %v5387 = vunpack.c.h.b16 %v4203
        %v5388 = vunpack.c.l.b16 %v4204
        %v5389 = vunpack.c.h.b16 %v4204
        %v5390 = vunpack.c.l.b16 %v4205
        %v5391 = vunpack.c.h.b16 %v4205
        %v5392 = vunpack.c.l.b16 %v4206
        %v5393 = vunpack.c.h.b16 %v4206
        %v5394 = vunpack.c.l.b16 %v4207
        %v5395 = vunpack.c.h.b16 %v4207
        %v5396 = vunpack.c.l.b16 %v4208
        %v5397 = vunpack.c.h.b16 %v4208
        %v5398 = vunpack.c.l.b16 %v4209
        %v5399 = vunpack.c.h.b16 %v4209
        %v5400 = vunpack.c.l.b16 %v4210
        %v5401 = vunpack.c.h.b16 %v4210
        %v5402 = vunpack.c.l.b16 %v4211
        %v5403 = vunpack.c.h.b16 %v4211
        %v5404 = vunpack.c.l.b16 %v4212
        %v5405 = vunpack.c.h.b16 %v4212
        %v5406 = vunpack.c.l.b16 %v4213
        %v5407 = vunpack.c.h.b16 %v4213
        %v5408 = vunpack.c.l.b16 %v4214
        %v5409 = vunpack.c.h.b16 %v4214
        %v5410 = vunpack.c.l.b16 %v4215
        %v5411 = vunpack.c.h.b16 %v4215
        %v5412 = vunpack.c.l.b16 %v4216
        %v5413 = vunpack.c.h.b16 %v4216
        %v5414 = vunpack.c.l.b16 %v4217
        %v5415 = vunpack.c.h.b16 %v4217
        %v5416 = vunpack.c.l.b16 %v4218
        %v5417 = vunpack.c.h.b16 %v4218
        %v5418 = vunpack.c.l.b16 %v4219
        %v5419 = vunpack.c.h.b16 %v4219
        %v5420 = vunpack.c.l.b16 %v4220
        %v5421 = vunpack.c.h.b16 %v4220
        %v5422 = vunpack.c.l.b16 %v4221
        %v5423 = vunpack.c.h.b16 %v4221
        %v5424 = vunpack.c.l.b16 %v4222
        %v5425 = vunpack.c.h.b16 %v4222
        %v5426 = vunpack.c.l.b16 %v4223
        %v5427 = vunpack.c.h.b16 %v4223
        %v5428 = vunpack.c.l.b16 %v4224
        %v5429 = vunpack.c.h.b16 %v4224
        %v5430 = vunpack.c.l.b16 %v4225
        %v5431 = vunpack.c.h.b16 %v4225
        %v5432 = vunpack.c.l.b16 %v4226
        %v5433 = vunpack.c.h.b16 %v4226
        %v5434 = vunpack.c.l.b16 %v4227
        %v5435 = vunpack.c.h.b16 %v4227
        %v5436 = vunpack.c.l.b16 %v4228
        %v5437 = vunpack.c.h.b16 %v4228
        %v5438 = vunpack.c.l.b16 %v4229
        %v5439 = vunpack.c.h.b16 %v4229
        %v5440 = vunpack.c.l.b16 %v4230
        %v5441 = vunpack.c.h.b16 %v4230
        %v5442 = vunpack.c.l.b16 %v4231
        %v5443 = vunpack.c.h.b16 %v4231
        %v5444 = vunpack.c.l.b16 %v4232
        %v5445 = vunpack.c.h.b16 %v4232
        %v5446 = vunpack.c.l.b16 %v4233
        %v5447 = vunpack.c.h.b16 %v4233
        %v5448 = vunpack.c.l.b16 %v4234
        %v5449 = vunpack.c.h.b16 %v4234
        %v5450 = vunpack.c.l.b16 %v4235
        %v5451 = vunpack.c.h.b16 %v4235
        %v5452 = vunpack.c.l.b16 %v4236
        %v5453 = vunpack.c.h.b16 %v4236
        %v5454 = vunpack.c.l.b16 %v4237
        %v5455 = vunpack.c.h.b16 %v4237
        %v5456 = vunpack.c.l.b16 %v4238
        %v5457 = vunpack.c.h.b16 %v4238
        %v5458 = vunpack.c.l.b16 %v4239
        %v5459 = vunpack.c.h.b16 %v4239
        %v5460 = vunpack.c.l.b16 %v4240
        %v5461 = vunpack.c.h.b16 %v4240
        %v5462 = vunpack.c.l.b16 %v4241
        %v5463 = vunpack.c.h.b16 %v4241
        %v5464 = vunpack.c.l.b16 %v4242
        %v5465 = vunpack.c.h.b16 %v4242
        %v5466 = vunpack.c.l.b16 %v4243
        %v5467 = vunpack.c.h.b16 %v4243
        %v5468 = vunpack.c.l.b16 %v4244
        %v5469 = vunpack.c.h.b16 %v4244
        %v5470 = vunpack.c.l.b16 %v4245
        %v5471 = vunpack.c.h.b16 %v4245
        %v5472 = vunpack.c.l.b16 %v4246
        %v5473 = vunpack.c.h.b16 %v4246
        %v5474 = vunpack.c.l.b16 %v4247
        %v5475 = vunpack.c.h.b16 %v4247
        %v5476 = vunpack.c.l.b16 %v4248
        %v5477 = vunpack.c.h.b16 %v4248
        %v5478 = vunpack.c.l.b16 %v4249
        %v5479 = vunpack.c.h.b16 %v4249
        %v5480 = vunpack.c.l.b16 %v4250
        %v5481 = vunpack.c.h.b16 %v4250
        %v5482 = vunpack.c.l.b16 %v4251
        %v5483 = vunpack.c.h.b16 %v4251
        %v5484 = vunpack.c.l.b16 %v4252
        %v5485 = vunpack.c.h.b16 %v4252
        %v5486 = vunpack.c.l.b16 %v4253
        %v5487 = vunpack.c.h.b16 %v4253
        %v5488 = vunpack.c.l.b16 %v4254
        %v5489 = vunpack.c.h.b16 %v4254
        %v5490 = vunpack.c.l.b16 %v4255
        %v5491 = vunpack.c.h.b16 %v4255
        %v5492 = vunpack.c.l.b16 %v4256
        %v5493 = vunpack.c.h.b16 %v4256
        %v5494 = vunpack.c.l.b16 %v4257
        %v5495 = vunpack.c.h.b16 %v4257
        %v5496 = vunpack.c.l.b16 %v4258
        %v5497 = vunpack.c.h.b16 %v4258
        %v5498 = vunpack.c.l.b16 %v4259
        %v5499 = vunpack.c.h.b16 %v4259
        %v5500 = vunpack.c.l.b16 %v4260
        %v5501 = vunpack.c.h.b16 %v4260
        %v5502 = vunpack.c.l.b16 %v4261
        %v5503 = vunpack.c.h.b16 %v4261
        %v5504 = vunpack.c.l.b16 %v4262
        %v5505 = vunpack.c.h.b16 %v4262
        %v5506 = vunpack.c.l.b16 %v4263
        %v5507 = vunpack.c.h.b16 %v4263
        %v5508 = vunpack.c.l.b16 %v4264
        %v5509 = vunpack.c.h.b16 %v4264
        %v5510 = vunpack.c.l.b16 %v4265
        %v5511 = vunpack.c.h.b16 %v4265
        %v5512 = vunpack.c.l.b16 %v4266
        %v5513 = vunpack.c.h.b16 %v4266
        %v5514 = vunpack.c.l.b16 %v4267
        %v5515 = vunpack.c.h.b16 %v4267
        %v5516 = vunpack.c.l.b16 %v4268
        %v5517 = vunpack.c.h.b16 %v4268
        %v5518 = vunpack.c.l.b16 %v4269
        %v5519 = vunpack.c.h.b16 %v4269
        %v5520 = vunpack.c.l.b16 %v4270
        %v5521 = vunpack.c.h.b16 %v4270
        %v5522 = vunpack.c.l.b16 %v4271
        %v5523 = vunpack.c.h.b16 %v4271
        %v5524 = vunpack.c.l.b16 %v4272
        %v5525 = vunpack.c.h.b16 %v4272
        %v5526 = vunpack.c.l.b16 %v4273
        %v5527 = vunpack.c.h.b16 %v4273
        %v5528 = vunpack.c.l.b16 %v4274
        %v5529 = vunpack.c.h.b16 %v4274
        %v5530 = vunpack.c.l.b16 %v4275
        %v5531 = vunpack.c.h.b16 %v4275
        %v5532 = vunpack.c.l.b16 %v4276
        %v5533 = vunpack.c.h.b16 %v4276
        %v5534 = vunpack.c.l.b16 %v4277
        %v5535 = vunpack.c.h.b16 %v4277
        %v5536 = vunpack.c.l.b16 %v4278
        %v5537 = vunpack.c.h.b16 %v4278
        %v5538 = vunpack.c.l.b16 %v4279
        %v5539 = vunpack.c.h.b16 %v4279
        %v5540 = vunpack.c.l.b16 %v4280
        %v5541 = vunpack.c.h.b16 %v4280
        %v5542 = vunpack.c.l.b16 %v4281
        %v5543 = vunpack.c.h.b16 %v4281
        %v5544 = vunpack.c.l.b16 %v4282
        %v5545 = vunpack.c.h.b16 %v4282
        %v5546 = vunpack.c.l.b16 %v4283
        %v5547 = vunpack.c.h.b16 %v4283
        %v5548 = vunpack.c.l.b16 %v4284
        %v5549 = vunpack.c.h.b16 %v4284
        %v5550 = vunpack.c.l.b16 %v4285
        %v5551 = vunpack.c.h.b16 %v4285
        %v5552 = vunpack.c.l.b16 %v4286
        %v5553 = vunpack.c.h.b16 %v4286
        %v5554 = vunpack.c.l.b16 %v4287
        %v5555 = vunpack.c.h.b16 %v4287
        %v5556 = vunpack.c.l.b16 %v4288
        %v5557 = vunpack.c.h.b16 %v4288
        %v5558 = vunpack.c.l.b16 %v4289
        %v5559 = vunpack.c.h.b16 %v4289
        %v5560 = vunpack.c.l.b16 %v4290
        %v5561 = vunpack.c.h.b16 %v4290
        %v5562 = vunpack.c.l.b16 %v4291
        %v5563 = vunpack.c.h.b16 %v4291
        %v5564 = vunpack.c.l.b16 %v4292
        %v5565 = vunpack.c.h.b16 %v4292
        %v5566 = vunpack.c.l.b16 %v4293
        %v5567 = vunpack.c.h.b16 %v4293
        %v5568 = vunpack.c.l.b16 %v4294
        %v5569 = vunpack.c.h.b16 %v4294
        %v5570 = vunpack.c.l.b16 %v4295
        %v5571 = vunpack.c.h.b16 %v4295
        %v5572 = vunpack.c.l.b16 %v4296
        %v5573 = vunpack.c.h.b16 %v4296
        %v5574 = vunpack.c.l.b16 %v4297
        %v5575 = vunpack.c.h.b16 %v4297
        %v5576 = vunpack.c.l.b16 %v4298
        %v5577 = vunpack.c.h.b16 %v4298
        %v5578 = vunpack.c.l.b16 %v4299
        %v5579 = vunpack.c.h.b16 %v4299
        %v5580 = vunpack.c.l.b16 %v4300
        %v5581 = vunpack.c.h.b16 %v4300
        %v5582 = vunpack.c.l.b16 %v4301
        %v5583 = vunpack.c.h.b16 %v4301
        %v5584 = vunpack.c.l.b16 %v4302
        %v5585 = vunpack.c.h.b16 %v4302
        %v5586 = vunpack.c.l.b16 %v4303
        %v5587 = vunpack.c.h.b16 %v4303
        %v5588 = vunpack.c.l.b16 %v4304
        %v5589 = vunpack.c.h.b16 %v4304
        %v5590 = vunpack.c.l.b16 %v4305
        %v5591 = vunpack.c.h.b16 %v4305
        %v5592 = vunpack.c.l.b16 %v4306
        %v5593 = vunpack.c.h.b16 %v4306
        %v5594 = vunpack.c.l.b16 %v4307
        %v5595 = vunpack.c.h.b16 %v4307
        %v5596 = vunpack.c.l.b16 %v4308
        %v5597 = vunpack.c.h.b16 %v4308
        %v5598 = vunpack.c.l.b16 %v4309
        %v5599 = vunpack.c.h.b16 %v4309
        %v5600 = vunpack.c.l.b16 %v4310
        %v5601 = vunpack.c.h.b16 %v4310
        %v5602 = vunpack.c.l.b16 %v4311
        %v5603 = vunpack.c.h.b16 %v4311
        %v5604 = vunpack.c.l.b16 %v4312
        %v5605 = vunpack.c.h.b16 %v4312
        %v5606 = vunpack.c.l.b16 %v4313
        %v5607 = vunpack.c.h.b16 %v4313
        %v5608 = vunpack.c.l.b16 %v4314
        %v5609 = vunpack.c.h.b16 %v4314
        %v5610 = vunpack.c.l.b16 %v4315
        %v5611 = vunpack.c.h.b16 %v4315
        %v5612 = vunpack.c.l.b16 %v4316
        %v5613 = vunpack.c.h.b16 %v4316
        %v5614 = vunpack.c.l.b16 %v4317
        %v5615 = vunpack.c.h.b16 %v4317
        %v5616 = vunpack.c.l.b16 %v4318
        %v5617 = vunpack.c.h.b16 %v4318
        %v5618 = vunpack.c.l.b16 %v4319
        %v5619 = vunpack.c.h.b16 %v4319
        %v5620 = vunpack.c.l.b16 %v4320
        %v5621 = vunpack.c.h.b16 %v4320
        %v5622 = vunpack.c.l.b16 %v4321
        %v5623 = vunpack.c.h.b16 %v4321
        %v5624 = vunpack.c.l.b16 %v4322
        %v5625 = vunpack.c.h.b16 %v4322
        %v5626 = vunpack.c.l.b16 %v4323
        %v5627 = vunpack.c.h.b16 %v4323
        %v5628 = vunpack.c.l.b16 %v4324
        %v5629 = vunpack.c.h.b16 %v4324
        %v5630 = vunpack.c.l.b16 %v4325
        %v5631 = vunpack.c.h.b16 %v4325
        %v5632 = vunpack.c.l.b16 %v4326
        %v5633 = vunpack.c.h.b16 %v4326
        %v5634 = vunpack.c.l.b16 %v4327
        %v5635 = vunpack.c.h.b16 %v4327
        %v5636 = vunpack.c.l.b16 %v4328
        %v5637 = vunpack.c.h.b16 %v4328
        %v5638 = vunpack.c.l.b16 %v4329
        %v5639 = vunpack.c.h.b16 %v4329
        %v5640 = vunpack.c.l.b16 %v4330
        %v5641 = vunpack.c.h.b16 %v4330
        %v5642 = vunpack.c.l.b16 %v4331
        %v5643 = vunpack.c.h.b16 %v4331
        %v5644 = vunpack.c.l.b16 %v4332
        %v5645 = vunpack.c.h.b16 %v4332
        %v5646 = vunpack.c.l.b16 %v4333
        %v5647 = vunpack.c.h.b16 %v4333
        %v5648 = vunpack.c.l.b16 %v4334
        %v5649 = vunpack.c.h.b16 %v4334
        %v5650 = vunpack.c.l.b16 %v4335
        %v5651 = vunpack.c.h.b16 %v4335
        %v5652 = vunpack.c.l.b16 %v4336
        %v5653 = vunpack.c.h.b16 %v4336
        %v5654 = vunpack.c.l.b16 %v4337
        %v5655 = vunpack.c.h.b16 %v4337
        %v5656 = vunpack.c.l.b16 %v4338
        %v5657 = vunpack.c.h.b16 %v4338
        %v5658 = vunpack.c.l.b16 %v4339
        %v5659 = vunpack.c.h.b16 %v4339
        %v5660 = vunpack.c.l.b16 %v4340
        %v5661 = vunpack.c.h.b16 %v4340
        %v5662 = vunpack.c.l.b16 %v4341
        %v5663 = vunpack.c.h.b16 %v4341
        %v5664 = vunpack.c.l.b16 %v4342
        %v5665 = vunpack.c.h.b16 %v4342
        %v5666 = vunpack.c.l.b16 %v4343
        %v5667 = vunpack.c.h.b16 %v4343
        %v5668 = vunpack.c.l.b16 %v4344
        %v5669 = vunpack.c.h.b16 %v4344
        %v5670 = vunpack.c.l.b16 %v4345
        %v5671 = vunpack.c.h.b16 %v4345
        %v5672 = vunpack.c.l.b16 %v4346
        %v5673 = vunpack.c.h.b16 %v4346
        %v5674 = vunpack.c.l.b16 %v4347
        %v5675 = vunpack.c.h.b16 %v4347
        %v5676 = vunpack.c.l.b16 %v4348
        %v5677 = vunpack.c.h.b16 %v4348
        %v5678 = vunpack.c.l.b16 %v4349
        %v5679 = vunpack.c.h.b16 %v4349
        %v5680 = vunpack.c.l.b16 %v4350
        %v5681 = vunpack.c.h.b16 %v4350
        %v5682 = vunpack.c.l.b16 %v4351
        %v5683 = vunpack.c.h.b16 %v4351
        %v5684 = vunpack.c.l.b16 %v4352
        %v5685 = vunpack.c.h.b16 %v4352
        %v5686 = vunpack.c.l.b16 %v4353
        %v5687 = vunpack.c.h.b16 %v4353
        %v5688 = vunpack.c.l.b16 %v4354
        %v5689 = vunpack.c.h.b16 %v4354
        %v5690 = vunpack.c.l.b16 %v4355
        %v5691 = vunpack.c.h.b16 %v4355
        %v5692 = vunpack.c.l.b16 %v4356
        %v5693 = vunpack.c.h.b16 %v4356
        %v5694 = vunpack.c.l.b16 %v4357
        %v5695 = vunpack.c.h.b16 %v4357
        %v5696 = vunpack.c.l.b16 %v4358
        %v5697 = vunpack.c.h.b16 %v4358
        %v5698 = vunpack.c.l.b16 %v4359
        %v5699 = vunpack.c.h.b16 %v4359
        %v5700 = vunpack.c.l.b16 %v4360
        %v5701 = vunpack.c.h.b16 %v4360
        %v5702 = vunpack.c.l.b16 %v4361
        %v5703 = vunpack.c.h.b16 %v4361
        %v5704 = vunpack.c.l.b16 %v4362
        %v5705 = vunpack.c.h.b16 %v4362
        %v5706 = vunpack.c.l.b16 %v4363
        %v5707 = vunpack.c.h.b16 %v4363
        %v5708 = vunpack.c.l.b16 %v4364
        %v5709 = vunpack.c.h.b16 %v4364
        %v5710 = vunpack.c.l.b16 %v4365
        %v5711 = vunpack.c.h.b16 %v4365
        %v5712 = vunpack.c.l.b16 %v4366
        %v5713 = vunpack.c.h.b16 %v4366
        %v5714 = vunpack.c.l.b16 %v4367
        %v5715 = vunpack.c.h.b16 %v4367
        %v5716 = vunpack.c.l.b16 %v4368
        %v5717 = vunpack.c.h.b16 %v4368
        %v5718 = vunpack.c.l.b16 %v4369
        %v5719 = vunpack.c.h.b16 %v4369
        %v5720 = vunpack.c.l.b16 %v4370
        %v5721 = vunpack.c.h.b16 %v4370
        %v5722 = vunpack.c.l.b16 %v4371
        %v5723 = vunpack.c.h.b16 %v4371
        %v5724 = vunpack.c.l.b16 %v4372
        %v5725 = vunpack.c.h.b16 %v4372
        %v5726 = vunpack.c.l.b16 %v4373
        %v5727 = vunpack.c.h.b16 %v4373
        %v5728 = vunpack.c.l.b16 %v4374
        %v5729 = vunpack.c.h.b16 %v4374
        %v5730 = vunpack.c.l.b16 %v4375
        %v5731 = vunpack.c.h.b16 %v4375
        %v5732 = vunpack.c.l.b16 %v4376
        %v5733 = vunpack.c.h.b16 %v4376
        %v5734 = vunpack.c.l.b16 %v4377
        %v5735 = vunpack.c.h.b16 %v4377
        %v5736 = vunpack.c.l.b16 %v4378
        %v5737 = vunpack.c.h.b16 %v4378
        %v5738 = vunpack.c.l.b16 %v4379
        %v5739 = vunpack.c.h.b16 %v4379
        %v5740 = vunpack.c.l.b16 %v4380
        %v5741 = vunpack.c.h.b16 %v4380
        %v5742 = vunpack.c.l.b16 %v4381
        %v5743 = vunpack.c.h.b16 %v4381
        %v5744 = vunpack.c.l.b16 %v4382
        %v5745 = vunpack.c.h.b16 %v4382
        %v5746 = vunpack.c.l.b16 %v4383
        %v5747 = vunpack.c.h.b16 %v4383
        %v5748 = vunpack.c.l.b16 %v4384
        %v5749 = vunpack.c.h.b16 %v4384
        %v5750 = vunpack.c.l.b16 %v4385
        %v5751 = vunpack.c.h.b16 %v4385
        %v5752 = vunpack.c.l.b16 %v4386
        %v5753 = vunpack.c.h.b16 %v4386
        %v5754 = vunpack.c.l.b16 %v4387
        %v5755 = vunpack.c.h.b16 %v4387
        %v5756 = vunpack.c.l.b16 %v4388
        %v5757 = vunpack.c.h.b16 %v4388
        %v5758 = vunpack.c.l.b16 %v4389
        %v5759 = vunpack.c.h.b16 %v4389
        %v5760 = vunpack.c.l.b16 %v4390
        %v5761 = vunpack.c.h.b16 %v4390
        %v5762 = vunpack.c.l.b16 %v4391
        %v5763 = vunpack.c.h.b16 %v4391
        %v5764 = vunpack.c.l.b16 %v4392
        %v5765 = vunpack.c.h.b16 %v4392
        %v5766 = vunpack.c.l.b16 %v4393
        %v5767 = vunpack.c.h.b16 %v4393
        %v5768 = vunpack.c.l.b16 %v4394
        %v5769 = vunpack.c.h.b16 %v4394
        %v5770 = vunpack.c.l.b16 %v4395
        %v5771 = vunpack.c.h.b16 %v4395
        %v5772 = vunpack.c.l.b16 %v4396
        %v5773 = vunpack.c.h.b16 %v4396
        %v5774 = vunpack.c.l.b16 %v4397
        %v5775 = vunpack.c.h.b16 %v4397
        %v5776 = vunpack.c.l.b16 %v4398
        %v5777 = vunpack.c.h.b16 %v4398
        %v5778 = vunpack.c.l.b16 %v4399
        %v5779 = vunpack.c.h.b16 %v4399
        %v5780 = vunpack.c.l.b16 %v4400
        %v5781 = vunpack.c.h.b16 %v4400
        %v5782 = vunpack.c.l.b16 %v4401
        %v5783 = vunpack.c.h.b16 %v4401
        %v5784 = vunpack.c.l.b16 %v4402
        %v5785 = vunpack.c.h.b16 %v4402
        %v5786 = vunpack.c.l.b16 %v4403
        %v5787 = vunpack.c.h.b16 %v4403
        %v5788 = vunpack.c.l.b16 %v4404
        %v5789 = vunpack.c.h.b16 %v4404
        %v5790 = vunpack.c.l.b16 %v4405
        %v5791 = vunpack.c.h.b16 %v4405
        %v5792 = vunpack.c.l.b16 %v4406
        %v5793 = vunpack.c.h.b16 %v4406
        %v5794 = vunpack.c.l.b16 %v4407
        %v5795 = vunpack.c.h.b16 %v4407
        %v5796 = vunpack.c.l.b16 %v4408
        %v5797 = vunpack.c.h.b16 %v4408
        %v5798 = vunpack.c.l.b16 %v4409
        %v5799 = vunpack.c.h.b16 %v4409
        %v5800 = vunpack.c.l.b16 %v4410
        %v5801 = vunpack.c.h.b16 %v4410
        %v5802 = vunpack.c.l.b16 %v4411
        %v5803 = vunpack.c.h.b16 %v4411
        %v5804 = vunpack.c.l.b16 %v4412
        %v5805 = vunpack.c.h.b16 %v4412
        %v5806 = vunpack.c.l.b16 %v4413
        %v5807 = vunpack.c.h.b16 %v4413
        %v5808 = vunpack.c.l.b16 %v4414
        %v5809 = vunpack.c.h.b16 %v4414
        %v5810 = vunpack.c.l.b16 %v4415
        %v5811 = vunpack.c.h.b16 %v4415
        %v5812 = vunpack.c.l.b16 %v4416
        %v5813 = vunpack.c.h.b16 %v4416
        %v5814 = vunpack.c.l.b16 %v4417
        %v5815 = vunpack.c.h.b16 %v4417
        %v5816 = vunpack.c.l.b16 %v4418
        %v5817 = vunpack.c.h.b16 %v4418
        %v5818 = vunpack.c.l.b16 %v4419
        %v5819 = vunpack.c.h.b16 %v4419
        %v5820 = vunpack.c.l.b16 %v4420
        %v5821 = vunpack.c.h.b16 %v4420
        %v5822 = vunpack.c.l.b16 %v4421
        %v5823 = vunpack.c.h.b16 %v4421
        %v5824 = vunpack.c.l.b16 %v4422
        %v5825 = vunpack.c.h.b16 %v4422
        %v5826 = vunpack.c.l.b16 %v4423
        %v5827 = vunpack.c.h.b16 %v4423
        %v5828 = vunpack.c.l.b16 %v4424
        %v5829 = vunpack.c.h.b16 %v4424
        %v5830 = vunpack.c.l.b16 %v4425
        %v5831 = vunpack.c.h.b16 %v4425
        %v5832 = vunpack.c.l.b16 %v4426
        %v5833 = vunpack.c.h.b16 %v4426
        %v5834 = vunpack.c.l.b16 %v4427
        %v5835 = vunpack.c.h.b16 %v4427
        %v5836 = vunpack.c.l.b16 %v4428
        %v5837 = vunpack.c.h.b16 %v4428
        %v5838 = vunpack.c.l.b16 %v4429
        %v5839 = vunpack.c.h.b16 %v4429
        %v5840 = vunpack.c.l.b16 %v4430
        %v5841 = vunpack.c.h.b16 %v4430
        %v5842 = vunpack.c.l.b16 %v4431
        %v5843 = vunpack.c.h.b16 %v4431
        %v5844 = vunpack.c.l.b16 %v4432
        %v5845 = vunpack.c.h.b16 %v4432
        %v5846 = vunpack.c.l.b16 %v4433
        %v5847 = vunpack.c.h.b16 %v4433
        %v5848 = vunpack.c.l.b16 %v4434
        %v5849 = vunpack.c.h.b16 %v4434
        %v5850 = vunpack.c.l.b16 %v4435
        %v5851 = vunpack.c.h.b16 %v4435
        %v5852 = vunpack.c.l.b16 %v4436
        %v5853 = vunpack.c.h.b16 %v4436
        %v5854 = vunpack.c.l.b16 %v4437
        %v5855 = vunpack.c.h.b16 %v4437
        %v5856 = vunpack.c.l.b16 %v4438
        %v5857 = vunpack.c.h.b16 %v4438
        %v5858 = vunpack.c.l.b16 %v4439
        %v5859 = vunpack.c.h.b16 %v4439
        %v5860 = vunpack.c.l.b16 %v4440
        %v5861 = vunpack.c.h.b16 %v4440
        %v5862 = vunpack.c.l.b16 %v4441
        %v5863 = vunpack.c.h.b16 %v4441
        %v5864 = vunpack.c.l.b16 %v4442
        %v5865 = vunpack.c.h.b16 %v4442
        %v5866 = vunpack.c.l.b16 %v4443
        %v5867 = vunpack.c.h.b16 %v4443
        %v5868 = vunpack.c.l.b16 %v4444
        %v5869 = vunpack.c.h.b16 %v4444
        %v5870 = vunpack.c.l.b16 %v4445
        %v5871 = vunpack.c.h.b16 %v4445
        %v5872 = vunpack.c.l.b16 %v4446
        %v5873 = vunpack.c.h.b16 %v4446
        %v5874 = vunpack.c.l.b16 %v4447
        %v5875 = vunpack.c.h.b16 %v4447
        %v5876 = vunpack.c.l.b16 %v4448
        %v5877 = vunpack.c.h.b16 %v4448
        %v5878 = vunpack.c.l.b16 %v4449
        %v5879 = vunpack.c.h.b16 %v4449
        %v5880 = vunpack.c.l.b16 %v4450
        %v5881 = vunpack.c.h.b16 %v4450
        %v5882 = vunpack.c.l.b16 %v4451
        %v5883 = vunpack.c.h.b16 %v4451
        %v5884 = vunpack.c.l.b16 %v4452
        %v5885 = vunpack.c.h.b16 %v4452
        %v5886 = vunpack.c.l.b16 %v4453
        %v5887 = vunpack.c.h.b16 %v4453
        %v5888 = vunpack.c.l.b16 %v4454
        %v5889 = vunpack.c.h.b16 %v4454
        %v5890 = vunpack.c.l.b16 %v4455
        %v5891 = vunpack.c.h.b16 %v4455
        %v5892 = vunpack.c.l.b16 %v4456
        %v5893 = vunpack.c.h.b16 %v4456
        %v5894 = vunpack.c.l.b16 %v4457
        %v5895 = vunpack.c.h.b16 %v4457
        %v5896 = vunpack.c.l.b16 %v4458
        %v5897 = vunpack.c.h.b16 %v4458
        %v5898 = vunpack.c.l.b16 %v4459
        %v5899 = vunpack.c.h.b16 %v4459
        %v5900 = vunpack.c.l.b16 %v4460
        %v5901 = vunpack.c.h.b16 %v4460
        %v5902 = vunpack.c.l.b16 %v4461
        %v5903 = vunpack.c.h.b16 %v4461
        %v5904 = vunpack.c.l.b16 %v4462
        %v5905 = vunpack.c.h.b16 %v4462
        %v5906 = vunpack.c.l.b16 %v4463
        %v5907 = vunpack.c.h.b16 %v4463
        %v5908 = vunpack.c.l.b16 %v4464
        %v5909 = vunpack.c.h.b16 %v4464
        %v5910 = vunpack.c.l.b16 %v4465
        %v5911 = vunpack.c.h.b16 %v4465
        %v5912 = vunpack.c.l.b16 %v4466
        %v5913 = vunpack.c.h.b16 %v4466
        %v5914 = vunpack.c.l.b16 %v4467
        %v5915 = vunpack.c.h.b16 %v4467
        %v5916 = vunpack.c.l.b16 %v4468
        %v5917 = vunpack.c.h.b16 %v4468
        %v5918 = vunpack.c.l.b16 %v4469
        %v5919 = vunpack.c.h.b16 %v4469
        %v5920 = vunpack.c.l.b16 %v4470
        %v5921 = vunpack.c.h.b16 %v4470
        %v5922 = vunpack.c.l.b16 %v4471
        %v5923 = vunpack.c.h.b16 %v4471
        %v5924 = vunpack.c.l.b16 %v4472
        %v5925 = vunpack.c.h.b16 %v4472
        %v5926 = vunpack.c.l.b16 %v4473
        %v5927 = vunpack.c.h.b16 %v4473
        %v5928 = vunpack.c.l.b16 %v4474
        %v5929 = vunpack.c.h.b16 %v4474
        %v5930 = vunpack.c.l.b16 %v4475
        %v5931 = vunpack.c.h.b16 %v4475
        %v5932 = vunpack.c.l.b16 %v4476
        %v5933 = vunpack.c.h.b16 %v4476
        %v5934 = vunpack.c.l.b16 %v4477
        %v5935 = vunpack.c.h.b16 %v4477
        %v5936 = vunpack.c.l.b16 %v4478
        %v5937 = vunpack.c.h.b16 %v4478
        %v5938 = vunpack.c.l.b16 %v4479
        %v5939 = vunpack.c.h.b16 %v4479
        %v5940 = vunpack.c.l.b16 %v4480
        %v5941 = vunpack.c.h.b16 %v4480
        %v5942 = vunpack.c.l.b16 %v4481
        %v5943 = vunpack.c.h.b16 %v4481
        %v5944 = vunpack.c.l.b16 %v4482
        %v5945 = vunpack.c.h.b16 %v4482
        %v5946 = vunpack.c.l.b16 %v4483
        %v5947 = vunpack.c.h.b16 %v4483
        %v5948 = vunpack.c.l.b16 %v4484
        %v5949 = vunpack.c.h.b16 %v4484
        %v5950 = vunpack.c.l.b16 %v4485
        %v5951 = vunpack.c.h.b16 %v4485
        %v5952 = vunpack.c.l.b16 %v4486
        %v5953 = vunpack.c.h.b16 %v4486
        %v5954 = vunpack.c.l.b16 %v4487
        %v5955 = vunpack.c.h.b16 %v4487
        %v5956 = vunpack.c.l.b16 %v4488
        %v5957 = vunpack.c.h.b16 %v4488
        %v5958 = vunpack.c.l.b16 %v4489
        %v5959 = vunpack.c.h.b16 %v4489
        %v5960 = vunpack.c.l.b16 %v4490
        %v5961 = vunpack.c.h.b16 %v4490
        %v5962 = vunpack.c.l.b16 %v4491
        %v5963 = vunpack.c.h.b16 %v4491
        %v5964 = vunpack.c.l.b16 %v4492
        %v5965 = vunpack.c.h.b16 %v4492
        %v5966 = vunpack.c.l.b16 %v4493
        %v5967 = vunpack.c.h.b16 %v4493
        %v5968 = vunpack.c.l.b16 %v4494
        %v5969 = vunpack.c.h.b16 %v4494
        %v5970 = vunpack.c.l.b16 %v4495
        %v5971 = vunpack.c.h.b16 %v4495
        %v5972 = vunpack.c.l.b16 %v4496
        %v5973 = vunpack.c.h.b16 %v4496
        %v5974 = vunpack.c.l.b16 %v4497
        %v5975 = vunpack.c.h.b16 %v4497
        %v5976 = vunpack.c.l.b16 %v4498
        %v5977 = vunpack.c.h.b16 %v4498
        %v5978 = vunpack.c.l.b16 %v4499
        %v5979 = vunpack.c.h.b16 %v4499
        %v5980 = vunpack.c.l.b16 %v4500
        %v5981 = vunpack.c.h.b16 %v4500
        %v5982 = vunpack.c.l.b16 %v4501
        %v5983 = vunpack.c.h.b16 %v4501
        %v5984 = vunpack.c.l.b16 %v4502
        %v5985 = vunpack.c.h.b16 %v4502
        %v5986 = vunpack.c.l.b16 %v4503
        %v5987 = vunpack.c.h.b16 %v4503
        %v5988 = vunpack.c.l.b16 %v4504
        %v5989 = vunpack.c.h.b16 %v4504
        %v5990 = vunpack.c.l.b16 %v4505
        %v5991 = vunpack.c.h.b16 %v4505
        %v5992 = vunpack.c.l.b16 %v4506
        %v5993 = vunpack.c.h.b16 %v4506
        %v5994 = vunpack.c.l.b16 %v4507
        %v5995 = vunpack.c.h.b16 %v4507
        %v5996 = vunpack.c.l.b16 %v4508
        %v5997 = vunpack.c.h.b16 %v4508
        %v5998 = vunpack.c.l.b16 %v4509
        %v5999 = vunpack.c.h.b16 %v4509
        %v6000 = vunpack.c.l.b16 %v4510
        %v6001 = vunpack.c.h.b16 %v4510
        %v6002 = vunpack.c.l.b16 %v4511
        %v6003 = vunpack.c.h.b16 %v4511
        %v6004 = vunpack.c.l.b16 %v4512
        %v6005 = vunpack.c.h.b16 %v4512
        %v6006 = vunpack.c.l.b16 %v4513
        %v6007 = vunpack.c.h.b16 %v4513
        %v6008 = vunpack.c.l.b16 %v4514
        %v6009 = vunpack.c.h.b16 %v4514
        %v6010 = vunpack.c.l.b16 %v4515
        %v6011 = vunpack.c.h.b16 %v4515
        %v6012 = vunpack.c.l.b16 %v4516
        %v6013 = vunpack.c.h.b16 %v4516
        %v6014 = vunpack.c.l.b16 %v4517
        %v6015 = vunpack.c.h.b16 %v4517
        %v6016 = vunpack.c.l.b16 %v4518
        %v6017 = vunpack.c.h.b16 %v4518
        %v6018 = vunpack.c.l.b16 %v4519
        %v6019 = vunpack.c.h.b16 %v4519
        %v6020 = vunpack.c.l.b16 %v4520
        %v6021 = vunpack.c.h.b16 %v4520
        %v6022 = vunpack.c.l.b16 %v4521
        %v6023 = vunpack.c.h.b16 %v4521
        %v6024 = vunpack.c.l.b16 %v4522
        %v6025 = vunpack.c.h.b16 %v4522
        %v6026 = vunpack.c.l.b16 %v4523
        %v6027 = vunpack.c.h.b16 %v4523
        %v6028 = vunpack.c.l.b16 %v4524
        %v6029 = vunpack.c.h.b16 %v4524
        %v6030 = vunpack.c.l.b16 %v4525
        %v6031 = vunpack.c.h.b16 %v4525
        %v6032 = vunpack.c.l.b16 %v4526
        %v6033 = vunpack.c.h.b16 %v4526
        %v6034 = vunpack.c.l.b16 %v4527
        %v6035 = vunpack.c.h.b16 %v4527
        %v6036 = vunpack.c.l.b16 %v4528
        %v6037 = vunpack.c.h.b16 %v4528
        %v6038 = vunpack.c.l.b16 %v4529
        %v6039 = vunpack.c.h.b16 %v4529
        %v6040 = vunpack.c.l.b16 %v4530
        %v6041 = vunpack.c.h.b16 %v4530
        %v6042 = vunpack.c.l.b16 %v4531
        %v6043 = vunpack.c.h.b16 %v4531
        %v6044 = vunpack.c.l.b16 %v4532
        %v6045 = vunpack.c.h.b16 %v4532
        %v6046 = vunpack.c.l.b16 %v4533
        %v6047 = vunpack.c.h.b16 %v4533
        %v6048 = vunpack.c.l.b16 %v4534
        %v6049 = vunpack.c.h.b16 %v4534
        %v6050 = vunpack.c.l.b16 %v4535
        %v6051 = vunpack.c.h.b16 %v4535
        %v6052 = vunpack.c.l.b16 %v4536
        %v6053 = vunpack.c.h.b16 %v4536
        %v6054 = vunpack.c.l.b16 %v4537
        %v6055 = vunpack.c.h.b16 %v4537
        %v6056 = vunpack.c.l.b16 %v4538
        %v6057 = vunpack.c.h.b16 %v4538
        %v6058 = vunpack.c.l.b16 %v4539
        %v6059 = vunpack.c.h.b16 %v4539
        %v6060 = vunpack.c.l.b16 %v4540
        %v6061 = vunpack.c.h.b16 %v4540
        %v6062 = vunpack.c.l.b16 %v4541
        %v6063 = vunpack.c.h.b16 %v4541
        %v6064 = vunpack.c.l.b16 %v4542
        %v6065 = vunpack.c.h.b16 %v4542
        %v6066 = vunpack.c.l.b16 %v4543
        %v6067 = vunpack.c.h.b16 %v4543
        %v6068 = vunpack.c.l.b16 %v4544
        %v6069 = vunpack.c.h.b16 %v4544
        %v6070 = vunpack.c.l.b16 %v4545
        %v6071 = vunpack.c.h.b16 %v4545
        %v6072 = vunpack.c.l.b16 %v4546
        %v6073 = vunpack.c.h.b16 %v4546
        %v6074 = vunpack.c.l.b16 %v4547
        %v6075 = vunpack.c.h.b16 %v4547
        %v6076 = vunpack.c.l.b16 %v4548
        %v6077 = vunpack.c.h.b16 %v4548
        %v6078 = vunpack.c.l.b16 %v4549
        %v6079 = vunpack.c.h.b16 %v4549
        %v6080 = vunpack.c.l.b16 %v4550
        %v6081 = vunpack.c.h.b16 %v4550
        %v6082 = vunpack.c.l.b16 %v4551
        %v6083 = vunpack.c.h.b16 %v4551
        %v6084 = vunpack.c.l.b16 %v4552
        %v6085 = vunpack.c.h.b16 %v4552
        %v6086 = vunpack.c.l.b16 %v4553
        %v6087 = vunpack.c.h.b16 %v4553
        %v6088 = vunpack.c.l.b16 %v4554
        %v6089 = vunpack.c.h.b16 %v4554
        %v6090 = vunpack.c.l.b16 %v4555
        %v6091 = vunpack.c.h.b16 %v4555
        %v6092 = vpack.c.b16 %v5084, %v5068
        %v6093 = vpack.c.b16 %v5085, %v5069
        %v6094 = vpack.c.b16 %v5086, %v5070
        %v6095 = vpack.c.b16 %v5087, %v5071
        %v6096 = vpack.c.b16 %v5088, %v5072
        %v6097 = vpack.c.b16 %v5089, %v5073
        %v6098 = vpack.c.b16 %v5090, %v5074
        %v6099 = vpack.c.b16 %v5091, %v5075
        %v6100 = vpack.c.b16 %v5092, %v5076
        %v6101 = vpack.c.b16 %v5093, %v5077
        %v6102 = vpack.c.b16 %v5094, %v5078
        %v6103 = vpack.c.b16 %v5095, %v5079
        %v6104 = vpack.c.b16 %v5096, %v5080
        %v6105 = vpack.c.b16 %v5097, %v5081
        %v6106 = vpack.c.b16 %v5098, %v5082
        %v6107 = vpack.c.b16 %v5099, %v5083
        %v6108 = vpack.c.b16 %v5116, %v5100
        %v6109 = vpack.c.b16 %v5117, %v5101
        %v6110 = vpack.c.b16 %v5118, %v5102
        %v6111 = vpack.c.b16 %v5119, %v5103
        %v6112 = vpack.c.b16 %v5120, %v5104
        %v6113 = vpack.c.b16 %v5121, %v5105
        %v6114 = vpack.c.b16 %v5122, %v5106
        %v6115 = vpack.c.b16 %v5123, %v5107
        %v6116 = vpack.c.b16 %v5124, %v5108
        %v6117 = vpack.c.b16 %v5125, %v5109
        %v6118 = vpack.c.b16 %v5126, %v5110
        %v6119 = vpack.c.b16 %v5127, %v5111
        %v6120 = vpack.c.b16 %v5128, %v5112
        %v6121 = vpack.c.b16 %v5129, %v5113
        %v6122 = vpack.c.b16 %v5130, %v5114
        %v6123 = vpack.c.b16 %v5131, %v5115
        %v6124 = vpack.c.b16 %v5148, %v5132
        %v6125 = vpack.c.b16 %v5149, %v5133
        %v6126 = vpack.c.b16 %v5150, %v5134
        %v6127 = vpack.c.b16 %v5151, %v5135
        %v6128 = vpack.c.b16 %v5152, %v5136
        %v6129 = vpack.c.b16 %v5153, %v5137
        %v6130 = vpack.c.b16 %v5154, %v5138
        %v6131 = vpack.c.b16 %v5155, %v5139
        %v6132 = vpack.c.b16 %v5156, %v5140
        %v6133 = vpack.c.b16 %v5157, %v5141
        %v6134 = vpack.c.b16 %v5158, %v5142
        %v6135 = vpack.c.b16 %v5159, %v5143
        %v6136 = vpack.c.b16 %v5160, %v5144
        %v6137 = vpack.c.b16 %v5161, %v5145
        %v6138 = vpack.c.b16 %v5162, %v5146
        %v6139 = vpack.c.b16 %v5163, %v5147
        %v6140 = vpack.c.b16 %v5180, %v5164
        %v6141 = vpack.c.b16 %v5181, %v5165
        %v6142 = vpack.c.b16 %v5182, %v5166
        %v6143 = vpack.c.b16 %v5183, %v5167
        %v6144 = vpack.c.b16 %v5184, %v5168
        %v6145 = vpack.c.b16 %v5185, %v5169
        %v6146 = vpack.c.b16 %v5186, %v5170
        %v6147 = vpack.c.b16 %v5187, %v5171
        %v6148 = vpack.c.b16 %v5188, %v5172
        %v6149 = vpack.c.b16 %v5189, %v5173
        %v6150 = vpack.c.b16 %v5190, %v5174
        %v6151 = vpack.c.b16 %v5191, %v5175
        %v6152 = vpack.c.b16 %v5192, %v5176
        %v6153 = vpack.c.b16 %v5193, %v5177
        %v6154 = vpack.c.b16 %v5194, %v5178
        %v6155 = vpack.c.b16 %v5195, %v5179
        %v6156 = vpack.c.b16 %v5212, %v5196
        %v6157 = vpack.c.b16 %v5213, %v5197
        %v6158 = vpack.c.b16 %v5214, %v5198
        %v6159 = vpack.c.b16 %v5215, %v5199
        %v6160 = vpack.c.b16 %v5216, %v5200
        %v6161 = vpack.c.b16 %v5217, %v5201
        %v6162 = vpack.c.b16 %v5218, %v5202
        %v6163 = vpack.c.b16 %v5219, %v5203
        %v6164 = vpack.c.b16 %v5220, %v5204
        %v6165 = vpack.c.b16 %v5221, %v5205
        %v6166 = vpack.c.b16 %v5222, %v5206
        %v6167 = vpack.c.b16 %v5223, %v5207
        %v6168 = vpack.c.b16 %v5224, %v5208
        %v6169 = vpack.c.b16 %v5225, %v5209
        %v6170 = vpack.c.b16 %v5226, %v5210
        %v6171 = vpack.c.b16 %v5227, %v5211
        %v6172 = vpack.c.b16 %v5244, %v5228
        %v6173 = vpack.c.b16 %v5245, %v5229
        %v6174 = vpack.c.b16 %v5246, %v5230
        %v6175 = vpack.c.b16 %v5247, %v5231
        %v6176 = vpack.c.b16 %v5248, %v5232
        %v6177 = vpack.c.b16 %v5249, %v5233
        %v6178 = vpack.c.b16 %v5250, %v5234
        %v6179 = vpack.c.b16 %v5251, %v5235
        %v6180 = vpack.c.b16 %v5252, %v5236
        %v6181 = vpack.c.b16 %v5253, %v5237
        %v6182 = vpack.c.b16 %v5254, %v5238
        %v6183 = vpack.c.b16 %v5255, %v5239
        %v6184 = vpack.c.b16 %v5256, %v5240
        %v6185 = vpack.c.b16 %v5257, %v5241
        %v6186 = vpack.c.b16 %v5258, %v5242
        %v6187 = vpack.c.b16 %v5259, %v5243
        %v6188 = vpack.c.b16 %v5276, %v5260
        %v6189 = vpack.c.b16 %v5277, %v5261
        %v6190 = vpack.c.b16 %v5278, %v5262
        %v6191 = vpack.c.b16 %v5279, %v5263
        %v6192 = vpack.c.b16 %v5280, %v5264
        %v6193 = vpack.c.b16 %v5281, %v5265
        %v6194 = vpack.c.b16 %v5282, %v5266
        %v6195 = vpack.c.b16 %v5283, %v5267
        %v6196 = vpack.c.b16 %v5284, %v5268
        %v6197 = vpack.c.b16 %v5285, %v5269
        %v6198 = vpack.c.b16 %v5286, %v5270
        %v6199 = vpack.c.b16 %v5287, %v5271
        %v6200 = vpack.c.b16 %v5288, %v5272
        %v6201 = vpack.c.b16 %v5289, %v5273
        %v6202 = vpack.c.b16 %v5290, %v5274
        %v6203 = vpack.c.b16 %v5291, %v5275
        %v6204 = vpack.c.b16 %v5308, %v5292
        %v6205 = vpack.c.b16 %v5309, %v5293
        %v6206 = vpack.c.b16 %v5310, %v5294
        %v6207 = vpack.c.b16 %v5311, %v5295
        %v6208 = vpack.c.b16 %v5312, %v5296
        %v6209 = vpack.c.b16 %v5313, %v5297
        %v6210 = vpack.c.b16 %v5314, %v5298
        %v6211 = vpack.c.b16 %v5315, %v5299
        %v6212 = vpack.c.b16 %v5316, %v5300
        %v6213 = vpack.c.b16 %v5317, %v5301
        %v6214 = vpack.c.b16 %v5318, %v5302
        %v6215 = vpack.c.b16 %v5319, %v5303
        %v6216 = vpack.c.b16 %v5320, %v5304
        %v6217 = vpack.c.b16 %v5321, %v5305
        %v6218 = vpack.c.b16 %v5322, %v5306
        %v6219 = vpack.c.b16 %v5323, %v5307
        %v6220 = vpack.c.b16 %v5340, %v5324
        %v6221 = vpack.c.b16 %v5341, %v5325
        %v6222 = vpack.c.b16 %v5342, %v5326
        %v6223 = vpack.c.b16 %v5343, %v5327
        %v6224 = vpack.c.b16 %v5344, %v5328
        %v6225 = vpack.c.b16 %v5345, %v5329
        %v6226 = vpack.c.b16 %v5346, %v5330
        %v6227 = vpack.c.b16 %v5347, %v5331
        %v6228 = vpack.c.b16 %v5348, %v5332
        %v6229 = vpack.c.b16 %v5349, %v5333
        %v6230 = vpack.c.b16 %v5350, %v5334
        %v6231 = vpack.c.b16 %v5351, %v5335
        %v6232 = vpack.c.b16 %v5352, %v5336
        %v6233 = vpack.c.b16 %v5353, %v5337
        %v6234 = vpack.c.b16 %v5354, %v5338
        %v6235 = vpack.c.b16 %v5355, %v5339
        %v6236 = vpack.c.b16 %v5372, %v5356
        %v6237 = vpack.c.b16 %v5373, %v5357
        %v6238 = vpack.c.b16 %v5374, %v5358
        %v6239 = vpack.c.b16 %v5375, %v5359
        %v6240 = vpack.c.b16 %v5376, %v5360
        %v6241 = vpack.c.b16 %v5377, %v5361
        %v6242 = vpack.c.b16 %v5378, %v5362
        %v6243 = vpack.c.b16 %v5379, %v5363
        %v6244 = vpack.c.b16 %v5380, %v5364
        %v6245 = vpack.c.b16 %v5381, %v5365
        %v6246 = vpack.c.b16 %v5382, %v5366
        %v6247 = vpack.c.b16 %v5383, %v5367
        %v6248 = vpack.c.b16 %v5384, %v5368
        %v6249 = vpack.c.b16 %v5385, %v5369
        %v6250 = vpack.c.b16 %v5386, %v5370
        %v6251 = vpack.c.b16 %v5387, %v5371
        %v6252 = vpack.c.b16 %v5404, %v5388
        %v6253 = vpack.c.b16 %v5405, %v5389
        %v6254 = vpack.c.b16 %v5406, %v5390
        %v6255 = vpack.c.b16 %v5407, %v5391
        %v6256 = vpack.c.b16 %v5408, %v5392
        %v6257 = vpack.c.b16 %v5409, %v5393
        %v6258 = vpack.c.b16 %v5410, %v5394
        %v6259 = vpack.c.b16 %v5411, %v5395
        %v6260 = vpack.c.b16 %v5412, %v5396
        %v6261 = vpack.c.b16 %v5413, %v5397
        %v6262 = vpack.c.b16 %v5414, %v5398
        %v6263 = vpack.c.b16 %v5415, %v5399
        %v6264 = vpack.c.b16 %v5416, %v5400
        %v6265 = vpack.c.b16 %v5417, %v5401
        %v6266 = vpack.c.b16 %v5418, %v5402
        %v6267 = vpack.c.b16 %v5419, %v5403
        %v6268 = vpack.c.b16 %v5436, %v5420
        %v6269 = vpack.c.b16 %v5437, %v5421
        %v6270 = vpack.c.b16 %v5438, %v5422
        %v6271 = vpack.c.b16 %v5439, %v5423
        %v6272 = vpack.c.b16 %v5440, %v5424
        %v6273 = vpack.c.b16 %v5441, %v5425
        %v6274 = vpack.c.b16 %v5442, %v5426
        %v6275 = vpack.c.b16 %v5443, %v5427
        %v6276 = vpack.c.b16 %v5444, %v5428
        %v6277 = vpack.c.b16 %v5445, %v5429
        %v6278 = vpack.c.b16 %v5446, %v5430
        %v6279 = vpack.c.b16 %v5447, %v5431
        %v6280 = vpack.c.b16 %v5448, %v5432
        %v6281 = vpack.c.b16 %v5449, %v5433
        %v6282 = vpack.c.b16 %v5450, %v5434
        %v6283 = vpack.c.b16 %v5451, %v5435
        %v6284 = vpack.c.b16 %v5468, %v5452
        %v6285 = vpack.c.b16 %v5469, %v5453
        %v6286 = vpack.c.b16 %v5470, %v5454
        %v6287 = vpack.c.b16 %v5471, %v5455
        %v6288 = vpack.c.b16 %v5472, %v5456
        %v6289 = vpack.c.b16 %v5473, %v5457
        %v6290 = vpack.c.b16 %v5474, %v5458
        %v6291 = vpack.c.b16 %v5475, %v5459
        %v6292 = vpack.c.b16 %v5476, %v5460
        %v6293 = vpack.c.b16 %v5477, %v5461
        %v6294 = vpack.c.b16 %v5478, %v5462
        %v6295 = vpack.c.b16 %v5479, %v5463
        %v6296 = vpack.c.b16 %v5480, %v5464
        %v6297 = vpack.c.b16 %v5481, %v5465
        %v6298 = vpack.c.b16 %v5482, %v5466
        %v6299 = vpack.c.b16 %v5483, %v5467
        %v6300 = vpack.c.b16 %v5500, %v5484
        %v6301 = vpack.c.b16 %v5501, %v5485
        %v6302 = vpack.c.b16 %v5502, %v5486
        %v6303 = vpack.c.b16 %v5503, %v5487
        %v6304 = vpack.c.b16 %v5504, %v5488
        %v6305 = vpack.c.b16 %v5505, %v5489
        %v6306 = vpack.c.b16 %v5506, %v5490
        %v6307 = vpack.c.b16 %v5507, %v5491
        %v6308 = vpack.c.b16 %v5508, %v5492
        %v6309 = vpack.c.b16 %v5509, %v5493
        %v6310 = vpack.c.b16 %v5510, %v5494
        %v6311 = vpack.c.b16 %v5511, %v5495
        %v6312 = vpack.c.b16 %v5512, %v5496
        %v6313 = vpack.c.b16 %v5513, %v5497
        %v6314 = vpack.c.b16 %v5514, %v5498
        %v6315 = vpack.c.b16 %v5515, %v5499
        %v6316 = vpack.c.b16 %v5532, %v5516
        %v6317 = vpack.c.b16 %v5533, %v5517
        %v6318 = vpack.c.b16 %v5534, %v5518
        %v6319 = vpack.c.b16 %v5535, %v5519
        %v6320 = vpack.c.b16 %v5536, %v5520
        %v6321 = vpack.c.b16 %v5537, %v5521
        %v6322 = vpack.c.b16 %v5538, %v5522
        %v6323 = vpack.c.b16 %v5539, %v5523
        %v6324 = vpack.c.b16 %v5540, %v5524
        %v6325 = vpack.c.b16 %v5541, %v5525
        %v6326 = vpack.c.b16 %v5542, %v5526
        %v6327 = vpack.c.b16 %v5543, %v5527
        %v6328 = vpack.c.b16 %v5544, %v5528
        %v6329 = vpack.c.b16 %v5545, %v5529
        %v6330 = vpack.c.b16 %v5546, %v5530
        %v6331 = vpack.c.b16 %v5547, %v5531
        %v6332 = vpack.c.b16 %v5564, %v5548
        %v6333 = vpack.c.b16 %v5565, %v5549
        %v6334 = vpack.c.b16 %v5566, %v5550
        %v6335 = vpack.c.b16 %v5567, %v5551
        %v6336 = vpack.c.b16 %v5568, %v5552
        %v6337 = vpack.c.b16 %v5569, %v5553
        %v6338 = vpack.c.b16 %v5570, %v5554
        %v6339 = vpack.c.b16 %v5571, %v5555
        %v6340 = vpack.c.b16 %v5572, %v5556
        %v6341 = vpack.c.b16 %v5573, %v5557
        %v6342 = vpack.c.b16 %v5574, %v5558
        %v6343 = vpack.c.b16 %v5575, %v5559
        %v6344 = vpack.c.b16 %v5576, %v5560
        %v6345 = vpack.c.b16 %v5577, %v5561
        %v6346 = vpack.c.b16 %v5578, %v5562
        %v6347 = vpack.c.b16 %v5579, %v5563
        %v6348 = vpack.c.b16 %v5596, %v5580
        %v6349 = vpack.c.b16 %v5597, %v5581
        %v6350 = vpack.c.b16 %v5598, %v5582
        %v6351 = vpack.c.b16 %v5599, %v5583
        %v6352 = vpack.c.b16 %v5600, %v5584
        %v6353 = vpack.c.b16 %v5601, %v5585
        %v6354 = vpack.c.b16 %v5602, %v5586
        %v6355 = vpack.c.b16 %v5603, %v5587
        %v6356 = vpack.c.b16 %v5604, %v5588
        %v6357 = vpack.c.b16 %v5605, %v5589
        %v6358 = vpack.c.b16 %v5606, %v5590
        %v6359 = vpack.c.b16 %v5607, %v5591
        %v6360 = vpack.c.b16 %v5608, %v5592
        %v6361 = vpack.c.b16 %v5609, %v5593
        %v6362 = vpack.c.b16 %v5610, %v5594
        %v6363 = vpack.c.b16 %v5611, %v5595
        %v6364 = vpack.c.b16 %v5628, %v5612
        %v6365 = vpack.c.b16 %v5629, %v5613
        %v6366 = vpack.c.b16 %v5630, %v5614
        %v6367 = vpack.c.b16 %v5631, %v5615
        %v6368 = vpack.c.b16 %v5632, %v5616
        %v6369 = vpack.c.b16 %v5633, %v5617
        %v6370 = vpack.c.b16 %v5634, %v5618
        %v6371 = vpack.c.b16 %v5635, %v5619
        %v6372 = vpack.c.b16 %v5636, %v5620
        %v6373 = vpack.c.b16 %v5637, %v5621
        %v6374 = vpack.c.b16 %v5638, %v5622
        %v6375 = vpack.c.b16 %v5639, %v5623
        %v6376 = vpack.c.b16 %v5640, %v5624
        %v6377 = vpack.c.b16 %v5641, %v5625
        %v6378 = vpack.c.b16 %v5642, %v5626
        %v6379 = vpack.c.b16 %v5643, %v5627
        %v6380 = vpack.c.b16 %v5660, %v5644
        %v6381 = vpack.c.b16 %v5661, %v5645
        %v6382 = vpack.c.b16 %v5662, %v5646
        %v6383 = vpack.c.b16 %v5663, %v5647
        %v6384 = vpack.c.b16 %v5664, %v5648
        %v6385 = vpack.c.b16 %v5665, %v5649
        %v6386 = vpack.c.b16 %v5666, %v5650
        %v6387 = vpack.c.b16 %v5667, %v5651
        %v6388 = vpack.c.b16 %v5668, %v5652
        %v6389 = vpack.c.b16 %v5669, %v5653
        %v6390 = vpack.c.b16 %v5670, %v5654
        %v6391 = vpack.c.b16 %v5671, %v5655
        %v6392 = vpack.c.b16 %v5672, %v5656
        %v6393 = vpack.c.b16 %v5673, %v5657
        %v6394 = vpack.c.b16 %v5674, %v5658
        %v6395 = vpack.c.b16 %v5675, %v5659
        %v6396 = vpack.c.b16 %v5692, %v5676
        %v6397 = vpack.c.b16 %v5693, %v5677
        %v6398 = vpack.c.b16 %v5694, %v5678
        %v6399 = vpack.c.b16 %v5695, %v5679
        %v6400 = vpack.c.b16 %v5696, %v5680
        %v6401 = vpack.c.b16 %v5697, %v5681
        %v6402 = vpack.c.b16 %v5698, %v5682
        %v6403 = vpack.c.b16 %v5699, %v5683
        %v6404 = vpack.c.b16 %v5700, %v5684
        %v6405 = vpack.c.b16 %v5701, %v5685
        %v6406 = vpack.c.b16 %v5702, %v5686
        %v6407 = vpack.c.b16 %v5703, %v5687
        %v6408 = vpack.c.b16 %v5704, %v5688
        %v6409 = vpack.c.b16 %v5705, %v5689
        %v6410 = vpack.c.b16 %v5706, %v5690
        %v6411 = vpack.c.b16 %v5707, %v5691
        %v6412 = vpack.c.b16 %v5724, %v5708
        %v6413 = vpack.c.b16 %v5725, %v5709
        %v6414 = vpack.c.b16 %v5726, %v5710
        %v6415 = vpack.c.b16 %v5727, %v5711
        %v6416 = vpack.c.b16 %v5728, %v5712
        %v6417 = vpack.c.b16 %v5729, %v5713
        %v6418 = vpack.c.b16 %v5730, %v5714
        %v6419 = vpack.c.b16 %v5731, %v5715
        %v6420 = vpack.c.b16 %v5732, %v5716
        %v6421 = vpack.c.b16 %v5733, %v5717
        %v6422 = vpack.c.b16 %v5734, %v5718
        %v6423 = vpack.c.b16 %v5735, %v5719
        %v6424 = vpack.c.b16 %v5736, %v5720
        %v6425 = vpack.c.b16 %v5737, %v5721
        %v6426 = vpack.c.b16 %v5738, %v5722
        %v6427 = vpack.c.b16 %v5739, %v5723
        %v6428 = vpack.c.b16 %v5756, %v5740
        %v6429 = vpack.c.b16 %v5757, %v5741
        %v6430 = vpack.c.b16 %v5758, %v5742
        %v6431 = vpack.c.b16 %v5759, %v5743
        %v6432 = vpack.c.b16 %v5760, %v5744
        %v6433 = vpack.c.b16 %v5761, %v5745
        %v6434 = vpack.c.b16 %v5762, %v5746
        %v6435 = vpack.c.b16 %v5763, %v5747
        %v6436 = vpack.c.b16 %v5764, %v5748
        %v6437 = vpack.c.b16 %v5765, %v5749
        %v6438 = vpack.c.b16 %v5766, %v5750
        %v6439 = vpack.c.b16 %v5767, %v5751
        %v6440 = vpack.c.b16 %v5768, %v5752
        %v6441 = vpack.c.b16 %v5769, %v5753
        %v6442 = vpack.c.b16 %v5770, %v5754
        %v6443 = vpack.c.b16 %v5771, %v5755
        %v6444 = vpack.c.b16 %v5788, %v5772
        %v6445 = vpack.c.b16 %v5789, %v5773
        %v6446 = vpack.c.b16 %v5790, %v5774
        %v6447 = vpack.c.b16 %v5791, %v5775
        %v6448 = vpack.c.b16 %v5792, %v5776
        %v6449 = vpack.c.b16 %v5793, %v5777
        %v6450 = vpack.c.b16 %v5794, %v5778
        %v6451 = vpack.c.b16 %v5795, %v5779
        %v6452 = vpack.c.b16 %v5796, %v5780
        %v6453 = vpack.c.b16 %v5797, %v5781
        %v6454 = vpack.c.b16 %v5798, %v5782
        %v6455 = vpack.c.b16 %v5799, %v5783
        %v6456 = vpack.c.b16 %v5800, %v5784
        %v6457 = vpack.c.b16 %v5801, %v5785
        %v6458 = vpack.c.b16 %v5802, %v5786
        %v6459 = vpack.c.b16 %v5803, %v5787
        %v6460 = vpack.c.b16 %v5820, %v5804
        %v6461 = vpack.c.b16 %v5821, %v5805
        %v6462 = vpack.c.b16 %v5822, %v5806
        %v6463 = vpack.c.b16 %v5823, %v5807
        %v6464 = vpack.c.b16 %v5824, %v5808
        %v6465 = vpack.c.b16 %v5825, %v5809
        %v6466 = vpack.c.b16 %v5826, %v5810
        %v6467 = vpack.c.b16 %v5827, %v5811
        %v6468 = vpack.c.b16 %v5828, %v5812
        %v6469 = vpack.c.b16 %v5829, %v5813
        %v6470 = vpack.c.b16 %v5830, %v5814
        %v6471 = vpack.c.b16 %v5831, %v5815
        %v6472 = vpack.c.b16 %v5832, %v5816
        %v6473 = vpack.c.b16 %v5833, %v5817
        %v6474 = vpack.c.b16 %v5834, %v5818
        %v6475 = vpack.c.b16 %v5835, %v5819
        %v6476 = vpack.c.b16 %v5852, %v5836
        %v6477 = vpack.c.b16 %v5853, %v5837
        %v6478 = vpack.c.b16 %v5854, %v5838
        %v6479 = vpack.c.b16 %v5855, %v5839
        %v6480 = vpack.c.b16 %v5856, %v5840
        %v6481 = vpack.c.b16 %v5857, %v5841
        %v6482 = vpack.c.b16 %v5858, %v5842
        %v6483 = vpack.c.b16 %v5859, %v5843
        %v6484 = vpack.c.b16 %v5860, %v5844
        %v6485 = vpack.c.b16 %v5861, %v5845
        %v6486 = vpack.c.b16 %v5862, %v5846
        %v6487 = vpack.c.b16 %v5863, %v5847
        %v6488 = vpack.c.b16 %v5864, %v5848
        %v6489 = vpack.c.b16 %v5865, %v5849
        %v6490 = vpack.c.b16 %v5866, %v5850
        %v6491 = vpack.c.b16 %v5867, %v5851
        %v6492 = vpack.c.b16 %v5884, %v5868
        %v6493 = vpack.c.b16 %v5885, %v5869
        %v6494 = vpack.c.b16 %v5886, %v5870
        %v6495 = vpack.c.b16 %v5887, %v5871
        %v6496 = vpack.c.b16 %v5888, %v5872
        %v6497 = vpack.c.b16 %v5889, %v5873
        %v6498 = vpack.c.b16 %v5890, %v5874
        %v6499 = vpack.c.b16 %v5891, %v5875
        %v6500 = vpack.c.b16 %v5892, %v5876
        %v6501 = vpack.c.b16 %v5893, %v5877
        %v6502 = vpack.c.b16 %v5894, %v5878
        %v6503 = vpack.c.b16 %v5895, %v5879
        %v6504 = vpack.c.b16 %v5896, %v5880
        %v6505 = vpack.c.b16 %v5897, %v5881
        %v6506 = vpack.c.b16 %v5898, %v5882
        %v6507 = vpack.c.b16 %v5899, %v5883
        %v6508 = vpack.c.b16 %v5916, %v5900
        %v6509 = vpack.c.b16 %v5917, %v5901
        %v6510 = vpack.c.b16 %v5918, %v5902
        %v6511 = vpack.c.b16 %v5919, %v5903
        %v6512 = vpack.c.b16 %v5920, %v5904
        %v6513 = vpack.c.b16 %v5921, %v5905
        %v6514 = vpack.c.b16 %v5922, %v5906
        %v6515 = vpack.c.b16 %v5923, %v5907
        %v6516 = vpack.c.b16 %v5924, %v5908
        %v6517 = vpack.c.b16 %v5925, %v5909
        %v6518 = vpack.c.b16 %v5926, %v5910
        %v6519 = vpack.c.b16 %v5927, %v5911
        %v6520 = vpack.c.b16 %v5928, %v5912
        %v6521 = vpack.c.b16 %v5929, %v5913
        %v6522 = vpack.c.b16 %v5930, %v5914
        %v6523 = vpack.c.b16 %v5931, %v5915
        %v6524 = vpack.c.b16 %v5948, %v5932
        %v6525 = vpack.c.b16 %v5949, %v5933
        %v6526 = vpack.c.b16 %v5950, %v5934
        %v6527 = vpack.c.b16 %v5951, %v5935
        %v6528 = vpack.c.b16 %v5952, %v5936
        %v6529 = vpack.c.b16 %v5953, %v5937
        %v6530 = vpack.c.b16 %v5954, %v5938
        %v6531 = vpack.c.b16 %v5955, %v5939
        %v6532 = vpack.c.b16 %v5956, %v5940
        %v6533 = vpack.c.b16 %v5957, %v5941
        %v6534 = vpack.c.b16 %v5958, %v5942
        %v6535 = vpack.c.b16 %v5959, %v5943
        %v6536 = vpack.c.b16 %v5960, %v5944
        %v6537 = vpack.c.b16 %v5961, %v5945
        %v6538 = vpack.c.b16 %v5962, %v5946
        %v6539 = vpack.c.b16 %v5963, %v5947
        %v6540 = vpack.c.b16 %v5980, %v5964
        %v6541 = vpack.c.b16 %v5981, %v5965
        %v6542 = vpack.c.b16 %v5982, %v5966
        %v6543 = vpack.c.b16 %v5983, %v5967
        %v6544 = vpack.c.b16 %v5984, %v5968
        %v6545 = vpack.c.b16 %v5985, %v5969
        %v6546 = vpack.c.b16 %v5986, %v5970
        %v6547 = vpack.c.b16 %v5987, %v5971
        %v6548 = vpack.c.b16 %v5988, %v5972
        %v6549 = vpack.c.b16 %v5989, %v5973
        %v6550 = vpack.c.b16 %v5990, %v5974
        %v6551 = vpack.c.b16 %v5991, %v5975
        %v6552 = vpack.c.b16 %v5992, %v5976
        %v6553 = vpack.c.b16 %v5993, %v5977
        %v6554 = vpack.c.b16 %v5994, %v5978
        %v6555 = vpack.c.b16 %v5995, %v5979
        %v6556 = vpack.c.b16 %v6012, %v5996
        %v6557 = vpack.c.b16 %v6013, %v5997
        %v6558 = vpack.c.b16 %v6014, %v5998
        %v6559 = vpack.c.b16 %v6015, %v5999
        %v6560 = vpack.c.b16 %v6016, %v6000
        %v6561 = vpack.c.b16 %v6017, %v6001
        %v6562 = vpack.c.b16 %v6018, %v6002
        %v6563 = vpack.c.b16 %v6019, %v6003
        %v6564 = vpack.c.b16 %v6020, %v6004
        %v6565 = vpack.c.b16 %v6021, %v6005
        %v6566 = vpack.c.b16 %v6022, %v6006
        %v6567 = vpack.c.b16 %v6023, %v6007
        %v6568 = vpack.c.b16 %v6024, %v6008
        %v6569 = vpack.c.b16 %v6025, %v6009
        %v6570 = vpack.c.b16 %v6026, %v6010
        %v6571 = vpack.c.b16 %v6027, %v6011
        %v6572 = vpack.c.b16 %v6044, %v6028
        %v6573 = vpack.c.b16 %v6045, %v6029
        %v6574 = vpack.c.b16 %v6046, %v6030
        %v6575 = vpack.c.b16 %v6047, %v6031
        %v6576 = vpack.c.b16 %v6048, %v6032
        %v6577 = vpack.c.b16 %v6049, %v6033
        %v6578 = vpack.c.b16 %v6050, %v6034
        %v6579 = vpack.c.b16 %v6051, %v6035
        %v6580 = vpack.c.b16 %v6052, %v6036
        %v6581 = vpack.c.b16 %v6053, %v6037
        %v6582 = vpack.c.b16 %v6054, %v6038
        %v6583 = vpack.c.b16 %v6055, %v6039
        %v6584 = vpack.c.b16 %v6056, %v6040
        %v6585 = vpack.c.b16 %v6057, %v6041
        %v6586 = vpack.c.b16 %v6058, %v6042
        %v6587 = vpack.c.b16 %v6059, %v6043
        %v6588 = vpack.c.b16 %v6076, %v6060
        %v6589 = vpack.c.b16 %v6077, %v6061
        %v6590 = vpack.c.b16 %v6078, %v6062
        %v6591 = vpack.c.b16 %v6079, %v6063
        %v6592 = vpack.c.b16 %v6080, %v6064
        %v6593 = vpack.c.b16 %v6081, %v6065
        %v6594 = vpack.c.b16 %v6082, %v6066
        %v6595 = vpack.c.b16 %v6083, %v6067
        %v6596 = vpack.c.b16 %v6084, %v6068
        %v6597 = vpack.c.b16 %v6085, %v6069
        %v6598 = vpack.c.b16 %v6086, %v6070
        %v6599 = vpack.c.b16 %v6087, %v6071
        %v6600 = vpack.c.b16 %v6088, %v6072
        %v6601 = vpack.c.b16 %v6089, %v6073
        %v6602 = vpack.c.b16 %v6090, %v6074
        %v6603 = vpack.c.b16 %v6091, %v6075
        %7116 = vmatprep.subr.bf16.mxu0 %v6205
        %7117 = vmatpush1.bf16.msra.mxu0 %v6204
        %7118 = vmatprep.subr.bf16.mxu0 %v6189
        %7119 = vmatpush1.bf16.msra.mxu0 %v6188
        %7120 = vmatprep.subr.bf16.mxu0 %v6173
        %7121 = vmatpush1.bf16.msra.mxu0 %v6172
        %7122 = vmatprep.subr.bf16.mxu0 %v6157
        %7123 = vmatpush1.bf16.msra.mxu0 %v6156
        %7124 = vmatprep.subr.bf16.mxu0 %v6141
        %7125 = vmatpush1.bf16.msra.mxu0 %v6140
        %7126 = vmatprep.subr.bf16.mxu0 %v6125
        %7127 = vmatpush1.bf16.msra.mxu0 %v6124
        %7128 = vmatprep.subr.bf16.mxu0 %v6109
        %7129 = vmatpush1.bf16.msra.mxu0 %v6108
        %7130 = vmatprep.subr.bf16.mxu0 %v6093
        %7131 = vmatpush1.bf16.msra.mxu0 %v6092
        %7132 = vmatprep.subr.bf16.mxu0 %v6333
        %7133 = vmatpush2.bf16.msra.mxu0 %v6332
        %7134 = vmatprep.subr.bf16.mxu0 %v6317
        %7135 = vmatpush2.bf16.msra.mxu0 %v6316
        %7136 = vmatprep.subr.bf16.mxu0 %v6301
        %7137 = vmatpush2.bf16.msra.mxu0 %v6300
        %7138 = vmatprep.subr.bf16.mxu0 %v6285
        %7139 = vmatpush2.bf16.msra.mxu0 %v6284
        %7140 = vmatprep.subr.bf16.mxu0 %v6269
        %7141 = vmatpush2.bf16.msra.mxu0 %v6268
        %7142 = vmatprep.subr.bf16.mxu0 %v6253
        %7143 = vmatpush2.bf16.msra.mxu0 %v6252
        %7144 = vmatprep.subr.bf16.mxu0 %v6237
        %7145 = vmatpush2.bf16.msra.mxu0 %v6236
        %7146 = vmatprep.subr.bf16.mxu0 %v6221
        %7147 = vmatpush2.bf16.msra.mxu0 %v6220
        %7148 = vmatprep.mubr.bf16.mxu0 %v4041
        %7149 = vmatmul.mubr.bf16.gmra.mxu0 %v4040
        %v7150 = vpop.f32.mrf.mxu0
        %v7151 = vadd.f32 0.0, %v7150
        %v7152 = vpop.f32.mrf.mxu0
        %v7153 = vadd.f32 0.0, %v7152
        %v7154 = vpop.f32.mrf.mxu0
        %v7155 = vpop.f32.mrf.mxu0
        %7156 = vdwg.mxu0
        %7157 = vmatprep.subr.bf16.mxu0 %v6461
        %7158 = vmatpush1.bf16.msra.mxu0 %v6460
        %7159 = vmatprep.subr.bf16.mxu0 %v6445
        %7160 = vmatpush1.bf16.msra.mxu0 %v6444
        %7161 = vmatprep.subr.bf16.mxu0 %v6429
        %7162 = vmatpush1.bf16.msra.mxu0 %v6428
        %7163 = vmatprep.subr.bf16.mxu0 %v6413
        %7164 = vmatpush1.bf16.msra.mxu0 %v6412
        %7165 = vmatprep.subr.bf16.mxu0 %v6397
        %7166 = vmatpush1.bf16.msra.mxu0 %v6396
        %7167 = vmatprep.subr.bf16.mxu0 %v6381
        %7168 = vmatpush1.bf16.msra.mxu0 %v6380
        %7169 = vmatprep.subr.bf16.mxu0 %v6365
        %7170 = vmatpush1.bf16.msra.mxu0 %v6364
        %7171 = vmatprep.subr.bf16.mxu0 %v6349
        %7172 = vmatpush1.bf16.msra.mxu0 %v6348
        %7173 = vmatprep.subr.bf16.mxu0 %v6589
        %7174 = vmatpush2.bf16.msra.mxu0 %v6588
        %7175 = vmatprep.subr.bf16.mxu0 %v6573
        %7176 = vmatpush2.bf16.msra.mxu0 %v6572
        %7177 = vmatprep.subr.bf16.mxu0 %v6557
        %7178 = vmatpush2.bf16.msra.mxu0 %v6556
        %7179 = vmatprep.subr.bf16.mxu0 %v6541
        %7180 = vmatpush2.bf16.msra.mxu0 %v6540
        %7181 = vmatprep.subr.bf16.mxu0 %v6525
        %7182 = vmatpush2.bf16.msra.mxu0 %v6524
        %7183 = vmatprep.subr.bf16.mxu0 %v6509
        %7184 = vmatpush2.bf16.msra.mxu0 %v6508
        %7185 = vmatprep.subr.bf16.mxu0 %v6493
        %7186 = vmatpush2.bf16.msra.mxu0 %v6492
        %7187 = vmatprep.subr.bf16.mxu0 %v6477
        %7188 = vmatpush2.bf16.msra.mxu0 %v6476
        %7189 = vmatprep.mubr.bf16.mxu0 %v4043
        %7190 = vmatmul.mubr.bf16.gmra.mxu0 %v4042
        %v7191 = vpop.f32.mrf.mxu0
        %v7192 = vadd.f32 %v7151, %v7191
        %v7193 = vpop.f32.mrf.mxu0
        %v7194 = vadd.f32 %v7153, %v7193
        %v7195 = vpop.f32.mrf.mxu0
        %v7196 = vpop.f32.mrf.mxu0
        %7197 = vdwg.mxu0
        %7198 = vmatprep.subr.bf16.mxu0 %v6207
        %7199 = vmatpush1.bf16.msra.mxu0 %v6206
        %7200 = vmatprep.subr.bf16.mxu0 %v6191
        %7201 = vmatpush1.bf16.msra.mxu0 %v6190
        %7202 = vmatprep.subr.bf16.mxu0 %v6175
        %7203 = vmatpush1.bf16.msra.mxu0 %v6174
        %7204 = vmatprep.subr.bf16.mxu0 %v6159
        %7205 = vmatpush1.bf16.msra.mxu0 %v6158
        %7206 = vmatprep.subr.bf16.mxu0 %v6143
        %7207 = vmatpush1.bf16.msra.mxu0 %v6142
        %7208 = vmatprep.subr.bf16.mxu0 %v6127
        %7209 = vmatpush1.bf16.msra.mxu0 %v6126
        %7210 = vmatprep.subr.bf16.mxu0 %v6111
        %7211 = vmatpush1.bf16.msra.mxu0 %v6110
        %7212 = vmatprep.subr.bf16.mxu0 %v6095
        %7213 = vmatpush1.bf16.msra.mxu0 %v6094
        %7214 = vmatprep.subr.bf16.mxu0 %v6335
        %7215 = vmatpush2.bf16.msra.mxu0 %v6334
        %7216 = vmatprep.subr.bf16.mxu0 %v6319
        %7217 = vmatpush2.bf16.msra.mxu0 %v6318
        %7218 = vmatprep.subr.bf16.mxu0 %v6303
        %7219 = vmatpush2.bf16.msra.mxu0 %v6302
        %7220 = vmatprep.subr.bf16.mxu0 %v6287
        %7221 = vmatpush2.bf16.msra.mxu0 %v6286
        %7222 = vmatprep.subr.bf16.mxu0 %v6271
        %7223 = vmatpush2.bf16.msra.mxu0 %v6270
        %7224 = vmatprep.subr.bf16.mxu0 %v6255
        %7225 = vmatpush2.bf16.msra.mxu0 %v6254
        %7226 = vmatprep.subr.bf16.mxu0 %v6239
        %7227 = vmatpush2.bf16.msra.mxu0 %v6238
        %7228 = vmatprep.subr.bf16.mxu0 %v6223
        %7229 = vmatpush2.bf16.msra.mxu0 %v6222
        %7230 = vmatprep.mubr.bf16.mxu0 %v4041
        %7231 = vmatmul.mubr.bf16.gmra.mxu0 %v4040
        %v7232 = vpop.f32.mrf.mxu0
        %v7233 = vadd.f32 0.0, %v7232
        %v7234 = vpop.f32.mrf.mxu0
        %v7235 = vadd.f32 0.0, %v7234
        %v7236 = vpop.f32.mrf.mxu0
        %v7237 = vpop.f32.mrf.mxu0
        %7238 = vdwg.mxu0
        %7239 = vmatprep.subr.bf16.mxu0 %v6463
        %7240 = vmatpush1.bf16.msra.mxu0 %v6462
        %7241 = vmatprep.subr.bf16.mxu0 %v6447
        %7242 = vmatpush1.bf16.msra.mxu0 %v6446
        %7243 = vmatprep.subr.bf16.mxu0 %v6431
        %7244 = vmatpush1.bf16.msra.mxu0 %v6430
        %7245 = vmatprep.subr.bf16.mxu0 %v6415
        %7246 = vmatpush1.bf16.msra.mxu0 %v6414
        %7247 = vmatprep.subr.bf16.mxu0 %v6399
        %7248 = vmatpush1.bf16.msra.mxu0 %v6398
        %7249 = vmatprep.subr.bf16.mxu0 %v6383
        %7250 = vmatpush1.bf16.msra.mxu0 %v6382
        %7251 = vmatprep.subr.bf16.mxu0 %v6367
        %7252 = vmatpush1.bf16.msra.mxu0 %v6366
        %7253 = vmatprep.subr.bf16.mxu0 %v6351
        %7254 = vmatpush1.bf16.msra.mxu0 %v6350
        %7255 = vmatprep.subr.bf16.mxu0 %v6591
        %7256 = vmatpush2.bf16.msra.mxu0 %v6590
        %7257 = vmatprep.subr.bf16.mxu0 %v6575
        %7258 = vmatpush2.bf16.msra.mxu0 %v6574
        %7259 = vmatprep.subr.bf16.mxu0 %v6559
        %7260 = vmatpush2.bf16.msra.mxu0 %v6558
        %7261 = vmatprep.subr.bf16.mxu0 %v6543
        %7262 = vmatpush2.bf16.msra.mxu0 %v6542
        %7263 = vmatprep.subr.bf16.mxu0 %v6527
        %7264 = vmatpush2.bf16.msra.mxu0 %v6526
        %7265 = vmatprep.subr.bf16.mxu0 %v6511
        %7266 = vmatpush2.bf16.msra.mxu0 %v6510
        %7267 = vmatprep.subr.bf16.mxu0 %v6495
        %7268 = vmatpush2.bf16.msra.mxu0 %v6494
        %7269 = vmatprep.subr.bf16.mxu0 %v6479
        %7270 = vmatpush2.bf16.msra.mxu0 %v6478
        %7271 = vmatprep.mubr.bf16.mxu0 %v4043
        %7272 = vmatmul.mubr.bf16.gmra.mxu0 %v4042
        %v7273 = vpop.f32.mrf.mxu0
        %v7274 = vadd.f32 %v7233, %v7273
        %v7275 = vpop.f32.mrf.mxu0
        %v7276 = vadd.f32 %v7235, %v7275
        %v7277 = vpop.f32.mrf.mxu0
        %v7278 = vpop.f32.mrf.mxu0
        %7279 = vdwg.mxu0
        %7280 = vmatprep.subr.bf16.mxu0 %v6209
        %7281 = vmatpush1.bf16.msra.mxu0 %v6208
        %7282 = vmatprep.subr.bf16.mxu0 %v6193
        %7283 = vmatpush1.bf16.msra.mxu0 %v6192
        %7284 = vmatprep.subr.bf16.mxu0 %v6177
        %7285 = vmatpush1.bf16.msra.mxu0 %v6176
        %7286 = vmatprep.subr.bf16.mxu0 %v6161
        %7287 = vmatpush1.bf16.msra.mxu0 %v6160
        %7288 = vmatprep.subr.bf16.mxu0 %v6145
        %7289 = vmatpush1.bf16.msra.mxu0 %v6144
        %7290 = vmatprep.subr.bf16.mxu0 %v6129
        %7291 = vmatpush1.bf16.msra.mxu0 %v6128
        %7292 = vmatprep.subr.bf16.mxu0 %v6113
        %7293 = vmatpush1.bf16.msra.mxu0 %v6112
        %7294 = vmatprep.subr.bf16.mxu0 %v6097
        %7295 = vmatpush1.bf16.msra.mxu0 %v6096
        %7296 = vmatprep.subr.bf16.mxu0 %v6337
        %7297 = vmatpush2.bf16.msra.mxu0 %v6336
        %7298 = vmatprep.subr.bf16.mxu0 %v6321
        %7299 = vmatpush2.bf16.msra.mxu0 %v6320
        %7300 = vmatprep.subr.bf16.mxu0 %v6305
        %7301 = vmatpush2.bf16.msra.mxu0 %v6304
        %7302 = vmatprep.subr.bf16.mxu0 %v6289
        %7303 = vmatpush2.bf16.msra.mxu0 %v6288
        %7304 = vmatprep.subr.bf16.mxu0 %v6273
        %7305 = vmatpush2.bf16.msra.mxu0 %v6272
        %7306 = vmatprep.subr.bf16.mxu0 %v6257
        %7307 = vmatpush2.bf16.msra.mxu0 %v6256
        %7308 = vmatprep.subr.bf16.mxu0 %v6241
        %7309 = vmatpush2.bf16.msra.mxu0 %v6240
        %7310 = vmatprep.subr.bf16.mxu0 %v6225
        %7311 = vmatpush2.bf16.msra.mxu0 %v6224
        %7312 = vmatprep.mubr.bf16.mxu0 %v4041
        %7313 = vmatmul.mubr.bf16.gmra.mxu0 %v4040
        %v7314 = vpop.f32.mrf.mxu0
        %v7315 = vadd.f32 0.0, %v7314
        %v7316 = vpop.f32.mrf.mxu0
        %v7317 = vadd.f32 0.0, %v7316
        %v7318 = vpop.f32.mrf.mxu0
        %v7319 = vpop.f32.mrf.mxu0
        %7320 = vdwg.mxu0
        %7321 = vmatprep.subr.bf16.mxu0 %v6465
        %7322 = vmatpush1.bf16.msra.mxu0 %v6464
        %7323 = vmatprep.subr.bf16.mxu0 %v6449
        %7324 = vmatpush1.bf16.msra.mxu0 %v6448
        %7325 = vmatprep.subr.bf16.mxu0 %v6433
        %7326 = vmatpush1.bf16.msra.mxu0 %v6432
        %7327 = vmatprep.subr.bf16.mxu0 %v6417
        %7328 = vmatpush1.bf16.msra.mxu0 %v6416
        %7329 = vmatprep.subr.bf16.mxu0 %v6401
        %7330 = vmatpush1.bf16.msra.mxu0 %v6400
        %7331 = vmatprep.subr.bf16.mxu0 %v6385
        %7332 = vmatpush1.bf16.msra.mxu0 %v6384
        %7333 = vmatprep.subr.bf16.mxu0 %v6369
        %7334 = vmatpush1.bf16.msra.mxu0 %v6368
        %7335 = vmatprep.subr.bf16.mxu0 %v6353
        %7336 = vmatpush1.bf16.msra.mxu0 %v6352
        %7337 = vmatprep.subr.bf16.mxu0 %v6593
        %7338 = vmatpush2.bf16.msra.mxu0 %v6592
        %7339 = vmatprep.subr.bf16.mxu0 %v6577
        %7340 = vmatpush2.bf16.msra.mxu0 %v6576
        %7341 = vmatprep.subr.bf16.mxu0 %v6561
        %7342 = vmatpush2.bf16.msra.mxu0 %v6560
        %7343 = vmatprep.subr.bf16.mxu0 %v6545
        %7344 = vmatpush2.bf16.msra.mxu0 %v6544
        %7345 = vmatprep.subr.bf16.mxu0 %v6529
        %7346 = vmatpush2.bf16.msra.mxu0 %v6528
        %7347 = vmatprep.subr.bf16.mxu0 %v6513
        %7348 = vmatpush2.bf16.msra.mxu0 %v6512
        %7349 = vmatprep.subr.bf16.mxu0 %v6497
        %7350 = vmatpush2.bf16.msra.mxu0 %v6496
        %7351 = vmatprep.subr.bf16.mxu0 %v6481
        %7352 = vmatpush2.bf16.msra.mxu0 %v6480
        %7353 = vmatprep.mubr.bf16.mxu0 %v4043
        %7354 = vmatmul.mubr.bf16.gmra.mxu0 %v4042
        %v7355 = vpop.f32.mrf.mxu0
        %v7356 = vadd.f32 %v7315, %v7355
        %v7357 = vpop.f32.mrf.mxu0
        %v7358 = vadd.f32 %v7317, %v7357
        %v7359 = vpop.f32.mrf.mxu0
        %v7360 = vpop.f32.mrf.mxu0
        %7361 = vdwg.mxu0
        %7362 = vmatprep.subr.bf16.mxu0 %v6211
        %7363 = vmatpush1.bf16.msra.mxu0 %v6210
        %7364 = vmatprep.subr.bf16.mxu0 %v6195
        %7365 = vmatpush1.bf16.msra.mxu0 %v6194
        %7366 = vmatprep.subr.bf16.mxu0 %v6179
        %7367 = vmatpush1.bf16.msra.mxu0 %v6178
        %7368 = vmatprep.subr.bf16.mxu0 %v6163
        %7369 = vmatpush1.bf16.msra.mxu0 %v6162
        %7370 = vmatprep.subr.bf16.mxu0 %v6147
        %7371 = vmatpush1.bf16.msra.mxu0 %v6146
        %7372 = vmatprep.subr.bf16.mxu0 %v6131
        %7373 = vmatpush1.bf16.msra.mxu0 %v6130
        %7374 = vmatprep.subr.bf16.mxu0 %v6115
        %7375 = vmatpush1.bf16.msra.mxu0 %v6114
        %7376 = vmatprep.subr.bf16.mxu0 %v6099
        %7377 = vmatpush1.bf16.msra.mxu0 %v6098
        %7378 = vmatprep.subr.bf16.mxu0 %v6339
        %7379 = vmatpush2.bf16.msra.mxu0 %v6338
        %7380 = vmatprep.subr.bf16.mxu0 %v6323
        %7381 = vmatpush2.bf16.msra.mxu0 %v6322
        %7382 = vmatprep.subr.bf16.mxu0 %v6307
        %7383 = vmatpush2.bf16.msra.mxu0 %v6306
        %7384 = vmatprep.subr.bf16.mxu0 %v6291
        %7385 = vmatpush2.bf16.msra.mxu0 %v6290
        %7386 = vmatprep.subr.bf16.mxu0 %v6275
        %7387 = vmatpush2.bf16.msra.mxu0 %v6274
        %7388 = vmatprep.subr.bf16.mxu0 %v6259
        %7389 = vmatpush2.bf16.msra.mxu0 %v6258
        %7390 = vmatprep.subr.bf16.mxu0 %v6243
        %7391 = vmatpush2.bf16.msra.mxu0 %v6242
        %7392 = vmatprep.subr.bf16.mxu0 %v6227
        %7393 = vmatpush2.bf16.msra.mxu0 %v6226
        %7394 = vmatprep.mubr.bf16.mxu0 %v4041
        %7395 = vmatmul.mubr.bf16.gmra.mxu0 %v4040
        %v7396 = vpop.f32.mrf.mxu0
        %v7397 = vadd.f32 0.0, %v7396
        %v7398 = vpop.f32.mrf.mxu0
        %v7399 = vadd.f32 0.0, %v7398
        %v7400 = vpop.f32.mrf.mxu0
        %v7401 = vpop.f32.mrf.mxu0
        %7402 = vdwg.mxu0
        %7403 = vmatprep.subr.bf16.mxu0 %v6467
        %7404 = vmatpush1.bf16.msra.mxu0 %v6466
        %7405 = vmatprep.subr.bf16.mxu0 %v6451
        %7406 = vmatpush1.bf16.msra.mxu0 %v6450
        %7407 = vmatprep.subr.bf16.mxu0 %v6435
        %7408 = vmatpush1.bf16.msra.mxu0 %v6434
        %7409 = vmatprep.subr.bf16.mxu0 %v6419
        %7410 = vmatpush1.bf16.msra.mxu0 %v6418
        %7411 = vmatprep.subr.bf16.mxu0 %v6403
        %7412 = vmatpush1.bf16.msra.mxu0 %v6402
        %7413 = vmatprep.subr.bf16.mxu0 %v6387
        %7414 = vmatpush1.bf16.msra.mxu0 %v6386
        %7415 = vmatprep.subr.bf16.mxu0 %v6371
        %7416 = vmatpush1.bf16.msra.mxu0 %v6370
        %7417 = vmatprep.subr.bf16.mxu0 %v6355
        %7418 = vmatpush1.bf16.msra.mxu0 %v6354
        %7419 = vmatprep.subr.bf16.mxu0 %v6595
        %7420 = vmatpush2.bf16.msra.mxu0 %v6594
        %7421 = vmatprep.subr.bf16.mxu0 %v6579
        %7422 = vmatpush2.bf16.msra.mxu0 %v6578
        %7423 = vmatprep.subr.bf16.mxu0 %v6563
        %7424 = vmatpush2.bf16.msra.mxu0 %v6562
        %7425 = vmatprep.subr.bf16.mxu0 %v6547
        %7426 = vmatpush2.bf16.msra.mxu0 %v6546
        %7427 = vmatprep.subr.bf16.mxu0 %v6531
        %7428 = vmatpush2.bf16.msra.mxu0 %v6530
        %7429 = vmatprep.subr.bf16.mxu0 %v6515
        %7430 = vmatpush2.bf16.msra.mxu0 %v6514
        %7431 = vmatprep.subr.bf16.mxu0 %v6499
        %7432 = vmatpush2.bf16.msra.mxu0 %v6498
        %7433 = vmatprep.subr.bf16.mxu0 %v6483
        %7434 = vmatpush2.bf16.msra.mxu0 %v6482
        %7435 = vmatprep.mubr.bf16.mxu0 %v4043
        %7436 = vmatmul.mubr.bf16.gmra.mxu0 %v4042
        %v7437 = vpop.f32.mrf.mxu0
        %v7438 = vadd.f32 %v7397, %v7437
        %v7439 = vpop.f32.mrf.mxu0
        %v7440 = vadd.f32 %v7399, %v7439
        %v7441 = vpop.f32.mrf.mxu0
        %v7442 = vpop.f32.mrf.mxu0
        %7443 = vdwg.mxu0
        %7444 = vmatprep.subr.bf16.mxu0 %v6213
        %7445 = vmatpush1.bf16.msra.mxu0 %v6212
        %7446 = vmatprep.subr.bf16.mxu0 %v6197
        %7447 = vmatpush1.bf16.msra.mxu0 %v6196
        %7448 = vmatprep.subr.bf16.mxu0 %v6181
        %7449 = vmatpush1.bf16.msra.mxu0 %v6180
        %7450 = vmatprep.subr.bf16.mxu0 %v6165
        %7451 = vmatpush1.bf16.msra.mxu0 %v6164
        %7452 = vmatprep.subr.bf16.mxu0 %v6149
        %7453 = vmatpush1.bf16.msra.mxu0 %v6148
        %7454 = vmatprep.subr.bf16.mxu0 %v6133
        %7455 = vmatpush1.bf16.msra.mxu0 %v6132
        %7456 = vmatprep.subr.bf16.mxu0 %v6117
        %7457 = vmatpush1.bf16.msra.mxu0 %v6116
        %7458 = vmatprep.subr.bf16.mxu0 %v6101
        %7459 = vmatpush1.bf16.msra.mxu0 %v6100
        %7460 = vmatprep.subr.bf16.mxu0 %v6341
        %7461 = vmatpush2.bf16.msra.mxu0 %v6340
        %7462 = vmatprep.subr.bf16.mxu0 %v6325
        %7463 = vmatpush2.bf16.msra.mxu0 %v6324
        %7464 = vmatprep.subr.bf16.mxu0 %v6309
        %7465 = vmatpush2.bf16.msra.mxu0 %v6308
        %7466 = vmatprep.subr.bf16.mxu0 %v6293
        %7467 = vmatpush2.bf16.msra.mxu0 %v6292
        %7468 = vmatprep.subr.bf16.mxu0 %v6277
        %7469 = vmatpush2.bf16.msra.mxu0 %v6276
        %7470 = vmatprep.subr.bf16.mxu0 %v6261
        %7471 = vmatpush2.bf16.msra.mxu0 %v6260
        %7472 = vmatprep.subr.bf16.mxu0 %v6245
        %7473 = vmatpush2.bf16.msra.mxu0 %v6244
        %7474 = vmatprep.subr.bf16.mxu0 %v6229
        %7475 = vmatpush2.bf16.msra.mxu0 %v6228
        %7476 = vmatprep.mubr.bf16.mxu0 %v4041
        %7477 = vmatmul.mubr.bf16.gmra.mxu0 %v4040
        %v7478 = vpop.f32.mrf.mxu0
        %v7479 = vadd.f32 0.0, %v7478
        %v7480 = vpop.f32.mrf.mxu0
        %v7481 = vadd.f32 0.0, %v7480
        %v7482 = vpop.f32.mrf.mxu0
        %v7483 = vpop.f32.mrf.mxu0
        %7484 = vdwg.mxu0
        %7485 = vmatprep.subr.bf16.mxu0 %v6469
        %7486 = vmatpush1.bf16.msra.mxu0 %v6468
        %7487 = vmatprep.subr.bf16.mxu0 %v6453
        %7488 = vmatpush1.bf16.msra.mxu0 %v6452
        %7489 = vmatprep.subr.bf16.mxu0 %v6437
        %7490 = vmatpush1.bf16.msra.mxu0 %v6436
        %7491 = vmatprep.subr.bf16.mxu0 %v6421
        %7492 = vmatpush1.bf16.msra.mxu0 %v6420
        %7493 = vmatprep.subr.bf16.mxu0 %v6405
        %7494 = vmatpush1.bf16.msra.mxu0 %v6404
        %7495 = vmatprep.subr.bf16.mxu0 %v6389
        %7496 = vmatpush1.bf16.msra.mxu0 %v6388
        %7497 = vmatprep.subr.bf16.mxu0 %v6373
        %7498 = vmatpush1.bf16.msra.mxu0 %v6372
        %7499 = vmatprep.subr.bf16.mxu0 %v6357
        %7500 = vmatpush1.bf16.msra.mxu0 %v6356
        %7501 = vmatprep.subr.bf16.mxu0 %v6597
        %7502 = vmatpush2.bf16.msra.mxu0 %v6596
        %7503 = vmatprep.subr.bf16.mxu0 %v6581
        %7504 = vmatpush2.bf16.msra.mxu0 %v6580
        %7505 = vmatprep.subr.bf16.mxu0 %v6565
        %7506 = vmatpush2.bf16.msra.mxu0 %v6564
        %7507 = vmatprep.subr.bf16.mxu0 %v6549
        %7508 = vmatpush2.bf16.msra.mxu0 %v6548
        %7509 = vmatprep.subr.bf16.mxu0 %v6533
        %7510 = vmatpush2.bf16.msra.mxu0 %v6532
        %7511 = vmatprep.subr.bf16.mxu0 %v6517
        %7512 = vmatpush2.bf16.msra.mxu0 %v6516
        %7513 = vmatprep.subr.bf16.mxu0 %v6501
        %7514 = vmatpush2.bf16.msra.mxu0 %v6500
        %7515 = vmatprep.subr.bf16.mxu0 %v6485
        %7516 = vmatpush2.bf16.msra.mxu0 %v6484
        %7517 = vmatprep.mubr.bf16.mxu0 %v4043
        %7518 = vmatmul.mubr.bf16.gmra.mxu0 %v4042
        %v7519 = vpop.f32.mrf.mxu0
        %v7520 = vadd.f32 %v7479, %v7519
        %v7521 = vpop.f32.mrf.mxu0
        %v7522 = vadd.f32 %v7481, %v7521
        %v7523 = vpop.f32.mrf.mxu0
        %v7524 = vpop.f32.mrf.mxu0
        %7525 = vdwg.mxu0
        %7526 = vmatprep.subr.bf16.mxu0 %v6215
        %7527 = vmatpush1.bf16.msra.mxu0 %v6214
        %7528 = vmatprep.subr.bf16.mxu0 %v6199
        %7529 = vmatpush1.bf16.msra.mxu0 %v6198
        %7530 = vmatprep.subr.bf16.mxu0 %v6183
        %7531 = vmatpush1.bf16.msra.mxu0 %v6182
        %7532 = vmatprep.subr.bf16.mxu0 %v6167
        %7533 = vmatpush1.bf16.msra.mxu0 %v6166
        %7534 = vmatprep.subr.bf16.mxu0 %v6151
        %7535 = vmatpush1.bf16.msra.mxu0 %v6150
        %7536 = vmatprep.subr.bf16.mxu0 %v6135
        %7537 = vmatpush1.bf16.msra.mxu0 %v6134
        %7538 = vmatprep.subr.bf16.mxu0 %v6119
        %7539 = vmatpush1.bf16.msra.mxu0 %v6118
        %7540 = vmatprep.subr.bf16.mxu0 %v6103
        %7541 = vmatpush1.bf16.msra.mxu0 %v6102
        %7542 = vmatprep.subr.bf16.mxu0 %v6343
        %7543 = vmatpush2.bf16.msra.mxu0 %v6342
        %7544 = vmatprep.subr.bf16.mxu0 %v6327
        %7545 = vmatpush2.bf16.msra.mxu0 %v6326
        %7546 = vmatprep.subr.bf16.mxu0 %v6311
        %7547 = vmatpush2.bf16.msra.mxu0 %v6310
        %7548 = vmatprep.subr.bf16.mxu0 %v6295
        %7549 = vmatpush2.bf16.msra.mxu0 %v6294
        %7550 = vmatprep.subr.bf16.mxu0 %v6279
        %7551 = vmatpush2.bf16.msra.mxu0 %v6278
        %7552 = vmatprep.subr.bf16.mxu0 %v6263
        %7553 = vmatpush2.bf16.msra.mxu0 %v6262
        %7554 = vmatprep.subr.bf16.mxu0 %v6247
        %7555 = vmatpush2.bf16.msra.mxu0 %v6246
        %7556 = vmatprep.subr.bf16.mxu0 %v6231
        %7557 = vmatpush2.bf16.msra.mxu0 %v6230
        %7558 = vmatprep.mubr.bf16.mxu0 %v4041
        %7559 = vmatmul.mubr.bf16.gmra.mxu0 %v4040
        %v7560 = vpop.f32.mrf.mxu0
        %v7561 = vadd.f32 0.0, %v7560
        %v7562 = vpop.f32.mrf.mxu0
        %v7563 = vadd.f32 0.0, %v7562
        %v7564 = vpop.f32.mrf.mxu0
        %v7565 = vpop.f32.mrf.mxu0
        %7566 = vdwg.mxu0
        %7567 = vmatprep.subr.bf16.mxu0 %v6471
        %7568 = vmatpush1.bf16.msra.mxu0 %v6470
        %7569 = vmatprep.subr.bf16.mxu0 %v6455
        %7570 = vmatpush1.bf16.msra.mxu0 %v6454
        %7571 = vmatprep.subr.bf16.mxu0 %v6439
        %7572 = vmatpush1.bf16.msra.mxu0 %v6438
        %7573 = vmatprep.subr.bf16.mxu0 %v6423
        %7574 = vmatpush1.bf16.msra.mxu0 %v6422
        %7575 = vmatprep.subr.bf16.mxu0 %v6407
        %7576 = vmatpush1.bf16.msra.mxu0 %v6406
        %7577 = vmatprep.subr.bf16.mxu0 %v6391
        %7578 = vmatpush1.bf16.msra.mxu0 %v6390
        %7579 = vmatprep.subr.bf16.mxu0 %v6375
        %7580 = vmatpush1.bf16.msra.mxu0 %v6374
        %7581 = vmatprep.subr.bf16.mxu0 %v6359
        %7582 = vmatpush1.bf16.msra.mxu0 %v6358
        %7583 = vmatprep.subr.bf16.mxu0 %v6599
        %7584 = vmatpush2.bf16.msra.mxu0 %v6598
        %7585 = vmatprep.subr.bf16.mxu0 %v6583
        %7586 = vmatpush2.bf16.msra.mxu0 %v6582
        %7587 = vmatprep.subr.bf16.mxu0 %v6567
        %7588 = vmatpush2.bf16.msra.mxu0 %v6566
        %7589 = vmatprep.subr.bf16.mxu0 %v6551
        %7590 = vmatpush2.bf16.msra.mxu0 %v6550
        %7591 = vmatprep.subr.bf16.mxu0 %v6535
        %7592 = vmatpush2.bf16.msra.mxu0 %v6534
        %7593 = vmatprep.subr.bf16.mxu0 %v6519
        %7594 = vmatpush2.bf16.msra.mxu0 %v6518
        %7595 = vmatprep.subr.bf16.mxu0 %v6503
        %7596 = vmatpush2.bf16.msra.mxu0 %v6502
        %7597 = vmatprep.subr.bf16.mxu0 %v6487
        %7598 = vmatpush2.bf16.msra.mxu0 %v6486
        %7599 = vmatprep.mubr.bf16.mxu0 %v4043
        %7600 = vmatmul.mubr.bf16.gmra.mxu0 %v4042
        %v7601 = vpop.f32.mrf.mxu0
        %v7602 = vadd.f32 %v7561, %v7601
        %v7603 = vpop.f32.mrf.mxu0
        %v7604 = vadd.f32 %v7563, %v7603
        %v7605 = vpop.f32.mrf.mxu0
        %v7606 = vpop.f32.mrf.mxu0
        %7607 = vdwg.mxu0
        %7608 = vmatprep.subr.bf16.mxu0 %v6217
        %7609 = vmatpush1.bf16.msra.mxu0 %v6216
        %7610 = vmatprep.subr.bf16.mxu0 %v6201
        %7611 = vmatpush1.bf16.msra.mxu0 %v6200
        %7612 = vmatprep.subr.bf16.mxu0 %v6185
        %7613 = vmatpush1.bf16.msra.mxu0 %v6184
        %7614 = vmatprep.subr.bf16.mxu0 %v6169
        %7615 = vmatpush1.bf16.msra.mxu0 %v6168
        %7616 = vmatprep.subr.bf16.mxu0 %v6153
        %7617 = vmatpush1.bf16.msra.mxu0 %v6152
        %7618 = vmatprep.subr.bf16.mxu0 %v6137
        %7619 = vmatpush1.bf16.msra.mxu0 %v6136
        %7620 = vmatprep.subr.bf16.mxu0 %v6121
        %7621 = vmatpush1.bf16.msra.mxu0 %v6120
        %7622 = vmatprep.subr.bf16.mxu0 %v6105
        %7623 = vmatpush1.bf16.msra.mxu0 %v6104
        %7624 = vmatprep.subr.bf16.mxu0 %v6345
        %7625 = vmatpush2.bf16.msra.mxu0 %v6344
        %7626 = vmatprep.subr.bf16.mxu0 %v6329
        %7627 = vmatpush2.bf16.msra.mxu0 %v6328
        %7628 = vmatprep.subr.bf16.mxu0 %v6313
        %7629 = vmatpush2.bf16.msra.mxu0 %v6312
        %7630 = vmatprep.subr.bf16.mxu0 %v6297
        %7631 = vmatpush2.bf16.msra.mxu0 %v6296
        %7632 = vmatprep.subr.bf16.mxu0 %v6281
        %7633 = vmatpush2.bf16.msra.mxu0 %v6280
        %7634 = vmatprep.subr.bf16.mxu0 %v6265
        %7635 = vmatpush2.bf16.msra.mxu0 %v6264
        %7636 = vmatprep.subr.bf16.mxu0 %v6249
        %7637 = vmatpush2.bf16.msra.mxu0 %v6248
        %7638 = vmatprep.subr.bf16.mxu0 %v6233
        %7639 = vmatpush2.bf16.msra.mxu0 %v6232
        %7640 = vmatprep.mubr.bf16.mxu0 %v4041
        %7641 = vmatmul.mubr.bf16.gmra.mxu0 %v4040
        %v7642 = vpop.f32.mrf.mxu0
        %v7643 = vadd.f32 0.0, %v7642
        %v7644 = vpop.f32.mrf.mxu0
        %v7645 = vadd.f32 0.0, %v7644
        %v7646 = vpop.f32.mrf.mxu0
        %v7647 = vpop.f32.mrf.mxu0
        %7648 = vdwg.mxu0
        %7649 = vmatprep.subr.bf16.mxu0 %v6473
        %7650 = vmatpush1.bf16.msra.mxu0 %v6472
        %7651 = vmatprep.subr.bf16.mxu0 %v6457
        %7652 = vmatpush1.bf16.msra.mxu0 %v6456
        %7653 = vmatprep.subr.bf16.mxu0 %v6441
        %7654 = vmatpush1.bf16.msra.mxu0 %v6440
        %7655 = vmatprep.subr.bf16.mxu0 %v6425
        %7656 = vmatpush1.bf16.msra.mxu0 %v6424
        %7657 = vmatprep.subr.bf16.mxu0 %v6409
        %7658 = vmatpush1.bf16.msra.mxu0 %v6408
        %7659 = vmatprep.subr.bf16.mxu0 %v6393
        %7660 = vmatpush1.bf16.msra.mxu0 %v6392
        %7661 = vmatprep.subr.bf16.mxu0 %v6377
        %7662 = vmatpush1.bf16.msra.mxu0 %v6376
        %7663 = vmatprep.subr.bf16.mxu0 %v6361
        %7664 = vmatpush1.bf16.msra.mxu0 %v6360
        %7665 = vmatprep.subr.bf16.mxu0 %v6601
        %7666 = vmatpush2.bf16.msra.mxu0 %v6600
        %7667 = vmatprep.subr.bf16.mxu0 %v6585
        %7668 = vmatpush2.bf16.msra.mxu0 %v6584
        %7669 = vmatprep.subr.bf16.mxu0 %v6569
        %7670 = vmatpush2.bf16.msra.mxu0 %v6568
        %7671 = vmatprep.subr.bf16.mxu0 %v6553
        %7672 = vmatpush2.bf16.msra.mxu0 %v6552
        %7673 = vmatprep.subr.bf16.mxu0 %v6537
        %7674 = vmatpush2.bf16.msra.mxu0 %v6536
        %7675 = vmatprep.subr.bf16.mxu0 %v6521
        %7676 = vmatpush2.bf16.msra.mxu0 %v6520
        %7677 = vmatprep.subr.bf16.mxu0 %v6505
        %7678 = vmatpush2.bf16.msra.mxu0 %v6504
        %7679 = vmatprep.subr.bf16.mxu0 %v6489
        %7680 = vmatpush2.bf16.msra.mxu0 %v6488
        %7681 = vmatprep.mubr.bf16.mxu0 %v4043
        %7682 = vmatmul.mubr.bf16.gmra.mxu0 %v4042
        %v7683 = vpop.f32.mrf.mxu0
        %v7684 = vadd.f32 %v7643, %v7683
        %v7685 = vpop.f32.mrf.mxu0
        %v7686 = vadd.f32 %v7645, %v7685
        %v7687 = vpop.f32.mrf.mxu0
        %v7688 = vpop.f32.mrf.mxu0
        %7689 = vdwg.mxu0
        %7690 = vmatprep.subr.bf16.mxu0 %v6219
        %7691 = vmatpush1.bf16.msra.mxu0 %v6218
        %7692 = vmatprep.subr.bf16.mxu0 %v6203
        %7693 = vmatpush1.bf16.msra.mxu0 %v6202
        %7694 = vmatprep.subr.bf16.mxu0 %v6187
        %7695 = vmatpush1.bf16.msra.mxu0 %v6186
        %7696 = vmatprep.subr.bf16.mxu0 %v6171
        %7697 = vmatpush1.bf16.msra.mxu0 %v6170
        %7698 = vmatprep.subr.bf16.mxu0 %v6155
        %7699 = vmatpush1.bf16.msra.mxu0 %v6154
        %7700 = vmatprep.subr.bf16.mxu0 %v6139
        %7701 = vmatpush1.bf16.msra.mxu0 %v6138
        %7702 = vmatprep.subr.bf16.mxu0 %v6123
        %7703 = vmatpush1.bf16.msra.mxu0 %v6122
        %7704 = vmatprep.subr.bf16.mxu0 %v6107
        %7705 = vmatpush1.bf16.msra.mxu0 %v6106
        %7706 = vmatprep.subr.bf16.mxu0 %v6347
        %7707 = vmatpush2.bf16.msra.mxu0 %v6346
        %7708 = vmatprep.subr.bf16.mxu0 %v6331
        %7709 = vmatpush2.bf16.msra.mxu0 %v6330
        %7710 = vmatprep.subr.bf16.mxu0 %v6315
        %7711 = vmatpush2.bf16.msra.mxu0 %v6314
        %7712 = vmatprep.subr.bf16.mxu0 %v6299
        %7713 = vmatpush2.bf16.msra.mxu0 %v6298
        %7714 = vmatprep.subr.bf16.mxu0 %v6283
        %7715 = vmatpush2.bf16.msra.mxu0 %v6282
        %7716 = vmatprep.subr.bf16.mxu0 %v6267
        %7717 = vmatpush2.bf16.msra.mxu0 %v6266
        %7718 = vmatprep.subr.bf16.mxu0 %v6251
        %7719 = vmatpush2.bf16.msra.mxu0 %v6250
        %7720 = vmatprep.subr.bf16.mxu0 %v6235
        %7721 = vmatpush2.bf16.msra.mxu0 %v6234
        %7722 = vmatprep.mubr.bf16.mxu0 %v4041
        %7723 = vmatmul.mubr.bf16.gmra.mxu0 %v4040
        %v7724 = vpop.f32.mrf.mxu0
        %v7725 = vadd.f32 0.0, %v7724
        %v7726 = vpop.f32.mrf.mxu0
        %v7727 = vadd.f32 0.0, %v7726
        %v7728 = vpop.f32.mrf.mxu0
        %v7729 = vpop.f32.mrf.mxu0
        %7730 = vdwg.mxu0
        %7731 = vmatprep.subr.bf16.mxu0 %v6475
        %7732 = vmatpush1.bf16.msra.mxu0 %v6474
        %7733 = vmatprep.subr.bf16.mxu0 %v6459
        %7734 = vmatpush1.bf16.msra.mxu0 %v6458
        %7735 = vmatprep.subr.bf16.mxu0 %v6443
        %7736 = vmatpush1.bf16.msra.mxu0 %v6442
        %7737 = vmatprep.subr.bf16.mxu0 %v6427
        %7738 = vmatpush1.bf16.msra.mxu0 %v6426
        %7739 = vmatprep.subr.bf16.mxu0 %v6411
        %7740 = vmatpush1.bf16.msra.mxu0 %v6410
        %7741 = vmatprep.subr.bf16.mxu0 %v6395
        %7742 = vmatpush1.bf16.msra.mxu0 %v6394
        %7743 = vmatprep.subr.bf16.mxu0 %v6379
        %7744 = vmatpush1.bf16.msra.mxu0 %v6378
        %7745 = vmatprep.subr.bf16.mxu0 %v6363
        %7746 = vmatpush1.bf16.msra.mxu0 %v6362
        %7747 = vmatprep.subr.bf16.mxu0 %v6603
        %7748 = vmatpush2.bf16.msra.mxu0 %v6602
        %7749 = vmatprep.subr.bf16.mxu0 %v6587
        %7750 = vmatpush2.bf16.msra.mxu0 %v6586
        %7751 = vmatprep.subr.bf16.mxu0 %v6571
        %7752 = vmatpush2.bf16.msra.mxu0 %v6570
        %7753 = vmatprep.subr.bf16.mxu0 %v6555
        %7754 = vmatpush2.bf16.msra.mxu0 %v6554
        %7755 = vmatprep.subr.bf16.mxu0 %v6539
        %7756 = vmatpush2.bf16.msra.mxu0 %v6538
        %7757 = vmatprep.subr.bf16.mxu0 %v6523
        %7758 = vmatpush2.bf16.msra.mxu0 %v6522
        %7759 = vmatprep.subr.bf16.mxu0 %v6507
        %7760 = vmatpush2.bf16.msra.mxu0 %v6506
        %7761 = vmatprep.subr.bf16.mxu0 %v6491
        %7762 = vmatpush2.bf16.msra.mxu0 %v6490
        %7763 = vmatprep.mubr.bf16.mxu0 %v4043
        %7764 = vmatmul.mubr.bf16.gmra.mxu0 %v4042
        %v7765 = vpop.f32.mrf.mxu0
        %v7766 = vadd.f32 %v7725, %v7765
        %v7767 = vpop.f32.mrf.mxu0
        %v7768 = vadd.f32 %v7727, %v7767
        %v7769 = vpop.f32.mrf.mxu0
        %v7770 = vpop.f32.mrf.mxu0
        %7771 = vdwg.mxu0
        %v7772 = vsub.f32 0.0, %v7192
        %v7773 = vsub.f32 0.0, %v7194
        %v7774 = vsub.f32 0.0, %v7274
        %v7775 = vsub.f32 0.0, %v7276
        %v7776 = vsub.f32 0.0, %v7356
        %v7777 = vsub.f32 0.0, %v7358
        %v7778 = vsub.f32 0.0, %v7438
        %v7779 = vsub.f32 0.0, %v7440
        %v7780 = vmul.f32 %v7772, 1.442695
        %v7781 = vpow.pop %v7780
        %v7782 = vmul.f32 %v7773, 1.442695
        %v7783 = vpow.pop %v7782
        %v7784 = vmul.f32 %v7774, 1.442695
        %v7785 = vpow.pop %v7784
        %v7786 = vmul.f32 %v7775, 1.442695
        %v7787 = vpow.pop %v7786
        %v7788 = vmul.f32 %v7776, 1.442695
        %v7789 = vpow.pop %v7788
        %v7790 = vmul.f32 %v7777, 1.442695
        %v7791 = vpow.pop %v7790
        %v7792 = vmul.f32 %v7778, 1.442695
        %v7793 = vpow.pop %v7792
        %v7794 = vmul.f32 %v7779, 1.442695
        %v7795 = vpow.pop %v7794
        %v7796 = vadd.f32 %v7781, 1.0
        %v7797 = vadd.f32 %v7783, 1.0
        %v7798 = vadd.f32 %v7785, 1.0
        %v7799 = vadd.f32 %v7787, 1.0
        %v7800 = vadd.f32 %v7789, 1.0
        %v7801 = vadd.f32 %v7791, 1.0
        %v7802 = vadd.f32 %v7793, 1.0
        %v7803 = vadd.f32 %v7795, 1.0
        %v7804 = vrcp.pop %v7796
        %v7805 = vmul.f32 %v7192, %v7804
        %v7806 = vrcp.pop %v7797
        %v7807 = vmul.f32 %v7194, %v7806
        %v7808 = vrcp.pop %v7798
        %v7809 = vmul.f32 %v7274, %v7808
        %v7810 = vrcp.pop %v7799
        %v7811 = vmul.f32 %v7276, %v7810
        %v7812 = vrcp.pop %v7800
        %v7813 = vmul.f32 %v7356, %v7812
        %v7814 = vrcp.pop %v7801
        %v7815 = vmul.f32 %v7358, %v7814
        %v7816 = vrcp.pop %v7802
        %v7817 = vmul.f32 %v7438, %v7816
        %v7818 = vrcp.pop %v7803
        %v7819 = vmul.f32 %v7440, %v7818
        %v7820 = vmul.f32 %v7805, %v7520
        %v7821 = vmul.f32 %v7807, %v7522
        %v7822 = vmul.f32 %v7809, %v7602
        %v7823 = vmul.f32 %v7811, %v7604
        %v7824 = vmul.f32 %v7813, %v7684
        %v7825 = vmul.f32 %v7815, %v7686
        %v7826 = vmul.f32 %v7817, %v7766
        %v7827 = vmul.f32 %v7819, %v7768
        %v7828 = vpack.c.bf16 %v7820, %v7820
        %v7829 = vpack.c.bf16 %v7821, %v7821
        %v7830 = vpack.c.bf16 %v7822, %v7822
        %v7831 = vpack.c.bf16 %v7823, %v7823
        %v7832 = vpack.c.bf16 %v7824, %v7824
        %v7833 = vpack.c.bf16 %v7825, %v7825
        %v7834 = vpack.c.bf16 %v7826, %v7826
        %v7835 = vpack.c.bf16 %v7827, %v7827
        %v7836 = vld [vmem:[#allocation20] sm:$0xff]
        %v7837 = vld [vmem:[#allocation20 + $0x8] sm:$0xff]
        %v7838 = vld [vmem:[#allocation20 + $0x10] sm:$0xff]
        %v7839 = vld [vmem:[#allocation20 + $0x18] sm:$0xff]
        %v7840 = vld [vmem:[#allocation20 + $0x20] sm:$0xff]
        %v7841 = vld [vmem:[#allocation20 + $0x28] sm:$0xff]
        %v7842 = vld [vmem:[#allocation20 + $0x30] sm:$0xff]
        %v7843 = vld [vmem:[#allocation20 + $0x38] sm:$0xff]
        %v7844 = vld [vmem:[#allocation20 + $0x40] sm:$0xff]
        %v7845 = vld [vmem:[#allocation20 + $0x48] sm:$0xff]
        %v7846 = vld [vmem:[#allocation20 + $0x50] sm:$0xff]
        %v7847 = vld [vmem:[#allocation20 + $0x58] sm:$0xff]
        %v7848 = vld [vmem:[#allocation20 + $0x60] sm:$0xff]
        %v7849 = vld [vmem:[#allocation20 + $0x68] sm:$0xff]
        %v7850 = vld [vmem:[#allocation20 + $0x70] sm:$0xff]
        %v7851 = vld [vmem:[#allocation20 + $0x78] sm:$0xff]
        %v7852 = vld [vmem:[#allocation20 + $0x80] sm:$0xff]
        %v7853 = vld [vmem:[#allocation20 + $0x88] sm:$0xff]
        %v7854 = vld [vmem:[#allocation20 + $0x90] sm:$0xff]
        %v7855 = vld [vmem:[#allocation20 + $0x98] sm:$0xff]
        %v7856 = vld [vmem:[#allocation20 + $0xa0] sm:$0xff]
        %v7857 = vld [vmem:[#allocation20 + $0xa8] sm:$0xff]
        %v7858 = vld [vmem:[#allocation20 + $0xb0] sm:$0xff]
        %v7859 = vld [vmem:[#allocation20 + $0xb8] sm:$0xff]
        %v7860 = vld [vmem:[#allocation20 + $0xc0] sm:$0xff]
        %v7861 = vld [vmem:[#allocation20 + $0xc8] sm:$0xff]
        %v7862 = vld [vmem:[#allocation20 + $0xd0] sm:$0xff]
        %v7863 = vld [vmem:[#allocation20 + $0xd8] sm:$0xff]
        %v7864 = vld [vmem:[#allocation20 + $0xe0] sm:$0xff]
        %v7865 = vld [vmem:[#allocation20 + $0xe8] sm:$0xff]
        %v7866 = vld [vmem:[#allocation20 + $0xf0] sm:$0xff]
        %v7867 = vld [vmem:[#allocation20 + $0xf8] sm:$0xff]
        %v7868 = vld [vmem:[#allocation20 + $0x100] sm:$0xff]
        %v7869 = vld [vmem:[#allocation20 + $0x108] sm:$0xff]
        %v7870 = vld [vmem:[#allocation20 + $0x110] sm:$0xff]
        %v7871 = vld [vmem:[#allocation20 + $0x118] sm:$0xff]
        %v7872 = vld [vmem:[#allocation20 + $0x120] sm:$0xff]
        %v7873 = vld [vmem:[#allocation20 + $0x128] sm:$0xff]
        %v7874 = vld [vmem:[#allocation20 + $0x130] sm:$0xff]
        %v7875 = vld [vmem:[#allocation20 + $0x138] sm:$0xff]
        %v7876 = vld [vmem:[#allocation20 + $0x140] sm:$0xff]
        %v7877 = vld [vmem:[#allocation20 + $0x148] sm:$0xff]
        %v7878 = vld [vmem:[#allocation20 + $0x150] sm:$0xff]
        %v7879 = vld [vmem:[#allocation20 + $0x158] sm:$0xff]
        %v7880 = vld [vmem:[#allocation20 + $0x160] sm:$0xff]
        %v7881 = vld [vmem:[#allocation20 + $0x168] sm:$0xff]
        %v7882 = vld [vmem:[#allocation20 + $0x170] sm:$0xff]
        %v7883 = vld [vmem:[#allocation20 + $0x178] sm:$0xff]
        %v7884 = vld [vmem:[#allocation20 + $0x180] sm:$0xff]
        %v7885 = vld [vmem:[#allocation20 + $0x188] sm:$0xff]
        %v7886 = vld [vmem:[#allocation20 + $0x190] sm:$0xff]
        %v7887 = vld [vmem:[#allocation20 + $0x198] sm:$0xff]
        %v7888 = vld [vmem:[#allocation20 + $0x1a0] sm:$0xff]
        %v7889 = vld [vmem:[#allocation20 + $0x1a8] sm:$0xff]
        %v7890 = vld [vmem:[#allocation20 + $0x1b0] sm:$0xff]
        %v7891 = vld [vmem:[#allocation20 + $0x1b8] sm:$0xff]
        %v7892 = vld [vmem:[#allocation20 + $0x1c0] sm:$0xff]
        %v7893 = vld [vmem:[#allocation20 + $0x1c8] sm:$0xff]
        %v7894 = vld [vmem:[#allocation20 + $0x1d0] sm:$0xff]
        %v7895 = vld [vmem:[#allocation20 + $0x1d8] sm:$0xff]
        %v7896 = vld [vmem:[#allocation20 + $0x1e0] sm:$0xff]
        %v7897 = vld [vmem:[#allocation20 + $0x1e8] sm:$0xff]
        %v7898 = vld [vmem:[#allocation20 + $0x1f0] sm:$0xff]
        %v7899 = vld [vmem:[#allocation20 + $0x1f8] sm:$0xff]
        %v7900 = vld [vmem:[#allocation20 + $0x200] sm:$0xff]
        %v7901 = vld [vmem:[#allocation20 + $0x208] sm:$0xff]
        %v7902 = vld [vmem:[#allocation20 + $0x210] sm:$0xff]
        %v7903 = vld [vmem:[#allocation20 + $0x218] sm:$0xff]
        %v7904 = vld [vmem:[#allocation20 + $0x220] sm:$0xff]
        %v7905 = vld [vmem:[#allocation20 + $0x228] sm:$0xff]
        %v7906 = vld [vmem:[#allocation20 + $0x230] sm:$0xff]
        %v7907 = vld [vmem:[#allocation20 + $0x238] sm:$0xff]
        %v7908 = vld [vmem:[#allocation20 + $0x240] sm:$0xff]
        %v7909 = vld [vmem:[#allocation20 + $0x248] sm:$0xff]
        %v7910 = vld [vmem:[#allocation20 + $0x250] sm:$0xff]
        %v7911 = vld [vmem:[#allocation20 + $0x258] sm:$0xff]
        %v7912 = vld [vmem:[#allocation20 + $0x260] sm:$0xff]
        %v7913 = vld [vmem:[#allocation20 + $0x268] sm:$0xff]
        %v7914 = vld [vmem:[#allocation20 + $0x270] sm:$0xff]
        %v7915 = vld [vmem:[#allocation20 + $0x278] sm:$0xff]
        %v7916 = vld [vmem:[#allocation20 + $0x280] sm:$0xff]
        %v7917 = vld [vmem:[#allocation20 + $0x288] sm:$0xff]
        %v7918 = vld [vmem:[#allocation20 + $0x290] sm:$0xff]
        %v7919 = vld [vmem:[#allocation20 + $0x298] sm:$0xff]
        %v7920 = vld [vmem:[#allocation20 + $0x2a0] sm:$0xff]
        %v7921 = vld [vmem:[#allocation20 + $0x2a8] sm:$0xff]
        %v7922 = vld [vmem:[#allocation20 + $0x2b0] sm:$0xff]
        %v7923 = vld [vmem:[#allocation20 + $0x2b8] sm:$0xff]
        %v7924 = vld [vmem:[#allocation20 + $0x2c0] sm:$0xff]
        %v7925 = vld [vmem:[#allocation20 + $0x2c8] sm:$0xff]
        %v7926 = vld [vmem:[#allocation20 + $0x2d0] sm:$0xff]
        %v7927 = vld [vmem:[#allocation20 + $0x2d8] sm:$0xff]
        %v7928 = vld [vmem:[#allocation20 + $0x2e0] sm:$0xff]
        %v7929 = vld [vmem:[#allocation20 + $0x2e8] sm:$0xff]
        %v7930 = vld [vmem:[#allocation20 + $0x2f0] sm:$0xff]
        %v7931 = vld [vmem:[#allocation20 + $0x2f8] sm:$0xff]
        %v7932 = vld [vmem:[#allocation20 + $0x300] sm:$0xff]
        %v7933 = vld [vmem:[#allocation20 + $0x308] sm:$0xff]
        %v7934 = vld [vmem:[#allocation20 + $0x310] sm:$0xff]
        %v7935 = vld [vmem:[#allocation20 + $0x318] sm:$0xff]
        %v7936 = vld [vmem:[#allocation20 + $0x320] sm:$0xff]
        %v7937 = vld [vmem:[#allocation20 + $0x328] sm:$0xff]
        %v7938 = vld [vmem:[#allocation20 + $0x330] sm:$0xff]
        %v7939 = vld [vmem:[#allocation20 + $0x338] sm:$0xff]
        %v7940 = vld [vmem:[#allocation20 + $0x340] sm:$0xff]
        %v7941 = vld [vmem:[#allocation20 + $0x348] sm:$0xff]
        %v7942 = vld [vmem:[#allocation20 + $0x350] sm:$0xff]
        %v7943 = vld [vmem:[#allocation20 + $0x358] sm:$0xff]
        %v7944 = vld [vmem:[#allocation20 + $0x360] sm:$0xff]
        %v7945 = vld [vmem:[#allocation20 + $0x368] sm:$0xff]
        %v7946 = vld [vmem:[#allocation20 + $0x370] sm:$0xff]
        %v7947 = vld [vmem:[#allocation20 + $0x378] sm:$0xff]
        %v7948 = vld [vmem:[#allocation20 + $0x380] sm:$0xff]
        %v7949 = vld [vmem:[#allocation20 + $0x388] sm:$0xff]
        %v7950 = vld [vmem:[#allocation20 + $0x390] sm:$0xff]
        %v7951 = vld [vmem:[#allocation20 + $0x398] sm:$0xff]
        %v7952 = vld [vmem:[#allocation20 + $0x3a0] sm:$0xff]
        %v7953 = vld [vmem:[#allocation20 + $0x3a8] sm:$0xff]
        %v7954 = vld [vmem:[#allocation20 + $0x3b0] sm:$0xff]
        %v7955 = vld [vmem:[#allocation20 + $0x3b8] sm:$0xff]
        %v7956 = vld [vmem:[#allocation20 + $0x3c0] sm:$0xff]
        %v7957 = vld [vmem:[#allocation20 + $0x3c8] sm:$0xff]
        %v7958 = vld [vmem:[#allocation20 + $0x3d0] sm:$0xff]
        %v7959 = vld [vmem:[#allocation20 + $0x3d8] sm:$0xff]
        %v7960 = vld [vmem:[#allocation20 + $0x3e0] sm:$0xff]
        %v7961 = vld [vmem:[#allocation20 + $0x3e8] sm:$0xff]
        %v7962 = vld [vmem:[#allocation20 + $0x3f0] sm:$0xff]
        %v7963 = vld [vmem:[#allocation20 + $0x3f8] sm:$0xff]
        %v7964 = vld [vmem:[#allocation20 + $0x400] sm:$0xff]
        %v7965 = vld [vmem:[#allocation20 + $0x408] sm:$0xff]
        %v7966 = vld [vmem:[#allocation20 + $0x410] sm:$0xff]
        %v7967 = vld [vmem:[#allocation20 + $0x418] sm:$0xff]
        %v7968 = vld [vmem:[#allocation20 + $0x420] sm:$0xff]
        %v7969 = vld [vmem:[#allocation20 + $0x428] sm:$0xff]
        %v7970 = vld [vmem:[#allocation20 + $0x430] sm:$0xff]
        %v7971 = vld [vmem:[#allocation20 + $0x438] sm:$0xff]
        %v7972 = vld [vmem:[#allocation20 + $0x440] sm:$0xff]
        %v7973 = vld [vmem:[#allocation20 + $0x448] sm:$0xff]
        %v7974 = vld [vmem:[#allocation20 + $0x450] sm:$0xff]
        %v7975 = vld [vmem:[#allocation20 + $0x458] sm:$0xff]
        %v7976 = vld [vmem:[#allocation20 + $0x460] sm:$0xff]
        %v7977 = vld [vmem:[#allocation20 + $0x468] sm:$0xff]
        %v7978 = vld [vmem:[#allocation20 + $0x470] sm:$0xff]
        %v7979 = vld [vmem:[#allocation20 + $0x478] sm:$0xff]
        %v7980 = vld [vmem:[#allocation20 + $0x480] sm:$0xff]
        %v7981 = vld [vmem:[#allocation20 + $0x488] sm:$0xff]
        %v7982 = vld [vmem:[#allocation20 + $0x490] sm:$0xff]
        %v7983 = vld [vmem:[#allocation20 + $0x498] sm:$0xff]
        %v7984 = vld [vmem:[#allocation20 + $0x4a0] sm:$0xff]
        %v7985 = vld [vmem:[#allocation20 + $0x4a8] sm:$0xff]
        %v7986 = vld [vmem:[#allocation20 + $0x4b0] sm:$0xff]
        %v7987 = vld [vmem:[#allocation20 + $0x4b8] sm:$0xff]
        %v7988 = vld [vmem:[#allocation20 + $0x4c0] sm:$0xff]
        %v7989 = vld [vmem:[#allocation20 + $0x4c8] sm:$0xff]
        %v7990 = vld [vmem:[#allocation20 + $0x4d0] sm:$0xff]
        %v7991 = vld [vmem:[#allocation20 + $0x4d8] sm:$0xff]
        %v7992 = vld [vmem:[#allocation20 + $0x4e0] sm:$0xff]
        %v7993 = vld [vmem:[#allocation20 + $0x4e8] sm:$0xff]
        %v7994 = vld [vmem:[#allocation20 + $0x4f0] sm:$0xff]
        %v7995 = vld [vmem:[#allocation20 + $0x4f8] sm:$0xff]
        %v7996 = vld [vmem:[#allocation20 + $0x500] sm:$0xff]
        %v7997 = vld [vmem:[#allocation20 + $0x508] sm:$0xff]
        %v7998 = vld [vmem:[#allocation20 + $0x510] sm:$0xff]
        %v7999 = vld [vmem:[#allocation20 + $0x518] sm:$0xff]
        %v8000 = vld [vmem:[#allocation20 + $0x520] sm:$0xff]
        %v8001 = vld [vmem:[#allocation20 + $0x528] sm:$0xff]
        %v8002 = vld [vmem:[#allocation20 + $0x530] sm:$0xff]
        %v8003 = vld [vmem:[#allocation20 + $0x538] sm:$0xff]
        %v8004 = vld [vmem:[#allocation20 + $0x540] sm:$0xff]
        %v8005 = vld [vmem:[#allocation20 + $0x548] sm:$0xff]
        %v8006 = vld [vmem:[#allocation20 + $0x550] sm:$0xff]
        %v8007 = vld [vmem:[#allocation20 + $0x558] sm:$0xff]
        %v8008 = vld [vmem:[#allocation20 + $0x560] sm:$0xff]
        %v8009 = vld [vmem:[#allocation20 + $0x568] sm:$0xff]
        %v8010 = vld [vmem:[#allocation20 + $0x570] sm:$0xff]
        %v8011 = vld [vmem:[#allocation20 + $0x578] sm:$0xff]
        %v8012 = vld [vmem:[#allocation20 + $0x580] sm:$0xff]
        %v8013 = vld [vmem:[#allocation20 + $0x588] sm:$0xff]
        %v8014 = vld [vmem:[#allocation20 + $0x590] sm:$0xff]
        %v8015 = vld [vmem:[#allocation20 + $0x598] sm:$0xff]
        %v8016 = vld [vmem:[#allocation20 + $0x5a0] sm:$0xff]
        %v8017 = vld [vmem:[#allocation20 + $0x5a8] sm:$0xff]
        %v8018 = vld [vmem:[#allocation20 + $0x5b0] sm:$0xff]
        %v8019 = vld [vmem:[#allocation20 + $0x5b8] sm:$0xff]
        %v8020 = vld [vmem:[#allocation20 + $0x5c0] sm:$0xff]
        %v8021 = vld [vmem:[#allocation20 + $0x5c8] sm:$0xff]
        %v8022 = vld [vmem:[#allocation20 + $0x5d0] sm:$0xff]
        %v8023 = vld [vmem:[#allocation20 + $0x5d8] sm:$0xff]
        %v8024 = vld [vmem:[#allocation20 + $0x5e0] sm:$0xff]
        %v8025 = vld [vmem:[#allocation20 + $0x5e8] sm:$0xff]
        %v8026 = vld [vmem:[#allocation20 + $0x5f0] sm:$0xff]
        %v8027 = vld [vmem:[#allocation20 + $0x5f8] sm:$0xff]
        %v8028 = vld [vmem:[#allocation20 + $0x600] sm:$0xff]
        %v8029 = vld [vmem:[#allocation20 + $0x608] sm:$0xff]
        %v8030 = vld [vmem:[#allocation20 + $0x610] sm:$0xff]
        %v8031 = vld [vmem:[#allocation20 + $0x618] sm:$0xff]
        %v8032 = vld [vmem:[#allocation20 + $0x620] sm:$0xff]
        %v8033 = vld [vmem:[#allocation20 + $0x628] sm:$0xff]
        %v8034 = vld [vmem:[#allocation20 + $0x630] sm:$0xff]
        %v8035 = vld [vmem:[#allocation20 + $0x638] sm:$0xff]
        %v8036 = vld [vmem:[#allocation20 + $0x640] sm:$0xff]
        %v8037 = vld [vmem:[#allocation20 + $0x648] sm:$0xff]
        %v8038 = vld [vmem:[#allocation20 + $0x650] sm:$0xff]
        %v8039 = vld [vmem:[#allocation20 + $0x658] sm:$0xff]
        %v8040 = vld [vmem:[#allocation20 + $0x660] sm:$0xff]
        %v8041 = vld [vmem:[#allocation20 + $0x668] sm:$0xff]
        %v8042 = vld [vmem:[#allocation20 + $0x670] sm:$0xff]
        %v8043 = vld [vmem:[#allocation20 + $0x678] sm:$0xff]
        %v8044 = vld [vmem:[#allocation20 + $0x680] sm:$0xff]
        %v8045 = vld [vmem:[#allocation20 + $0x688] sm:$0xff]
        %v8046 = vld [vmem:[#allocation20 + $0x690] sm:$0xff]
        %v8047 = vld [vmem:[#allocation20 + $0x698] sm:$0xff]
        %v8048 = vld [vmem:[#allocation20 + $0x6a0] sm:$0xff]
        %v8049 = vld [vmem:[#allocation20 + $0x6a8] sm:$0xff]
        %v8050 = vld [vmem:[#allocation20 + $0x6b0] sm:$0xff]
        %v8051 = vld [vmem:[#allocation20 + $0x6b8] sm:$0xff]
        %v8052 = vld [vmem:[#allocation20 + $0x6c0] sm:$0xff]
        %v8053 = vld [vmem:[#allocation20 + $0x6c8] sm:$0xff]
        %v8054 = vld [vmem:[#allocation20 + $0x6d0] sm:$0xff]
        %v8055 = vld [vmem:[#allocation20 + $0x6d8] sm:$0xff]
        %v8056 = vld [vmem:[#allocation20 + $0x6e0] sm:$0xff]
        %v8057 = vld [vmem:[#allocation20 + $0x6e8] sm:$0xff]
        %v8058 = vld [vmem:[#allocation20 + $0x6f0] sm:$0xff]
        %v8059 = vld [vmem:[#allocation20 + $0x6f8] sm:$0xff]
        %v8060 = vld [vmem:[#allocation20 + $0x700] sm:$0xff]
        %v8061 = vld [vmem:[#allocation20 + $0x708] sm:$0xff]
        %v8062 = vld [vmem:[#allocation20 + $0x710] sm:$0xff]
        %v8063 = vld [vmem:[#allocation20 + $0x718] sm:$0xff]
        %v8064 = vld [vmem:[#allocation20 + $0x720] sm:$0xff]
        %v8065 = vld [vmem:[#allocation20 + $0x728] sm:$0xff]
        %v8066 = vld [vmem:[#allocation20 + $0x730] sm:$0xff]
        %v8067 = vld [vmem:[#allocation20 + $0x738] sm:$0xff]
        %v8068 = vld [vmem:[#allocation20 + $0x740] sm:$0xff]
        %v8069 = vld [vmem:[#allocation20 + $0x748] sm:$0xff]
        %v8070 = vld [vmem:[#allocation20 + $0x750] sm:$0xff]
        %v8071 = vld [vmem:[#allocation20 + $0x758] sm:$0xff]
        %v8072 = vld [vmem:[#allocation20 + $0x760] sm:$0xff]
        %v8073 = vld [vmem:[#allocation20 + $0x768] sm:$0xff]
        %v8074 = vld [vmem:[#allocation20 + $0x770] sm:$0xff]
        %v8075 = vld [vmem:[#allocation20 + $0x778] sm:$0xff]
        %v8076 = vld [vmem:[#allocation20 + $0x780] sm:$0xff]
        %v8077 = vld [vmem:[#allocation20 + $0x788] sm:$0xff]
        %v8078 = vld [vmem:[#allocation20 + $0x790] sm:$0xff]
        %v8079 = vld [vmem:[#allocation20 + $0x798] sm:$0xff]
        %v8080 = vld [vmem:[#allocation20 + $0x7a0] sm:$0xff]
        %v8081 = vld [vmem:[#allocation20 + $0x7a8] sm:$0xff]
        %v8082 = vld [vmem:[#allocation20 + $0x7b0] sm:$0xff]
        %v8083 = vld [vmem:[#allocation20 + $0x7b8] sm:$0xff]
        %v8084 = vld [vmem:[#allocation20 + $0x7c0] sm:$0xff]
        %v8085 = vld [vmem:[#allocation20 + $0x7c8] sm:$0xff]
        %v8086 = vld [vmem:[#allocation20 + $0x7d0] sm:$0xff]
        %v8087 = vld [vmem:[#allocation20 + $0x7d8] sm:$0xff]
        %v8088 = vld [vmem:[#allocation20 + $0x7e0] sm:$0xff]
        %v8089 = vld [vmem:[#allocation20 + $0x7e8] sm:$0xff]
        %v8090 = vld [vmem:[#allocation20 + $0x7f0] sm:$0xff]
        %v8091 = vld [vmem:[#allocation20 + $0x7f8] sm:$0xff]
        %v8348 = vunpack.c.l.b16 %v7836
        %v8349 = vunpack.c.h.b16 %v7836
        %v8350 = vunpack.c.l.b16 %v7837
        %v8351 = vunpack.c.h.b16 %v7837
        %v8352 = vunpack.c.l.b16 %v7838
        %v8353 = vunpack.c.h.b16 %v7838
        %v8354 = vunpack.c.l.b16 %v7839
        %v8355 = vunpack.c.h.b16 %v7839
        %v8356 = vunpack.c.l.b16 %v7840
        %v8357 = vunpack.c.h.b16 %v7840
        %v8358 = vunpack.c.l.b16 %v7841
        %v8359 = vunpack.c.h.b16 %v7841
        %v8360 = vunpack.c.l.b16 %v7842
        %v8361 = vunpack.c.h.b16 %v7842
        %v8362 = vunpack.c.l.b16 %v7843
        %v8363 = vunpack.c.h.b16 %v7843
        %v8364 = vunpack.c.l.b16 %v7844
        %v8365 = vunpack.c.h.b16 %v7844
        %v8366 = vunpack.c.l.b16 %v7845
        %v8367 = vunpack.c.h.b16 %v7845
        %v8368 = vunpack.c.l.b16 %v7846
        %v8369 = vunpack.c.h.b16 %v7846
        %v8370 = vunpack.c.l.b16 %v7847
        %v8371 = vunpack.c.h.b16 %v7847
        %v8372 = vunpack.c.l.b16 %v7848
        %v8373 = vunpack.c.h.b16 %v7848
        %v8374 = vunpack.c.l.b16 %v7849
        %v8375 = vunpack.c.h.b16 %v7849
        %v8376 = vunpack.c.l.b16 %v7850
        %v8377 = vunpack.c.h.b16 %v7850
        %v8378 = vunpack.c.l.b16 %v7851
        %v8379 = vunpack.c.h.b16 %v7851
        %v8380 = vunpack.c.l.b16 %v7852
        %v8381 = vunpack.c.h.b16 %v7852
        %v8382 = vunpack.c.l.b16 %v7853
        %v8383 = vunpack.c.h.b16 %v7853
        %v8384 = vunpack.c.l.b16 %v7854
        %v8385 = vunpack.c.h.b16 %v7854
        %v8386 = vunpack.c.l.b16 %v7855
        %v8387 = vunpack.c.h.b16 %v7855
        %v8388 = vunpack.c.l.b16 %v7856
        %v8389 = vunpack.c.h.b16 %v7856
        %v8390 = vunpack.c.l.b16 %v7857
        %v8391 = vunpack.c.h.b16 %v7857
        %v8392 = vunpack.c.l.b16 %v7858
        %v8393 = vunpack.c.h.b16 %v7858
        %v8394 = vunpack.c.l.b16 %v7859
        %v8395 = vunpack.c.h.b16 %v7859
        %v8396 = vunpack.c.l.b16 %v7860
        %v8397 = vunpack.c.h.b16 %v7860
        %v8398 = vunpack.c.l.b16 %v7861
        %v8399 = vunpack.c.h.b16 %v7861
        %v8400 = vunpack.c.l.b16 %v7862
        %v8401 = vunpack.c.h.b16 %v7862
        %v8402 = vunpack.c.l.b16 %v7863
        %v8403 = vunpack.c.h.b16 %v7863
        %v8404 = vunpack.c.l.b16 %v7864
        %v8405 = vunpack.c.h.b16 %v7864
        %v8406 = vunpack.c.l.b16 %v7865
        %v8407 = vunpack.c.h.b16 %v7865
        %v8408 = vunpack.c.l.b16 %v7866
        %v8409 = vunpack.c.h.b16 %v7866
        %v8410 = vunpack.c.l.b16 %v7867
        %v8411 = vunpack.c.h.b16 %v7867
        %v8412 = vunpack.c.l.b16 %v7868
        %v8413 = vunpack.c.h.b16 %v7868
        %v8414 = vunpack.c.l.b16 %v7869
        %v8415 = vunpack.c.h.b16 %v7869
        %v8416 = vunpack.c.l.b16 %v7870
        %v8417 = vunpack.c.h.b16 %v7870
        %v8418 = vunpack.c.l.b16 %v7871
        %v8419 = vunpack.c.h.b16 %v7871
        %v8420 = vunpack.c.l.b16 %v7872
        %v8421 = vunpack.c.h.b16 %v7872
        %v8422 = vunpack.c.l.b16 %v7873
        %v8423 = vunpack.c.h.b16 %v7873
        %v8424 = vunpack.c.l.b16 %v7874
        %v8425 = vunpack.c.h.b16 %v7874
        %v8426 = vunpack.c.l.b16 %v7875
        %v8427 = vunpack.c.h.b16 %v7875
        %v8428 = vunpack.c.l.b16 %v7876
        %v8429 = vunpack.c.h.b16 %v7876
        %v8430 = vunpack.c.l.b16 %v7877
        %v8431 = vunpack.c.h.b16 %v7877
        %v8432 = vunpack.c.l.b16 %v7878
        %v8433 = vunpack.c.h.b16 %v7878
        %v8434 = vunpack.c.l.b16 %v7879
        %v8435 = vunpack.c.h.b16 %v7879
        %v8436 = vunpack.c.l.b16 %v7880
        %v8437 = vunpack.c.h.b16 %v7880
        %v8438 = vunpack.c.l.b16 %v7881
        %v8439 = vunpack.c.h.b16 %v7881
        %v8440 = vunpack.c.l.b16 %v7882
        %v8441 = vunpack.c.h.b16 %v7882
        %v8442 = vunpack.c.l.b16 %v7883
        %v8443 = vunpack.c.h.b16 %v7883
        %v8444 = vunpack.c.l.b16 %v7884
        %v8445 = vunpack.c.h.b16 %v7884
        %v8446 = vunpack.c.l.b16 %v7885
        %v8447 = vunpack.c.h.b16 %v7885
        %v8448 = vunpack.c.l.b16 %v7886
        %v8449 = vunpack.c.h.b16 %v7886
        %v8450 = vunpack.c.l.b16 %v7887
        %v8451 = vunpack.c.h.b16 %v7887
        %v8452 = vunpack.c.l.b16 %v7888
        %v8453 = vunpack.c.h.b16 %v7888
        %v8454 = vunpack.c.l.b16 %v7889
        %v8455 = vunpack.c.h.b16 %v7889
        %v8456 = vunpack.c.l.b16 %v7890
        %v8457 = vunpack.c.h.b16 %v7890
        %v8458 = vunpack.c.l.b16 %v7891
        %v8459 = vunpack.c.h.b16 %v7891
        %v8460 = vunpack.c.l.b16 %v7892
        %v8461 = vunpack.c.h.b16 %v7892
        %v8462 = vunpack.c.l.b16 %v7893
        %v8463 = vunpack.c.h.b16 %v7893
        %v8464 = vunpack.c.l.b16 %v7894
        %v8465 = vunpack.c.h.b16 %v7894
        %v8466 = vunpack.c.l.b16 %v7895
        %v8467 = vunpack.c.h.b16 %v7895
        %v8468 = vunpack.c.l.b16 %v7896
        %v8469 = vunpack.c.h.b16 %v7896
        %v8470 = vunpack.c.l.b16 %v7897
        %v8471 = vunpack.c.h.b16 %v7897
        %v8472 = vunpack.c.l.b16 %v7898
        %v8473 = vunpack.c.h.b16 %v7898
        %v8474 = vunpack.c.l.b16 %v7899
        %v8475 = vunpack.c.h.b16 %v7899
        %v8476 = vunpack.c.l.b16 %v7900
        %v8477 = vunpack.c.h.b16 %v7900
        %v8478 = vunpack.c.l.b16 %v7901
        %v8479 = vunpack.c.h.b16 %v7901
        %v8480 = vunpack.c.l.b16 %v7902
        %v8481 = vunpack.c.h.b16 %v7902
        %v8482 = vunpack.c.l.b16 %v7903
        %v8483 = vunpack.c.h.b16 %v7903
        %v8484 = vunpack.c.l.b16 %v7904
        %v8485 = vunpack.c.h.b16 %v7904
        %v8486 = vunpack.c.l.b16 %v7905
        %v8487 = vunpack.c.h.b16 %v7905
        %v8488 = vunpack.c.l.b16 %v7906
        %v8489 = vunpack.c.h.b16 %v7906
        %v8490 = vunpack.c.l.b16 %v7907
        %v8491 = vunpack.c.h.b16 %v7907
        %v8492 = vunpack.c.l.b16 %v7908
        %v8493 = vunpack.c.h.b16 %v7908
        %v8494 = vunpack.c.l.b16 %v7909
        %v8495 = vunpack.c.h.b16 %v7909
        %v8496 = vunpack.c.l.b16 %v7910
        %v8497 = vunpack.c.h.b16 %v7910
        %v8498 = vunpack.c.l.b16 %v7911
        %v8499 = vunpack.c.h.b16 %v7911
        %v8500 = vunpack.c.l.b16 %v7912
        %v8501 = vunpack.c.h.b16 %v7912
        %v8502 = vunpack.c.l.b16 %v7913
        %v8503 = vunpack.c.h.b16 %v7913
        %v8504 = vunpack.c.l.b16 %v7914
        %v8505 = vunpack.c.h.b16 %v7914
        %v8506 = vunpack.c.l.b16 %v7915
        %v8507 = vunpack.c.h.b16 %v7915
        %v8508 = vunpack.c.l.b16 %v7916
        %v8509 = vunpack.c.h.b16 %v7916
        %v8510 = vunpack.c.l.b16 %v7917
        %v8511 = vunpack.c.h.b16 %v7917
        %v8512 = vunpack.c.l.b16 %v7918
        %v8513 = vunpack.c.h.b16 %v7918
        %v8514 = vunpack.c.l.b16 %v7919
        %v8515 = vunpack.c.h.b16 %v7919
        %v8516 = vunpack.c.l.b16 %v7920
        %v8517 = vunpack.c.h.b16 %v7920
        %v8518 = vunpack.c.l.b16 %v7921
        %v8519 = vunpack.c.h.b16 %v7921
        %v8520 = vunpack.c.l.b16 %v7922
        %v8521 = vunpack.c.h.b16 %v7922
        %v8522 = vunpack.c.l.b16 %v7923
        %v8523 = vunpack.c.h.b16 %v7923
        %v8524 = vunpack.c.l.b16 %v7924
        %v8525 = vunpack.c.h.b16 %v7924
        %v8526 = vunpack.c.l.b16 %v7925
        %v8527 = vunpack.c.h.b16 %v7925
        %v8528 = vunpack.c.l.b16 %v7926
        %v8529 = vunpack.c.h.b16 %v7926
        %v8530 = vunpack.c.l.b16 %v7927
        %v8531 = vunpack.c.h.b16 %v7927
        %v8532 = vunpack.c.l.b16 %v7928
        %v8533 = vunpack.c.h.b16 %v7928
        %v8534 = vunpack.c.l.b16 %v7929
        %v8535 = vunpack.c.h.b16 %v7929
        %v8536 = vunpack.c.l.b16 %v7930
        %v8537 = vunpack.c.h.b16 %v7930
        %v8538 = vunpack.c.l.b16 %v7931
        %v8539 = vunpack.c.h.b16 %v7931
        %v8540 = vunpack.c.l.b16 %v7932
        %v8541 = vunpack.c.h.b16 %v7932
        %v8542 = vunpack.c.l.b16 %v7933
        %v8543 = vunpack.c.h.b16 %v7933
        %v8544 = vunpack.c.l.b16 %v7934
        %v8545 = vunpack.c.h.b16 %v7934
        %v8546 = vunpack.c.l.b16 %v7935
        %v8547 = vunpack.c.h.b16 %v7935
        %v8548 = vunpack.c.l.b16 %v7936
        %v8549 = vunpack.c.h.b16 %v7936
        %v8550 = vunpack.c.l.b16 %v7937
        %v8551 = vunpack.c.h.b16 %v7937
        %v8552 = vunpack.c.l.b16 %v7938
        %v8553 = vunpack.c.h.b16 %v7938
        %v8554 = vunpack.c.l.b16 %v7939
        %v8555 = vunpack.c.h.b16 %v7939
        %v8556 = vunpack.c.l.b16 %v7940
        %v8557 = vunpack.c.h.b16 %v7940
        %v8558 = vunpack.c.l.b16 %v7941
        %v8559 = vunpack.c.h.b16 %v7941
        %v8560 = vunpack.c.l.b16 %v7942
        %v8561 = vunpack.c.h.b16 %v7942
        %v8562 = vunpack.c.l.b16 %v7943
        %v8563 = vunpack.c.h.b16 %v7943
        %v8564 = vunpack.c.l.b16 %v7944
        %v8565 = vunpack.c.h.b16 %v7944
        %v8566 = vunpack.c.l.b16 %v7945
        %v8567 = vunpack.c.h.b16 %v7945
        %v8568 = vunpack.c.l.b16 %v7946
        %v8569 = vunpack.c.h.b16 %v7946
        %v8570 = vunpack.c.l.b16 %v7947
        %v8571 = vunpack.c.h.b16 %v7947
        %v8572 = vunpack.c.l.b16 %v7948
        %v8573 = vunpack.c.h.b16 %v7948
        %v8574 = vunpack.c.l.b16 %v7949
        %v8575 = vunpack.c.h.b16 %v7949
        %v8576 = vunpack.c.l.b16 %v7950
        %v8577 = vunpack.c.h.b16 %v7950
        %v8578 = vunpack.c.l.b16 %v7951
        %v8579 = vunpack.c.h.b16 %v7951
        %v8580 = vunpack.c.l.b16 %v7952
        %v8581 = vunpack.c.h.b16 %v7952
        %v8582 = vunpack.c.l.b16 %v7953
        %v8583 = vunpack.c.h.b16 %v7953
        %v8584 = vunpack.c.l.b16 %v7954
        %v8585 = vunpack.c.h.b16 %v7954
        %v8586 = vunpack.c.l.b16 %v7955
        %v8587 = vunpack.c.h.b16 %v7955
        %v8588 = vunpack.c.l.b16 %v7956
        %v8589 = vunpack.c.h.b16 %v7956
        %v8590 = vunpack.c.l.b16 %v7957
        %v8591 = vunpack.c.h.b16 %v7957
        %v8592 = vunpack.c.l.b16 %v7958
        %v8593 = vunpack.c.h.b16 %v7958
        %v8594 = vunpack.c.l.b16 %v7959
        %v8595 = vunpack.c.h.b16 %v7959
        %v8596 = vunpack.c.l.b16 %v7960
        %v8597 = vunpack.c.h.b16 %v7960
        %v8598 = vunpack.c.l.b16 %v7961
        %v8599 = vunpack.c.h.b16 %v7961
        %v8600 = vunpack.c.l.b16 %v7962
        %v8601 = vunpack.c.h.b16 %v7962
        %v8602 = vunpack.c.l.b16 %v7963
        %v8603 = vunpack.c.h.b16 %v7963
        %v8604 = vunpack.c.l.b16 %v7964
        %v8605 = vunpack.c.h.b16 %v7964
        %v8606 = vunpack.c.l.b16 %v7965
        %v8607 = vunpack.c.h.b16 %v7965
        %v8608 = vunpack.c.l.b16 %v7966
        %v8609 = vunpack.c.h.b16 %v7966
        %v8610 = vunpack.c.l.b16 %v7967
        %v8611 = vunpack.c.h.b16 %v7967
        %v8612 = vunpack.c.l.b16 %v7968
        %v8613 = vunpack.c.h.b16 %v7968
        %v8614 = vunpack.c.l.b16 %v7969
        %v8615 = vunpack.c.h.b16 %v7969
        %v8616 = vunpack.c.l.b16 %v7970
        %v8617 = vunpack.c.h.b16 %v7970
        %v8618 = vunpack.c.l.b16 %v7971
        %v8619 = vunpack.c.h.b16 %v7971
        %v8620 = vunpack.c.l.b16 %v7972
        %v8621 = vunpack.c.h.b16 %v7972
        %v8622 = vunpack.c.l.b16 %v7973
        %v8623 = vunpack.c.h.b16 %v7973
        %v8624 = vunpack.c.l.b16 %v7974
        %v8625 = vunpack.c.h.b16 %v7974
        %v8626 = vunpack.c.l.b16 %v7975
        %v8627 = vunpack.c.h.b16 %v7975
        %v8628 = vunpack.c.l.b16 %v7976
        %v8629 = vunpack.c.h.b16 %v7976
        %v8630 = vunpack.c.l.b16 %v7977
        %v8631 = vunpack.c.h.b16 %v7977
        %v8632 = vunpack.c.l.b16 %v7978
        %v8633 = vunpack.c.h.b16 %v7978
        %v8634 = vunpack.c.l.b16 %v7979
        %v8635 = vunpack.c.h.b16 %v7979
        %v8636 = vunpack.c.l.b16 %v7980
        %v8637 = vunpack.c.h.b16 %v7980
        %v8638 = vunpack.c.l.b16 %v7981
        %v8639 = vunpack.c.h.b16 %v7981
        %v8640 = vunpack.c.l.b16 %v7982
        %v8641 = vunpack.c.h.b16 %v7982
        %v8642 = vunpack.c.l.b16 %v7983
        %v8643 = vunpack.c.h.b16 %v7983
        %v8644 = vunpack.c.l.b16 %v7984
        %v8645 = vunpack.c.h.b16 %v7984
        %v8646 = vunpack.c.l.b16 %v7985
        %v8647 = vunpack.c.h.b16 %v7985
        %v8648 = vunpack.c.l.b16 %v7986
        %v8649 = vunpack.c.h.b16 %v7986
        %v8650 = vunpack.c.l.b16 %v7987
        %v8651 = vunpack.c.h.b16 %v7987
        %v8652 = vunpack.c.l.b16 %v7988
        %v8653 = vunpack.c.h.b16 %v7988
        %v8654 = vunpack.c.l.b16 %v7989
        %v8655 = vunpack.c.h.b16 %v7989
        %v8656 = vunpack.c.l.b16 %v7990
        %v8657 = vunpack.c.h.b16 %v7990
        %v8658 = vunpack.c.l.b16 %v7991
        %v8659 = vunpack.c.h.b16 %v7991
        %v8660 = vunpack.c.l.b16 %v7992
        %v8661 = vunpack.c.h.b16 %v7992
        %v8662 = vunpack.c.l.b16 %v7993
        %v8663 = vunpack.c.h.b16 %v7993
        %v8664 = vunpack.c.l.b16 %v7994
        %v8665 = vunpack.c.h.b16 %v7994
        %v8666 = vunpack.c.l.b16 %v7995
        %v8667 = vunpack.c.h.b16 %v7995
        %v8668 = vunpack.c.l.b16 %v7996
        %v8669 = vunpack.c.h.b16 %v7996
        %v8670 = vunpack.c.l.b16 %v7997
        %v8671 = vunpack.c.h.b16 %v7997
        %v8672 = vunpack.c.l.b16 %v7998
        %v8673 = vunpack.c.h.b16 %v7998
        %v8674 = vunpack.c.l.b16 %v7999
        %v8675 = vunpack.c.h.b16 %v7999
        %v8676 = vunpack.c.l.b16 %v8000
        %v8677 = vunpack.c.h.b16 %v8000
        %v8678 = vunpack.c.l.b16 %v8001
        %v8679 = vunpack.c.h.b16 %v8001
        %v8680 = vunpack.c.l.b16 %v8002
        %v8681 = vunpack.c.h.b16 %v8002
        %v8682 = vunpack.c.l.b16 %v8003
        %v8683 = vunpack.c.h.b16 %v8003
        %v8684 = vunpack.c.l.b16 %v8004
        %v8685 = vunpack.c.h.b16 %v8004
        %v8686 = vunpack.c.l.b16 %v8005
        %v8687 = vunpack.c.h.b16 %v8005
        %v8688 = vunpack.c.l.b16 %v8006
        %v8689 = vunpack.c.h.b16 %v8006
        %v8690 = vunpack.c.l.b16 %v8007
        %v8691 = vunpack.c.h.b16 %v8007
        %v8692 = vunpack.c.l.b16 %v8008
        %v8693 = vunpack.c.h.b16 %v8008
        %v8694 = vunpack.c.l.b16 %v8009
        %v8695 = vunpack.c.h.b16 %v8009
        %v8696 = vunpack.c.l.b16 %v8010
        %v8697 = vunpack.c.h.b16 %v8010
        %v8698 = vunpack.c.l.b16 %v8011
        %v8699 = vunpack.c.h.b16 %v8011
        %v8700 = vunpack.c.l.b16 %v8012
        %v8701 = vunpack.c.h.b16 %v8012
        %v8702 = vunpack.c.l.b16 %v8013
        %v8703 = vunpack.c.h.b16 %v8013
        %v8704 = vunpack.c.l.b16 %v8014
        %v8705 = vunpack.c.h.b16 %v8014
        %v8706 = vunpack.c.l.b16 %v8015
        %v8707 = vunpack.c.h.b16 %v8015
        %v8708 = vunpack.c.l.b16 %v8016
        %v8709 = vunpack.c.h.b16 %v8016
        %v8710 = vunpack.c.l.b16 %v8017
        %v8711 = vunpack.c.h.b16 %v8017
        %v8712 = vunpack.c.l.b16 %v8018
        %v8713 = vunpack.c.h.b16 %v8018
        %v8714 = vunpack.c.l.b16 %v8019
        %v8715 = vunpack.c.h.b16 %v8019
        %v8716 = vunpack.c.l.b16 %v8020
        %v8717 = vunpack.c.h.b16 %v8020
        %v8718 = vunpack.c.l.b16 %v8021
        %v8719 = vunpack.c.h.b16 %v8021
        %v8720 = vunpack.c.l.b16 %v8022
        %v8721 = vunpack.c.h.b16 %v8022
        %v8722 = vunpack.c.l.b16 %v8023
        %v8723 = vunpack.c.h.b16 %v8023
        %v8724 = vunpack.c.l.b16 %v8024
        %v8725 = vunpack.c.h.b16 %v8024
        %v8726 = vunpack.c.l.b16 %v8025
        %v8727 = vunpack.c.h.b16 %v8025
        %v8728 = vunpack.c.l.b16 %v8026
        %v8729 = vunpack.c.h.b16 %v8026
        %v8730 = vunpack.c.l.b16 %v8027
        %v8731 = vunpack.c.h.b16 %v8027
        %v8732 = vunpack.c.l.b16 %v8028
        %v8733 = vunpack.c.h.b16 %v8028
        %v8734 = vunpack.c.l.b16 %v8029
        %v8735 = vunpack.c.h.b16 %v8029
        %v8736 = vunpack.c.l.b16 %v8030
        %v8737 = vunpack.c.h.b16 %v8030
        %v8738 = vunpack.c.l.b16 %v8031
        %v8739 = vunpack.c.h.b16 %v8031
        %v8740 = vunpack.c.l.b16 %v8032
        %v8741 = vunpack.c.h.b16 %v8032
        %v8742 = vunpack.c.l.b16 %v8033
        %v8743 = vunpack.c.h.b16 %v8033
        %v8744 = vunpack.c.l.b16 %v8034
        %v8745 = vunpack.c.h.b16 %v8034
        %v8746 = vunpack.c.l.b16 %v8035
        %v8747 = vunpack.c.h.b16 %v8035
        %v8748 = vunpack.c.l.b16 %v8036
        %v8749 = vunpack.c.h.b16 %v8036
        %v8750 = vunpack.c.l.b16 %v8037
        %v8751 = vunpack.c.h.b16 %v8037
        %v8752 = vunpack.c.l.b16 %v8038
        %v8753 = vunpack.c.h.b16 %v8038
        %v8754 = vunpack.c.l.b16 %v8039
        %v8755 = vunpack.c.h.b16 %v8039
        %v8756 = vunpack.c.l.b16 %v8040
        %v8757 = vunpack.c.h.b16 %v8040
        %v8758 = vunpack.c.l.b16 %v8041
        %v8759 = vunpack.c.h.b16 %v8041
        %v8760 = vunpack.c.l.b16 %v8042
        %v8761 = vunpack.c.h.b16 %v8042
        %v8762 = vunpack.c.l.b16 %v8043
        %v8763 = vunpack.c.h.b16 %v8043
        %v8764 = vunpack.c.l.b16 %v8044
        %v8765 = vunpack.c.h.b16 %v8044
        %v8766 = vunpack.c.l.b16 %v8045
        %v8767 = vunpack.c.h.b16 %v8045
        %v8768 = vunpack.c.l.b16 %v8046
        %v8769 = vunpack.c.h.b16 %v8046
        %v8770 = vunpack.c.l.b16 %v8047
        %v8771 = vunpack.c.h.b16 %v8047
        %v8772 = vunpack.c.l.b16 %v8048
        %v8773 = vunpack.c.h.b16 %v8048
        %v8774 = vunpack.c.l.b16 %v8049
        %v8775 = vunpack.c.h.b16 %v8049
        %v8776 = vunpack.c.l.b16 %v8050
        %v8777 = vunpack.c.h.b16 %v8050
        %v8778 = vunpack.c.l.b16 %v8051
        %v8779 = vunpack.c.h.b16 %v8051
        %v8780 = vunpack.c.l.b16 %v8052
        %v8781 = vunpack.c.h.b16 %v8052
        %v8782 = vunpack.c.l.b16 %v8053
        %v8783 = vunpack.c.h.b16 %v8053
        %v8784 = vunpack.c.l.b16 %v8054
        %v8785 = vunpack.c.h.b16 %v8054
        %v8786 = vunpack.c.l.b16 %v8055
        %v8787 = vunpack.c.h.b16 %v8055
        %v8788 = vunpack.c.l.b16 %v8056
        %v8789 = vunpack.c.h.b16 %v8056
        %v8790 = vunpack.c.l.b16 %v8057
        %v8791 = vunpack.c.h.b16 %v8057
        %v8792 = vunpack.c.l.b16 %v8058
        %v8793 = vunpack.c.h.b16 %v8058
        %v8794 = vunpack.c.l.b16 %v8059
        %v8795 = vunpack.c.h.b16 %v8059
        %v8796 = vunpack.c.l.b16 %v8060
        %v8797 = vunpack.c.h.b16 %v8060
        %v8798 = vunpack.c.l.b16 %v8061
        %v8799 = vunpack.c.h.b16 %v8061
        %v8800 = vunpack.c.l.b16 %v8062
        %v8801 = vunpack.c.h.b16 %v8062
        %v8802 = vunpack.c.l.b16 %v8063
        %v8803 = vunpack.c.h.b16 %v8063
        %v8804 = vunpack.c.l.b16 %v8064
        %v8805 = vunpack.c.h.b16 %v8064
        %v8806 = vunpack.c.l.b16 %v8065
        %v8807 = vunpack.c.h.b16 %v8065
        %v8808 = vunpack.c.l.b16 %v8066
        %v8809 = vunpack.c.h.b16 %v8066
        %v8810 = vunpack.c.l.b16 %v8067
        %v8811 = vunpack.c.h.b16 %v8067
        %v8812 = vunpack.c.l.b16 %v8068
        %v8813 = vunpack.c.h.b16 %v8068
        %v8814 = vunpack.c.l.b16 %v8069
        %v8815 = vunpack.c.h.b16 %v8069
        %v8816 = vunpack.c.l.b16 %v8070
        %v8817 = vunpack.c.h.b16 %v8070
        %v8818 = vunpack.c.l.b16 %v8071
        %v8819 = vunpack.c.h.b16 %v8071
        %v8820 = vunpack.c.l.b16 %v8072
        %v8821 = vunpack.c.h.b16 %v8072
        %v8822 = vunpack.c.l.b16 %v8073
        %v8823 = vunpack.c.h.b16 %v8073
        %v8824 = vunpack.c.l.b16 %v8074
        %v8825 = vunpack.c.h.b16 %v8074
        %v8826 = vunpack.c.l.b16 %v8075
        %v8827 = vunpack.c.h.b16 %v8075
        %v8828 = vunpack.c.l.b16 %v8076
        %v8829 = vunpack.c.h.b16 %v8076
        %v8830 = vunpack.c.l.b16 %v8077
        %v8831 = vunpack.c.h.b16 %v8077
        %v8832 = vunpack.c.l.b16 %v8078
        %v8833 = vunpack.c.h.b16 %v8078
        %v8834 = vunpack.c.l.b16 %v8079
        %v8835 = vunpack.c.h.b16 %v8079
        %v8836 = vunpack.c.l.b16 %v8080
        %v8837 = vunpack.c.h.b16 %v8080
        %v8838 = vunpack.c.l.b16 %v8081
        %v8839 = vunpack.c.h.b16 %v8081
        %v8840 = vunpack.c.l.b16 %v8082
        %v8841 = vunpack.c.h.b16 %v8082
        %v8842 = vunpack.c.l.b16 %v8083
        %v8843 = vunpack.c.h.b16 %v8083
        %v8844 = vunpack.c.l.b16 %v8084
        %v8845 = vunpack.c.h.b16 %v8084
        %v8846 = vunpack.c.l.b16 %v8085
        %v8847 = vunpack.c.h.b16 %v8085
        %v8848 = vunpack.c.l.b16 %v8086
        %v8849 = vunpack.c.h.b16 %v8086
        %v8850 = vunpack.c.l.b16 %v8087
        %v8851 = vunpack.c.h.b16 %v8087
        %v8852 = vunpack.c.l.b16 %v8088
        %v8853 = vunpack.c.h.b16 %v8088
        %v8854 = vunpack.c.l.b16 %v8089
        %v8855 = vunpack.c.h.b16 %v8089
        %v8856 = vunpack.c.l.b16 %v8090
        %v8857 = vunpack.c.h.b16 %v8090
        %v8858 = vunpack.c.l.b16 %v8091
        %v8859 = vunpack.c.h.b16 %v8091
        %v8860 = vpack.c.b16 %v8352, %v8348
        %v8861 = vpack.c.b16 %v8353, %v8349
        %v8862 = vpack.c.b16 %v8354, %v8350
        %v8863 = vpack.c.b16 %v8355, %v8351
        %v8864 = vpack.c.b16 %v8360, %v8356
        %v8865 = vpack.c.b16 %v8361, %v8357
        %v8866 = vpack.c.b16 %v8362, %v8358
        %v8867 = vpack.c.b16 %v8363, %v8359
        %v8868 = vpack.c.b16 %v8368, %v8364
        %v8869 = vpack.c.b16 %v8369, %v8365
        %v8870 = vpack.c.b16 %v8370, %v8366
        %v8871 = vpack.c.b16 %v8371, %v8367
        %v8872 = vpack.c.b16 %v8376, %v8372
        %v8873 = vpack.c.b16 %v8377, %v8373
        %v8874 = vpack.c.b16 %v8378, %v8374
        %v8875 = vpack.c.b16 %v8379, %v8375
        %v8876 = vpack.c.b16 %v8384, %v8380
        %v8877 = vpack.c.b16 %v8385, %v8381
        %v8878 = vpack.c.b16 %v8386, %v8382
        %v8879 = vpack.c.b16 %v8387, %v8383
        %v8880 = vpack.c.b16 %v8392, %v8388
        %v8881 = vpack.c.b16 %v8393, %v8389
        %v8882 = vpack.c.b16 %v8394, %v8390
        %v8883 = vpack.c.b16 %v8395, %v8391
        %v8884 = vpack.c.b16 %v8400, %v8396
        %v8885 = vpack.c.b16 %v8401, %v8397
        %v8886 = vpack.c.b16 %v8402, %v8398
        %v8887 = vpack.c.b16 %v8403, %v8399
        %v8888 = vpack.c.b16 %v8408, %v8404
        %v8889 = vpack.c.b16 %v8409, %v8405
        %v8890 = vpack.c.b16 %v8410, %v8406
        %v8891 = vpack.c.b16 %v8411, %v8407
        %v8892 = vpack.c.b16 %v8416, %v8412
        %v8893 = vpack.c.b16 %v8417, %v8413
        %v8894 = vpack.c.b16 %v8418, %v8414
        %v8895 = vpack.c.b16 %v8419, %v8415
        %v8896 = vpack.c.b16 %v8424, %v8420
        %v8897 = vpack.c.b16 %v8425, %v8421
        %v8898 = vpack.c.b16 %v8426, %v8422
        %v8899 = vpack.c.b16 %v8427, %v8423
        %v8900 = vpack.c.b16 %v8432, %v8428
        %v8901 = vpack.c.b16 %v8433, %v8429
        %v8902 = vpack.c.b16 %v8434, %v8430
        %v8903 = vpack.c.b16 %v8435, %v8431
        %v8904 = vpack.c.b16 %v8440, %v8436
        %v8905 = vpack.c.b16 %v8441, %v8437
        %v8906 = vpack.c.b16 %v8442, %v8438
        %v8907 = vpack.c.b16 %v8443, %v8439
        %v8908 = vpack.c.b16 %v8448, %v8444
        %v8909 = vpack.c.b16 %v8449, %v8445
        %v8910 = vpack.c.b16 %v8450, %v8446
        %v8911 = vpack.c.b16 %v8451, %v8447
        %v8912 = vpack.c.b16 %v8456, %v8452
        %v8913 = vpack.c.b16 %v8457, %v8453
        %v8914 = vpack.c.b16 %v8458, %v8454
        %v8915 = vpack.c.b16 %v8459, %v8455
        %v8916 = vpack.c.b16 %v8464, %v8460
        %v8917 = vpack.c.b16 %v8465, %v8461
        %v8918 = vpack.c.b16 %v8466, %v8462
        %v8919 = vpack.c.b16 %v8467, %v8463
        %v8920 = vpack.c.b16 %v8472, %v8468
        %v8921 = vpack.c.b16 %v8473, %v8469
        %v8922 = vpack.c.b16 %v8474, %v8470
        %v8923 = vpack.c.b16 %v8475, %v8471
        %v8924 = vpack.c.b16 %v8480, %v8476
        %v8925 = vpack.c.b16 %v8481, %v8477
        %v8926 = vpack.c.b16 %v8482, %v8478
        %v8927 = vpack.c.b16 %v8483, %v8479
        %v8928 = vpack.c.b16 %v8488, %v8484
        %v8929 = vpack.c.b16 %v8489, %v8485
        %v8930 = vpack.c.b16 %v8490, %v8486
        %v8931 = vpack.c.b16 %v8491, %v8487
        %v8932 = vpack.c.b16 %v8496, %v8492
        %v8933 = vpack.c.b16 %v8497, %v8493
        %v8934 = vpack.c.b16 %v8498, %v8494
        %v8935 = vpack.c.b16 %v8499, %v8495
        %v8936 = vpack.c.b16 %v8504, %v8500
        %v8937 = vpack.c.b16 %v8505, %v8501
        %v8938 = vpack.c.b16 %v8506, %v8502
        %v8939 = vpack.c.b16 %v8507, %v8503
        %v8940 = vpack.c.b16 %v8512, %v8508
        %v8941 = vpack.c.b16 %v8513, %v8509
        %v8942 = vpack.c.b16 %v8514, %v8510
        %v8943 = vpack.c.b16 %v8515, %v8511
        %v8944 = vpack.c.b16 %v8520, %v8516
        %v8945 = vpack.c.b16 %v8521, %v8517
        %v8946 = vpack.c.b16 %v8522, %v8518
        %v8947 = vpack.c.b16 %v8523, %v8519
        %v8948 = vpack.c.b16 %v8528, %v8524
        %v8949 = vpack.c.b16 %v8529, %v8525
        %v8950 = vpack.c.b16 %v8530, %v8526
        %v8951 = vpack.c.b16 %v8531, %v8527
        %v8952 = vpack.c.b16 %v8536, %v8532
        %v8953 = vpack.c.b16 %v8537, %v8533
        %v8954 = vpack.c.b16 %v8538, %v8534
        %v8955 = vpack.c.b16 %v8539, %v8535
        %v8956 = vpack.c.b16 %v8544, %v8540
        %v8957 = vpack.c.b16 %v8545, %v8541
        %v8958 = vpack.c.b16 %v8546, %v8542
        %v8959 = vpack.c.b16 %v8547, %v8543
        %v8960 = vpack.c.b16 %v8552, %v8548
        %v8961 = vpack.c.b16 %v8553, %v8549
        %v8962 = vpack.c.b16 %v8554, %v8550
        %v8963 = vpack.c.b16 %v8555, %v8551
        %v8964 = vpack.c.b16 %v8560, %v8556
        %v8965 = vpack.c.b16 %v8561, %v8557
        %v8966 = vpack.c.b16 %v8562, %v8558
        %v8967 = vpack.c.b16 %v8563, %v8559
        %v8968 = vpack.c.b16 %v8568, %v8564
        %v8969 = vpack.c.b16 %v8569, %v8565
        %v8970 = vpack.c.b16 %v8570, %v8566
        %v8971 = vpack.c.b16 %v8571, %v8567
        %v8972 = vpack.c.b16 %v8576, %v8572
        %v8973 = vpack.c.b16 %v8577, %v8573
        %v8974 = vpack.c.b16 %v8578, %v8574
        %v8975 = vpack.c.b16 %v8579, %v8575
        %v8976 = vpack.c.b16 %v8584, %v8580
        %v8977 = vpack.c.b16 %v8585, %v8581
        %v8978 = vpack.c.b16 %v8586, %v8582
        %v8979 = vpack.c.b16 %v8587, %v8583
        %v8980 = vpack.c.b16 %v8592, %v8588
        %v8981 = vpack.c.b16 %v8593, %v8589
        %v8982 = vpack.c.b16 %v8594, %v8590
        %v8983 = vpack.c.b16 %v8595, %v8591
        %v8984 = vpack.c.b16 %v8600, %v8596
        %v8985 = vpack.c.b16 %v8601, %v8597
        %v8986 = vpack.c.b16 %v8602, %v8598
        %v8987 = vpack.c.b16 %v8603, %v8599
        %v8988 = vpack.c.b16 %v8608, %v8604
        %v8989 = vpack.c.b16 %v8609, %v8605
        %v8990 = vpack.c.b16 %v8610, %v8606
        %v8991 = vpack.c.b16 %v8611, %v8607
        %v8992 = vpack.c.b16 %v8616, %v8612
        %v8993 = vpack.c.b16 %v8617, %v8613
        %v8994 = vpack.c.b16 %v8618, %v8614
        %v8995 = vpack.c.b16 %v8619, %v8615
        %v8996 = vpack.c.b16 %v8624, %v8620
        %v8997 = vpack.c.b16 %v8625, %v8621
        %v8998 = vpack.c.b16 %v8626, %v8622
        %v8999 = vpack.c.b16 %v8627, %v8623
        %v9000 = vpack.c.b16 %v8632, %v8628
        %v9001 = vpack.c.b16 %v8633, %v8629
        %v9002 = vpack.c.b16 %v8634, %v8630
        %v9003 = vpack.c.b16 %v8635, %v8631
        %v9004 = vpack.c.b16 %v8640, %v8636
        %v9005 = vpack.c.b16 %v8641, %v8637
        %v9006 = vpack.c.b16 %v8642, %v8638
        %v9007 = vpack.c.b16 %v8643, %v8639
        %v9008 = vpack.c.b16 %v8648, %v8644
        %v9009 = vpack.c.b16 %v8649, %v8645
        %v9010 = vpack.c.b16 %v8650, %v8646
        %v9011 = vpack.c.b16 %v8651, %v8647
        %v9012 = vpack.c.b16 %v8656, %v8652
        %v9013 = vpack.c.b16 %v8657, %v8653
        %v9014 = vpack.c.b16 %v8658, %v8654
        %v9015 = vpack.c.b16 %v8659, %v8655
        %v9016 = vpack.c.b16 %v8664, %v8660
        %v9017 = vpack.c.b16 %v8665, %v8661
        %v9018 = vpack.c.b16 %v8666, %v8662
        %v9019 = vpack.c.b16 %v8667, %v8663
        %v9020 = vpack.c.b16 %v8672, %v8668
        %v9021 = vpack.c.b16 %v8673, %v8669
        %v9022 = vpack.c.b16 %v8674, %v8670
        %v9023 = vpack.c.b16 %v8675, %v8671
        %v9024 = vpack.c.b16 %v8680, %v8676
        %v9025 = vpack.c.b16 %v8681, %v8677
        %v9026 = vpack.c.b16 %v8682, %v8678
        %v9027 = vpack.c.b16 %v8683, %v8679
        %v9028 = vpack.c.b16 %v8688, %v8684
        %v9029 = vpack.c.b16 %v8689, %v8685
        %v9030 = vpack.c.b16 %v8690, %v8686
        %v9031 = vpack.c.b16 %v8691, %v8687
        %v9032 = vpack.c.b16 %v8696, %v8692
        %v9033 = vpack.c.b16 %v8697, %v8693
        %v9034 = vpack.c.b16 %v8698, %v8694
        %v9035 = vpack.c.b16 %v8699, %v8695
        %v9036 = vpack.c.b16 %v8704, %v8700
        %v9037 = vpack.c.b16 %v8705, %v8701
        %v9038 = vpack.c.b16 %v8706, %v8702
        %v9039 = vpack.c.b16 %v8707, %v8703
        %v9040 = vpack.c.b16 %v8712, %v8708
        %v9041 = vpack.c.b16 %v8713, %v8709
        %v9042 = vpack.c.b16 %v8714, %v8710
        %v9043 = vpack.c.b16 %v8715, %v8711
        %v9044 = vpack.c.b16 %v8720, %v8716
        %v9045 = vpack.c.b16 %v8721, %v8717
        %v9046 = vpack.c.b16 %v8722, %v8718
        %v9047 = vpack.c.b16 %v8723, %v8719
        %v9048 = vpack.c.b16 %v8728, %v8724
        %v9049 = vpack.c.b16 %v8729, %v8725
        %v9050 = vpack.c.b16 %v8730, %v8726
        %v9051 = vpack.c.b16 %v8731, %v8727
        %v9052 = vpack.c.b16 %v8736, %v8732
        %v9053 = vpack.c.b16 %v8737, %v8733
        %v9054 = vpack.c.b16 %v8738, %v8734
        %v9055 = vpack.c.b16 %v8739, %v8735
        %v9056 = vpack.c.b16 %v8744, %v8740
        %v9057 = vpack.c.b16 %v8745, %v8741
        %v9058 = vpack.c.b16 %v8746, %v8742
        %v9059 = vpack.c.b16 %v8747, %v8743
        %v9060 = vpack.c.b16 %v8752, %v8748
        %v9061 = vpack.c.b16 %v8753, %v8749
        %v9062 = vpack.c.b16 %v8754, %v8750
        %v9063 = vpack.c.b16 %v8755, %v8751
        %v9064 = vpack.c.b16 %v8760, %v8756
        %v9065 = vpack.c.b16 %v8761, %v8757
        %v9066 = vpack.c.b16 %v8762, %v8758
        %v9067 = vpack.c.b16 %v8763, %v8759
        %v9068 = vpack.c.b16 %v8768, %v8764
        %v9069 = vpack.c.b16 %v8769, %v8765
        %v9070 = vpack.c.b16 %v8770, %v8766
        %v9071 = vpack.c.b16 %v8771, %v8767
        %v9072 = vpack.c.b16 %v8776, %v8772
        %v9073 = vpack.c.b16 %v8777, %v8773
        %v9074 = vpack.c.b16 %v8778, %v8774
        %v9075 = vpack.c.b16 %v8779, %v8775
        %v9076 = vpack.c.b16 %v8784, %v8780
        %v9077 = vpack.c.b16 %v8785, %v8781
        %v9078 = vpack.c.b16 %v8786, %v8782
        %v9079 = vpack.c.b16 %v8787, %v8783
        %v9080 = vpack.c.b16 %v8792, %v8788
        %v9081 = vpack.c.b16 %v8793, %v8789
        %v9082 = vpack.c.b16 %v8794, %v8790
        %v9083 = vpack.c.b16 %v8795, %v8791
        %v9084 = vpack.c.b16 %v8800, %v8796
        %v9085 = vpack.c.b16 %v8801, %v8797
        %v9086 = vpack.c.b16 %v8802, %v8798
        %v9087 = vpack.c.b16 %v8803, %v8799
        %v9088 = vpack.c.b16 %v8808, %v8804
        %v9089 = vpack.c.b16 %v8809, %v8805
        %v9090 = vpack.c.b16 %v8810, %v8806
        %v9091 = vpack.c.b16 %v8811, %v8807
        %v9092 = vpack.c.b16 %v8816, %v8812
        %v9093 = vpack.c.b16 %v8817, %v8813
        %v9094 = vpack.c.b16 %v8818, %v8814
        %v9095 = vpack.c.b16 %v8819, %v8815
        %v9096 = vpack.c.b16 %v8824, %v8820
        %v9097 = vpack.c.b16 %v8825, %v8821
        %v9098 = vpack.c.b16 %v8826, %v8822
        %v9099 = vpack.c.b16 %v8827, %v8823
        %v9100 = vpack.c.b16 %v8832, %v8828
        %v9101 = vpack.c.b16 %v8833, %v8829
        %v9102 = vpack.c.b16 %v8834, %v8830
        %v9103 = vpack.c.b16 %v8835, %v8831
        %v9104 = vpack.c.b16 %v8840, %v8836
        %v9105 = vpack.c.b16 %v8841, %v8837
        %v9106 = vpack.c.b16 %v8842, %v8838
        %v9107 = vpack.c.b16 %v8843, %v8839
        %v9108 = vpack.c.b16 %v8848, %v8844
        %v9109 = vpack.c.b16 %v8849, %v8845
        %v9110 = vpack.c.b16 %v8850, %v8846
        %v9111 = vpack.c.b16 %v8851, %v8847
        %v9112 = vpack.c.b16 %v8856, %v8852
        %v9113 = vpack.c.b16 %v8857, %v8853
        %v9114 = vpack.c.b16 %v8858, %v8854
        %v9115 = vpack.c.b16 %v8859, %v8855
        %9372 = vmatprep.subr.bf16.mxu0 %v8889
        %9373 = vmatpush1.bf16.msra.mxu0 %v8888
        %9374 = vmatprep.subr.bf16.mxu0 %v8885
        %9375 = vmatpush1.bf16.msra.mxu0 %v8884
        %9376 = vmatprep.subr.bf16.mxu0 %v8881
        %9377 = vmatpush1.bf16.msra.mxu0 %v8880
        %9378 = vmatprep.subr.bf16.mxu0 %v8877
        %9379 = vmatpush1.bf16.msra.mxu0 %v8876
        %9380 = vmatprep.subr.bf16.mxu0 %v8873
        %9381 = vmatpush1.bf16.msra.mxu0 %v8872
        %9382 = vmatprep.subr.bf16.mxu0 %v8869
        %9383 = vmatpush1.bf16.msra.mxu0 %v8868
        %9384 = vmatprep.subr.bf16.mxu0 %v8865
        %9385 = vmatpush1.bf16.msra.mxu0 %v8864
        %9386 = vmatprep.subr.bf16.mxu0 %v8861
        %9387 = vmatpush1.bf16.msra.mxu0 %v8860
        %9388 = vmatprep.subr.bf16.mxu0 %v8921
        %9389 = vmatpush2.bf16.msra.mxu0 %v8920
        %9390 = vmatprep.subr.bf16.mxu0 %v8917
        %9391 = vmatpush2.bf16.msra.mxu0 %v8916
        %9392 = vmatprep.subr.bf16.mxu0 %v8913
        %9393 = vmatpush2.bf16.msra.mxu0 %v8912
        %9394 = vmatprep.subr.bf16.mxu0 %v8909
        %9395 = vmatpush2.bf16.msra.mxu0 %v8908
        %9396 = vmatprep.subr.bf16.mxu0 %v8905
        %9397 = vmatpush2.bf16.msra.mxu0 %v8904
        %9398 = vmatprep.subr.bf16.mxu0 %v8901
        %9399 = vmatpush2.bf16.msra.mxu0 %v8900
        %9400 = vmatprep.subr.bf16.mxu0 %v8897
        %9401 = vmatpush2.bf16.msra.mxu0 %v8896
        %9402 = vmatprep.subr.bf16.mxu0 %v8893
        %9403 = vmatpush2.bf16.msra.mxu0 %v8892
        %9404 = vmatprep.mubr.bf16.mxu0 %v7829
        %9405 = vmatmul.mubr.bf16.gmra.mxu0 %v7828
        %v9406 = vpop.f32.mrf.mxu0
        %v9407 = vadd.f32 0.0, %v9406
        %v9408 = vpop.f32.mrf.mxu0
        %v9409 = vadd.f32 0.0, %v9408
        %v9410 = vpop.f32.mrf.mxu0
        %v9411 = vpop.f32.mrf.mxu0
        %9412 = vdwg.mxu0
        %9413 = vmatprep.subr.bf16.mxu0 %v8953
        %9414 = vmatpush1.bf16.msra.mxu0 %v8952
        %9415 = vmatprep.subr.bf16.mxu0 %v8949
        %9416 = vmatpush1.bf16.msra.mxu0 %v8948
        %9417 = vmatprep.subr.bf16.mxu0 %v8945
        %9418 = vmatpush1.bf16.msra.mxu0 %v8944
        %9419 = vmatprep.subr.bf16.mxu0 %v8941
        %9420 = vmatpush1.bf16.msra.mxu0 %v8940
        %9421 = vmatprep.subr.bf16.mxu0 %v8937
        %9422 = vmatpush1.bf16.msra.mxu0 %v8936
        %9423 = vmatprep.subr.bf16.mxu0 %v8933
        %9424 = vmatpush1.bf16.msra.mxu0 %v8932
        %9425 = vmatprep.subr.bf16.mxu0 %v8929
        %9426 = vmatpush1.bf16.msra.mxu0 %v8928
        %9427 = vmatprep.subr.bf16.mxu0 %v8925
        %9428 = vmatpush1.bf16.msra.mxu0 %v8924
        %9429 = vmatprep.subr.bf16.mxu0 %v8985
        %9430 = vmatpush2.bf16.msra.mxu0 %v8984
        %9431 = vmatprep.subr.bf16.mxu0 %v8981
        %9432 = vmatpush2.bf16.msra.mxu0 %v8980
        %9433 = vmatprep.subr.bf16.mxu0 %v8977
        %9434 = vmatpush2.bf16.msra.mxu0 %v8976
        %9435 = vmatprep.subr.bf16.mxu0 %v8973
        %9436 = vmatpush2.bf16.msra.mxu0 %v8972
        %9437 = vmatprep.subr.bf16.mxu0 %v8969
        %9438 = vmatpush2.bf16.msra.mxu0 %v8968
        %9439 = vmatprep.subr.bf16.mxu0 %v8965
        %9440 = vmatpush2.bf16.msra.mxu0 %v8964
        %9441 = vmatprep.subr.bf16.mxu0 %v8961
        %9442 = vmatpush2.bf16.msra.mxu0 %v8960
        %9443 = vmatprep.subr.bf16.mxu0 %v8957
        %9444 = vmatpush2.bf16.msra.mxu0 %v8956
        %9445 = vmatprep.mubr.bf16.mxu0 %v7831
        %9446 = vmatmul.mubr.bf16.gmra.mxu0 %v7830
        %v9447 = vpop.f32.mrf.mxu0
        %v9448 = vadd.f32 %v9407, %v9447
        %v9449 = vpop.f32.mrf.mxu0
        %v9450 = vadd.f32 %v9409, %v9449
        %v9451 = vpop.f32.mrf.mxu0
        %v9452 = vpop.f32.mrf.mxu0
        %9453 = vdwg.mxu0
        %9454 = vmatprep.subr.bf16.mxu0 %v9017
        %9455 = vmatpush1.bf16.msra.mxu0 %v9016
        %9456 = vmatprep.subr.bf16.mxu0 %v9013
        %9457 = vmatpush1.bf16.msra.mxu0 %v9012
        %9458 = vmatprep.subr.bf16.mxu0 %v9009
        %9459 = vmatpush1.bf16.msra.mxu0 %v9008
        %9460 = vmatprep.subr.bf16.mxu0 %v9005
        %9461 = vmatpush1.bf16.msra.mxu0 %v9004
        %9462 = vmatprep.subr.bf16.mxu0 %v9001
        %9463 = vmatpush1.bf16.msra.mxu0 %v9000
        %9464 = vmatprep.subr.bf16.mxu0 %v8997
        %9465 = vmatpush1.bf16.msra.mxu0 %v8996
        %9466 = vmatprep.subr.bf16.mxu0 %v8993
        %9467 = vmatpush1.bf16.msra.mxu0 %v8992
        %9468 = vmatprep.subr.bf16.mxu0 %v8989
        %9469 = vmatpush1.bf16.msra.mxu0 %v8988
        %9470 = vmatprep.subr.bf16.mxu0 %v9049
        %9471 = vmatpush2.bf16.msra.mxu0 %v9048
        %9472 = vmatprep.subr.bf16.mxu0 %v9045
        %9473 = vmatpush2.bf16.msra.mxu0 %v9044
        %9474 = vmatprep.subr.bf16.mxu0 %v9041
        %9475 = vmatpush2.bf16.msra.mxu0 %v9040
        %9476 = vmatprep.subr.bf16.mxu0 %v9037
        %9477 = vmatpush2.bf16.msra.mxu0 %v9036
        %9478 = vmatprep.subr.bf16.mxu0 %v9033
        %9479 = vmatpush2.bf16.msra.mxu0 %v9032
        %9480 = vmatprep.subr.bf16.mxu0 %v9029
        %9481 = vmatpush2.bf16.msra.mxu0 %v9028
        %9482 = vmatprep.subr.bf16.mxu0 %v9025
        %9483 = vmatpush2.bf16.msra.mxu0 %v9024
        %9484 = vmatprep.subr.bf16.mxu0 %v9021
        %9485 = vmatpush2.bf16.msra.mxu0 %v9020
        %9486 = vmatprep.mubr.bf16.mxu0 %v7833
        %9487 = vmatmul.mubr.bf16.gmra.mxu0 %v7832
        %v9488 = vpop.f32.mrf.mxu0
        %v9489 = vadd.f32 %v9448, %v9488
        %v9490 = vpop.f32.mrf.mxu0
        %v9491 = vadd.f32 %v9450, %v9490
        %v9492 = vpop.f32.mrf.mxu0
        %v9493 = vpop.f32.mrf.mxu0
        %9494 = vdwg.mxu0
        %9495 = vmatprep.subr.bf16.mxu0 %v9081
        %9496 = vmatpush1.bf16.msra.mxu0 %v9080
        %9497 = vmatprep.subr.bf16.mxu0 %v9077
        %9498 = vmatpush1.bf16.msra.mxu0 %v9076
        %9499 = vmatprep.subr.bf16.mxu0 %v9073
        %9500 = vmatpush1.bf16.msra.mxu0 %v9072
        %9501 = vmatprep.subr.bf16.mxu0 %v9069
        %9502 = vmatpush1.bf16.msra.mxu0 %v9068
        %9503 = vmatprep.subr.bf16.mxu0 %v9065
        %9504 = vmatpush1.bf16.msra.mxu0 %v9064
        %9505 = vmatprep.subr.bf16.mxu0 %v9061
        %9506 = vmatpush1.bf16.msra.mxu0 %v9060
        %9507 = vmatprep.subr.bf16.mxu0 %v9057
        %9508 = vmatpush1.bf16.msra.mxu0 %v9056
        %9509 = vmatprep.subr.bf16.mxu0 %v9053
        %9510 = vmatpush1.bf16.msra.mxu0 %v9052
        %9511 = vmatprep.subr.bf16.mxu0 %v9113
        %9512 = vmatpush2.bf16.msra.mxu0 %v9112
        %9513 = vmatprep.subr.bf16.mxu0 %v9109
        %9514 = vmatpush2.bf16.msra.mxu0 %v9108
        %9515 = vmatprep.subr.bf16.mxu0 %v9105
        %9516 = vmatpush2.bf16.msra.mxu0 %v9104
        %9517 = vmatprep.subr.bf16.mxu0 %v9101
        %9518 = vmatpush2.bf16.msra.mxu0 %v9100
        %9519 = vmatprep.subr.bf16.mxu0 %v9097
        %9520 = vmatpush2.bf16.msra.mxu0 %v9096
        %9521 = vmatprep.subr.bf16.mxu0 %v9093
        %9522 = vmatpush2.bf16.msra.mxu0 %v9092
        %9523 = vmatprep.subr.bf16.mxu0 %v9089
        %9524 = vmatpush2.bf16.msra.mxu0 %v9088
        %9525 = vmatprep.subr.bf16.mxu0 %v9085
        %9526 = vmatpush2.bf16.msra.mxu0 %v9084
        %9527 = vmatprep.mubr.bf16.mxu0 %v7835
        %9528 = vmatmul.mubr.bf16.gmra.mxu0 %v7834
        %v9529 = vpop.f32.mrf.mxu0
        %v9530 = vadd.f32 %v9489, %v9529
        %v9531 = vpop.f32.mrf.mxu0
        %v9532 = vadd.f32 %v9491, %v9531
        %v9533 = vpop.f32.mrf.mxu0
        %v9534 = vpop.f32.mrf.mxu0
        %9535 = vdwg.mxu0
        %9536 = vmatprep.subr.bf16.mxu0 %v8891
        %9537 = vmatpush1.bf16.msra.mxu0 %v8890
        %9538 = vmatprep.subr.bf16.mxu0 %v8887
        %9539 = vmatpush1.bf16.msra.mxu0 %v8886
        %9540 = vmatprep.subr.bf16.mxu0 %v8883
        %9541 = vmatpush1.bf16.msra.mxu0 %v8882
        %9542 = vmatprep.subr.bf16.mxu0 %v8879
        %9543 = vmatpush1.bf16.msra.mxu0 %v8878
        %9544 = vmatprep.subr.bf16.mxu0 %v8875
        %9545 = vmatpush1.bf16.msra.mxu0 %v8874
        %9546 = vmatprep.subr.bf16.mxu0 %v8871
        %9547 = vmatpush1.bf16.msra.mxu0 %v8870
        %9548 = vmatprep.subr.bf16.mxu0 %v8867
        %9549 = vmatpush1.bf16.msra.mxu0 %v8866
        %9550 = vmatprep.subr.bf16.mxu0 %v8863
        %9551 = vmatpush1.bf16.msra.mxu0 %v8862
        %9552 = vmatprep.subr.bf16.mxu0 %v8923
        %9553 = vmatpush2.bf16.msra.mxu0 %v8922
        %9554 = vmatprep.subr.bf16.mxu0 %v8919
        %9555 = vmatpush2.bf16.msra.mxu0 %v8918
        %9556 = vmatprep.subr.bf16.mxu0 %v8915
        %9557 = vmatpush2.bf16.msra.mxu0 %v8914
        %9558 = vmatprep.subr.bf16.mxu0 %v8911
        %9559 = vmatpush2.bf16.msra.mxu0 %v8910
        %9560 = vmatprep.subr.bf16.mxu0 %v8907
        %9561 = vmatpush2.bf16.msra.mxu0 %v8906
        %9562 = vmatprep.subr.bf16.mxu0 %v8903
        %9563 = vmatpush2.bf16.msra.mxu0 %v8902
        %9564 = vmatprep.subr.bf16.mxu0 %v8899
        %9565 = vmatpush2.bf16.msra.mxu0 %v8898
        %9566 = vmatprep.subr.bf16.mxu0 %v8895
        %9567 = vmatpush2.bf16.msra.mxu0 %v8894
        %9568 = vmatprep.mubr.bf16.mxu0 %v7829
        %9569 = vmatmul.mubr.bf16.gmra.mxu0 %v7828
        %v9570 = vpop.f32.mrf.mxu0
        %v9571 = vadd.f32 0.0, %v9570
        %v9572 = vpop.f32.mrf.mxu0
        %v9573 = vadd.f32 0.0, %v9572
        %v9574 = vpop.f32.mrf.mxu0
        %v9575 = vpop.f32.mrf.mxu0
        %9576 = vdwg.mxu0
        %9577 = vmatprep.subr.bf16.mxu0 %v8955
        %9578 = vmatpush1.bf16.msra.mxu0 %v8954
        %9579 = vmatprep.subr.bf16.mxu0 %v8951
        %9580 = vmatpush1.bf16.msra.mxu0 %v8950
        %9581 = vmatprep.subr.bf16.mxu0 %v8947
        %9582 = vmatpush1.bf16.msra.mxu0 %v8946
        %9583 = vmatprep.subr.bf16.mxu0 %v8943
        %9584 = vmatpush1.bf16.msra.mxu0 %v8942
        %9585 = vmatprep.subr.bf16.mxu0 %v8939
        %9586 = vmatpush1.bf16.msra.mxu0 %v8938
        %9587 = vmatprep.subr.bf16.mxu0 %v8935
        %9588 = vmatpush1.bf16.msra.mxu0 %v8934
        %9589 = vmatprep.subr.bf16.mxu0 %v8931
        %9590 = vmatpush1.bf16.msra.mxu0 %v8930
        %9591 = vmatprep.subr.bf16.mxu0 %v8927
        %9592 = vmatpush1.bf16.msra.mxu0 %v8926
        %9593 = vmatprep.subr.bf16.mxu0 %v8987
        %9594 = vmatpush2.bf16.msra.mxu0 %v8986
        %9595 = vmatprep.subr.bf16.mxu0 %v8983
        %9596 = vmatpush2.bf16.msra.mxu0 %v8982
        %9597 = vmatprep.subr.bf16.mxu0 %v8979
        %9598 = vmatpush2.bf16.msra.mxu0 %v8978
        %9599 = vmatprep.subr.bf16.mxu0 %v8975
        %9600 = vmatpush2.bf16.msra.mxu0 %v8974
        %9601 = vmatprep.subr.bf16.mxu0 %v8971
        %9602 = vmatpush2.bf16.msra.mxu0 %v8970
        %9603 = vmatprep.subr.bf16.mxu0 %v8967
        %9604 = vmatpush2.bf16.msra.mxu0 %v8966
        %9605 = vmatprep.subr.bf16.mxu0 %v8963
        %9606 = vmatpush2.bf16.msra.mxu0 %v8962
        %9607 = vmatprep.subr.bf16.mxu0 %v8959
        %9608 = vmatpush2.bf16.msra.mxu0 %v8958
        %9609 = vmatprep.mubr.bf16.mxu0 %v7831
        %9610 = vmatmul.mubr.bf16.gmra.mxu0 %v7830
        %v9611 = vpop.f32.mrf.mxu0
        %v9612 = vadd.f32 %v9571, %v9611
        %v9613 = vpop.f32.mrf.mxu0
        %v9614 = vadd.f32 %v9573, %v9613
        %v9615 = vpop.f32.mrf.mxu0
        %v9616 = vpop.f32.mrf.mxu0
        %9617 = vdwg.mxu0
        %9618 = vmatprep.subr.bf16.mxu0 %v9019
        %9619 = vmatpush1.bf16.msra.mxu0 %v9018
        %9620 = vmatprep.subr.bf16.mxu0 %v9015
        %9621 = vmatpush1.bf16.msra.mxu0 %v9014
        %9622 = vmatprep.subr.bf16.mxu0 %v9011
        %9623 = vmatpush1.bf16.msra.mxu0 %v9010
        %9624 = vmatprep.subr.bf16.mxu0 %v9007
        %9625 = vmatpush1.bf16.msra.mxu0 %v9006
        %9626 = vmatprep.subr.bf16.mxu0 %v9003
        %9627 = vmatpush1.bf16.msra.mxu0 %v9002
        %9628 = vmatprep.subr.bf16.mxu0 %v8999
        %9629 = vmatpush1.bf16.msra.mxu0 %v8998
        %9630 = vmatprep.subr.bf16.mxu0 %v8995
        %9631 = vmatpush1.bf16.msra.mxu0 %v8994
        %9632 = vmatprep.subr.bf16.mxu0 %v8991
        %9633 = vmatpush1.bf16.msra.mxu0 %v8990
        %9634 = vmatprep.subr.bf16.mxu0 %v9051
        %9635 = vmatpush2.bf16.msra.mxu0 %v9050
        %9636 = vmatprep.subr.bf16.mxu0 %v9047
        %9637 = vmatpush2.bf16.msra.mxu0 %v9046
        %9638 = vmatprep.subr.bf16.mxu0 %v9043
        %9639 = vmatpush2.bf16.msra.mxu0 %v9042
        %9640 = vmatprep.subr.bf16.mxu0 %v9039
        %9641 = vmatpush2.bf16.msra.mxu0 %v9038
        %9642 = vmatprep.subr.bf16.mxu0 %v9035
        %9643 = vmatpush2.bf16.msra.mxu0 %v9034
        %9644 = vmatprep.subr.bf16.mxu0 %v9031
        %9645 = vmatpush2.bf16.msra.mxu0 %v9030
        %9646 = vmatprep.subr.bf16.mxu0 %v9027
        %9647 = vmatpush2.bf16.msra.mxu0 %v9026
        %9648 = vmatprep.subr.bf16.mxu0 %v9023
        %9649 = vmatpush2.bf16.msra.mxu0 %v9022
        %9650 = vmatprep.mubr.bf16.mxu0 %v7833
        %9651 = vmatmul.mubr.bf16.gmra.mxu0 %v7832
        %v9652 = vpop.f32.mrf.mxu0
        %v9653 = vadd.f32 %v9612, %v9652
        %v9654 = vpop.f32.mrf.mxu0
        %v9655 = vadd.f32 %v9614, %v9654
        %v9656 = vpop.f32.mrf.mxu0
        %v9657 = vpop.f32.mrf.mxu0
        %9658 = vdwg.mxu0
        %9659 = vmatprep.subr.bf16.mxu0 %v9083
        %9660 = vmatpush1.bf16.msra.mxu0 %v9082
        %9661 = vmatprep.subr.bf16.mxu0 %v9079
        %9662 = vmatpush1.bf16.msra.mxu0 %v9078
        %9663 = vmatprep.subr.bf16.mxu0 %v9075
        %9664 = vmatpush1.bf16.msra.mxu0 %v9074
        %9665 = vmatprep.subr.bf16.mxu0 %v9071
        %9666 = vmatpush1.bf16.msra.mxu0 %v9070
        %9667 = vmatprep.subr.bf16.mxu0 %v9067
        %9668 = vmatpush1.bf16.msra.mxu0 %v9066
        %9669 = vmatprep.subr.bf16.mxu0 %v9063
        %9670 = vmatpush1.bf16.msra.mxu0 %v9062
        %9671 = vmatprep.subr.bf16.mxu0 %v9059
        %9672 = vmatpush1.bf16.msra.mxu0 %v9058
        %9673 = vmatprep.subr.bf16.mxu0 %v9055
        %9674 = vmatpush1.bf16.msra.mxu0 %v9054
        %9675 = vmatprep.subr.bf16.mxu0 %v9115
        %9676 = vmatpush2.bf16.msra.mxu0 %v9114
        %9677 = vmatprep.subr.bf16.mxu0 %v9111
        %9678 = vmatpush2.bf16.msra.mxu0 %v9110
        %9679 = vmatprep.subr.bf16.mxu0 %v9107
        %9680 = vmatpush2.bf16.msra.mxu0 %v9106
        %9681 = vmatprep.subr.bf16.mxu0 %v9103
        %9682 = vmatpush2.bf16.msra.mxu0 %v9102
        %9683 = vmatprep.subr.bf16.mxu0 %v9099
        %9684 = vmatpush2.bf16.msra.mxu0 %v9098
        %9685 = vmatprep.subr.bf16.mxu0 %v9095
        %9686 = vmatpush2.bf16.msra.mxu0 %v9094
        %9687 = vmatprep.subr.bf16.mxu0 %v9091
        %9688 = vmatpush2.bf16.msra.mxu0 %v9090
        %9689 = vmatprep.subr.bf16.mxu0 %v9087
        %9690 = vmatpush2.bf16.msra.mxu0 %v9086
        %9691 = vmatprep.mubr.bf16.mxu0 %v7835
        %9692 = vmatmul.mubr.bf16.gmra.mxu0 %v7834
        %v9693 = vpop.f32.mrf.mxu0
        %v9694 = vadd.f32 %v9653, %v9693
        %v9695 = vpop.f32.mrf.mxu0
        %v9696 = vadd.f32 %v9655, %v9695
        %v9697 = vpop.f32.mrf.mxu0
        %v9698 = vpop.f32.mrf.mxu0
        %9699 = vdwg.mxu0
        %v9700 = vadd.f32 %v3995, %v9530
        %v9701 = vadd.f32 %v3996, %v9532
        %v9702 = vadd.f32 %v3997, %v9694
        %v9703 = vadd.f32 %v3998, %v9696
        %v9704 = vpack.c.bf16 %v9700, %v9700
        %v9705 = vpack.c.bf16 %v9701, %v9701
        %v9706 = vpack.c.bf16 %v9702, %v9702
        %v9707 = vpack.c.bf16 %v9703, %v9703
        %v9712 = vunpack.c.l.b16 %v9704
        %v9713 = vunpack.c.l.b16 %v9705
        %v9714 = vunpack.c.l.b16 %v9706
        %v9715 = vunpack.c.l.b16 %v9707
        %v9716 = vpack.c.b16 %v9713, %v9712
        %v9717 = vpack.c.b16 %v9715, %v9714
        %9720 = vst [vmem:[%s558] sm:$0xff] %v9716
        %9721 = vst [vmem:[%s558 + $0x8] sm:$0xff] %v9717
        %s9722 = sand.u32 %s293, 1
        %s9723 = scalar_lea.sflag [#allocation4], %s9722
        %s9724 = sand.u32 %s293, 1
        %s9725 = smul.addr %s9724, 16
        %s9726 = scalar_lea.vmem [#allocation22], %s9725
        // Predicated region
        $region117: #{tpu_custom_call.1} parent=67 // pred_check
          %p9727 = pneg %p303
        $region118: #{tpu_custom_call.1} parent=67 // pred_check_branch
          %9729 = sbr.rel (%p9727) target = $region120
        $region119: #{tpu_custom_call.1} parent=67 // pred_region
          %s9731 = ssub.s32 256, 256
          %9732 = vsyncadd %s9723, %s9731
          %s9733 = smul.addr %s33, 4
          %s9734 = smul.addr %s9733, 64
          %s9735 = scalar_lea.hbm %s12, %s9734
          %s9737 = sshll.u32 %s9726, 4
          %s9738 = int_to_ptr.vmem [resolvable:$true] %s9737
          %9740 = dma.vmem_to_hbm [thread:$0]  %s9738, 256, %s9735, %s9723
        $region120: #{tpu_custom_call.1} parent=67 // pred_fallthru
          _
      $region68: #{tpu_custom_call.1} parent=5 // pred_fallthru
        _
      %p9741 = scmp.le.s32.totalorder 2, %s28
      // Predicated region
      $region121: #{tpu_custom_call.1} parent=5 // pred_check
        %p9742 = pneg %p9741
      $region122: #{tpu_custom_call.1} parent=5 // pred_check_branch
        %9744 = sbr.rel (%p9742) target = $region124
      $region123: #{tpu_custom_call.1} parent=5 // pred_region
        %s9745 = ssub.s32 %s28, 2
        // Predicated region
        $region125: #{tpu_custom_call.1} parent=123 // pred_check
          %p9746 = pneg %p309
        $region126: #{tpu_custom_call.1} parent=123 // pred_check_branch
          %9748 = sbr.rel (%p9746) target = $region128
        $region127: #{tpu_custom_call.1} parent=123 // pred_region
          %s9749 = sand.u32 %s294, 1
          %s9750 = scalar_lea.sflag [#allocation4], %s9749
          %s9751 = sand.u32 %s294, 1
          %s9752 = smul.addr %s9751, 16
          %s9753 = scalar_lea.vmem [#allocation22], %s9752
          %9754 = dma.done %s9750, 256
        $region128: #{tpu_custom_call.1} parent=123 // pred_fallthru
          _
      $region124: #{tpu_custom_call.1} parent=5 // pred_fallthru
        _
    $region6: #{tpu_custom_call.1} parent=1 // loop_footer
      %s32 = sadd.s32 1, %s28
    $region7: #{tpu_custom_call.1} parent=1 // loop_footer_branch
      %27 = sbr.rel target = $region3
    $region8: #{tpu_custom_call.1} parent=1 // loop_exit
      _
    %9755 = vsyncpa [#allocation3], 1
    %s9756 = scalar_lea.sflag [#allocation3], 1
    %9757 = vsyncpa %s9756, 1
    %9758 = vsyncpa [#allocation6], 1
    %9759 = vsyncpa [#allocation9], 1
    %9760 = vsyncpa [#allocation12], 1
    %9761 = vsyncpa [#allocation15], 1
    %9762 = vsyncpa [#allocation18], 1
    %9763 = vsyncpa [#allocation21], 1
    %9764 = vsyncpa [#allocation4], 1
    %s9765 = scalar_lea.sflag [#allocation4], 1
    %9766 = vsyncpa %s9765, 1

</llo_original>
